<compile_context>
chip_gen: v6e
topology: v6e:2x2x1
jax: 0.10.0
libtpu: 0.0.40
codegen_flags: <defaults>
</compile_context>

<pallas_src>
import jax
import jax.numpy as jnp
from jax import lax
from jax.experimental import pallas as pl
from jax.experimental.pallas import tpu as pltpu

VMEM_SPEC = pl.BlockSpec(memory_space=pltpu.MemorySpace.VMEM)


# ------------------------------ helpers -------------------------------------

def _round_up(n, m):
    return ((n + m - 1) // m) * m


def _pick_tile(n, cap, multiple=1):
    """Largest divisor of n that is <= cap and a multiple of `multiple` (>=1)."""
    cap = max(1, min(cap, n))
    for t in range(cap, 0, -1):
        if n % t == 0 and t % multiple == 0:
            return t
    return 1


def _pad_gate_cols(a, h, hp):
    """Pad the trailing 4*h gate axis to 4*hp, zero-padding each gate block."""
    if hp == h:
        return a
    lead = a.shape[:-1]
    a = a.reshape(lead + (4, h))
    a = jnp.pad(a, [(0, 0)] * len(lead) + [(0, 0), (0, hp - h)])
    return a.reshape(lead + (4 * hp,))


def _cparams(bytes_estimate, semantics=None):
    # Clamp below v7x's 64 MiB physical VMEM; 48 MiB leaves Mosaic headroom.
    limit = int(min(max(2 * bytes_estimate, 8 << 20), 48 << 20))
    return pltpu.CompilerParams(dimension_semantics=semantics,
                                vmem_limit_bytes=limit)


# ------------------------------ kernels --------------------------------------

def _spk_bias_kernel(onehot_ref, table_ref, p1w_ref, p1b_ref, p2w_ref, p2b_ref,
                     wf1_ref, wb1_ref, bf1_ref, bb1_ref,
                     wf2_ref, wb2_ref, bf2_ref, bb2_ref,
                     o1f_ref, o1b_ref, o2f_ref, o2b_ref):
    # Embedding lookup as one-hot matmul, then both projections and the
    # per-layer / per-direction gate biases  p_l @ W_ih_d^T + (b_ih + b_hh).
    # Tiny (rows == batch) f32 work; runs once per call.
    emb = jnp.dot(onehot_ref[...], table_ref[...], preferred_element_type=jnp.float32)
    p1 = jnp.dot(emb, p1w_ref[...], preferred_element_type=jnp.float32) + p1b_ref[...]
    p2 = jnp.dot(emb, p2w_ref[...], preferred_element_type=jnp.float32) + p2b_ref[...]
    o1f_ref[...] = jnp.dot(p1, wf1_ref[...], preferred_element_type=jnp.float32) + bf1_ref[...]
    o1b_ref[...] = jnp.dot(p1, wb1_ref[...], preferred_element_type=jnp.float32) + bb1_ref[...]
    o2f_ref[...] = jnp.dot(p2, wf2_ref[...], preferred_element_type=jnp.float32) + bf2_ref[...]
    o2b_ref[...] = jnp.dot(p2, wb2_ref[...], preferred_element_type=jnp.float32) + bb2_ref[...]


def _gates1_kernel(x_ref, wf_ref, wb_ref, bf_ref, bb_ref, of_ref, ob_ref):
    # Both directions' input projections from one read of x (bf16 MXU, f32 acc),
    # speaker/gate bias folded in here (off the serial recurrence path).
    x = x_ref[...]                                            # bf16
    gf = jnp.dot(x, wf_ref[...], preferred_element_type=jnp.float32)
    gb = jnp.dot(x, wb_ref[...], preferred_element_type=jnp.float32)
    of_ref[...] = (gf + bf_ref[...]).astype(jnp.bfloat16)
    ob_ref[...] = (gb + bb_ref[...]).astype(jnp.bfloat16)


def _gates2_kernel(hf_ref, hb_ref, wft_ref, wfb_ref, wbt_ref, wbb_ref,
                   bf_ref, bb_ref, of_ref, ob_ref):
    # concat([h_f, h_b]) @ W_ih^T expressed as h_f @ W_top + h_b @ W_bot so the
    # two direction arrays are consumed directly (no HBM concat pass).
    hf = hf_ref[...]                                          # bf16
    hb = hb_ref[...]
    gf = (jnp.dot(hf, wft_ref[...], preferred_element_type=jnp.float32)
          + jnp.dot(hb, wfb_ref[...], preferred_element_type=jnp.float32))
    gb = (jnp.dot(hf, wbt_ref[...], preferred_element_type=jnp.float32)
          + jnp.dot(hb, wbb_ref[...], preferred_element_type=jnp.float32))
    of_ref[...] = (gf + bf_ref[...]).astype(jnp.bfloat16)
    ob_ref[...] = (gb + bb_ref[...]).astype(jnp.bfloat16)


def _outproj_kernel(hf_ref, hb_ref, wt_ref, wb_ref, b_ref, o_ref):
    y = (jnp.dot(hf_ref[...], wt_ref[...], preferred_element_type=jnp.float32)
         + jnp.dot(hb_ref[...], wb_ref[...], preferred_element_type=jnp.float32))
    o_ref[...] = y + b_ref[...]


def _bilstm_kernel(gf_ref, gb_ref, whf_ref, whb_ref, hf_ref, hb_ref,
                   hf_sc, cf_sc, hb_sc, cb_sc):
    # gf/gb  : (TT, B, 4Hp) bf16 gate pre-activations (bias already folded in);
    #          gb's BlockSpec hands us the mirrored time tile NT-1-tt.
    # whf/whb: (Hp, 4Hp) bf16 recurrent weights W_hh^T (resident).
    # hf/hb  : (TT, B, Hp) bf16 hidden-state outputs.
    # scratch: f32 h/c carry per direction, persists across time tiles.
    TT, B, _ = gf_ref.shape
    H = whf_ref.shape[0]

    @pl.when(pl.program_id(0) == 0)
    def _init():
        z = jnp.zeros((B, H), jnp.float32)
        hf_sc[...] = z
        cf_sc[...] = z
        hb_sc[...] = z
        cb_sc[...] = z

    whf = whf_ref[...]          # bf16, stays resident in vregs/VMEM
    whb = whb_ref[...]

    def cell(gx, h, c, whh):
        # Recurrent matmul in bf16 (MXU), gate math / state update in f32.
        gates = gx.astype(jnp.float32) + jnp.dot(
            h.astype(jnp.bfloat16), whh, preferred_element_type=jnp.float32)
        i = jax.nn.sigmoid(gates[:, 0:H])            # PyTorch gate order i, f, g, o
        f = jax.nn.sigmoid(gates[:, H:2 * H])
        g = jnp.tanh(gates[:, 2 * H:3 * H])
        o = jax.nn.sigmoid(gates[:, 3 * H:4 * H])
        c_new = f * c + i * g
        h_new = o * jnp.tanh(c_new)
        return h_new, c_new

    def body(t, carry):
        hf, cf, hb, cb = carry
        rt = TT - 1 - t
        # Interleave the two independent dependency chains for ILP.
        hf, cf = cell(gf_ref[t], hf, cf, whf)
        hb, cb = cell(gb_ref[rt], hb, cb, whb)
        hf_ref[t] = hf.astype(jnp.bfloat16)
        hb_ref[rt] = hb.astype(jnp.bfloat16)
        return hf, cf, hb, cb

    carry = (hf_sc[...], cf_sc[...], hb_sc[...], cb_sc[...])
    unroll = TT if TT <= 8 else 8
    hf, cf, hb, cb = lax.fori_loop(0, TT, body, carry, unroll=unroll)
    hf_sc[...] = hf
    cf_sc[...] = cf
    hb_sc[...] = hb
    cb_sc[...] = cb


# ------------------------------ pallas_call wrappers -------------------------

def spk_bias_pallas(onehot, params):
    B = onehot.shape[0]
    H = params["whh_f1_t"].shape[0]
    G4 = 4 * H
    return pl.pallas_call(
        _spk_bias_kernel,
        out_shape=tuple(jax.ShapeDtypeStruct((B, G4), jnp.float32) for _ in range(4)),
        in_specs=[VMEM_SPEC] * 14,
        out_specs=tuple([VMEM_SPEC] * 4),
        compiler_params=pltpu.CompilerParams(vmem_limit_bytes=16 << 20),
    )(onehot, params["emb_table"],
      params["p1_w_t"], params["p1_b"].reshape(1, -1),
      params["p2_w_t"], params["p2_b"].reshape(1, -1),
      params["wih_f1_t"], params["wih_b1_t"],
      params["b_f1"].reshape(1, -1), params["b_b1"].reshape(1, -1),
      params["wih_f2_t"], params["wih_b2_t"],
      params["b_f2"].reshape(1, -1), params["b_b2"].reshape(1, -1))


def gates1_pallas(x2d, wf, wb, bias_f, bias_b, tm, tn):
    M, K = x2d.shape
    G4 = wf.shape[1]
    est = 2 * (tm * K * 2 + 2 * K * tn * 2 + 2 * tm * tn * 2 + 2 * tm * tn * 2)
    return pl.pallas_call(
        _gates1_kernel,
        out_shape=(jax.ShapeDtypeStruct((M, G4), jnp.bfloat16),
                   jax.ShapeDtypeStruct((M, G4), jnp.bfloat16)),
        grid=(M // tm, G4 // tn),
        in_specs=[pl.BlockSpec((tm, K), lambda i, n: (i, 0)),
                  pl.BlockSpec((K, tn), lambda i, n: (0, n)),
                  pl.BlockSpec((K, tn), lambda i, n: (0, n)),
                  pl.BlockSpec((tm, tn), lambda i, n: (0, n)),
                  pl.BlockSpec((tm, tn), lambda i, n: (0, n))],
        out_specs=(pl.BlockSpec((tm, tn), lambda i, n: (i, n)),
                   pl.BlockSpec((tm, tn), lambda i, n: (i, n))),
        compiler_params=_cparams(est, ("parallel", "parallel")),
    )(x2d, wf, wb, bias_f, bias_b)


def gates2_pallas(hf2d, hb2d, wft, wfb, wbt, wbb, bias_f, bias_b, tm, tn):
    M, H = hf2d.shape
    G4 = wft.shape[1]
    est = 2 * (2 * tm * H * 2 + 4 * H * tn * 2 + 2 * tm * tn * 2 + 2 * tm * tn * 2)
    return pl.pallas_call(
        _gates2_kernel,
        out_shape=(jax.ShapeDtypeStruct((M, G4), jnp.bfloat16),
                   jax.ShapeDtypeStruct((M, G4), jnp.bfloat16)),
        grid=(M // tm, G4 // tn),
        in_specs=[pl.BlockSpec((tm, H), lambda i, n: (i, 0)),
                  pl.BlockSpec((tm, H), lambda i, n: (i, 0)),
                  pl.BlockSpec((H, tn), lambda i, n: (0, n)),
                  pl.BlockSpec((H, tn), lambda i, n: (0, n)),
                  pl.BlockSpec((H, tn), lambda i, n: (0, n)),
                  pl.BlockSpec((H, tn), lambda i, n: (0, n)),
                  pl.BlockSpec((tm, tn), lambda i, n: (0, n)),
                  pl.BlockSpec((tm, tn), lambda i, n: (0, n))],
        out_specs=(pl.BlockSpec((tm, tn), lambda i, n: (i, n)),
                   pl.BlockSpec((tm, tn), lambda i, n: (i, n))),
        compiler_params=_cparams(est, ("parallel", "parallel")),
    )(hf2d, hb2d, wft, wfb, wbt, wbb, bias_f, bias_b)


def outproj_pallas(hf2d, hb2d, w_top, w_bot, bias_row, tm):
    M, H = hf2d.shape
    N = w_top.shape[1]
    est = 2 * (2 * tm * H * 2 + 2 * H * N * 2 + N * 4 + tm * N * 4)
    return pl.pallas_call(
        _outproj_kernel,
        out_shape=jax.ShapeDtypeStruct((M, N), jnp.float32),
        grid=(M // tm,),
        in_specs=[pl.BlockSpec((tm, H), lambda i: (i, 0)),
                  pl.BlockSpec((tm, H), lambda i: (i, 0)),
                  pl.BlockSpec((H, N), lambda i: (0, 0)),
                  pl.BlockSpec((H, N), lambda i: (0, 0)),
                  pl.BlockSpec((1, N), lambda i: (0, 0))],
        out_specs=pl.BlockSpec((tm, N), lambda i: (i, 0)),
        compiler_params=_cparams(est, ("parallel",)),
    )(hf2d, hb2d, w_top, w_bot, bias_row)


def bilstm_pallas(gf, gb, whh_f_t, whh_b_t, time_tile):
    T, B, G4 = gf.shape
    H = whh_f_t.shape[0]
    tt = time_tile
    nt = T // tt
    est = (2 * (2 * tt * B * G4 * 2 + 2 * tt * B * H * 2)   # gate/hidden streams (bf16)
           + 2 * 2 * H * G4 * 2                              # resident W_hh^T (bf16)
           + 4 * B * H * 4)                                  # f32 scratch
    return pl.pallas_call(
        _bilstm_kernel,
        out_shape=(jax.ShapeDtypeStruct((T, B, H), jnp.bfloat16),
                   jax.ShapeDtypeStruct((T, B, H), jnp.bfloat16)),
        grid=(nt,),
        in_specs=[
            pl.BlockSpec((tt, B, G4), lambda t: (t, 0, 0)),
            pl.BlockSpec((tt, B, G4), lambda t: (nt - 1 - t, 0, 0)),   # reversed stream
            pl.BlockSpec((H, G4), lambda t: (0, 0)),                   # resident W_hh^T
            pl.BlockSpec((H, G4), lambda t: (0, 0)),
        ],
        out_specs=(
            pl.BlockSpec((tt, B, H), lambda t: (t, 0, 0)),
            pl.BlockSpec((tt, B, H), lambda t: (nt - 1 - t, 0, 0)),
        ),
        scratch_shapes=[pltpu.VMEM((B, H), jnp.float32) for _ in range(4)],
        compiler_params=_cparams(est, ("arbitrary",)),
    )(gf, gb, whh_f_t, whh_b_t)


# ------------------------------ model ----------------------------------------

def init_params(key, in_channels, out_channels, num_spk, embd_dim, lstm_hidden):
    H = lstm_hidden
    ks = jax.random.split(key, 24)

    def w(k, shape, scale=0.1):
        return jax.random.normal(k, shape, jnp.float32) * scale

    p = {}
    p["emb_table"] = w(ks[0], (num_spk, embd_dim))
    # emb_proj1 / emb_proj2 / out_projection (stored pre-transposed: [in, out])
    p["p1_w_t"] = w(ks[1], (embd_dim, in_channels)); p["p1_b"] = w(ks[2], (in_channels,))
    p["p2_w_t"] = w(ks[3], (embd_dim, 2 * H));       p["p2_b"] = w(ks[4], (2 * H,))
    p["out_w_t"] = w(ks[5], (2 * H, out_channels));  p["out_b"] = w(ks[6], (out_channels,))
    # blstm1: forward + reverse directions (b_ih + b_hh folded together)
    p["wih_f1_t"] = w(ks[7], (in_channels, 4 * H)); p["whh_f1_t"] = w(ks[8], (H, 4 * H))
    p["b_f1"] = w(ks[9], (4 * H,))
    p["wih_b1_t"] = w(ks[10], (in_channels, 4 * H)); p["whh_b1_t"] = w(ks[11], (H, 4 * H))
    p["b_b1"] = w(ks[12], (4 * H,))
    # blstm2
    p["wih_f2_t"] = w(ks[13], (2 * H, 4 * H)); p["whh_f2_t"] = w(ks[14], (H, 4 * H))
    p["b_f2"] = w(ks[15], (4 * H,))
    p["wih_b2_t"] = w(ks[16], (2 * H, 4 * H)); p["whh_b2_t"] = w(ks[17], (H, 4 * H))
    p["b_b2"] = w(ks[18], (4 * H,))
    return p


def forward(params, x, spk_inds):
    """x: [T, B, in_channels] f32; spk_inds: [B] int32 -> [T, B, out_channels] f32."""
    T, B, Fin = x.shape
    H = params["whh_f1_t"].shape[0]
    num_spk = params["emb_table"].shape[0]
    out_ch = params["out_w_t"].shape[1]

    bf16 = jnp.bfloat16
    Hp = _round_up(H, 128)        # lane-dense hidden dim: dense stores, aligned gate slices
    G4p = 4 * Hp
    Bp = _round_up(B, 8)          # sublane-dense batch
    Np = _round_up(out_ch, 128)   # lane-dense output projection

    # ---------------- parameter staging: pad + pre-cast to bf16 once ----------
    def rowpad(a, rows):
        return jnp.pad(a, ((0, rows - a.shape[0]), (0, 0)))

    w1f = _pad_gate_cols(params["wih_f1_t"], H, Hp).astype(bf16)           # (Fin, 4Hp)
    w1b = _pad_gate_cols(params["wih_b1_t"], H, Hp).astype(bf16)
    w2f = _pad_gate_cols(params["wih_f2_t"], H, Hp)                        # (2H, 4Hp) f32
    w2b = _pad_gate_cols(params["wih_b2_t"], H, Hp)
    w2f_t, w2f_b = rowpad(w2f[:H], Hp).astype(bf16), rowpad(w2f[H:], Hp).astype(bf16)
    w2b_t, w2b_b = rowpad(w2b[:H], Hp).astype(bf16), rowpad(w2b[H:], Hp).astype(bf16)
    whh1f = rowpad(_pad_gate_cols(params["whh_f1_t"], H, Hp), Hp).astype(bf16)
    whh1b = rowpad(_pad_gate_cols(params["whh_b1_t"], H, Hp), Hp).astype(bf16)
    whh2f = rowpad(_pad_gate_cols(params["whh_f2_t"], H, Hp), Hp).astype(bf16)
    whh2b = rowpad(_pad_gate_cols(params["whh_b2_t"], H, Hp), Hp).astype(bf16)
    wo = jnp.pad(params["out_w_t"], ((0, 0), (0, Np - out_ch)))
    wo_t, wo_b = rowpad(wo[:H], Hp).astype(bf16), rowpad(wo[H:], Hp).astype(bf16)
    bo = jnp.pad(params["out_b"], (0, Np - out_ch)).reshape(1, Np)

    # ---------------- tile sizes ----------------------------------------------
    TN = _pick_tile(G4p, 1024, multiple=128)             # lane tile of the gate streams
    row_budget = max(Bp, (1 << 20) // TN)                # keeps gate-kernel blocks < ~24 MiB
    TTg = _pick_tile(T, max(1, row_budget // Bp))        # time rows per gate-matmul tile
    TM = TTg * Bp                                        # row tile (multiple of Bp)
    per_t_rec = Bp * (2 * G4p + 2 * Hp) * 2              # bf16 gate + hidden per time step
    TT = _pick_tile(T, max(1, (12 << 20) // (2 * per_t_rec)))   # recurrence time tile

    # ---------------- speaker-conditioned gate biases (time-invariant) --------
    onehot = jax.nn.one_hot(spk_inds, num_spk, dtype=jnp.float32)
    b1f, b1b, b2f, b2b = spk_bias_pallas(onehot, params)

    def stage_bias(bias):
        # gate-pad, batch-pad, repeat to one row tile (matches every M-tile), bf16.
        bias = _pad_gate_cols(bias, H, Hp)
        bias = jnp.pad(bias, ((0, Bp - B), (0, 0)))
        return jnp.tile(bias, (TTg, 1)).astype(bf16)     # (TM, 4Hp)

    b1f, b1b, b2f, b2b = (stage_bias(b) for b in (b1f, b1b, b2f, b2b))

    # ---------------- layer 1 --------------------------------------------------
    x_p = jnp.pad(x, ((0, 0), (0, Bp - B), (0, 0))).astype(bf16)
    M = T * Bp
    gf1, gb1 = gates1_pallas(x_p.reshape(M, Fin), w1f, w1b, b1f, b1b, TM, TN)
    hf1, hb1 = bilstm_pallas(gf1.reshape(T, Bp, G4p), gb1.reshape(T, Bp, G4p),
                             whh1f, whh1b, TT)

    # ---------------- layer 2 (consumes both direction arrays directly) -------
    gf2, gb2 = gates2_pallas(hf1.reshape(M, Hp), hb1.reshape(M, Hp),
                             w2f_t, w2f_b, w2b_t, w2b_b, b2f, b2b, TM, TN)
    hf2, hb2 = bilstm_pallas(gf2.reshape(T, Bp, G4p), gb2.reshape(T, Bp, G4p),
                             whh2f, whh2b, TT)

    # ---------------- output projection (lane-padded, dense stores) -----------
    y = outproj_pallas(hf2.reshape(M, Hp), hb2.reshape(M, Hp), wo_t, wo_b, bo, TM)
    return y.reshape(T, Bp, Np)[:, :B, :out_ch]


# ------------------------------ pure-JAX reference ----------------------------

def _reference_forward(params, x, spk_inds):
    H = params["whh_f1_t"].shape[0]
    emb = params["emb_table"][spk_inds]
    p1 = emb @ params["p1_w_t"] + params["p1_b"]
    p2 = emb @ params["p2_w_t"] + params["p2_b"]

    def lstm_dir(inp, wih_t, whh_t, b, reverse):
        B = inp.shape[1]
        gx = inp @ wih_t + b

        def step(carry, g):
            h, c = carry
            gates = g + h @ whh_t
            i = jax.nn.sigmoid(gates[:, :H])
            f = jax.nn.sigmoid(gates[:, H:2 * H])
            gg = jnp.tanh(gates[:, 2 * H:3 * H])
            o = jax.nn.sigmoid(gates[:, 3 * H:])
            c = f * c + i * gg
            h = o * jnp.tanh(c)
            return (h, c), h

        init = (jnp.zeros((B, H), jnp.float32), jnp.zeros((B, H), jnp.float32))
        _, hs = lax.scan(step, init, gx, reverse=reverse)
        return hs

    in1 = x + p1[None]
    h1 = jnp.concatenate(
        [lstm_dir(in1, params["wih_f1_t"], params["whh_f1_t"], params["b_f1"], False),
         lstm_dir(in1, params["wih_b1_t"], params["whh_b1_t"], params["b_b1"], True)], -1)
    in2 = h1 + p2[None]
    h2 = jnp.concatenate(
        [lstm_dir(in2, params["wih_f2_t"], params["whh_f2_t"], params["b_f2"], False),
         lstm_dir(in2, params["wih_b2_t"], params["whh_b2_t"], params["b_b2"], True)], -1)
    return h2 @ params["out_w_t"] + params["out_b"]


# ------------------------------ demo ------------------------------------------

if __name__ == "__main__":
    T, B = 8, 2
    in_channels, out_channels = 16, 8
    num_spk, embd_dim, lstm_hidden = 4, 8, 32

    key = jax.random.PRNGKey(0)
    k_param, k_x, k_spk = jax.random.split(key, 3)
    params = init_params(k_param, in_channels, out_channels,
                         num_spk, embd_dim, lstm_hidden)

    x = jax.random.normal(k_x, (T, B, in_channels), jnp.float32)
    spk_inds = jax.random.randint(k_spk, (B,), 0, num_spk, jnp.int32)

    y = jax.jit(forward)(params, x, spk_inds)
    y = jax.block_until_ready(y)

    assert y.shape == (T, B, out_channels), y.shape
    assert bool(jnp.all(jnp.isfinite(y)))

    # Validate against a pure-JAX f32 reference (tolerance relaxed: projections,
    # the recurrent h@W_hh, and the inter-kernel activation streams are bf16).
    ref = _reference_forward(params, x, spk_inds)
    err = float(jnp.max(jnp.abs(y - ref)))
    assert err < 7.5e-2, f"max abs err vs reference: {err}"

    print("KERNEL_OK")
</pallas_src>

<mosaic_0001>
module attributes {stable_mosaic.version = 11 : i64} {
  func.func @_spk_bias_kernel(%arg0: memref<2x4xf32, #tpu.memory_space<vmem>>, %arg1: memref<4x8xf32, #tpu.memory_space<vmem>>, %arg2: memref<8x16xf32, #tpu.memory_space<vmem>>, %arg3: memref<1x16xf32, #tpu.memory_space<vmem>>, %arg4: memref<8x64xf32, #tpu.memory_space<vmem>>, %arg5: memref<1x64xf32, #tpu.memory_space<vmem>>, %arg6: memref<16x128xf32, #tpu.memory_space<vmem>>, %arg7: memref<16x128xf32, #tpu.memory_space<vmem>>, %arg8: memref<1x128xf32, #tpu.memory_space<vmem>>, %arg9: memref<1x128xf32, #tpu.memory_space<vmem>>, %arg10: memref<64x128xf32, #tpu.memory_space<vmem>>, %arg11: memref<64x128xf32, #tpu.memory_space<vmem>>, %arg12: memref<1x128xf32, #tpu.memory_space<vmem>>, %arg13: memref<1x128xf32, #tpu.memory_space<vmem>>, %arg14: memref<2x128xf32, #tpu.memory_space<vmem>>, %arg15: memref<2x128xf32, #tpu.memory_space<vmem>>, %arg16: memref<2x128xf32, #tpu.memory_space<vmem>>, %arg17: memref<2x128xf32, #tpu.memory_space<vmem>>) attributes {dimension_semantics = [], scalar_prefetch = 0 : i64, scratch_operands = 0 : i64, tpu.core_type = #tpu.core_type<tc>} {
    %c0 = arith.constant 0 : index
    %c0_0 = arith.constant 0 : index
    %0 = vector.load %arg0[%c0, %c0_0] : memref<2x4xf32, #tpu.memory_space<vmem>>, vector<2x4xf32>
    %c0_1 = arith.constant 0 : index
    %c0_2 = arith.constant 0 : index
    %1 = vector.load %arg1[%c0_1, %c0_2] : memref<4x8xf32, #tpu.memory_space<vmem>>, vector<4x8xf32>
    %cst = arith.constant dense<0.000000e+00> : vector<2x8xf32>
    %2 = tpu.matmul %0, %1, %cst {dimension_numbers = #tpu.dot_dimension_numbers<[1], [0], [0], [1], [0, 0, 1, 1], [], []>} : vector<2x4xf32>, vector<4x8xf32>, vector<2x8xf32> -> vector<2x8xf32>
    %c0_3 = arith.constant 0 : index
    %c0_4 = arith.constant 0 : index
    %3 = vector.load %arg2[%c0_3, %c0_4] : memref<8x16xf32, #tpu.memory_space<vmem>>, vector<8x16xf32>
    %cst_5 = arith.constant dense<0.000000e+00> : vector<2x16xf32>
    %4 = tpu.matmul %2, %3, %cst_5 {dimension_numbers = #tpu.dot_dimension_numbers<[1], [0], [0], [1], [0, 0, 1, 1], [], []>} : vector<2x8xf32>, vector<8x16xf32>, vector<2x16xf32> -> vector<2x16xf32>
    %c0_6 = arith.constant 0 : index
    %c0_7 = arith.constant 0 : index
    %5 = vector.load %arg3[%c0_6, %c0_7] : memref<1x16xf32, #tpu.memory_space<vmem>>, vector<1x16xf32>
    %6 = vector.broadcast %5 : vector<1x16xf32> to vector<2x16xf32>
    %7 = arith.addf %4, %6 : vector<2x16xf32>
    %c0_8 = arith.constant 0 : index
    %c0_9 = arith.constant 0 : index
    %8 = vector.load %arg4[%c0_8, %c0_9] : memref<8x64xf32, #tpu.memory_space<vmem>>, vector<8x64xf32>
    %cst_10 = arith.constant dense<0.000000e+00> : vector<2x64xf32>
    %9 = tpu.matmul %2, %8, %cst_10 {dimension_numbers = #tpu.dot_dimension_numbers<[1], [0], [0], [1], [0, 0, 1, 1], [], []>} : vector<2x8xf32>, vector<8x64xf32>, vector<2x64xf32> -> vector<2x64xf32>
    %c0_11 = arith.constant 0 : index
    %c0_12 = arith.constant 0 : index
    %10 = vector.load %arg5[%c0_11, %c0_12] : memref<1x64xf32, #tpu.memory_space<vmem>>, vector<1x64xf32>
    %11 = vector.broadcast %10 : vector<1x64xf32> to vector<2x64xf32>
    %12 = arith.addf %9, %11 : vector<2x64xf32>
    %c0_13 = arith.constant 0 : index
    %c0_14 = arith.constant 0 : index
    %13 = vector.load %arg6[%c0_13, %c0_14] : memref<16x128xf32, #tpu.memory_space<vmem>>, vector<16x128xf32>
    %cst_15 = arith.constant dense<0.000000e+00> : vector<2x128xf32>
    %14 = tpu.matmul %7, %13, %cst_15 {dimension_numbers = #tpu.dot_dimension_numbers<[1], [0], [0], [1], [0, 0, 1, 1], [], []>} : vector<2x16xf32>, vector<16x128xf32>, vector<2x128xf32> -> vector<2x128xf32>
    %c0_16 = arith.constant 0 : index
    %c0_17 = arith.constant 0 : index
    %15 = vector.load %arg8[%c0_16, %c0_17] : memref<1x128xf32, #tpu.memory_space<vmem>>, vector<1x128xf32>
    %16 = vector.broadcast %15 : vector<1x128xf32> to vector<2x128xf32>
    %17 = arith.addf %14, %16 : vector<2x128xf32>
    %c0_18 = arith.constant 0 : index
    %c0_19 = arith.constant 0 : index
    %18 = vector.load %arg14[%c0_18, %c0_19] : memref<2x128xf32, #tpu.memory_space<vmem>>, vector<2x128xf32>
    tpu.vector_store %arg14[%c0_18, %c0_19], %17 {strides = array<i32>} : memref<2x128xf32, #tpu.memory_space<vmem>>, vector<2x128xf32>,
    %c0_20 = arith.constant 0 : index
    %c0_21 = arith.constant 0 : index
    %19 = vector.load %arg7[%c0_20, %c0_21] : memref<16x128xf32, #tpu.memory_space<vmem>>, vector<16x128xf32>
    %cst_22 = arith.constant dense<0.000000e+00> : vector<2x128xf32>
    %20 = tpu.matmul %7, %19, %cst_22 {dimension_numbers = #tpu.dot_dimension_numbers<[1], [0], [0], [1], [0, 0, 1, 1], [], []>} : vector<2x16xf32>, vector<16x128xf32>, vector<2x128xf32> -> vector<2x128xf32>
    %c0_23 = arith.constant 0 : index
    %c0_24 = arith.constant 0 : index
    %21 = vector.load %arg9[%c0_23, %c0_24] : memref<1x128xf32, #tpu.memory_space<vmem>>, vector<1x128xf32>
    %22 = vector.broadcast %21 : vector<1x128xf32> to vector<2x128xf32>
    %23 = arith.addf %20, %22 : vector<2x128xf32>
    %c0_25 = arith.constant 0 : index
    %c0_26 = arith.constant 0 : index
    %24 = vector.load %arg15[%c0_25, %c0_26] : memref<2x128xf32, #tpu.memory_space<vmem>>, vector<2x128xf32>
    tpu.vector_store %arg15[%c0_25, %c0_26], %23 {strides = array<i32>} : memref<2x128xf32, #tpu.memory_space<vmem>>, vector<2x128xf32>,
    %c0_27 = arith.constant 0 : index
    %c0_28 = arith.constant 0 : index
    %25 = vector.load %arg10[%c0_27, %c0_28] : memref<64x128xf32, #tpu.memory_space<vmem>>, vector<64x128xf32>
    %cst_29 = arith.constant dense<0.000000e+00> : vector<2x128xf32>
    %26 = tpu.matmul %12, %25, %cst_29 {dimension_numbers = #tpu.dot_dimension_numbers<[1], [0], [0], [1], [0, 0, 1, 1], [], []>} : vector<2x64xf32>, vector<64x128xf32>, vector<2x128xf32> -> vector<2x128xf32>
    %c0_30 = arith.constant 0 : index
    %c0_31 = arith.constant 0 : index
    %27 = vector.load %arg12[%c0_30, %c0_31] : memref<1x128xf32, #tpu.memory_space<vmem>>, vector<1x128xf32>
    %28 = vector.broadcast %27 : vector<1x128xf32> to vector<2x128xf32>
    %29 = arith.addf %26, %28 : vector<2x128xf32>
    %c0_32 = arith.constant 0 : index
    %c0_33 = arith.constant 0 : index
    %30 = vector.load %arg16[%c0_32, %c0_33] : memref<2x128xf32, #tpu.memory_space<vmem>>, vector<2x128xf32>
    tpu.vector_store %arg16[%c0_32, %c0_33], %29 {strides = array<i32>} : memref<2x128xf32, #tpu.memory_space<vmem>>, vector<2x128xf32>,
    %c0_34 = arith.constant 0 : index
    %c0_35 = arith.constant 0 : index
    %31 = vector.load %arg11[%c0_34, %c0_35] : memref<64x128xf32, #tpu.memory_space<vmem>>, vector<64x128xf32>
    %cst_36 = arith.constant dense<0.000000e+00> : vector<2x128xf32>
    %32 = tpu.matmul %12, %31, %cst_36 {dimension_numbers = #tpu.dot_dimension_numbers<[1], [0], [0], [1], [0, 0, 1, 1], [], []>} : vector<2x64xf32>, vector<64x128xf32>, vector<2x128xf32> -> vector<2x128xf32>
    %c0_37 = arith.constant 0 : index
    %c0_38 = arith.constant 0 : index
    %33 = vector.load %arg13[%c0_37, %c0_38] : memref<1x128xf32, #tpu.memory_space<vmem>>, vector<1x128xf32>
    %34 = vector.broadcast %33 : vector<1x128xf32> to vector<2x128xf32>
    %35 = arith.addf %32, %34 : vector<2x128xf32>
    %c0_39 = arith.constant 0 : index
    %c0_40 = arith.constant 0 : index
    %36 = vector.load %arg17[%c0_39, %c0_40] : memref<2x128xf32, #tpu.memory_space<vmem>>, vector<2x128xf32>
    tpu.vector_store %arg17[%c0_39, %c0_40], %35 {strides = array<i32>} : memref<2x128xf32, #tpu.memory_space<vmem>>, vector<2x128xf32>,
    return
  }
}

module attributes {stable_mosaic.version = 11 : i64} {
  func.func @_gates1_kernel(%arg0: i32, %arg1: i32, %arg2: memref<64x16xbf16, #tpu.memory_space<vmem>>, %arg3: memref<16x512xbf16, #tpu.memory_space<vmem>>, %arg4: memref<16x512xbf16, #tpu.memory_space<vmem>>, %arg5: memref<64x512xbf16, #tpu.memory_space<vmem>>, %arg6: memref<64x512xbf16, #tpu.memory_space<vmem>>, %arg7: memref<64x512xbf16, #tpu.memory_space<vmem>>, %arg8: memref<64x512xbf16, #tpu.memory_space<vmem>>) attributes {dimension_semantics = [#tpu.dimension_semantics<parallel>, #tpu.dimension_semantics<parallel>], iteration_bounds = array<i64: 1, 1>, scalar_prefetch = 0 : i64, scratch_operands = 0 : i64, tpu.core_type = #tpu.core_type<tc>, window_params = [{transform_indices = @transform_0, window_bounds = array<i64: 64, 16>}, {transform_indices = @transform_1, window_bounds = array<i64: 16, 512>}, {transform_indices = @transform_2, window_bounds = array<i64: 16, 512>}, {transform_indices = @transform_3, window_bounds = array<i64: 64, 512>}, {transform_indices = @transform_4, window_bounds = array<i64: 64, 512>}, {transform_indices = @transform_5, window_bounds = array<i64: 64, 512>}, {transform_indices = @transform_6, window_bounds = array<i64: 64, 512>}]} {
    %c0 = arith.constant 0 : index
    %c0_0 = arith.constant 0 : index
    %0 = vector.load %arg2[%c0, %c0_0] : memref<64x16xbf16, #tpu.memory_space<vmem>>, vector<64x16xbf16>
    %c0_1 = arith.constant 0 : index
    %c0_2 = arith.constant 0 : index
    %1 = vector.load %arg3[%c0_1, %c0_2] : memref<16x512xbf16, #tpu.memory_space<vmem>>, vector<16x512xbf16>
    %cst = arith.constant dense<0.000000e+00> : vector<64x512xf32>
    %2 = tpu.matmul %0, %1, %cst {dimension_numbers = #tpu.dot_dimension_numbers<[1], [0], [0], [1], [0, 0, 1, 1], [], []>} : vector<64x16xbf16>, vector<16x512xbf16>, vector<64x512xf32> -> vector<64x512xf32>
    %c0_3 = arith.constant 0 : index
    %c0_4 = arith.constant 0 : index
    %3 = vector.load %arg4[%c0_3, %c0_4] : memref<16x512xbf16, #tpu.memory_space<vmem>>, vector<16x512xbf16>
    %cst_5 = arith.constant dense<0.000000e+00> : vector<64x512xf32>
    %4 = tpu.matmul %0, %3, %cst_5 {dimension_numbers = #tpu.dot_dimension_numbers<[1], [0], [0], [1], [0, 0, 1, 1], [], []>} : vector<64x16xbf16>, vector<16x512xbf16>, vector<64x512xf32> -> vector<64x512xf32>
    %c0_6 = arith.constant 0 : index
    %c0_7 = arith.constant 0 : index
    %5 = vector.load %arg5[%c0_6, %c0_7] : memref<64x512xbf16, #tpu.memory_space<vmem>>, vector<64x512xbf16>
    %6 = arith.extf %5 : vector<64x512xbf16> to vector<64x512xf32>
    %7 = arith.addf %2, %6 : vector<64x512xf32>
    %8 = arith.truncf %7 : vector<64x512xf32> to vector<64x512xbf16>
    %c0_8 = arith.constant 0 : index
    %c0_9 = arith.constant 0 : index
    %9 = vector.load %arg7[%c0_8, %c0_9] : memref<64x512xbf16, #tpu.memory_space<vmem>>, vector<64x512xbf16>
    tpu.vector_store %arg7[%c0_8, %c0_9], %8 {strides = array<i32>} : memref<64x512xbf16, #tpu.memory_space<vmem>>, vector<64x512xbf16>,
    %c0_10 = arith.constant 0 : index
    %c0_11 = arith.constant 0 : index
    %10 = vector.load %arg6[%c0_10, %c0_11] : memref<64x512xbf16, #tpu.memory_space<vmem>>, vector<64x512xbf16>
    %11 = arith.extf %10 : vector<64x512xbf16> to vector<64x512xf32>
    %12 = arith.addf %4, %11 : vector<64x512xf32>
    %13 = arith.truncf %12 : vector<64x512xf32> to vector<64x512xbf16>
    %c0_12 = arith.constant 0 : index
    %c0_13 = arith.constant 0 : index
    %14 = vector.load %arg8[%c0_12, %c0_13] : memref<64x512xbf16, #tpu.memory_space<vmem>>, vector<64x512xbf16>
    tpu.vector_store %arg8[%c0_12, %c0_13], %13 {strides = array<i32>} : memref<64x512xbf16, #tpu.memory_space<vmem>>, vector<64x512xbf16>,
    return
  }
  func.func @transform_0(%arg0: i32, %arg1: i32) -> (i32, i32) {
    %c0_i32 = arith.constant 0 : i32
    %c0_i32_0 = arith.constant 0 : i32
    return %arg0, %c0_i32 : i32, i32
  }
  func.func @transform_1(%arg0: i32, %arg1: i32) -> (i32, i32) {
    %c0_i32 = arith.constant 0 : i32
    %c0_i32_0 = arith.constant 0 : i32
    return %c0_i32, %arg1 : i32, i32
  }
  func.func @transform_2(%arg0: i32, %arg1: i32) -> (i32, i32) {
    %c0_i32 = arith.constant 0 : i32
    %c0_i32_0 = arith.constant 0 : i32
    return %c0_i32, %arg1 : i32, i32
  }
  func.func @transform_3(%arg0: i32, %arg1: i32) -> (i32, i32) {
    %c0_i32 = arith.constant 0 : i32
    %c0_i32_0 = arith.constant 0 : i32
    return %c0_i32, %arg1 : i32, i32
  }
  func.func @transform_4(%arg0: i32, %arg1: i32) -> (i32, i32) {
    %c0_i32 = arith.constant 0 : i32
    %c0_i32_0 = arith.constant 0 : i32
    return %c0_i32, %arg1 : i32, i32
  }
  func.func @transform_5(%arg0: i32, %arg1: i32) -> (i32, i32) {
    %c0_i32 = arith.constant 0 : i32
    return %arg0, %arg1 : i32, i32
  }
  func.func @transform_6(%arg0: i32, %arg1: i32) -> (i32, i32) {
    %c0_i32 = arith.constant 0 : i32
    return %arg0, %arg1 : i32, i32
  }
}

module attributes {stable_mosaic.version = 11 : i64} {
  func.func @_bilstm_kernel(%arg0: i32, %arg1: memref<8x8x512xbf16, #tpu.memory_space<vmem>>, %arg2: memref<8x8x512xbf16, #tpu.memory_space<vmem>>, %arg3: memref<128x512xbf16, #tpu.memory_space<vmem>>, %arg4: memref<128x512xbf16, #tpu.memory_space<vmem>>, %arg5: memref<8x8x128xbf16, #tpu.memory_space<vmem>>, %arg6: memref<8x8x128xbf16, #tpu.memory_space<vmem>>, %arg7: memref<8x128xf32, #tpu.memory_space<vmem>>, %arg8: memref<8x128xf32, #tpu.memory_space<vmem>>, %arg9: memref<8x128xf32, #tpu.memory_space<vmem>>, %arg10: memref<8x128xf32, #tpu.memory_space<vmem>>) attributes {dimension_semantics = [#tpu.dimension_semantics<arbitrary>], iteration_bounds = array<i64: 1>, scalar_prefetch = 0 : i64, scratch_operands = 4 : i64, tpu.core_type = #tpu.core_type<tc>, window_params = [{transform_indices = @transform_0, window_bounds = array<i64: 8, 8, 512>}, {transform_indices = @transform_1, window_bounds = array<i64: 8, 8, 512>}, {pipeline_mode = #tpu.pipeline_mode<synchronous>, transform_indices = @transform_2, window_bounds = array<i64: 128, 512>}, {pipeline_mode = #tpu.pipeline_mode<synchronous>, transform_indices = @transform_3, window_bounds = array<i64: 128, 512>}, {transform_indices = @transform_4, window_bounds = array<i64: 8, 8, 128>}, {transform_indices = @transform_5, window_bounds = array<i64: 8, 8, 128>}]} {
    %c0_i32 = arith.constant 0 : i32
    %0 = arith.cmpi eq, %arg0, %c0_i32 : i32
    %1 = arith.extui %0 : i1 to i32
    %c0_i32_0 = arith.constant 0 : i32
    %2 = arith.cmpi ne, %1, %c0_i32_0 : i32
    scf.if %2 {
      %cst_156 = arith.constant 0.000000e+00 : f32
      %613 = vector.broadcast %cst_156 : f32 to vector<8x128xf32>
      %c0_157 = arith.constant 0 : index
      %c0_158 = arith.constant 0 : index
      %614 = vector.load %arg7[%c0_157, %c0_158] : memref<8x128xf32, #tpu.memory_space<vmem>>, vector<8x128xf32>
      tpu.vector_store %arg7[%c0_157, %c0_158], %613 {strides = array<i32>} : memref<8x128xf32, #tpu.memory_space<vmem>>, vector<8x128xf32>,
      %c0_159 = arith.constant 0 : index
      %c0_160 = arith.constant 0 : index
      %615 = vector.load %arg8[%c0_159, %c0_160] : memref<8x128xf32, #tpu.memory_space<vmem>>, vector<8x128xf32>
      tpu.vector_store %arg8[%c0_159, %c0_160], %613 {strides = array<i32>} : memref<8x128xf32, #tpu.memory_space<vmem>>, vector<8x128xf32>,
      %c0_161 = arith.constant 0 : index
      %c0_162 = arith.constant 0 : index
      %616 = vector.load %arg9[%c0_161, %c0_162] : memref<8x128xf32, #tpu.memory_space<vmem>>, vector<8x128xf32>
      tpu.vector_store %arg9[%c0_161, %c0_162], %613 {strides = array<i32>} : memref<8x128xf32, #tpu.memory_space<vmem>>, vector<8x128xf32>,
      %c0_163 = arith.constant 0 : index
      %c0_164 = arith.constant 0 : index
      %617 = vector.load %arg10[%c0_163, %c0_164] : memref<8x128xf32, #tpu.memory_space<vmem>>, vector<8x128xf32>
      tpu.vector_store %arg10[%c0_163, %c0_164], %613 {strides = array<i32>} : memref<8x128xf32, #tpu.memory_space<vmem>>, vector<8x128xf32>,
    } else {
    }
    %c0 = arith.constant 0 : index
    %c0_1 = arith.constant 0 : index
    %3 = vector.load %arg3[%c0, %c0_1] : memref<128x512xbf16, #tpu.memory_space<vmem>>, vector<128x512xbf16>
    %c0_2 = arith.constant 0 : index
    %c0_3 = arith.constant 0 : index
    %4 = vector.load %arg4[%c0_2, %c0_3] : memref<128x512xbf16, #tpu.memory_space<vmem>>, vector<128x512xbf16>
    %c0_4 = arith.constant 0 : index
    %c0_5 = arith.constant 0 : index
    %5 = vector.load %arg7[%c0_4, %c0_5] : memref<8x128xf32, #tpu.memory_space<vmem>>, vector<8x128xf32>
    %c0_6 = arith.constant 0 : index
    %c0_7 = arith.constant 0 : index
    %6 = vector.load %arg8[%c0_6, %c0_7] : memref<8x128xf32, #tpu.memory_space<vmem>>, vector<8x128xf32>
    %c0_8 = arith.constant 0 : index
    %c0_9 = arith.constant 0 : index
    %7 = vector.load %arg9[%c0_8, %c0_9] : memref<8x128xf32, #tpu.memory_space<vmem>>, vector<8x128xf32>
    %c0_10 = arith.constant 0 : index
    %c0_11 = arith.constant 0 : index
    %8 = vector.load %arg10[%c0_10, %c0_11] : memref<8x128xf32, #tpu.memory_space<vmem>>, vector<8x128xf32>
    %c0_i32_12 = arith.constant 0 : i32
    %c7_i32 = arith.constant 7 : i32
    %9 = arith.subi %c7_i32, %c0_i32_12 : i32
    %10 = arith.index_cast %c0_i32_12 : i32 to index
    %c0_13 = arith.constant 0 : index
    %c0_14 = arith.constant 0 : index
    %11 = vector.load %arg1[%10, %c0_13, %c0_14] : memref<8x8x512xbf16, #tpu.memory_space<vmem>>, vector<1x8x512xbf16>
    %12 = vector.shape_cast %11 : vector<1x8x512xbf16> to vector<8x512xbf16>
    %13 = arith.extf %12 : vector<8x512xbf16> to vector<8x512xf32>
    %14 = arith.truncf %5 : vector<8x128xf32> to vector<8x128xbf16>
    %cst = arith.constant dense<0.000000e+00> : vector<8x512xf32>
    %15 = tpu.matmul %14, %3, %cst {dimension_numbers = #tpu.dot_dimension_numbers<[1], [0], [0], [1], [0, 0, 1, 1], [], []>} : vector<8x128xbf16>, vector<128x512xbf16>, vector<8x512xf32> -> vector<8x512xf32>
    %16 = arith.addf %13, %15 : vector<8x512xf32>
    %17 = vector.extract_strided_slice %16 {offsets = [0, 0], sizes = [8, 128], strides = [1, 1]} : vector<8x512xf32> to vector<8x128xf32>
    %18 = arith.negf %17 : vector<8x128xf32>
    %19 = math.exp %18 : vector<8x128xf32>
    %cst_15 = arith.constant 1.000000e+00 : f32
    %20 = vector.broadcast %cst_15 : f32 to vector<8x128xf32>
    %21 = arith.addf %20, %19 : vector<8x128xf32>
    %22 = arith.divf %20, %21 : vector<8x128xf32>
    %23 = vector.extract_strided_slice %16 {offsets = [0, 128], sizes = [8, 128], strides = [1, 1]} : vector<8x512xf32> to vector<8x128xf32>
    %24 = arith.negf %23 : vector<8x128xf32>
    %25 = math.exp %24 : vector<8x128xf32>
    %cst_16 = arith.constant 1.000000e+00 : f32
    %26 = vector.broadcast %cst_16 : f32 to vector<8x128xf32>
    %27 = arith.addf %26, %25 : vector<8x128xf32>
    %28 = arith.divf %26, %27 : vector<8x128xf32>
    %29 = vector.extract_strided_slice %16 {offsets = [0, 256], sizes = [8, 128], strides = [1, 1]} : vector<8x512xf32> to vector<8x128xf32>
    %30 = math.tanh %29 : vector<8x128xf32>
    %31 = vector.extract_strided_slice %16 {offsets = [0, 384], sizes = [8, 128], strides = [1, 1]} : vector<8x512xf32> to vector<8x128xf32>
    %32 = arith.negf %31 : vector<8x128xf32>
    %33 = math.exp %32 : vector<8x128xf32>
    %cst_17 = arith.constant 1.000000e+00 : f32
    %34 = vector.broadcast %cst_17 : f32 to vector<8x128xf32>
    %35 = arith.addf %34, %33 : vector<8x128xf32>
    %36 = arith.divf %34, %35 : vector<8x128xf32>
    %37 = arith.mulf %28, %6 : vector<8x128xf32>
    %38 = arith.mulf %22, %30 : vector<8x128xf32>
    %39 = arith.addf %37, %38 : vector<8x128xf32>
    %40 = math.tanh %39 : vector<8x128xf32>
    %41 = arith.mulf %36, %40 : vector<8x128xf32>
    %42 = arith.index_cast %9 : i32 to index
    %c0_18 = arith.constant 0 : index
    %c0_19 = arith.constant 0 : index
    %43 = vector.load %arg2[%42, %c0_18, %c0_19] : memref<8x8x512xbf16, #tpu.memory_space<vmem>>, vector<1x8x512xbf16>
    %44 = vector.shape_cast %43 : vector<1x8x512xbf16> to vector<8x512xbf16>
    %45 = arith.extf %44 : vector<8x512xbf16> to vector<8x512xf32>
    %46 = arith.truncf %7 : vector<8x128xf32> to vector<8x128xbf16>
    %cst_20 = arith.constant dense<0.000000e+00> : vector<8x512xf32>
    %47 = tpu.matmul %46, %4, %cst_20 {dimension_numbers = #tpu.dot_dimension_numbers<[1], [0], [0], [1], [0, 0, 1, 1], [], []>} : vector<8x128xbf16>, vector<128x512xbf16>, vector<8x512xf32> -> vector<8x512xf32>
    %48 = arith.addf %45, %47 : vector<8x512xf32>
    %49 = vector.extract_strided_slice %48 {offsets = [0, 0], sizes = [8, 128], strides = [1, 1]} : vector<8x512xf32> to vector<8x128xf32>
    %50 = arith.negf %49 : vector<8x128xf32>
    %51 = math.exp %50 : vector<8x128xf32>
    %cst_21 = arith.constant 1.000000e+00 : f32
    %52 = vector.broadcast %cst_21 : f32 to vector<8x128xf32>
    %53 = arith.addf %52, %51 : vector<8x128xf32>
    %54 = arith.divf %52, %53 : vector<8x128xf32>
    %55 = vector.extract_strided_slice %48 {offsets = [0, 128], sizes = [8, 128], strides = [1, 1]} : vector<8x512xf32> to vector<8x128xf32>
    %56 = arith.negf %55 : vector<8x128xf32>
    %57 = math.exp %56 : vector<8x128xf32>
    %cst_22 = arith.constant 1.000000e+00 : f32
    %58 = vector.broadcast %cst_22 : f32 to vector<8x128xf32>
    %59 = arith.addf %58, %57 : vector<8x128xf32>
    %60 = arith.divf %58, %59 : vector<8x128xf32>
    %61 = vector.extract_strided_slice %48 {offsets = [0, 256], sizes = [8, 128], strides = [1, 1]} : vector<8x512xf32> to vector<8x128xf32>
    %62 = math.tanh %61 : vector<8x128xf32>
    %63 = vector.extract_strided_slice %48 {offsets = [0, 384], sizes = [8, 128], strides = [1, 1]} : vector<8x512xf32> to vector<8x128xf32>
    %64 = arith.negf %63 : vector<8x128xf32>
    %65 = math.exp %64 : vector<8x128xf32>
    %cst_23 = arith.constant 1.000000e+00 : f32
    %66 = vector.broadcast %cst_23 : f32 to vector<8x128xf32>
    %67 = arith.addf %66, %65 : vector<8x128xf32>
    %68 = arith.divf %66, %67 : vector<8x128xf32>
    %69 = arith.mulf %60, %8 : vector<8x128xf32>
    %70 = arith.mulf %54, %62 : vector<8x128xf32>
    %71 = arith.addf %69, %70 : vector<8x128xf32>
    %72 = math.tanh %71 : vector<8x128xf32>
    %73 = arith.mulf %68, %72 : vector<8x128xf32>
    %74 = arith.truncf %41 : vector<8x128xf32> to vector<8x128xbf16>
    %75 = arith.index_cast %c0_i32_12 : i32 to index
    %c0_24 = arith.constant 0 : index
    %c0_25 = arith.constant 0 : index
    %76 = vector.load %arg5[%75, %c0_24, %c0_25] : memref<8x8x128xbf16, #tpu.memory_space<vmem>>, vector<1x8x128xbf16>
    %77 = vector.shape_cast %76 : vector<1x8x128xbf16> to vector<8x128xbf16>
    %78 = vector.shape_cast %74 : vector<8x128xbf16> to vector<1x8x128xbf16>
    tpu.vector_store %arg5[%75, %c0_24, %c0_25], %78 {strides = array<i32>} : memref<8x8x128xbf16, #tpu.memory_space<vmem>>, vector<1x8x128xbf16>,
    %79 = arith.truncf %73 : vector<8x128xf32> to vector<8x128xbf16>
    %80 = arith.index_cast %9 : i32 to index
    %c0_26 = arith.constant 0 : index
    %c0_27 = arith.constant 0 : index
    %81 = vector.load %arg6[%80, %c0_26, %c0_27] : memref<8x8x128xbf16, #tpu.memory_space<vmem>>, vector<1x8x128xbf16>
    %82 = vector.shape_cast %81 : vector<1x8x128xbf16> to vector<8x128xbf16>
    %83 = vector.shape_cast %79 : vector<8x128xbf16> to vector<1x8x128xbf16>
    tpu.vector_store %arg6[%80, %c0_26, %c0_27], %83 {strides = array<i32>} : memref<8x8x128xbf16, #tpu.memory_space<vmem>>, vector<1x8x128xbf16>,
    %c1_i32 = arith.constant 1 : i32
    %c7_i32_28 = arith.constant 7 : i32
    %84 = arith.subi %c7_i32_28, %c1_i32 : i32
    %85 = arith.index_cast %c1_i32 : i32 to index
    %c0_29 = arith.constant 0 : index
    %c0_30 = arith.constant 0 : index
    %86 = vector.load %arg1[%85, %c0_29, %c0_30] : memref<8x8x512xbf16, #tpu.memory_space<vmem>>, vector<1x8x512xbf16>
    %87 = vector.shape_cast %86 : vector<1x8x512xbf16> to vector<8x512xbf16>
    %88 = arith.extf %87 : vector<8x512xbf16> to vector<8x512xf32>
    %89 = arith.truncf %41 : vector<8x128xf32> to vector<8x128xbf16>
    %cst_31 = arith.constant dense<0.000000e+00> : vector<8x512xf32>
    %90 = tpu.matmul %89, %3, %cst_31 {dimension_numbers = #tpu.dot_dimension_numbers<[1], [0], [0], [1], [0, 0, 1, 1], [], []>} : vector<8x128xbf16>, vector<128x512xbf16>, vector<8x512xf32> -> vector<8x512xf32>
    %91 = arith.addf %88, %90 : vector<8x512xf32>
    %92 = vector.extract_strided_slice %91 {offsets = [0, 0], sizes = [8, 128], strides = [1, 1]} : vector<8x512xf32> to vector<8x128xf32>
    %93 = arith.negf %92 : vector<8x128xf32>
    %94 = math.exp %93 : vector<8x128xf32>
    %cst_32 = arith.constant 1.000000e+00 : f32
    %95 = vector.broadcast %cst_32 : f32 to vector<8x128xf32>
    %96 = arith.addf %95, %94 : vector<8x128xf32>
    %97 = arith.divf %95, %96 : vector<8x128xf32>
    %98 = vector.extract_strided_slice %91 {offsets = [0, 128], sizes = [8, 128], strides = [1, 1]} : vector<8x512xf32> to vector<8x128xf32>
    %99 = arith.negf %98 : vector<8x128xf32>
    %100 = math.exp %99 : vector<8x128xf32>
    %cst_33 = arith.constant 1.000000e+00 : f32
    %101 = vector.broadcast %cst_33 : f32 to vector<8x128xf32>
    %102 = arith.addf %101, %100 : vector<8x128xf32>
    %103 = arith.divf %101, %102 : vector<8x128xf32>
    %104 = vector.extract_strided_slice %91 {offsets = [0, 256], sizes = [8, 128], strides = [1, 1]} : vector<8x512xf32> to vector<8x128xf32>
    %105 = math.tanh %104 : vector<8x128xf32>
    %106 = vector.extract_strided_slice %91 {offsets = [0, 384], sizes = [8, 128], strides = [1, 1]} : vector<8x512xf32> to vector<8x128xf32>
    %107 = arith.negf %106 : vector<8x128xf32>
    %108 = math.exp %107 : vector<8x128xf32>
    %cst_34 = arith.constant 1.000000e+00 : f32
    %109 = vector.broadcast %cst_34 : f32 to vector<8x128xf32>
    %110 = arith.addf %109, %108 : vector<8x128xf32>
    %111 = arith.divf %109, %110 : vector<8x128xf32>
    %112 = arith.mulf %103, %39 : vector<8x128xf32>
    %113 = arith.mulf %97, %105 : vector<8x128xf32>
    %114 = arith.addf %112, %113 : vector<8x128xf32>
    %115 = math.tanh %114 : vector<8x128xf32>
    %116 = arith.mulf %111, %115 : vector<8x128xf32>
    %117 = arith.index_cast %84 : i32 to index
    %c0_35 = arith.constant 0 : index
    %c0_36 = arith.constant 0 : index
    %118 = vector.load %arg2[%117, %c0_35, %c0_36] : memref<8x8x512xbf16, #tpu.memory_space<vmem>>, vector<1x8x512xbf16>
    %119 = vector.shape_cast %118 : vector<1x8x512xbf16> to vector<8x512xbf16>
    %120 = arith.extf %119 : vector<8x512xbf16> to vector<8x512xf32>
    %121 = arith.truncf %73 : vector<8x128xf32> to vector<8x128xbf16>
    %cst_37 = arith.constant dense<0.000000e+00> : vector<8x512xf32>
    %122 = tpu.matmul %121, %4, %cst_37 {dimension_numbers = #tpu.dot_dimension_numbers<[1], [0], [0], [1], [0, 0, 1, 1], [], []>} : vector<8x128xbf16>, vector<128x512xbf16>, vector<8x512xf32> -> vector<8x512xf32>
    %123 = arith.addf %120, %122 : vector<8x512xf32>
    %124 = vector.extract_strided_slice %123 {offsets = [0, 0], sizes = [8, 128], strides = [1, 1]} : vector<8x512xf32> to vector<8x128xf32>
    %125 = arith.negf %124 : vector<8x128xf32>
    %126 = math.exp %125 : vector<8x128xf32>
    %cst_38 = arith.constant 1.000000e+00 : f32
    %127 = vector.broadcast %cst_38 : f32 to vector<8x128xf32>
    %128 = arith.addf %127, %126 : vector<8x128xf32>
    %129 = arith.divf %127, %128 : vector<8x128xf32>
    %130 = vector.extract_strided_slice %123 {offsets = [0, 128], sizes = [8, 128], strides = [1, 1]} : vector<8x512xf32> to vector<8x128xf32>
    %131 = arith.negf %130 : vector<8x128xf32>
    %132 = math.exp %131 : vector<8x128xf32>
    %cst_39 = arith.constant 1.000000e+00 : f32
    %133 = vector.broadcast %cst_39 : f32 to vector<8x128xf32>
    %134 = arith.addf %133, %132 : vector<8x128xf32>
    %135 = arith.divf %133, %134 : vector<8x128xf32>
    %136 = vector.extract_strided_slice %123 {offsets = [0, 256], sizes = [8, 128], strides = [1, 1]} : vector<8x512xf32> to vector<8x128xf32>
    %137 = math.tanh %136 : vector<8x128xf32>
    %138 = vector.extract_strided_slice %123 {offsets = [0, 384], sizes = [8, 128], strides = [1, 1]} : vector<8x512xf32> to vector<8x128xf32>
    %139 = arith.negf %138 : vector<8x128xf32>
    %140 = math.exp %139 : vector<8x128xf32>
    %cst_40 = arith.constant 1.000000e+00 : f32
    %141 = vector.broadcast %cst_40 : f32 to vector<8x128xf32>
    %142 = arith.addf %141, %140 : vector<8x128xf32>
    %143 = arith.divf %141, %142 : vector<8x128xf32>
    %144 = arith.mulf %135, %71 : vector<8x128xf32>
    %145 = arith.mulf %129, %137 : vector<8x128xf32>
    %146 = arith.addf %144, %145 : vector<8x128xf32>
    %147 = math.tanh %146 : vector<8x128xf32>
    %148 = arith.mulf %143, %147 : vector<8x128xf32>
    %149 = arith.truncf %116 : vector<8x128xf32> to vector<8x128xbf16>
    %150 = arith.index_cast %c1_i32 : i32 to index
    %c0_41 = arith.constant 0 : index
    %c0_42 = arith.constant 0 : index
    %151 = vector.load %arg5[%150, %c0_41, %c0_42] : memref<8x8x128xbf16, #tpu.memory_space<vmem>>, vector<1x8x128xbf16>
    %152 = vector.shape_cast %151 : vector<1x8x128xbf16> to vector<8x128xbf16>
    %153 = vector.shape_cast %149 : vector<8x128xbf16> to vector<1x8x128xbf16>
    tpu.vector_store %arg5[%150, %c0_41, %c0_42], %153 {strides = array<i32>} : memref<8x8x128xbf16, #tpu.memory_space<vmem>>, vector<1x8x128xbf16>,
    %154 = arith.truncf %148 : vector<8x128xf32> to vector<8x128xbf16>
    %155 = arith.index_cast %84 : i32 to index
    %c0_43 = arith.constant 0 : index
    %c0_44 = arith.constant 0 : index
    %156 = vector.load %arg6[%155, %c0_43, %c0_44] : memref<8x8x128xbf16, #tpu.memory_space<vmem>>, vector<1x8x128xbf16>
    %157 = vector.shape_cast %156 : vector<1x8x128xbf16> to vector<8x128xbf16>
    %158 = vector.shape_cast %154 : vector<8x128xbf16> to vector<1x8x128xbf16>
    tpu.vector_store %arg6[%155, %c0_43, %c0_44], %158 {strides = array<i32>} : memref<8x8x128xbf16, #tpu.memory_space<vmem>>, vector<1x8x128xbf16>,
    %c2_i32 = arith.constant 2 : i32
    %c7_i32_45 = arith.constant 7 : i32
    %159 = arith.subi %c7_i32_45, %c2_i32 : i32
    %160 = arith.index_cast %c2_i32 : i32 to index
    %c0_46 = arith.constant 0 : index
    %c0_47 = arith.constant 0 : index
    %161 = vector.load %arg1[%160, %c0_46, %c0_47] : memref<8x8x512xbf16, #tpu.memory_space<vmem>>, vector<1x8x512xbf16>
    %162 = vector.shape_cast %161 : vector<1x8x512xbf16> to vector<8x512xbf16>
    %163 = arith.extf %162 : vector<8x512xbf16> to vector<8x512xf32>
    %164 = arith.truncf %116 : vector<8x128xf32> to vector<8x128xbf16>
    %cst_48 = arith.constant dense<0.000000e+00> : vector<8x512xf32>
    %165 = tpu.matmul %164, %3, %cst_48 {dimension_numbers = #tpu.dot_dimension_numbers<[1], [0], [0], [1], [0, 0, 1, 1], [], []>} : vector<8x128xbf16>, vector<128x512xbf16>, vector<8x512xf32> -> vector<8x512xf32>
    %166 = arith.addf %163, %165 : vector<8x512xf32>
    %167 = vector.extract_strided_slice %166 {offsets = [0, 0], sizes = [8, 128], strides = [1, 1]} : vector<8x512xf32> to vector<8x128xf32>
    %168 = arith.negf %167 : vector<8x128xf32>
    %169 = math.exp %168 : vector<8x128xf32>
    %cst_49 = arith.constant 1.000000e+00 : f32
    %170 = vector.broadcast %cst_49 : f32 to vector<8x128xf32>
    %171 = arith.addf %170, %169 : vector<8x128xf32>
    %172 = arith.divf %170, %171 : vector<8x128xf32>
    %173 = vector.extract_strided_slice %166 {offsets = [0, 128], sizes = [8, 128], strides = [1, 1]} : vector<8x512xf32> to vector<8x128xf32>
    %174 = arith.negf %173 : vector<8x128xf32>
    %175 = math.exp %174 : vector<8x128xf32>
    %cst_50 = arith.constant 1.000000e+00 : f32
    %176 = vector.broadcast %cst_50 : f32 to vector<8x128xf32>
    %177 = arith.addf %176, %175 : vector<8x128xf32>
    %178 = arith.divf %176, %177 : vector<8x128xf32>
    %179 = vector.extract_strided_slice %166 {offsets = [0, 256], sizes = [8, 128], strides = [1, 1]} : vector<8x512xf32> to vector<8x128xf32>
    %180 = math.tanh %179 : vector<8x128xf32>
    %181 = vector.extract_strided_slice %166 {offsets = [0, 384], sizes = [8, 128], strides = [1, 1]} : vector<8x512xf32> to vector<8x128xf32>
    %182 = arith.negf %181 : vector<8x128xf32>
    %183 = math.exp %182 : vector<8x128xf32>
    %cst_51 = arith.constant 1.000000e+00 : f32
    %184 = vector.broadcast %cst_51 : f32 to vector<8x128xf32>
    %185 = arith.addf %184, %183 : vector<8x128xf32>
    %186 = arith.divf %184, %185 : vector<8x128xf32>
    %187 = arith.mulf %178, %114 : vector<8x128xf32>
    %188 = arith.mulf %172, %180 : vector<8x128xf32>
    %189 = arith.addf %187, %188 : vector<8x128xf32>
    %190 = math.tanh %189 : vector<8x128xf32>
    %191 = arith.mulf %186, %190 : vector<8x128xf32>
    %192 = arith.index_cast %159 : i32 to index
    %c0_52 = arith.constant 0 : index
    %c0_53 = arith.constant 0 : index
    %193 = vector.load %arg2[%192, %c0_52, %c0_53] : memref<8x8x512xbf16, #tpu.memory_space<vmem>>, vector<1x8x512xbf16>
    %194 = vector.shape_cast %193 : vector<1x8x512xbf16> to vector<8x512xbf16>
    %195 = arith.extf %194 : vector<8x512xbf16> to vector<8x512xf32>
    %196 = arith.truncf %148 : vector<8x128xf32> to vector<8x128xbf16>
    %cst_54 = arith.constant dense<0.000000e+00> : vector<8x512xf32>
    %197 = tpu.matmul %196, %4, %cst_54 {dimension_numbers = #tpu.dot_dimension_numbers<[1], [0], [0], [1], [0, 0, 1, 1], [], []>} : vector<8x128xbf16>, vector<128x512xbf16>, vector<8x512xf32> -> vector<8x512xf32>
    %198 = arith.addf %195, %197 : vector<8x512xf32>
    %199 = vector.extract_strided_slice %198 {offsets = [0, 0], sizes = [8, 128], strides = [1, 1]} : vector<8x512xf32> to vector<8x128xf32>
    %200 = arith.negf %199 : vector<8x128xf32>
    %201 = math.exp %200 : vector<8x128xf32>
    %cst_55 = arith.constant 1.000000e+00 : f32
    %202 = vector.broadcast %cst_55 : f32 to vector<8x128xf32>
    %203 = arith.addf %202, %201 : vector<8x128xf32>
    %204 = arith.divf %202, %203 : vector<8x128xf32>
    %205 = vector.extract_strided_slice %198 {offsets = [0, 128], sizes = [8, 128], strides = [1, 1]} : vector<8x512xf32> to vector<8x128xf32>
    %206 = arith.negf %205 : vector<8x128xf32>
    %207 = math.exp %206 : vector<8x128xf32>
    %cst_56 = arith.constant 1.000000e+00 : f32
    %208 = vector.broadcast %cst_56 : f32 to vector<8x128xf32>
    %209 = arith.addf %208, %207 : vector<8x128xf32>
    %210 = arith.divf %208, %209 : vector<8x128xf32>
    %211 = vector.extract_strided_slice %198 {offsets = [0, 256], sizes = [8, 128], strides = [1, 1]} : vector<8x512xf32> to vector<8x128xf32>
    %212 = math.tanh %211 : vector<8x128xf32>
    %213 = vector.extract_strided_slice %198 {offsets = [0, 384], sizes = [8, 128], strides = [1, 1]} : vector<8x512xf32> to vector<8x128xf32>
    %214 = arith.negf %213 : vector<8x128xf32>
    %215 = math.exp %214 : vector<8x128xf32>
    %cst_57 = arith.constant 1.000000e+00 : f32
    %216 = vector.broadcast %cst_57 : f32 to vector<8x128xf32>
    %217 = arith.addf %216, %215 : vector<8x128xf32>
    %218 = arith.divf %216, %217 : vector<8x128xf32>
    %219 = arith.mulf %210, %146 : vector<8x128xf32>
    %220 = arith.mulf %204, %212 : vector<8x128xf32>
    %221 = arith.addf %219, %220 : vector<8x128xf32>
    %222 = math.tanh %221 : vector<8x128xf32>
    %223 = arith.mulf %218, %222 : vector<8x128xf32>
    %224 = arith.truncf %191 : vector<8x128xf32> to vector<8x128xbf16>
    %225 = arith.index_cast %c2_i32 : i32 to index
    %c0_58 = arith.constant 0 : index
    %c0_59 = arith.constant 0 : index
    %226 = vector.load %arg5[%225, %c0_58, %c0_59] : memref<8x8x128xbf16, #tpu.memory_space<vmem>>, vector<1x8x128xbf16>
    %227 = vector.shape_cast %226 : vector<1x8x128xbf16> to vector<8x128xbf16>
    %228 = vector.shape_cast %224 : vector<8x128xbf16> to vector<1x8x128xbf16>
    tpu.vector_store %arg5[%225, %c0_58, %c0_59], %228 {strides = array<i32>} : memref<8x8x128xbf16, #tpu.memory_space<vmem>>, vector<1x8x128xbf16>,
    %229 = arith.truncf %223 : vector<8x128xf32> to vector<8x128xbf16>
    %230 = arith.index_cast %159 : i32 to index
    %c0_60 = arith.constant 0 : index
    %c0_61 = arith.constant 0 : index
    %231 = vector.load %arg6[%230, %c0_60, %c0_61] : memref<8x8x128xbf16, #tpu.memory_space<vmem>>, vector<1x8x128xbf16>
    %232 = vector.shape_cast %231 : vector<1x8x128xbf16> to vector<8x128xbf16>
    %233 = vector.shape_cast %229 : vector<8x128xbf16> to vector<1x8x128xbf16>
    tpu.vector_store %arg6[%230, %c0_60, %c0_61], %233 {strides = array<i32>} : memref<8x8x128xbf16, #tpu.memory_space<vmem>>, vector<1x8x128xbf16>,
    %c3_i32 = arith.constant 3 : i32
    %c7_i32_62 = arith.constant 7 : i32
    %234 = arith.subi %c7_i32_62, %c3_i32 : i32
    %235 = arith.index_cast %c3_i32 : i32 to index
    %c0_63 = arith.constant 0 : index
    %c0_64 = arith.constant 0 : index
    %236 = vector.load %arg1[%235, %c0_63, %c0_64] : memref<8x8x512xbf16, #tpu.memory_space<vmem>>, vector<1x8x512xbf16>
    %237 = vector.shape_cast %236 : vector<1x8x512xbf16> to vector<8x512xbf16>
    %238 = arith.extf %237 : vector<8x512xbf16> to vector<8x512xf32>
    %239 = arith.truncf %191 : vector<8x128xf32> to vector<8x128xbf16>
    %cst_65 = arith.constant dense<0.000000e+00> : vector<8x512xf32>
    %240 = tpu.matmul %239, %3, %cst_65 {dimension_numbers = #tpu.dot_dimension_numbers<[1], [0], [0], [1], [0, 0, 1, 1], [], []>} : vector<8x128xbf16>, vector<128x512xbf16>, vector<8x512xf32> -> vector<8x512xf32>
    %241 = arith.addf %238, %240 : vector<8x512xf32>
    %242 = vector.extract_strided_slice %241 {offsets = [0, 0], sizes = [8, 128], strides = [1, 1]} : vector<8x512xf32> to vector<8x128xf32>
    %243 = arith.negf %242 : vector<8x128xf32>
    %244 = math.exp %243 : vector<8x128xf32>
    %cst_66 = arith.constant 1.000000e+00 : f32
    %245 = vector.broadcast %cst_66 : f32 to vector<8x128xf32>
    %246 = arith.addf %245, %244 : vector<8x128xf32>
    %247 = arith.divf %245, %246 : vector<8x128xf32>
    %248 = vector.extract_strided_slice %241 {offsets = [0, 128], sizes = [8, 128], strides = [1, 1]} : vector<8x512xf32> to vector<8x128xf32>
    %249 = arith.negf %248 : vector<8x128xf32>
    %250 = math.exp %249 : vector<8x128xf32>
    %cst_67 = arith.constant 1.000000e+00 : f32
    %251 = vector.broadcast %cst_67 : f32 to vector<8x128xf32>
    %252 = arith.addf %251, %250 : vector<8x128xf32>
    %253 = arith.divf %251, %252 : vector<8x128xf32>
    %254 = vector.extract_strided_slice %241 {offsets = [0, 256], sizes = [8, 128], strides = [1, 1]} : vector<8x512xf32> to vector<8x128xf32>
    %255 = math.tanh %254 : vector<8x128xf32>
    %256 = vector.extract_strided_slice %241 {offsets = [0, 384], sizes = [8, 128], strides = [1, 1]} : vector<8x512xf32> to vector<8x128xf32>
    %257 = arith.negf %256 : vector<8x128xf32>
    %258 = math.exp %257 : vector<8x128xf32>
    %cst_68 = arith.constant 1.000000e+00 : f32
    %259 = vector.broadcast %cst_68 : f32 to vector<8x128xf32>
    %260 = arith.addf %259, %258 : vector<8x128xf32>
    %261 = arith.divf %259, %260 : vector<8x128xf32>
    %262 = arith.mulf %253, %189 : vector<8x128xf32>
    %263 = arith.mulf %247, %255 : vector<8x128xf32>
    %264 = arith.addf %262, %263 : vector<8x128xf32>
    %265 = math.tanh %264 : vector<8x128xf32>
    %266 = arith.mulf %261, %265 : vector<8x128xf32>
    %267 = arith.index_cast %234 : i32 to index
    %c0_69 = arith.constant 0 : index
    %c0_70 = arith.constant 0 : index
    %268 = vector.load %arg2[%267, %c0_69, %c0_70] : memref<8x8x512xbf16, #tpu.memory_space<vmem>>, vector<1x8x512xbf16>
    %269 = vector.shape_cast %268 : vector<1x8x512xbf16> to vector<8x512xbf16>
    %270 = arith.extf %269 : vector<8x512xbf16> to vector<8x512xf32>
    %271 = arith.truncf %223 : vector<8x128xf32> to vector<8x128xbf16>
    %cst_71 = arith.constant dense<0.000000e+00> : vector<8x512xf32>
    %272 = tpu.matmul %271, %4, %cst_71 {dimension_numbers = #tpu.dot_dimension_numbers<[1], [0], [0], [1], [0, 0, 1, 1], [], []>} : vector<8x128xbf16>, vector<128x512xbf16>, vector<8x512xf32> -> vector<8x512xf32>
    %273 = arith.addf %270, %272 : vector<8x512xf32>
    %274 = vector.extract_strided_slice %273 {offsets = [0, 0], sizes = [8, 128], strides = [1, 1]} : vector<8x512xf32> to vector<8x128xf32>
    %275 = arith.negf %274 : vector<8x128xf32>
    %276 = math.exp %275 : vector<8x128xf32>
    %cst_72 = arith.constant 1.000000e+00 : f32
    %277 = vector.broadcast %cst_72 : f32 to vector<8x128xf32>
    %278 = arith.addf %277, %276 : vector<8x128xf32>
    %279 = arith.divf %277, %278 : vector<8x128xf32>
    %280 = vector.extract_strided_slice %273 {offsets = [0, 128], sizes = [8, 128], strides = [1, 1]} : vector<8x512xf32> to vector<8x128xf32>
    %281 = arith.negf %280 : vector<8x128xf32>
    %282 = math.exp %281 : vector<8x128xf32>
    %cst_73 = arith.constant 1.000000e+00 : f32
    %283 = vector.broadcast %cst_73 : f32 to vector<8x128xf32>
    %284 = arith.addf %283, %282 : vector<8x128xf32>
    %285 = arith.divf %283, %284 : vector<8x128xf32>
    %286 = vector.extract_strided_slice %273 {offsets = [0, 256], sizes = [8, 128], strides = [1, 1]} : vector<8x512xf32> to vector<8x128xf32>
    %287 = math.tanh %286 : vector<8x128xf32>
    %288 = vector.extract_strided_slice %273 {offsets = [0, 384], sizes = [8, 128], strides = [1, 1]} : vector<8x512xf32> to vector<8x128xf32>
    %289 = arith.negf %288 : vector<8x128xf32>
    %290 = math.exp %289 : vector<8x128xf32>
    %cst_74 = arith.constant 1.000000e+00 : f32
    %291 = vector.broadcast %cst_74 : f32 to vector<8x128xf32>
    %292 = arith.addf %291, %290 : vector<8x128xf32>
    %293 = arith.divf %291, %292 : vector<8x128xf32>
    %294 = arith.mulf %285, %221 : vector<8x128xf32>
    %295 = arith.mulf %279, %287 : vector<8x128xf32>
    %296 = arith.addf %294, %295 : vector<8x128xf32>
    %297 = math.tanh %296 : vector<8x128xf32>
    %298 = arith.mulf %293, %297 : vector<8x128xf32>
    %299 = arith.truncf %266 : vector<8x128xf32> to vector<8x128xbf16>
    %300 = arith.index_cast %c3_i32 : i32 to index
    %c0_75 = arith.constant 0 : index
    %c0_76 = arith.constant 0 : index
    %301 = vector.load %arg5[%300, %c0_75, %c0_76] : memref<8x8x128xbf16, #tpu.memory_space<vmem>>, vector<1x8x128xbf16>
    %302 = vector.shape_cast %301 : vector<1x8x128xbf16> to vector<8x128xbf16>
    %303 = vector.shape_cast %299 : vector<8x128xbf16> to vector<1x8x128xbf16>
    tpu.vector_store %arg5[%300, %c0_75, %c0_76], %303 {strides = array<i32>} : memref<8x8x128xbf16, #tpu.memory_space<vmem>>, vector<1x8x128xbf16>,
    %304 = arith.truncf %298 : vector<8x128xf32> to vector<8x128xbf16>
    %305 = arith.index_cast %234 : i32 to index
    %c0_77 = arith.constant 0 : index
    %c0_78 = arith.constant 0 : index
    %306 = vector.load %arg6[%305, %c0_77, %c0_78] : memref<8x8x128xbf16, #tpu.memory_space<vmem>>, vector<1x8x128xbf16>
    %307 = vector.shape_cast %306 : vector<1x8x128xbf16> to vector<8x128xbf16>
    %308 = vector.shape_cast %304 : vector<8x128xbf16> to vector<1x8x128xbf16>
    tpu.vector_store %arg6[%305, %c0_77, %c0_78], %308 {strides = array<i32>} : memref<8x8x128xbf16, #tpu.memory_space<vmem>>, vector<1x8x128xbf16>,
    %c4_i32 = arith.constant 4 : i32
    %c7_i32_79 = arith.constant 7 : i32
    %309 = arith.subi %c7_i32_79, %c4_i32 : i32
    %310 = arith.index_cast %c4_i32 : i32 to index
    %c0_80 = arith.constant 0 : index
    %c0_81 = arith.constant 0 : index
    %311 = vector.load %arg1[%310, %c0_80, %c0_81] : memref<8x8x512xbf16, #tpu.memory_space<vmem>>, vector<1x8x512xbf16>
    %312 = vector.shape_cast %311 : vector<1x8x512xbf16> to vector<8x512xbf16>
    %313 = arith.extf %312 : vector<8x512xbf16> to vector<8x512xf32>
    %314 = arith.truncf %266 : vector<8x128xf32> to vector<8x128xbf16>
    %cst_82 = arith.constant dense<0.000000e+00> : vector<8x512xf32>
    %315 = tpu.matmul %314, %3, %cst_82 {dimension_numbers = #tpu.dot_dimension_numbers<[1], [0], [0], [1], [0, 0, 1, 1], [], []>} : vector<8x128xbf16>, vector<128x512xbf16>, vector<8x512xf32> -> vector<8x512xf32>
    %316 = arith.addf %313, %315 : vector<8x512xf32>
    %317 = vector.extract_strided_slice %316 {offsets = [0, 0], sizes = [8, 128], strides = [1, 1]} : vector<8x512xf32> to vector<8x128xf32>
    %318 = arith.negf %317 : vector<8x128xf32>
    %319 = math.exp %318 : vector<8x128xf32>
    %cst_83 = arith.constant 1.000000e+00 : f32
    %320 = vector.broadcast %cst_83 : f32 to vector<8x128xf32>
    %321 = arith.addf %320, %319 : vector<8x128xf32>
    %322 = arith.divf %320, %321 : vector<8x128xf32>
    %323 = vector.extract_strided_slice %316 {offsets = [0, 128], sizes = [8, 128], strides = [1, 1]} : vector<8x512xf32> to vector<8x128xf32>
    %324 = arith.negf %323 : vector<8x128xf32>
    %325 = math.exp %324 : vector<8x128xf32>
    %cst_84 = arith.constant 1.000000e+00 : f32
    %326 = vector.broadcast %cst_84 : f32 to vector<8x128xf32>
    %327 = arith.addf %326, %325 : vector<8x128xf32>
    %328 = arith.divf %326, %327 : vector<8x128xf32>
    %329 = vector.extract_strided_slice %316 {offsets = [0, 256], sizes = [8, 128], strides = [1, 1]} : vector<8x512xf32> to vector<8x128xf32>
    %330 = math.tanh %329 : vector<8x128xf32>
    %331 = vector.extract_strided_slice %316 {offsets = [0, 384], sizes = [8, 128], strides = [1, 1]} : vector<8x512xf32> to vector<8x128xf32>
    %332 = arith.negf %331 : vector<8x128xf32>
    %333 = math.exp %332 : vector<8x128xf32>
    %cst_85 = arith.constant 1.000000e+00 : f32
    %334 = vector.broadcast %cst_85 : f32 to vector<8x128xf32>
    %335 = arith.addf %334, %333 : vector<8x128xf32>
    %336 = arith.divf %334, %335 : vector<8x128xf32>
    %337 = arith.mulf %328, %264 : vector<8x128xf32>
    %338 = arith.mulf %322, %330 : vector<8x128xf32>
    %339 = arith.addf %337, %338 : vector<8x128xf32>
    %340 = math.tanh %339 : vector<8x128xf32>
    %341 = arith.mulf %336, %340 : vector<8x128xf32>
    %342 = arith.index_cast %309 : i32 to index
    %c0_86 = arith.constant 0 : index
    %c0_87 = arith.constant 0 : index
    %343 = vector.load %arg2[%342, %c0_86, %c0_87] : memref<8x8x512xbf16, #tpu.memory_space<vmem>>, vector<1x8x512xbf16>
    %344 = vector.shape_cast %343 : vector<1x8x512xbf16> to vector<8x512xbf16>
    %345 = arith.extf %344 : vector<8x512xbf16> to vector<8x512xf32>
    %346 = arith.truncf %298 : vector<8x128xf32> to vector<8x128xbf16>
    %cst_88 = arith.constant dense<0.000000e+00> : vector<8x512xf32>
    %347 = tpu.matmul %346, %4, %cst_88 {dimension_numbers = #tpu.dot_dimension_numbers<[1], [0], [0], [1], [0, 0, 1, 1], [], []>} : vector<8x128xbf16>, vector<128x512xbf16>, vector<8x512xf32> -> vector<8x512xf32>
    %348 = arith.addf %345, %347 : vector<8x512xf32>
    %349 = vector.extract_strided_slice %348 {offsets = [0, 0], sizes = [8, 128], strides = [1, 1]} : vector<8x512xf32> to vector<8x128xf32>
    %350 = arith.negf %349 : vector<8x128xf32>
    %351 = math.exp %350 : vector<8x128xf32>
    %cst_89 = arith.constant 1.000000e+00 : f32
    %352 = vector.broadcast %cst_89 : f32 to vector<8x128xf32>
    %353 = arith.addf %352, %351 : vector<8x128xf32>
    %354 = arith.divf %352, %353 : vector<8x128xf32>
    %355 = vector.extract_strided_slice %348 {offsets = [0, 128], sizes = [8, 128], strides = [1, 1]} : vector<8x512xf32> to vector<8x128xf32>
    %356 = arith.negf %355 : vector<8x128xf32>
    %357 = math.exp %356 : vector<8x128xf32>
    %cst_90 = arith.constant 1.000000e+00 : f32
    %358 = vector.broadcast %cst_90 : f32 to vector<8x128xf32>
    %359 = arith.addf %358, %357 : vector<8x128xf32>
    %360 = arith.divf %358, %359 : vector<8x128xf32>
    %361 = vector.extract_strided_slice %348 {offsets = [0, 256], sizes = [8, 128], strides = [1, 1]} : vector<8x512xf32> to vector<8x128xf32>
    %362 = math.tanh %361 : vector<8x128xf32>
    %363 = vector.extract_strided_slice %348 {offsets = [0, 384], sizes = [8, 128], strides = [1, 1]} : vector<8x512xf32> to vector<8x128xf32>
    %364 = arith.negf %363 : vector<8x128xf32>
    %365 = math.exp %364 : vector<8x128xf32>
    %cst_91 = arith.constant 1.000000e+00 : f32
    %366 = vector.broadcast %cst_91 : f32 to vector<8x128xf32>
    %367 = arith.addf %366, %365 : vector<8x128xf32>
    %368 = arith.divf %366, %367 : vector<8x128xf32>
    %369 = arith.mulf %360, %296 : vector<8x128xf32>
    %370 = arith.mulf %354, %362 : vector<8x128xf32>
    %371 = arith.addf %369, %370 : vector<8x128xf32>
    %372 = math.tanh %371 : vector<8x128xf32>
    %373 = arith.mulf %368, %372 : vector<8x128xf32>
    %374 = arith.truncf %341 : vector<8x128xf32> to vector<8x128xbf16>
    %375 = arith.index_cast %c4_i32 : i32 to index
    %c0_92 = arith.constant 0 : index
    %c0_93 = arith.constant 0 : index
    %376 = vector.load %arg5[%375, %c0_92, %c0_93] : memref<8x8x128xbf16, #tpu.memory_space<vmem>>, vector<1x8x128xbf16>
    %377 = vector.shape_cast %376 : vector<1x8x128xbf16> to vector<8x128xbf16>
    %378 = vector.shape_cast %374 : vector<8x128xbf16> to vector<1x8x128xbf16>
    tpu.vector_store %arg5[%375, %c0_92, %c0_93], %378 {strides = array<i32>} : memref<8x8x128xbf16, #tpu.memory_space<vmem>>, vector<1x8x128xbf16>,
    %379 = arith.truncf %373 : vector<8x128xf32> to vector<8x128xbf16>
    %380 = arith.index_cast %309 : i32 to index
    %c0_94 = arith.constant 0 : index
    %c0_95 = arith.constant 0 : index
    %381 = vector.load %arg6[%380, %c0_94, %c0_95] : memref<8x8x128xbf16, #tpu.memory_space<vmem>>, vector<1x8x128xbf16>
    %382 = vector.shape_cast %381 : vector<1x8x128xbf16> to vector<8x128xbf16>
    %383 = vector.shape_cast %379 : vector<8x128xbf16> to vector<1x8x128xbf16>
    tpu.vector_store %arg6[%380, %c0_94, %c0_95], %383 {strides = array<i32>} : memref<8x8x128xbf16, #tpu.memory_space<vmem>>, vector<1x8x128xbf16>,
    %c5_i32 = arith.constant 5 : i32
    %c7_i32_96 = arith.constant 7 : i32
    %384 = arith.subi %c7_i32_96, %c5_i32 : i32
    %385 = arith.index_cast %c5_i32 : i32 to index
    %c0_97 = arith.constant 0 : index
    %c0_98 = arith.constant 0 : index
    %386 = vector.load %arg1[%385, %c0_97, %c0_98] : memref<8x8x512xbf16, #tpu.memory_space<vmem>>, vector<1x8x512xbf16>
    %387 = vector.shape_cast %386 : vector<1x8x512xbf16> to vector<8x512xbf16>
    %388 = arith.extf %387 : vector<8x512xbf16> to vector<8x512xf32>
    %389 = arith.truncf %341 : vector<8x128xf32> to vector<8x128xbf16>
    %cst_99 = arith.constant dense<0.000000e+00> : vector<8x512xf32>
    %390 = tpu.matmul %389, %3, %cst_99 {dimension_numbers = #tpu.dot_dimension_numbers<[1], [0], [0], [1], [0, 0, 1, 1], [], []>} : vector<8x128xbf16>, vector<128x512xbf16>, vector<8x512xf32> -> vector<8x512xf32>
    %391 = arith.addf %388, %390 : vector<8x512xf32>
    %392 = vector.extract_strided_slice %391 {offsets = [0, 0], sizes = [8, 128], strides = [1, 1]} : vector<8x512xf32> to vector<8x128xf32>
    %393 = arith.negf %392 : vector<8x128xf32>
    %394 = math.exp %393 : vector<8x128xf32>
    %cst_100 = arith.constant 1.000000e+00 : f32
    %395 = vector.broadcast %cst_100 : f32 to vector<8x128xf32>
    %396 = arith.addf %395, %394 : vector<8x128xf32>
    %397 = arith.divf %395, %396 : vector<8x128xf32>
    %398 = vector.extract_strided_slice %391 {offsets = [0, 128], sizes = [8, 128], strides = [1, 1]} : vector<8x512xf32> to vector<8x128xf32>
    %399 = arith.negf %398 : vector<8x128xf32>
    %400 = math.exp %399 : vector<8x128xf32>
    %cst_101 = arith.constant 1.000000e+00 : f32
    %401 = vector.broadcast %cst_101 : f32 to vector<8x128xf32>
    %402 = arith.addf %401, %400 : vector<8x128xf32>
    %403 = arith.divf %401, %402 : vector<8x128xf32>
    %404 = vector.extract_strided_slice %391 {offsets = [0, 256], sizes = [8, 128], strides = [1, 1]} : vector<8x512xf32> to vector<8x128xf32>
    %405 = math.tanh %404 : vector<8x128xf32>
    %406 = vector.extract_strided_slice %391 {offsets = [0, 384], sizes = [8, 128], strides = [1, 1]} : vector<8x512xf32> to vector<8x128xf32>
    %407 = arith.negf %406 : vector<8x128xf32>
    %408 = math.exp %407 : vector<8x128xf32>
    %cst_102 = arith.constant 1.000000e+00 : f32
    %409 = vector.broadcast %cst_102 : f32 to vector<8x128xf32>
    %410 = arith.addf %409, %408 : vector<8x128xf32>
    %411 = arith.divf %409, %410 : vector<8x128xf32>
    %412 = arith.mulf %403, %339 : vector<8x128xf32>
    %413 = arith.mulf %397, %405 : vector<8x128xf32>
    %414 = arith.addf %412, %413 : vector<8x128xf32>
    %415 = math.tanh %414 : vector<8x128xf32>
    %416 = arith.mulf %411, %415 : vector<8x128xf32>
    %417 = arith.index_cast %384 : i32 to index
    %c0_103 = arith.constant 0 : index
    %c0_104 = arith.constant 0 : index
    %418 = vector.load %arg2[%417, %c0_103, %c0_104] : memref<8x8x512xbf16, #tpu.memory_space<vmem>>, vector<1x8x512xbf16>
    %419 = vector.shape_cast %418 : vector<1x8x512xbf16> to vector<8x512xbf16>
    %420 = arith.extf %419 : vector<8x512xbf16> to vector<8x512xf32>
    %421 = arith.truncf %373 : vector<8x128xf32> to vector<8x128xbf16>
    %cst_105 = arith.constant dense<0.000000e+00> : vector<8x512xf32>
    %422 = tpu.matmul %421, %4, %cst_105 {dimension_numbers = #tpu.dot_dimension_numbers<[1], [0], [0], [1], [0, 0, 1, 1], [], []>} : vector<8x128xbf16>, vector<128x512xbf16>, vector<8x512xf32> -> vector<8x512xf32>
    %423 = arith.addf %420, %422 : vector<8x512xf32>
    %424 = vector.extract_strided_slice %423 {offsets = [0, 0], sizes = [8, 128], strides = [1, 1]} : vector<8x512xf32> to vector<8x128xf32>
    %425 = arith.negf %424 : vector<8x128xf32>
    %426 = math.exp %425 : vector<8x128xf32>
    %cst_106 = arith.constant 1.000000e+00 : f32
    %427 = vector.broadcast %cst_106 : f32 to vector<8x128xf32>
    %428 = arith.addf %427, %426 : vector<8x128xf32>
    %429 = arith.divf %427, %428 : vector<8x128xf32>
    %430 = vector.extract_strided_slice %423 {offsets = [0, 128], sizes = [8, 128], strides = [1, 1]} : vector<8x512xf32> to vector<8x128xf32>
    %431 = arith.negf %430 : vector<8x128xf32>
    %432 = math.exp %431 : vector<8x128xf32>
    %cst_107 = arith.constant 1.000000e+00 : f32
    %433 = vector.broadcast %cst_107 : f32 to vector<8x128xf32>
    %434 = arith.addf %433, %432 : vector<8x128xf32>
    %435 = arith.divf %433, %434 : vector<8x128xf32>
    %436 = vector.extract_strided_slice %423 {offsets = [0, 256], sizes = [8, 128], strides = [1, 1]} : vector<8x512xf32> to vector<8x128xf32>
    %437 = math.tanh %436 : vector<8x128xf32>
    %438 = vector.extract_strided_slice %423 {offsets = [0, 384], sizes = [8, 128], strides = [1, 1]} : vector<8x512xf32> to vector<8x128xf32>
    %439 = arith.negf %438 : vector<8x128xf32>
    %440 = math.exp %439 : vector<8x128xf32>
    %cst_108 = arith.constant 1.000000e+00 : f32
    %441 = vector.broadcast %cst_108 : f32 to vector<8x128xf32>
    %442 = arith.addf %441, %440 : vector<8x128xf32>
    %443 = arith.divf %441, %442 : vector<8x128xf32>
    %444 = arith.mulf %435, %371 : vector<8x128xf32>
    %445 = arith.mulf %429, %437 : vector<8x128xf32>
    %446 = arith.addf %444, %445 : vector<8x128xf32>
    %447 = math.tanh %446 : vector<8x128xf32>
    %448 = arith.mulf %443, %447 : vector<8x128xf32>
    %449 = arith.truncf %416 : vector<8x128xf32> to vector<8x128xbf16>
    %450 = arith.index_cast %c5_i32 : i32 to index
    %c0_109 = arith.constant 0 : index
    %c0_110 = arith.constant 0 : index
    %451 = vector.load %arg5[%450, %c0_109, %c0_110] : memref<8x8x128xbf16, #tpu.memory_space<vmem>>, vector<1x8x128xbf16>
    %452 = vector.shape_cast %451 : vector<1x8x128xbf16> to vector<8x128xbf16>
    %453 = vector.shape_cast %449 : vector<8x128xbf16> to vector<1x8x128xbf16>
    tpu.vector_store %arg5[%450, %c0_109, %c0_110], %453 {strides = array<i32>} : memref<8x8x128xbf16, #tpu.memory_space<vmem>>, vector<1x8x128xbf16>,
    %454 = arith.truncf %448 : vector<8x128xf32> to vector<8x128xbf16>
    %455 = arith.index_cast %384 : i32 to index
    %c0_111 = arith.constant 0 : index
    %c0_112 = arith.constant 0 : index
    %456 = vector.load %arg6[%455, %c0_111, %c0_112] : memref<8x8x128xbf16, #tpu.memory_space<vmem>>, vector<1x8x128xbf16>
    %457 = vector.shape_cast %456 : vector<1x8x128xbf16> to vector<8x128xbf16>
    %458 = vector.shape_cast %454 : vector<8x128xbf16> to vector<1x8x128xbf16>
    tpu.vector_store %arg6[%455, %c0_111, %c0_112], %458 {strides = array<i32>} : memref<8x8x128xbf16, #tpu.memory_space<vmem>>, vector<1x8x128xbf16>,
    %c6_i32 = arith.constant 6 : i32
    %c7_i32_113 = arith.constant 7 : i32
    %459 = arith.subi %c7_i32_113, %c6_i32 : i32
    %460 = arith.index_cast %c6_i32 : i32 to index
    %c0_114 = arith.constant 0 : index
    %c0_115 = arith.constant 0 : index
    %461 = vector.load %arg1[%460, %c0_114, %c0_115] : memref<8x8x512xbf16, #tpu.memory_space<vmem>>, vector<1x8x512xbf16>
    %462 = vector.shape_cast %461 : vector<1x8x512xbf16> to vector<8x512xbf16>
    %463 = arith.extf %462 : vector<8x512xbf16> to vector<8x512xf32>
    %464 = arith.truncf %416 : vector<8x128xf32> to vector<8x128xbf16>
    %cst_116 = arith.constant dense<0.000000e+00> : vector<8x512xf32>
    %465 = tpu.matmul %464, %3, %cst_116 {dimension_numbers = #tpu.dot_dimension_numbers<[1], [0], [0], [1], [0, 0, 1, 1], [], []>} : vector<8x128xbf16>, vector<128x512xbf16>, vector<8x512xf32> -> vector<8x512xf32>
    %466 = arith.addf %463, %465 : vector<8x512xf32>
    %467 = vector.extract_strided_slice %466 {offsets = [0, 0], sizes = [8, 128], strides = [1, 1]} : vector<8x512xf32> to vector<8x128xf32>
    %468 = arith.negf %467 : vector<8x128xf32>
    %469 = math.exp %468 : vector<8x128xf32>
    %cst_117 = arith.constant 1.000000e+00 : f32
    %470 = vector.broadcast %cst_117 : f32 to vector<8x128xf32>
    %471 = arith.addf %470, %469 : vector<8x128xf32>
    %472 = arith.divf %470, %471 : vector<8x128xf32>
    %473 = vector.extract_strided_slice %466 {offsets = [0, 128], sizes = [8, 128], strides = [1, 1]} : vector<8x512xf32> to vector<8x128xf32>
    %474 = arith.negf %473 : vector<8x128xf32>
    %475 = math.exp %474 : vector<8x128xf32>
    %cst_118 = arith.constant 1.000000e+00 : f32
    %476 = vector.broadcast %cst_118 : f32 to vector<8x128xf32>
    %477 = arith.addf %476, %475 : vector<8x128xf32>
    %478 = arith.divf %476, %477 : vector<8x128xf32>
    %479 = vector.extract_strided_slice %466 {offsets = [0, 256], sizes = [8, 128], strides = [1, 1]} : vector<8x512xf32> to vector<8x128xf32>
    %480 = math.tanh %479 : vector<8x128xf32>
    %481 = vector.extract_strided_slice %466 {offsets = [0, 384], sizes = [8, 128], strides = [1, 1]} : vector<8x512xf32> to vector<8x128xf32>
    %482 = arith.negf %481 : vector<8x128xf32>
    %483 = math.exp %482 : vector<8x128xf32>
    %cst_119 = arith.constant 1.000000e+00 : f32
    %484 = vector.broadcast %cst_119 : f32 to vector<8x128xf32>
    %485 = arith.addf %484, %483 : vector<8x128xf32>
    %486 = arith.divf %484, %485 : vector<8x128xf32>
    %487 = arith.mulf %478, %414 : vector<8x128xf32>
    %488 = arith.mulf %472, %480 : vector<8x128xf32>
    %489 = arith.addf %487, %488 : vector<8x128xf32>
    %490 = math.tanh %489 : vector<8x128xf32>
    %491 = arith.mulf %486, %490 : vector<8x128xf32>
    %492 = arith.index_cast %459 : i32 to index
    %c0_120 = arith.constant 0 : index
    %c0_121 = arith.constant 0 : index
    %493 = vector.load %arg2[%492, %c0_120, %c0_121] : memref<8x8x512xbf16, #tpu.memory_space<vmem>>, vector<1x8x512xbf16>
    %494 = vector.shape_cast %493 : vector<1x8x512xbf16> to vector<8x512xbf16>
    %495 = arith.extf %494 : vector<8x512xbf16> to vector<8x512xf32>
    %496 = arith.truncf %448 : vector<8x128xf32> to vector<8x128xbf16>
    %cst_122 = arith.constant dense<0.000000e+00> : vector<8x512xf32>
    %497 = tpu.matmul %496, %4, %cst_122 {dimension_numbers = #tpu.dot_dimension_numbers<[1], [0], [0], [1], [0, 0, 1, 1], [], []>} : vector<8x128xbf16>, vector<128x512xbf16>, vector<8x512xf32> -> vector<8x512xf32>
    %498 = arith.addf %495, %497 : vector<8x512xf32>
    %499 = vector.extract_strided_slice %498 {offsets = [0, 0], sizes = [8, 128], strides = [1, 1]} : vector<8x512xf32> to vector<8x128xf32>
    %500 = arith.negf %499 : vector<8x128xf32>
    %501 = math.exp %500 : vector<8x128xf32>
    %cst_123 = arith.constant 1.000000e+00 : f32
    %502 = vector.broadcast %cst_123 : f32 to vector<8x128xf32>
    %503 = arith.addf %502, %501 : vector<8x128xf32>
    %504 = arith.divf %502, %503 : vector<8x128xf32>
    %505 = vector.extract_strided_slice %498 {offsets = [0, 128], sizes = [8, 128], strides = [1, 1]} : vector<8x512xf32> to vector<8x128xf32>
    %506 = arith.negf %505 : vector<8x128xf32>
    %507 = math.exp %506 : vector<8x128xf32>
    %cst_124 = arith.constant 1.000000e+00 : f32
    %508 = vector.broadcast %cst_124 : f32 to vector<8x128xf32>
    %509 = arith.addf %508, %507 : vector<8x128xf32>
    %510 = arith.divf %508, %509 : vector<8x128xf32>
    %511 = vector.extract_strided_slice %498 {offsets = [0, 256], sizes = [8, 128], strides = [1, 1]} : vector<8x512xf32> to vector<8x128xf32>
    %512 = math.tanh %511 : vector<8x128xf32>
    %513 = vector.extract_strided_slice %498 {offsets = [0, 384], sizes = [8, 128], strides = [1, 1]} : vector<8x512xf32> to vector<8x128xf32>
    %514 = arith.negf %513 : vector<8x128xf32>
    %515 = math.exp %514 : vector<8x128xf32>
    %cst_125 = arith.constant 1.000000e+00 : f32
    %516 = vector.broadcast %cst_125 : f32 to vector<8x128xf32>
    %517 = arith.addf %516, %515 : vector<8x128xf32>
    %518 = arith.divf %516, %517 : vector<8x128xf32>
    %519 = arith.mulf %510, %446 : vector<8x128xf32>
    %520 = arith.mulf %504, %512 : vector<8x128xf32>
    %521 = arith.addf %519, %520 : vector<8x128xf32>
    %522 = math.tanh %521 : vector<8x128xf32>
    %523 = arith.mulf %518, %522 : vector<8x128xf32>
    %524 = arith.truncf %491 : vector<8x128xf32> to vector<8x128xbf16>
    %525 = arith.index_cast %c6_i32 : i32 to index
    %c0_126 = arith.constant 0 : index
    %c0_127 = arith.constant 0 : index
    %526 = vector.load %arg5[%525, %c0_126, %c0_127] : memref<8x8x128xbf16, #tpu.memory_space<vmem>>, vector<1x8x128xbf16>
    %527 = vector.shape_cast %526 : vector<1x8x128xbf16> to vector<8x128xbf16>
    %528 = vector.shape_cast %524 : vector<8x128xbf16> to vector<1x8x128xbf16>
    tpu.vector_store %arg5[%525, %c0_126, %c0_127], %528 {strides = array<i32>} : memref<8x8x128xbf16, #tpu.memory_space<vmem>>, vector<1x8x128xbf16>,
    %529 = arith.truncf %523 : vector<8x128xf32> to vector<8x128xbf16>
    %530 = arith.index_cast %459 : i32 to index
    %c0_128 = arith.constant 0 : index
    %c0_129 = arith.constant 0 : index
    %531 = vector.load %arg6[%530, %c0_128, %c0_129] : memref<8x8x128xbf16, #tpu.memory_space<vmem>>, vector<1x8x128xbf16>
    %532 = vector.shape_cast %531 : vector<1x8x128xbf16> to vector<8x128xbf16>
    %533 = vector.shape_cast %529 : vector<8x128xbf16> to vector<1x8x128xbf16>
    tpu.vector_store %arg6[%530, %c0_128, %c0_129], %533 {strides = array<i32>} : memref<8x8x128xbf16, #tpu.memory_space<vmem>>, vector<1x8x128xbf16>,
    %c7_i32_130 = arith.constant 7 : i32
    %c7_i32_131 = arith.constant 7 : i32
    %534 = arith.subi %c7_i32_131, %c7_i32_130 : i32
    %535 = arith.index_cast %c7_i32_130 : i32 to index
    %c0_132 = arith.constant 0 : index
    %c0_133 = arith.constant 0 : index
    %536 = vector.load %arg1[%535, %c0_132, %c0_133] : memref<8x8x512xbf16, #tpu.memory_space<vmem>>, vector<1x8x512xbf16>
    %537 = vector.shape_cast %536 : vector<1x8x512xbf16> to vector<8x512xbf16>
    %538 = arith.extf %537 : vector<8x512xbf16> to vector<8x512xf32>
    %539 = arith.truncf %491 : vector<8x128xf32> to vector<8x128xbf16>
    %cst_134 = arith.constant dense<0.000000e+00> : vector<8x512xf32>
    %540 = tpu.matmul %539, %3, %cst_134 {dimension_numbers = #tpu.dot_dimension_numbers<[1], [0], [0], [1], [0, 0, 1, 1], [], []>} : vector<8x128xbf16>, vector<128x512xbf16>, vector<8x512xf32> -> vector<8x512xf32>
    %541 = arith.addf %538, %540 : vector<8x512xf32>
    %542 = vector.extract_strided_slice %541 {offsets = [0, 0], sizes = [8, 128], strides = [1, 1]} : vector<8x512xf32> to vector<8x128xf32>
    %543 = arith.negf %542 : vector<8x128xf32>
    %544 = math.exp %543 : vector<8x128xf32>
    %cst_135 = arith.constant 1.000000e+00 : f32
    %545 = vector.broadcast %cst_135 : f32 to vector<8x128xf32>
    %546 = arith.addf %545, %544 : vector<8x128xf32>
    %547 = arith.divf %545, %546 : vector<8x128xf32>
    %548 = vector.extract_strided_slice %541 {offsets = [0, 128], sizes = [8, 128], strides = [1, 1]} : vector<8x512xf32> to vector<8x128xf32>
    %549 = arith.negf %548 : vector<8x128xf32>
    %550 = math.exp %549 : vector<8x128xf32>
    %cst_136 = arith.constant 1.000000e+00 : f32
    %551 = vector.broadcast %cst_136 : f32 to vector<8x128xf32>
    %552 = arith.addf %551, %550 : vector<8x128xf32>
    %553 = arith.divf %551, %552 : vector<8x128xf32>
    %554 = vector.extract_strided_slice %541 {offsets = [0, 256], sizes = [8, 128], strides = [1, 1]} : vector<8x512xf32> to vector<8x128xf32>
    %555 = math.tanh %554 : vector<8x128xf32>
    %556 = vector.extract_strided_slice %541 {offsets = [0, 384], sizes = [8, 128], strides = [1, 1]} : vector<8x512xf32> to vector<8x128xf32>
    %557 = arith.negf %556 : vector<8x128xf32>
    %558 = math.exp %557 : vector<8x128xf32>
    %cst_137 = arith.constant 1.000000e+00 : f32
    %559 = vector.broadcast %cst_137 : f32 to vector<8x128xf32>
    %560 = arith.addf %559, %558 : vector<8x128xf32>
    %561 = arith.divf %559, %560 : vector<8x128xf32>
    %562 = arith.mulf %553, %489 : vector<8x128xf32>
    %563 = arith.mulf %547, %555 : vector<8x128xf32>
    %564 = arith.addf %562, %563 : vector<8x128xf32>
    %565 = math.tanh %564 : vector<8x128xf32>
    %566 = arith.mulf %561, %565 : vector<8x128xf32>
    %567 = arith.index_cast %534 : i32 to index
    %c0_138 = arith.constant 0 : index
    %c0_139 = arith.constant 0 : index
    %568 = vector.load %arg2[%567, %c0_138, %c0_139] : memref<8x8x512xbf16, #tpu.memory_space<vmem>>, vector<1x8x512xbf16>
    %569 = vector.shape_cast %568 : vector<1x8x512xbf16> to vector<8x512xbf16>
    %570 = arith.extf %569 : vector<8x512xbf16> to vector<8x512xf32>
    %571 = arith.truncf %523 : vector<8x128xf32> to vector<8x128xbf16>
    %cst_140 = arith.constant dense<0.000000e+00> : vector<8x512xf32>
    %572 = tpu.matmul %571, %4, %cst_140 {dimension_numbers = #tpu.dot_dimension_numbers<[1], [0], [0], [1], [0, 0, 1, 1], [], []>} : vector<8x128xbf16>, vector<128x512xbf16>, vector<8x512xf32> -> vector<8x512xf32>
    %573 = arith.addf %570, %572 : vector<8x512xf32>
    %574 = vector.extract_strided_slice %573 {offsets = [0, 0], sizes = [8, 128], strides = [1, 1]} : vector<8x512xf32> to vector<8x128xf32>
    %575 = arith.negf %574 : vector<8x128xf32>
    %576 = math.exp %575 : vector<8x128xf32>
    %cst_141 = arith.constant 1.000000e+00 : f32
    %577 = vector.broadcast %cst_141 : f32 to vector<8x128xf32>
    %578 = arith.addf %577, %576 : vector<8x128xf32>
    %579 = arith.divf %577, %578 : vector<8x128xf32>
    %580 = vector.extract_strided_slice %573 {offsets = [0, 128], sizes = [8, 128], strides = [1, 1]} : vector<8x512xf32> to vector<8x128xf32>
    %581 = arith.negf %580 : vector<8x128xf32>
    %582 = math.exp %581 : vector<8x128xf32>
    %cst_142 = arith.constant 1.000000e+00 : f32
    %583 = vector.broadcast %cst_142 : f32 to vector<8x128xf32>
    %584 = arith.addf %583, %582 : vector<8x128xf32>
    %585 = arith.divf %583, %584 : vector<8x128xf32>
    %586 = vector.extract_strided_slice %573 {offsets = [0, 256], sizes = [8, 128], strides = [1, 1]} : vector<8x512xf32> to vector<8x128xf32>
    %587 = math.tanh %586 : vector<8x128xf32>
    %588 = vector.extract_strided_slice %573 {offsets = [0, 384], sizes = [8, 128], strides = [1, 1]} : vector<8x512xf32> to vector<8x128xf32>
    %589 = arith.negf %588 : vector<8x128xf32>
    %590 = math.exp %589 : vector<8x128xf32>
    %cst_143 = arith.constant 1.000000e+00 : f32
    %591 = vector.broadcast %cst_143 : f32 to vector<8x128xf32>
    %592 = arith.addf %591, %590 : vector<8x128xf32>
    %593 = arith.divf %591, %592 : vector<8x128xf32>
    %594 = arith.mulf %585, %521 : vector<8x128xf32>
    %595 = arith.mulf %579, %587 : vector<8x128xf32>
    %596 = arith.addf %594, %595 : vector<8x128xf32>
    %597 = math.tanh %596 : vector<8x128xf32>
    %598 = arith.mulf %593, %597 : vector<8x128xf32>
    %599 = arith.truncf %566 : vector<8x128xf32> to vector<8x128xbf16>
    %600 = arith.index_cast %c7_i32_130 : i32 to index
    %c0_144 = arith.constant 0 : index
    %c0_145 = arith.constant 0 : index
    %601 = vector.load %arg5[%600, %c0_144, %c0_145] : memref<8x8x128xbf16, #tpu.memory_space<vmem>>, vector<1x8x128xbf16>
    %602 = vector.shape_cast %601 : vector<1x8x128xbf16> to vector<8x128xbf16>
    %603 = vector.shape_cast %599 : vector<8x128xbf16> to vector<1x8x128xbf16>
    tpu.vector_store %arg5[%600, %c0_144, %c0_145], %603 {strides = array<i32>} : memref<8x8x128xbf16, #tpu.memory_space<vmem>>, vector<1x8x128xbf16>,
    %604 = arith.truncf %598 : vector<8x128xf32> to vector<8x128xbf16>
    %605 = arith.index_cast %534 : i32 to index
    %c0_146 = arith.constant 0 : index
    %c0_147 = arith.constant 0 : index
    %606 = vector.load %arg6[%605, %c0_146, %c0_147] : memref<8x8x128xbf16, #tpu.memory_space<vmem>>, vector<1x8x128xbf16>
    %607 = vector.shape_cast %606 : vector<1x8x128xbf16> to vector<8x128xbf16>
    %608 = vector.shape_cast %604 : vector<8x128xbf16> to vector<1x8x128xbf16>
    tpu.vector_store %arg6[%605, %c0_146, %c0_147], %608 {strides = array<i32>} : memref<8x8x128xbf16, #tpu.memory_space<vmem>>, vector<1x8x128xbf16>,
    %c8_i32 = arith.constant 8 : i32
    %c0_148 = arith.constant 0 : index
    %c0_149 = arith.constant 0 : index
    %609 = vector.load %arg7[%c0_148, %c0_149] : memref<8x128xf32, #tpu.memory_space<vmem>>, vector<8x128xf32>
    tpu.vector_store %arg7[%c0_148, %c0_149], %566 {strides = array<i32>} : memref<8x128xf32, #tpu.memory_space<vmem>>, vector<8x128xf32>,
    %c0_150 = arith.constant 0 : index
    %c0_151 = arith.constant 0 : index
    %610 = vector.load %arg8[%c0_150, %c0_151] : memref<8x128xf32, #tpu.memory_space<vmem>>, vector<8x128xf32>
    tpu.vector_store %arg8[%c0_150, %c0_151], %564 {strides = array<i32>} : memref<8x128xf32, #tpu.memory_space<vmem>>, vector<8x128xf32>,
    %c0_152 = arith.constant 0 : index
    %c0_153 = arith.constant 0 : index
    %611 = vector.load %arg9[%c0_152, %c0_153] : memref<8x128xf32, #tpu.memory_space<vmem>>, vector<8x128xf32>
    tpu.vector_store %arg9[%c0_152, %c0_153], %598 {strides = array<i32>} : memref<8x128xf32, #tpu.memory_space<vmem>>, vector<8x128xf32>,
    %c0_154 = arith.constant 0 : index
    %c0_155 = arith.constant 0 : index
    %612 = vector.load %arg10[%c0_154, %c0_155] : memref<8x128xf32, #tpu.memory_space<vmem>>, vector<8x128xf32>
    tpu.vector_store %arg10[%c0_154, %c0_155], %596 {strides = array<i32>} : memref<8x128xf32, #tpu.memory_space<vmem>>, vector<8x128xf32>,
    return
  }
  func.func @transform_0(%arg0: i32) -> (i32, i32, i32) {
    %c0_i32 = arith.constant 0 : i32
    %c0_i32_0 = arith.constant 0 : i32
    %c0_i32_1 = arith.constant 0 : i32
    return %arg0, %c0_i32, %c0_i32_0 : i32, i32, i32
  }
  func.func @transform_1(%arg0: i32) -> (i32, i32, i32) {
    %c0_i32 = arith.constant 0 : i32
    %0 = arith.subi %c0_i32, %arg0 : i32
    %c0_i32_0 = arith.constant 0 : i32
    %c0_i32_1 = arith.constant 0 : i32
    %c0_i32_2 = arith.constant 0 : i32
    return %0, %c0_i32_0, %c0_i32_1 : i32, i32, i32
  }
  func.func @transform_2(%arg0: i32) -> (i32, i32) {
    %c0_i32 = arith.constant 0 : i32
    %c0_i32_0 = arith.constant 0 : i32
    %c0_i32_1 = arith.constant 0 : i32
    return %c0_i32, %c0_i32_0 : i32, i32
  }
  func.func @transform_3(%arg0: i32) -> (i32, i32) {
    %c0_i32 = arith.constant 0 : i32
    %c0_i32_0 = arith.constant 0 : i32
    %c0_i32_1 = arith.constant 0 : i32
    return %c0_i32, %c0_i32_0 : i32, i32
  }
  func.func @transform_4(%arg0: i32) -> (i32, i32, i32) {
    %c0_i32 = arith.constant 0 : i32
    %c0_i32_0 = arith.constant 0 : i32
    %c0_i32_1 = arith.constant 0 : i32
    return %arg0, %c0_i32, %c0_i32_0 : i32, i32, i32
  }
  func.func @transform_5(%arg0: i32) -> (i32, i32, i32) {
    %c0_i32 = arith.constant 0 : i32
    %0 = arith.subi %c0_i32, %arg0 : i32
    %c0_i32_0 = arith.constant 0 : i32
    %c0_i32_1 = arith.constant 0 : i32
    %c0_i32_2 = arith.constant 0 : i32
    return %0, %c0_i32_0, %c0_i32_1 : i32, i32, i32
  }
}

module attributes {stable_mosaic.version = 11 : i64} {
  func.func @_gates2_kernel(%arg0: i32, %arg1: i32, %arg2: memref<64x128xbf16, #tpu.memory_space<vmem>>, %arg3: memref<64x128xbf16, #tpu.memory_space<vmem>>, %arg4: memref<128x512xbf16, #tpu.memory_space<vmem>>, %arg5: memref<128x512xbf16, #tpu.memory_space<vmem>>, %arg6: memref<128x512xbf16, #tpu.memory_space<vmem>>, %arg7: memref<128x512xbf16, #tpu.memory_space<vmem>>, %arg8: memref<64x512xbf16, #tpu.memory_space<vmem>>, %arg9: memref<64x512xbf16, #tpu.memory_space<vmem>>, %arg10: memref<64x512xbf16, #tpu.memory_space<vmem>>, %arg11: memref<64x512xbf16, #tpu.memory_space<vmem>>) attributes {dimension_semantics = [#tpu.dimension_semantics<parallel>, #tpu.dimension_semantics<parallel>], iteration_bounds = array<i64: 1, 1>, scalar_prefetch = 0 : i64, scratch_operands = 0 : i64, tpu.core_type = #tpu.core_type<tc>, window_params = [{transform_indices = @transform_0, window_bounds = array<i64: 64, 128>}, {transform_indices = @transform_1, window_bounds = array<i64: 64, 128>}, {transform_indices = @transform_2, window_bounds = array<i64: 128, 512>}, {transform_indices = @transform_3, window_bounds = array<i64: 128, 512>}, {transform_indices = @transform_4, window_bounds = array<i64: 128, 512>}, {transform_indices = @transform_5, window_bounds = array<i64: 128, 512>}, {transform_indices = @transform_6, window_bounds = array<i64: 64, 512>}, {transform_indices = @transform_7, window_bounds = array<i64: 64, 512>}, {transform_indices = @transform_8, window_bounds = array<i64: 64, 512>}, {transform_indices = @transform_9, window_bounds = array<i64: 64, 512>}]} {
    %c0 = arith.constant 0 : index
    %c0_0 = arith.constant 0 : index
    %0 = vector.load %arg2[%c0, %c0_0] : memref<64x128xbf16, #tpu.memory_space<vmem>>, vector<64x128xbf16>
    %c0_1 = arith.constant 0 : index
    %c0_2 = arith.constant 0 : index
    %1 = vector.load %arg3[%c0_1, %c0_2] : memref<64x128xbf16, #tpu.memory_space<vmem>>, vector<64x128xbf16>
    %c0_3 = arith.constant 0 : index
    %c0_4 = arith.constant 0 : index
    %2 = vector.load %arg4[%c0_3, %c0_4] : memref<128x512xbf16, #tpu.memory_space<vmem>>, vector<128x512xbf16>
    %cst = arith.constant dense<0.000000e+00> : vector<64x512xf32>
    %3 = tpu.matmul %0, %2, %cst {dimension_numbers = #tpu.dot_dimension_numbers<[1], [0], [0], [1], [0, 0, 1, 1], [], []>} : vector<64x128xbf16>, vector<128x512xbf16>, vector<64x512xf32> -> vector<64x512xf32>
    %c0_5 = arith.constant 0 : index
    %c0_6 = arith.constant 0 : index
    %4 = vector.load %arg5[%c0_5, %c0_6] : memref<128x512xbf16, #tpu.memory_space<vmem>>, vector<128x512xbf16>
    %cst_7 = arith.constant dense<0.000000e+00> : vector<64x512xf32>
    %5 = tpu.matmul %1, %4, %cst_7 {dimension_numbers = #tpu.dot_dimension_numbers<[1], [0], [0], [1], [0, 0, 1, 1], [], []>} : vector<64x128xbf16>, vector<128x512xbf16>, vector<64x512xf32> -> vector<64x512xf32>
    %6 = arith.addf %3, %5 : vector<64x512xf32>
    %c0_8 = arith.constant 0 : index
    %c0_9 = arith.constant 0 : index
    %7 = vector.load %arg6[%c0_8, %c0_9] : memref<128x512xbf16, #tpu.memory_space<vmem>>, vector<128x512xbf16>
    %cst_10 = arith.constant dense<0.000000e+00> : vector<64x512xf32>
    %8 = tpu.matmul %0, %7, %cst_10 {dimension_numbers = #tpu.dot_dimension_numbers<[1], [0], [0], [1], [0, 0, 1, 1], [], []>} : vector<64x128xbf16>, vector<128x512xbf16>, vector<64x512xf32> -> vector<64x512xf32>
    %c0_11 = arith.constant 0 : index
    %c0_12 = arith.constant 0 : index
    %9 = vector.load %arg7[%c0_11, %c0_12] : memref<128x512xbf16, #tpu.memory_space<vmem>>, vector<128x512xbf16>
    %cst_13 = arith.constant dense<0.000000e+00> : vector<64x512xf32>
    %10 = tpu.matmul %1, %9, %cst_13 {dimension_numbers = #tpu.dot_dimension_numbers<[1], [0], [0], [1], [0, 0, 1, 1], [], []>} : vector<64x128xbf16>, vector<128x512xbf16>, vector<64x512xf32> -> vector<64x512xf32>
    %11 = arith.addf %8, %10 : vector<64x512xf32>
    %c0_14 = arith.constant 0 : index
    %c0_15 = arith.constant 0 : index
    %12 = vector.load %arg8[%c0_14, %c0_15] : memref<64x512xbf16, #tpu.memory_space<vmem>>, vector<64x512xbf16>
    %13 = arith.extf %12 : vector<64x512xbf16> to vector<64x512xf32>
    %14 = arith.addf %6, %13 : vector<64x512xf32>
    %15 = arith.truncf %14 : vector<64x512xf32> to vector<64x512xbf16>
    %c0_16 = arith.constant 0 : index
    %c0_17 = arith.constant 0 : index
    %16 = vector.load %arg10[%c0_16, %c0_17] : memref<64x512xbf16, #tpu.memory_space<vmem>>, vector<64x512xbf16>
    tpu.vector_store %arg10[%c0_16, %c0_17], %15 {strides = array<i32>} : memref<64x512xbf16, #tpu.memory_space<vmem>>, vector<64x512xbf16>,
    %c0_18 = arith.constant 0 : index
    %c0_19 = arith.constant 0 : index
    %17 = vector.load %arg9[%c0_18, %c0_19] : memref<64x512xbf16, #tpu.memory_space<vmem>>, vector<64x512xbf16>
    %18 = arith.extf %17 : vector<64x512xbf16> to vector<64x512xf32>
    %19 = arith.addf %11, %18 : vector<64x512xf32>
    %20 = arith.truncf %19 : vector<64x512xf32> to vector<64x512xbf16>
    %c0_20 = arith.constant 0 : index
    %c0_21 = arith.constant 0 : index
    %21 = vector.load %arg11[%c0_20, %c0_21] : memref<64x512xbf16, #tpu.memory_space<vmem>>, vector<64x512xbf16>
    tpu.vector_store %arg11[%c0_20, %c0_21], %20 {strides = array<i32>} : memref<64x512xbf16, #tpu.memory_space<vmem>>, vector<64x512xbf16>,
    return
  }
  func.func @transform_0(%arg0: i32, %arg1: i32) -> (i32, i32) {
    %c0_i32 = arith.constant 0 : i32
    %c0_i32_0 = arith.constant 0 : i32
    return %arg0, %c0_i32 : i32, i32
  }
  func.func @transform_1(%arg0: i32, %arg1: i32) -> (i32, i32) {
    %c0_i32 = arith.constant 0 : i32
    %c0_i32_0 = arith.constant 0 : i32
    return %arg0, %c0_i32 : i32, i32
  }
  func.func @transform_2(%arg0: i32, %arg1: i32) -> (i32, i32) {
    %c0_i32 = arith.constant 0 : i32
    %c0_i32_0 = arith.constant 0 : i32
    return %c0_i32, %arg1 : i32, i32
  }
  func.func @transform_3(%arg0: i32, %arg1: i32) -> (i32, i32) {
    %c0_i32 = arith.constant 0 : i32
    %c0_i32_0 = arith.constant 0 : i32
    return %c0_i32, %arg1 : i32, i32
  }
  func.func @transform_4(%arg0: i32, %arg1: i32) -> (i32, i32) {
    %c0_i32 = arith.constant 0 : i32
    %c0_i32_0 = arith.constant 0 : i32
    return %c0_i32, %arg1 : i32, i32
  }
  func.func @transform_5(%arg0: i32, %arg1: i32) -> (i32, i32) {
    %c0_i32 = arith.constant 0 : i32
    %c0_i32_0 = arith.constant 0 : i32
    return %c0_i32, %arg1 : i32, i32
  }
  func.func @transform_6(%arg0: i32, %arg1: i32) -> (i32, i32) {
    %c0_i32 = arith.constant 0 : i32
    %c0_i32_0 = arith.constant 0 : i32
    return %c0_i32, %arg1 : i32, i32
  }
  func.func @transform_7(%arg0: i32, %arg1: i32) -> (i32, i32) {
    %c0_i32 = arith.constant 0 : i32
    %c0_i32_0 = arith.constant 0 : i32
    return %c0_i32, %arg1 : i32, i32
  }
  func.func @transform_8(%arg0: i32, %arg1: i32) -> (i32, i32) {
    %c0_i32 = arith.constant 0 : i32
    return %arg0, %arg1 : i32, i32
  }
  func.func @transform_9(%arg0: i32, %arg1: i32) -> (i32, i32) {
    %c0_i32 = arith.constant 0 : i32
    return %arg0, %arg1 : i32, i32
  }
}

module attributes {stable_mosaic.version = 11 : i64} {
  func.func @_outproj_kernel(%arg0: i32, %arg1: memref<64x128xbf16, #tpu.memory_space<vmem>>, %arg2: memref<64x128xbf16, #tpu.memory_space<vmem>>, %arg3: memref<128x128xbf16, #tpu.memory_space<vmem>>, %arg4: memref<128x128xbf16, #tpu.memory_space<vmem>>, %arg5: memref<1x128xf32, #tpu.memory_space<vmem>>, %arg6: memref<64x128xf32, #tpu.memory_space<vmem>>) attributes {dimension_semantics = [#tpu.dimension_semantics<parallel>], iteration_bounds = array<i64: 1>, scalar_prefetch = 0 : i64, scratch_operands = 0 : i64, tpu.core_type = #tpu.core_type<tc>, window_params = [{transform_indices = @transform_0, window_bounds = array<i64: 64, 128>}, {transform_indices = @transform_1, window_bounds = array<i64: 64, 128>}, {pipeline_mode = #tpu.pipeline_mode<synchronous>, transform_indices = @transform_2, window_bounds = array<i64: 128, 128>}, {pipeline_mode = #tpu.pipeline_mode<synchronous>, transform_indices = @transform_3, window_bounds = array<i64: 128, 128>}, {pipeline_mode = #tpu.pipeline_mode<synchronous>, transform_indices = @transform_4, window_bounds = array<i64: 1, 128>}, {transform_indices = @transform_5, window_bounds = array<i64: 64, 128>}]} {
    %c0 = arith.constant 0 : index
    %c0_0 = arith.constant 0 : index
    %0 = vector.load %arg1[%c0, %c0_0] : memref<64x128xbf16, #tpu.memory_space<vmem>>, vector<64x128xbf16>
    %c0_1 = arith.constant 0 : index
    %c0_2 = arith.constant 0 : index
    %1 = vector.load %arg3[%c0_1, %c0_2] : memref<128x128xbf16, #tpu.memory_space<vmem>>, vector<128x128xbf16>
    %cst = arith.constant dense<0.000000e+00> : vector<64x128xf32>
    %2 = tpu.matmul %0, %1, %cst {dimension_numbers = #tpu.dot_dimension_numbers<[1], [0], [0], [1], [0, 0, 1, 1], [], []>} : vector<64x128xbf16>, vector<128x128xbf16>, vector<64x128xf32> -> vector<64x128xf32>
    %c0_3 = arith.constant 0 : index
    %c0_4 = arith.constant 0 : index
    %3 = vector.load %arg2[%c0_3, %c0_4] : memref<64x128xbf16, #tpu.memory_space<vmem>>, vector<64x128xbf16>
    %c0_5 = arith.constant 0 : index
    %c0_6 = arith.constant 0 : index
    %4 = vector.load %arg4[%c0_5, %c0_6] : memref<128x128xbf16, #tpu.memory_space<vmem>>, vector<128x128xbf16>
    %cst_7 = arith.constant dense<0.000000e+00> : vector<64x128xf32>
    %5 = tpu.matmul %3, %4, %cst_7 {dimension_numbers = #tpu.dot_dimension_numbers<[1], [0], [0], [1], [0, 0, 1, 1], [], []>} : vector<64x128xbf16>, vector<128x128xbf16>, vector<64x128xf32> -> vector<64x128xf32>
    %6 = arith.addf %2, %5 : vector<64x128xf32>
    %c0_8 = arith.constant 0 : index
    %c0_9 = arith.constant 0 : index
    %7 = vector.load %arg5[%c0_8, %c0_9] : memref<1x128xf32, #tpu.memory_space<vmem>>, vector<1x128xf32>
    %8 = vector.broadcast %7 : vector<1x128xf32> to vector<64x128xf32>
    %9 = arith.addf %6, %8 : vector<64x128xf32>
    %c0_10 = arith.constant 0 : index
    %c0_11 = arith.constant 0 : index
    %10 = vector.load %arg6[%c0_10, %c0_11] : memref<64x128xf32, #tpu.memory_space<vmem>>, vector<64x128xf32>
    tpu.vector_store %arg6[%c0_10, %c0_11], %9 {strides = array<i32>} : memref<64x128xf32, #tpu.memory_space<vmem>>, vector<64x128xf32>,
    return
  }
  func.func @transform_0(%arg0: i32) -> (i32, i32) {
    %c0_i32 = arith.constant 0 : i32
    %c0_i32_0 = arith.constant 0 : i32
    return %arg0, %c0_i32 : i32, i32
  }
  func.func @transform_1(%arg0: i32) -> (i32, i32) {
    %c0_i32 = arith.constant 0 : i32
    %c0_i32_0 = arith.constant 0 : i32
    return %arg0, %c0_i32 : i32, i32
  }
  func.func @transform_2(%arg0: i32) -> (i32, i32) {
    %c0_i32 = arith.constant 0 : i32
    %c0_i32_0 = arith.constant 0 : i32
    %c0_i32_1 = arith.constant 0 : i32
    return %c0_i32, %c0_i32_0 : i32, i32
  }
  func.func @transform_3(%arg0: i32) -> (i32, i32) {
    %c0_i32 = arith.constant 0 : i32
    %c0_i32_0 = arith.constant 0 : i32
    %c0_i32_1 = arith.constant 0 : i32
    return %c0_i32, %c0_i32_0 : i32, i32
  }
  func.func @transform_4(%arg0: i32) -> (i32, i32) {
    %c0_i32 = arith.constant 0 : i32
    %c0_i32_0 = arith.constant 0 : i32
    %c0_i32_1 = arith.constant 0 : i32
    return %c0_i32, %c0_i32_0 : i32, i32
  }
  func.func @transform_5(%arg0: i32) -> (i32, i32) {
    %c0_i32 = arith.constant 0 : i32
    %c0_i32_0 = arith.constant 0 : i32
    return %arg0, %c0_i32 : i32, i32
  }
}

</mosaic_0001>

<llo_original>
// kernel: forward.6
$region0: #{forward.6}
  #allocation0 [shape = 'u32[]', space=smem, size = 0x4, offset = 0x4, fixed_abs, tag = 'smem constant byte address 0x4 - core index']
  #allocation1 [shape = 'u32[144,128]{1,0:T(1,128)}', space=vmem, size = 0x12000, scoped, tag = 'internal scratch']
  %s0 = inlined_call_operand.vmem [shape: f32[2,4], index: 0, kind: input, shape index: {}]
  %s1 = inlined_call_operand.vmem [shape: f32[4,8], index: 1, kind: input, shape index: {}]
  %s2 = inlined_call_operand.hbm [shape: f32[8,16], index: 2, kind: input, shape index: {}]
  %s3 = inlined_call_operand.vmem [shape: f32[1,16], index: 3, kind: input, shape index: {}]
  %s4 = inlined_call_operand.hbm [shape: f32[8,64], index: 4, kind: input, shape index: {}]
  %s5 = inlined_call_operand.vmem [shape: f32[1,64], index: 5, kind: input, shape index: {}]
  %s6 = inlined_call_operand.vmem [shape: f32[16,128], index: 6, kind: input, shape index: {}]
  %s7 = inlined_call_operand.vmem [shape: f32[16,128], index: 7, kind: input, shape index: {}]
  %s8 = inlined_call_operand.vmem [shape: f32[1,128], index: 8, kind: input, shape index: {}]
  %s9 = inlined_call_operand.vmem [shape: f32[1,128], index: 9, kind: input, shape index: {}]
  %s10 = inlined_call_operand.hbm [shape: f32[64,128], index: 10, kind: input, shape index: {}]
  %s11 = inlined_call_operand.hbm [shape: f32[64,128], index: 11, kind: input, shape index: {}]
  %s12 = inlined_call_operand.hbm [shape: f32[1,128], index: 12, kind: input, shape index: {}]
  %s13 = inlined_call_operand.hbm [shape: f32[1,128], index: 13, kind: input, shape index: {}]
  %s14 = inlined_call_operand.vmem [shape: f32[2,128], index: 14, kind: output, shape index: {0}]
  %s15 = inlined_call_operand.vmem [shape: f32[2,128], index: 15, kind: output, shape index: {1}]
  %s16 = inlined_call_operand.vmem [shape: f32[2,128], index: 16, kind: output, shape index: {2}]
  %s17 = inlined_call_operand.vmem [shape: f32[2,128], index: 17, kind: output, shape index: {3}]
  %18 = xla_tuple %s14, %s15, %s16, %s17
  %s19 = sld [smem:[#allocation0]]
  $region114: #{forward.6} parent=0
    _
  %s21 = ssub.s32 1, %s19
  %s22 = scalar_select 0, %s21, %s19
  $region1: #{forward.6} parent=0
    #allocation2 [shape = 'u8[4096]{0}', space=vmem, size = 0x1000, scoped, tag = 'input window, operand 2, single buffered']
    #allocation3 [shape = 's32[1]{0}', space=sflag, size = 0x4, scoped, tag = 'scoped memory for forward.6']
    #allocation4 [shape = 'u8[4096]{0}', space=vmem, size = 0x1000, scoped, tag = 'input window, operand 4, single buffered']
    #allocation5 [shape = 's32[1]{0}', space=sflag, size = 0x4, scoped, tag = 'scoped memory for forward.6']
    #allocation6 [shape = 'u8[32768]{0}', space=vmem, size = 0x8000, scoped, tag = 'input window, operand 10, single buffered']
    #allocation7 [shape = 'u8[32768]{0}', space=vmem, size = 0x8000, scoped, tag = 'input window, operand 11, single buffered']
    #allocation8 [shape = 's32[1]{0}', space=sflag, size = 0x4, scoped, tag = 'scoped memory for forward.6']
    #allocation9 [shape = 'u8[512]{0}', space=vmem, size = 0x400, scoped, tag = 'input window, operand 12, single buffered']
    #allocation10 [shape = 'u8[512]{0}', space=vmem, size = 0x400, scoped, tag = 'input window, operand 13, single buffered']
    #allocation11 [shape = 's32[1]{0}', space=sflag, size = 0x4, scoped, tag = 'scoped memory for forward.6']
    %23 = vsyncpa [#allocation3], 0
    %24 = vsyncpa [#allocation5], 0
    %25 = vsyncpa [#allocation8], 0
    %26 = vsyncpa [#allocation11], 0
    // Predicated region
    $region2: #{forward.6} parent=1 // pred_check
      _
    $region3: #{forward.6} parent=1 // pred_check_branch
      %28 = sbr.rel (0) target = $region5
    $region4: #{forward.6} parent=1 // pred_region
      _
    $region5: #{forward.6} parent=1 // pred_fallthru
      _
    // Predicated region
    $region6: #{forward.6} parent=1 // pred_check
      _
    $region7: #{forward.6} parent=1 // pred_check_branch
      %30 = sbr.rel (0) target = $region9
    $region8: #{forward.6} parent=1 // pred_region
      _
    $region9: #{forward.6} parent=1 // pred_fallthru
      _
    // Predicated region
    $region10: #{forward.6} parent=1 // pred_check
      _
    $region11: #{forward.6} parent=1 // pred_check_branch
      %32 = sbr.rel (0) target = $region13
    $region12: #{forward.6} parent=1 // pred_region
      %s34 = ssub.s32 128, 128
      %35 = vsyncadd [#allocation3], %s34
      %s37 = sshll.u32 [#allocation2], 4
      %s38 = int_to_ptr.vmem [resolvable:$true] %s37
      %40 = dma.hbm_to_vmem [thread:$0]  %s2, 128, %s38, [#allocation3]
    $region13: #{forward.6} parent=1 // pred_fallthru
      _
    // Predicated region
    $region14: #{forward.6} parent=1 // pred_check
      _
    $region15: #{forward.6} parent=1 // pred_check_branch
      %42 = sbr.rel (0) target = $region17
    $region16: #{forward.6} parent=1 // pred_region
      _
    $region17: #{forward.6} parent=1 // pred_fallthru
      _
    // Predicated region
    $region18: #{forward.6} parent=1 // pred_check
      _
    $region19: #{forward.6} parent=1 // pred_check_branch
      %44 = sbr.rel (0) target = $region21
    $region20: #{forward.6} parent=1 // pred_region
      %s46 = ssub.s32 128, 128
      %47 = vsyncadd [#allocation5], %s46
      %s49 = sshll.u32 [#allocation4], 4
      %s50 = int_to_ptr.vmem [resolvable:$true] %s49
      %52 = dma.hbm_to_vmem [thread:$0]  %s4, 128, %s50, [#allocation5]
    $region21: #{forward.6} parent=1 // pred_fallthru
      _
    // Predicated region
    $region22: #{forward.6} parent=1 // pred_check
      _
    $region23: #{forward.6} parent=1 // pred_check_branch
      %54 = sbr.rel (0) target = $region25
    $region24: #{forward.6} parent=1 // pred_region
      _
    $region25: #{forward.6} parent=1 // pred_fallthru
      _
    // Predicated region
    $region26: #{forward.6} parent=1 // pred_check
      _
    $region27: #{forward.6} parent=1 // pred_check_branch
      %56 = sbr.rel (0) target = $region29
    $region28: #{forward.6} parent=1 // pred_region
      _
    $region29: #{forward.6} parent=1 // pred_fallthru
      _
    // Predicated region
    $region30: #{forward.6} parent=1 // pred_check
      _
    $region31: #{forward.6} parent=1 // pred_check_branch
      %58 = sbr.rel (0) target = $region33
    $region32: #{forward.6} parent=1 // pred_region
      _
    $region33: #{forward.6} parent=1 // pred_fallthru
      _
    // Predicated region
    $region34: #{forward.6} parent=1 // pred_check
      _
    $region35: #{forward.6} parent=1 // pred_check_branch
      %60 = sbr.rel (0) target = $region37
    $region36: #{forward.6} parent=1 // pred_region
      _
    $region37: #{forward.6} parent=1 // pred_fallthru
      _
    // Predicated region
    $region38: #{forward.6} parent=1 // pred_check
      _
    $region39: #{forward.6} parent=1 // pred_check_branch
      %62 = sbr.rel (0) target = $region41
    $region40: #{forward.6} parent=1 // pred_region
      _
    $region41: #{forward.6} parent=1 // pred_fallthru
      _
    // Predicated region
    $region42: #{forward.6} parent=1 // pred_check
      _
    $region43: #{forward.6} parent=1 // pred_check_branch
      %64 = sbr.rel (0) target = $region45
    $region44: #{forward.6} parent=1 // pred_region
      %s66 = ssub.s32 1024, 1024
      %67 = vsyncadd [#allocation5], %s66
      %s68 = sshll.u32 [#allocation6], 4
      %s69 = int_to_ptr.vmem [resolvable:$true] %s68
      %74 = dma.hbm_to_vmem [thread:$0]  %s10, 1024, %s69, [#allocation5], 128, 128, 8
    $region45: #{forward.6} parent=1 // pred_fallthru
      _
    // Predicated region
    $region46: #{forward.6} parent=1 // pred_check
      _
    $region47: #{forward.6} parent=1 // pred_check_branch
      %76 = sbr.rel (0) target = $region49
    $region48: #{forward.6} parent=1 // pred_region
      %s78 = ssub.s32 1024, 1024
      %79 = vsyncadd [#allocation8], %s78
      %s80 = sshll.u32 [#allocation7], 4
      %s81 = int_to_ptr.vmem [resolvable:$true] %s80
      %86 = dma.hbm_to_vmem [thread:$0]  %s11, 1024, %s81, [#allocation8], 128, 128, 8
    $region49: #{forward.6} parent=1 // pred_fallthru
      _
    // Predicated region
    $region50: #{forward.6} parent=1 // pred_check
      _
    $region51: #{forward.6} parent=1 // pred_check_branch
      %88 = sbr.rel (0) target = $region53
    $region52: #{forward.6} parent=1 // pred_region
      %s90 = ssub.s32 16, 16
      %91 = vsyncadd [#allocation8], %s90
      %s93 = sshll.u32 [#allocation9], 4
      %s94 = int_to_ptr.vmem [resolvable:$true] %s93
      %96 = dma.hbm_to_vmem [thread:$0]  %s12, 16, %s94, [#allocation8]
    $region53: #{forward.6} parent=1 // pred_fallthru
      _
    // Predicated region
    $region54: #{forward.6} parent=1 // pred_check
      _
    $region55: #{forward.6} parent=1 // pred_check_branch
      %98 = sbr.rel (0) target = $region57
    $region56: #{forward.6} parent=1 // pred_region
      %s100 = ssub.s32 16, 16
      %101 = vsyncadd [#allocation11], %s100
      %s103 = sshll.u32 [#allocation10], 4
      %s104 = int_to_ptr.vmem [resolvable:$true] %s103
      %106 = dma.hbm_to_vmem [thread:$0]  %s13, 16, %s104, [#allocation11]
    $region57: #{forward.6} parent=1 // pred_fallthru
      _
    // Predicated region
    $region58: #{forward.6} parent=1 // pred_check
      _
    $region59: #{forward.6} parent=1 // pred_check_branch
      %108 = sbr.rel (0) target = $region61
    $region60: #{forward.6} parent=1 // pred_region
      %109 = dma.done [#allocation3], 128
    $region61: #{forward.6} parent=1 // pred_fallthru
      _
    // Predicated region
    $region62: #{forward.6} parent=1 // pred_check
      _
    $region63: #{forward.6} parent=1 // pred_check_branch
      %111 = sbr.rel (0) target = $region65
    $region64: #{forward.6} parent=1 // pred_region
      %112 = dma.done [#allocation5], 128
    $region65: #{forward.6} parent=1 // pred_fallthru
      _
    // Predicated region
    $region66: #{forward.6} parent=1 // pred_check
      _
    $region67: #{forward.6} parent=1 // pred_check_branch
      %114 = sbr.rel (0) target = $region69
    $region68: #{forward.6} parent=1 // pred_region
      %115 = dma.done [#allocation5], 1024
    $region69: #{forward.6} parent=1 // pred_fallthru
      _
    // Predicated region
    $region70: #{forward.6} parent=1 // pred_check
      _
    $region71: #{forward.6} parent=1 // pred_check_branch
      %117 = sbr.rel (0) target = $region73
    $region72: #{forward.6} parent=1 // pred_region
      %118 = dma.done [#allocation8], 1024
    $region73: #{forward.6} parent=1 // pred_fallthru
      _
    // Predicated region
    $region74: #{forward.6} parent=1 // pred_check
      _
    $region75: #{forward.6} parent=1 // pred_check_branch
      %120 = sbr.rel (0) target = $region77
    $region76: #{forward.6} parent=1 // pred_region
      %121 = dma.done [#allocation8], 16
    $region77: #{forward.6} parent=1 // pred_fallthru
      _
    // Predicated region
    $region78: #{forward.6} parent=1 // pred_check
      _
    $region79: #{forward.6} parent=1 // pred_check_branch
      %123 = sbr.rel (0) target = $region81
    $region80: #{forward.6} parent=1 // pred_region
      %124 = dma.done [#allocation11], 16
    $region81: #{forward.6} parent=1 // pred_fallthru
      _
    %v125 = vld [vmem:[%s0] sm:$0x3]
    %v126 = vld [vmem:[%s1] sm:$0xf]
    %vm127 = vcmask 31744
    %v129 = vsel %vm127, %v125, 0
    %vm131 = vcmask 1043456
    %v133 = vsel %vm131, %v126, 0
    %135 = vmatprep.subr.mxu0 0.0
    %136 = vmatpush1.msra.mxu0 0.0
    %137 = vmatprep.subr.mxu0 0.0
    %138 = vmatpush1.msra.mxu0 0.0
    %139 = vmatprep.subr.mxu0 0.0
    %140 = vmatpush1.msra.mxu0 0.0
    %141 = vmatprep.subr.mxu0 0.0
    %142 = vmatpush1.msra.mxu0 0.0
    %143 = vmatprep.subr.mxu0 0.0
    %144 = vmatpush1.msra.mxu0 0.0
    %145 = vmatprep.subr.mxu0 0.0
    %146 = vmatpush1.msra.mxu0 0.0
    %147 = vmatprep.subr.mxu0 0.0
    %148 = vmatpush1.msra.mxu0 0.0
    %149 = vmatprep.subr.mxu0 0.0
    %150 = vmatpush1.msra.mxu0 0.0
    %151 = vmatprep.subr.mxu0 0.0
    %152 = vmatpush1.msra.mxu0 0.0
    %153 = vmatprep.subr.mxu0 0.0
    %154 = vmatpush1.msra.mxu0 0.0
    %155 = vmatprep.subr.mxu0 0.0
    %156 = vmatpush1.msra.mxu0 0.0
    %157 = vmatprep.subr.mxu0 0.0
    %158 = vmatpush1.msra.mxu0 0.0
    %159 = vmatprep.subr.mxu0 0.0
    %160 = vmatpush1.msra.mxu0 0.0
    %161 = vmatprep.subr.mxu0 0.0
    %162 = vmatpush1.msra.mxu0 0.0
    %163 = vmatprep.subr.mxu0 0.0
    %164 = vmatpush1.msra.mxu0 0.0
    %165 = vmatprep.subr.mxu0 0.0
    %166 = vmatpush1.msra.mxu0 %v133
    %167 = vmatprep.subr.mxu0 0.0
    %168 = vmatpush2.msra.mxu0 0.0
    %169 = vmatprep.subr.mxu0 0.0
    %170 = vmatpush2.msra.mxu0 0.0
    %171 = vmatprep.subr.mxu0 0.0
    %172 = vmatpush2.msra.mxu0 0.0
    %173 = vmatprep.subr.mxu0 0.0
    %174 = vmatpush2.msra.mxu0 0.0
    %175 = vmatprep.subr.mxu0 0.0
    %176 = vmatpush2.msra.mxu0 0.0
    %177 = vmatprep.subr.mxu0 0.0
    %178 = vmatpush2.msra.mxu0 0.0
    %179 = vmatprep.subr.mxu0 0.0
    %180 = vmatpush2.msra.mxu0 0.0
    %181 = vmatprep.subr.mxu0 0.0
    %182 = vmatpush2.msra.mxu0 0.0
    %183 = vmatprep.subr.mxu0 0.0
    %184 = vmatpush2.msra.mxu0 0.0
    %185 = vmatprep.subr.mxu0 0.0
    %186 = vmatpush2.msra.mxu0 0.0
    %187 = vmatprep.subr.mxu0 0.0
    %188 = vmatpush2.msra.mxu0 0.0
    %189 = vmatprep.subr.mxu0 0.0
    %190 = vmatpush2.msra.mxu0 0.0
    %191 = vmatprep.subr.mxu0 0.0
    %192 = vmatpush2.msra.mxu0 0.0
    %193 = vmatprep.subr.mxu0 0.0
    %194 = vmatpush2.msra.mxu0 0.0
    %195 = vmatprep.subr.mxu0 0.0
    %196 = vmatpush2.msra.mxu0 0.0
    %197 = vmatprep.subr.mxu0 0.0
    %198 = vmatpush2.msra.mxu0 0.0
    %199 = vmatprep.mubr.f32.mxu0 0.0
    %200 = vmatmul.mubr.f32.gmra.mxu0 %v129
    %v201 = vpop.f32.mrf.mxu0
    %v202 = vadd.f32 0.0, %v201
    %v203 = vpop.f32.mrf.mxu0
    %204 = vdwg.mxu0
    %v205 = vld [vmem:[#allocation2] sm:$0xff]
    %v206 = vld [vmem:[%s3] sm:$0x1]
    %v208 = vlaneseq
    %v209 = vshrl.u32 %v208, 7
    %v210 = vsub.s32 0, %v209
    %v211 = vrot.slane %v206, %v210
    %vm213 = vcmask 64512
    %v215 = vsel %vm213, %v202, 0
    %217 = vmatprep.subr.mxu0 0.0
    %218 = vmatpush1.msra.mxu0 0.0
    %219 = vmatprep.subr.mxu0 0.0
    %220 = vmatpush1.msra.mxu0 0.0
    %221 = vmatprep.subr.mxu0 0.0
    %222 = vmatpush1.msra.mxu0 0.0
    %223 = vmatprep.subr.mxu0 0.0
    %224 = vmatpush1.msra.mxu0 0.0
    %225 = vmatprep.subr.mxu0 0.0
    %226 = vmatpush1.msra.mxu0 0.0
    %227 = vmatprep.subr.mxu0 0.0
    %228 = vmatpush1.msra.mxu0 0.0
    %229 = vmatprep.subr.mxu0 0.0
    %230 = vmatpush1.msra.mxu0 0.0
    %231 = vmatprep.subr.mxu0 0.0
    %232 = vmatpush1.msra.mxu0 0.0
    %233 = vmatprep.subr.mxu0 0.0
    %234 = vmatpush1.msra.mxu0 0.0
    %235 = vmatprep.subr.mxu0 0.0
    %236 = vmatpush1.msra.mxu0 0.0
    %237 = vmatprep.subr.mxu0 0.0
    %238 = vmatpush1.msra.mxu0 0.0
    %239 = vmatprep.subr.mxu0 0.0
    %240 = vmatpush1.msra.mxu0 0.0
    %241 = vmatprep.subr.mxu0 0.0
    %242 = vmatpush1.msra.mxu0 0.0
    %243 = vmatprep.subr.mxu0 0.0
    %244 = vmatpush1.msra.mxu0 0.0
    %245 = vmatprep.subr.mxu0 0.0
    %246 = vmatpush1.msra.mxu0 0.0
    %247 = vmatprep.subr.mxu0 0.0
    %248 = vmatpush1.msra.mxu0 %v205
    %249 = vmatprep.subr.mxu0 0.0
    %250 = vmatpush2.msra.mxu0 0.0
    %251 = vmatprep.subr.mxu0 0.0
    %252 = vmatpush2.msra.mxu0 0.0
    %253 = vmatprep.subr.mxu0 0.0
    %254 = vmatpush2.msra.mxu0 0.0
    %255 = vmatprep.subr.mxu0 0.0
    %256 = vmatpush2.msra.mxu0 0.0
    %257 = vmatprep.subr.mxu0 0.0
    %258 = vmatpush2.msra.mxu0 0.0
    %259 = vmatprep.subr.mxu0 0.0
    %260 = vmatpush2.msra.mxu0 0.0
    %261 = vmatprep.subr.mxu0 0.0
    %262 = vmatpush2.msra.mxu0 0.0
    %263 = vmatprep.subr.mxu0 0.0
    %264 = vmatpush2.msra.mxu0 0.0
    %265 = vmatprep.subr.mxu0 0.0
    %266 = vmatpush2.msra.mxu0 0.0
    %267 = vmatprep.subr.mxu0 0.0
    %268 = vmatpush2.msra.mxu0 0.0
    %269 = vmatprep.subr.mxu0 0.0
    %270 = vmatpush2.msra.mxu0 0.0
    %271 = vmatprep.subr.mxu0 0.0
    %272 = vmatpush2.msra.mxu0 0.0
    %273 = vmatprep.subr.mxu0 0.0
    %274 = vmatpush2.msra.mxu0 0.0
    %275 = vmatprep.subr.mxu0 0.0
    %276 = vmatpush2.msra.mxu0 0.0
    %277 = vmatprep.subr.mxu0 0.0
    %278 = vmatpush2.msra.mxu0 0.0
    %279 = vmatprep.subr.mxu0 0.0
    %280 = vmatpush2.msra.mxu0 0.0
    %281 = vmatprep.mubr.f32.mxu0 0.0
    %282 = vmatmul.mubr.f32.gmra.mxu0 %v215
    %v283 = vpop.f32.mrf.mxu0
    %v284 = vadd.f32 %v211, %v283
    %v285 = vpop.f32.mrf.mxu0
    %286 = vdwg.mxu0
    %v287 = vld [vmem:[#allocation4] sm:$0xff]
    %v288 = vld [vmem:[%s5] sm:$0x1]
    %v290 = vlaneseq
    %v291 = vshrl.u32 %v290, 7
    %v292 = vsub.s32 0, %v291
    %v293 = vrot.slane %v288, %v292
    %295 = vmatprep.subr.mxu0 0.0
    %296 = vmatpush1.msra.mxu0 0.0
    %297 = vmatprep.subr.mxu0 0.0
    %298 = vmatpush1.msra.mxu0 0.0
    %299 = vmatprep.subr.mxu0 0.0
    %300 = vmatpush1.msra.mxu0 0.0
    %301 = vmatprep.subr.mxu0 0.0
    %302 = vmatpush1.msra.mxu0 0.0
    %303 = vmatprep.subr.mxu0 0.0
    %304 = vmatpush1.msra.mxu0 0.0
    %305 = vmatprep.subr.mxu0 0.0
    %306 = vmatpush1.msra.mxu0 0.0
    %307 = vmatprep.subr.mxu0 0.0
    %308 = vmatpush1.msra.mxu0 0.0
    %309 = vmatprep.subr.mxu0 0.0
    %310 = vmatpush1.msra.mxu0 0.0
    %311 = vmatprep.subr.mxu0 0.0
    %312 = vmatpush1.msra.mxu0 0.0
    %313 = vmatprep.subr.mxu0 0.0
    %314 = vmatpush1.msra.mxu0 0.0
    %315 = vmatprep.subr.mxu0 0.0
    %316 = vmatpush1.msra.mxu0 0.0
    %317 = vmatprep.subr.mxu0 0.0
    %318 = vmatpush1.msra.mxu0 0.0
    %319 = vmatprep.subr.mxu0 0.0
    %320 = vmatpush1.msra.mxu0 0.0
    %321 = vmatprep.subr.mxu0 0.0
    %322 = vmatpush1.msra.mxu0 0.0
    %323 = vmatprep.subr.mxu0 0.0
    %324 = vmatpush1.msra.mxu0 0.0
    %325 = vmatprep.subr.mxu0 0.0
    %326 = vmatpush1.msra.mxu0 %v287
    %327 = vmatprep.subr.mxu0 0.0
    %328 = vmatpush2.msra.mxu0 0.0
    %329 = vmatprep.subr.mxu0 0.0
    %330 = vmatpush2.msra.mxu0 0.0
    %331 = vmatprep.subr.mxu0 0.0
    %332 = vmatpush2.msra.mxu0 0.0
    %333 = vmatprep.subr.mxu0 0.0
    %334 = vmatpush2.msra.mxu0 0.0
    %335 = vmatprep.subr.mxu0 0.0
    %336 = vmatpush2.msra.mxu0 0.0
    %337 = vmatprep.subr.mxu0 0.0
    %338 = vmatpush2.msra.mxu0 0.0
    %339 = vmatprep.subr.mxu0 0.0
    %340 = vmatpush2.msra.mxu0 0.0
    %341 = vmatprep.subr.mxu0 0.0
    %342 = vmatpush2.msra.mxu0 0.0
    %343 = vmatprep.subr.mxu0 0.0
    %344 = vmatpush2.msra.mxu0 0.0
    %345 = vmatprep.subr.mxu0 0.0
    %346 = vmatpush2.msra.mxu0 0.0
    %347 = vmatprep.subr.mxu0 0.0
    %348 = vmatpush2.msra.mxu0 0.0
    %349 = vmatprep.subr.mxu0 0.0
    %350 = vmatpush2.msra.mxu0 0.0
    %351 = vmatprep.subr.mxu0 0.0
    %352 = vmatpush2.msra.mxu0 0.0
    %353 = vmatprep.subr.mxu0 0.0
    %354 = vmatpush2.msra.mxu0 0.0
    %355 = vmatprep.subr.mxu0 0.0
    %356 = vmatpush2.msra.mxu0 0.0
    %357 = vmatprep.subr.mxu0 0.0
    %358 = vmatpush2.msra.mxu0 0.0
    %359 = vmatprep.mubr.f32.mxu0 0.0
    %360 = vmatmul.mubr.f32.gmra.mxu0 %v215
    %v361 = vpop.f32.mrf.mxu0
    %v362 = vadd.f32 %v293, %v361
    %v363 = vpop.f32.mrf.mxu0
    %364 = vdwg.mxu0
    %v365 = vld [vmem:[%s6] sm:$0xff]
    %v366 = vld [vmem:[%s6 + $0x8] sm:$0xff]
    %v367 = vld [vmem:[%s8] sm:$0x1]
    %v369 = vlaneseq
    %v370 = vshrl.u32 %v369, 7
    %v371 = vsub.s32 0, %v370
    %v372 = vrot.slane %v367, %v371
    %vm374 = vcmask 130048
    %v376 = vsel %vm374, %v284, 0
    %378 = vmatprep.subr.mxu0 0.0
    %379 = vmatpush1.msra.mxu0 0.0
    %380 = vmatprep.subr.mxu0 0.0
    %381 = vmatpush1.msra.mxu0 0.0
    %382 = vmatprep.subr.mxu0 0.0
    %383 = vmatpush1.msra.mxu0 0.0
    %384 = vmatprep.subr.mxu0 0.0
    %385 = vmatpush1.msra.mxu0 0.0
    %386 = vmatprep.subr.mxu0 0.0
    %387 = vmatpush1.msra.mxu0 0.0
    %388 = vmatprep.subr.mxu0 0.0
    %389 = vmatpush1.msra.mxu0 0.0
    %390 = vmatprep.subr.mxu0 0.0
    %391 = vmatpush1.msra.mxu0 0.0
    %392 = vmatprep.subr.mxu0 0.0
    %393 = vmatpush1.msra.mxu0 0.0
    %394 = vmatprep.subr.mxu0 0.0
    %395 = vmatpush1.msra.mxu0 0.0
    %396 = vmatprep.subr.mxu0 0.0
    %397 = vmatpush1.msra.mxu0 0.0
    %398 = vmatprep.subr.mxu0 0.0
    %399 = vmatpush1.msra.mxu0 0.0
    %400 = vmatprep.subr.mxu0 0.0
    %401 = vmatpush1.msra.mxu0 0.0
    %402 = vmatprep.subr.mxu0 0.0
    %403 = vmatpush1.msra.mxu0 0.0
    %404 = vmatprep.subr.mxu0 0.0
    %405 = vmatpush1.msra.mxu0 0.0
    %406 = vmatprep.subr.mxu0 0.0
    %407 = vmatpush1.msra.mxu0 %v366
    %408 = vmatprep.subr.mxu0 0.0
    %409 = vmatpush1.msra.mxu0 %v365
    %410 = vmatprep.subr.mxu0 0.0
    %411 = vmatpush2.msra.mxu0 0.0
    %412 = vmatprep.subr.mxu0 0.0
    %413 = vmatpush2.msra.mxu0 0.0
    %414 = vmatprep.subr.mxu0 0.0
    %415 = vmatpush2.msra.mxu0 0.0
    %416 = vmatprep.subr.mxu0 0.0
    %417 = vmatpush2.msra.mxu0 0.0
    %418 = vmatprep.subr.mxu0 0.0
    %419 = vmatpush2.msra.mxu0 0.0
    %420 = vmatprep.subr.mxu0 0.0
    %421 = vmatpush2.msra.mxu0 0.0
    %422 = vmatprep.subr.mxu0 0.0
    %423 = vmatpush2.msra.mxu0 0.0
    %424 = vmatprep.subr.mxu0 0.0
    %425 = vmatpush2.msra.mxu0 0.0
    %426 = vmatprep.subr.mxu0 0.0
    %427 = vmatpush2.msra.mxu0 0.0
    %428 = vmatprep.subr.mxu0 0.0
    %429 = vmatpush2.msra.mxu0 0.0
    %430 = vmatprep.subr.mxu0 0.0
    %431 = vmatpush2.msra.mxu0 0.0
    %432 = vmatprep.subr.mxu0 0.0
    %433 = vmatpush2.msra.mxu0 0.0
    %434 = vmatprep.subr.mxu0 0.0
    %435 = vmatpush2.msra.mxu0 0.0
    %436 = vmatprep.subr.mxu0 0.0
    %437 = vmatpush2.msra.mxu0 0.0
    %438 = vmatprep.subr.mxu0 0.0
    %439 = vmatpush2.msra.mxu0 0.0
    %440 = vmatprep.subr.mxu0 0.0
    %441 = vmatpush2.msra.mxu0 0.0
    %442 = vmatprep.mubr.f32.mxu0 0.0
    %443 = vmatmul.mubr.f32.gmra.mxu0 %v376
    %v444 = vpop.f32.mrf.mxu0
    %v445 = vadd.f32 %v372, %v444
    %v446 = vpop.f32.mrf.mxu0
    %447 = vdwg.mxu0
    %448 = vst [vmem:[%s14] sm:$0x3] %v445
    %v449 = vld [vmem:[%s7] sm:$0xff]
    %v450 = vld [vmem:[%s7 + $0x8] sm:$0xff]
    %v451 = vld [vmem:[%s9] sm:$0x1]
    %v453 = vlaneseq
    %v454 = vshrl.u32 %v453, 7
    %v455 = vsub.s32 0, %v454
    %v456 = vrot.slane %v451, %v455
    %458 = vmatprep.subr.mxu0 0.0
    %459 = vmatpush1.msra.mxu0 0.0
    %460 = vmatprep.subr.mxu0 0.0
    %461 = vmatpush1.msra.mxu0 0.0
    %462 = vmatprep.subr.mxu0 0.0
    %463 = vmatpush1.msra.mxu0 0.0
    %464 = vmatprep.subr.mxu0 0.0
    %465 = vmatpush1.msra.mxu0 0.0
    %466 = vmatprep.subr.mxu0 0.0
    %467 = vmatpush1.msra.mxu0 0.0
    %468 = vmatprep.subr.mxu0 0.0
    %469 = vmatpush1.msra.mxu0 0.0
    %470 = vmatprep.subr.mxu0 0.0
    %471 = vmatpush1.msra.mxu0 0.0
    %472 = vmatprep.subr.mxu0 0.0
    %473 = vmatpush1.msra.mxu0 0.0
    %474 = vmatprep.subr.mxu0 0.0
    %475 = vmatpush1.msra.mxu0 0.0
    %476 = vmatprep.subr.mxu0 0.0
    %477 = vmatpush1.msra.mxu0 0.0
    %478 = vmatprep.subr.mxu0 0.0
    %479 = vmatpush1.msra.mxu0 0.0
    %480 = vmatprep.subr.mxu0 0.0
    %481 = vmatpush1.msra.mxu0 0.0
    %482 = vmatprep.subr.mxu0 0.0
    %483 = vmatpush1.msra.mxu0 0.0
    %484 = vmatprep.subr.mxu0 0.0
    %485 = vmatpush1.msra.mxu0 0.0
    %486 = vmatprep.subr.mxu0 0.0
    %487 = vmatpush1.msra.mxu0 %v450
    %488 = vmatprep.subr.mxu0 0.0
    %489 = vmatpush1.msra.mxu0 %v449
    %490 = vmatprep.subr.mxu0 0.0
    %491 = vmatpush2.msra.mxu0 0.0
    %492 = vmatprep.subr.mxu0 0.0
    %493 = vmatpush2.msra.mxu0 0.0
    %494 = vmatprep.subr.mxu0 0.0
    %495 = vmatpush2.msra.mxu0 0.0
    %496 = vmatprep.subr.mxu0 0.0
    %497 = vmatpush2.msra.mxu0 0.0
    %498 = vmatprep.subr.mxu0 0.0
    %499 = vmatpush2.msra.mxu0 0.0
    %500 = vmatprep.subr.mxu0 0.0
    %501 = vmatpush2.msra.mxu0 0.0
    %502 = vmatprep.subr.mxu0 0.0
    %503 = vmatpush2.msra.mxu0 0.0
    %504 = vmatprep.subr.mxu0 0.0
    %505 = vmatpush2.msra.mxu0 0.0
    %506 = vmatprep.subr.mxu0 0.0
    %507 = vmatpush2.msra.mxu0 0.0
    %508 = vmatprep.subr.mxu0 0.0
    %509 = vmatpush2.msra.mxu0 0.0
    %510 = vmatprep.subr.mxu0 0.0
    %511 = vmatpush2.msra.mxu0 0.0
    %512 = vmatprep.subr.mxu0 0.0
    %513 = vmatpush2.msra.mxu0 0.0
    %514 = vmatprep.subr.mxu0 0.0
    %515 = vmatpush2.msra.mxu0 0.0
    %516 = vmatprep.subr.mxu0 0.0
    %517 = vmatpush2.msra.mxu0 0.0
    %518 = vmatprep.subr.mxu0 0.0
    %519 = vmatpush2.msra.mxu0 0.0
    %520 = vmatprep.subr.mxu0 0.0
    %521 = vmatpush2.msra.mxu0 0.0
    %522 = vmatprep.mubr.f32.mxu0 0.0
    %523 = vmatmul.mubr.f32.gmra.mxu0 %v376
    %v524 = vpop.f32.mrf.mxu0
    %v525 = vadd.f32 %v456, %v524
    %v526 = vpop.f32.mrf.mxu0
    %527 = vdwg.mxu0
    %528 = vst [vmem:[%s15] sm:$0x3] %v525
    %v529 = vld [vmem:[#allocation6] sm:$0xff]
    %v530 = vld [vmem:[#allocation6 + $0x8] sm:$0xff]
    %v531 = vld [vmem:[#allocation6 + $0x10] sm:$0xff]
    %v532 = vld [vmem:[#allocation6 + $0x18] sm:$0xff]
    %v533 = vld [vmem:[#allocation6 + $0x20] sm:$0xff]
    %v534 = vld [vmem:[#allocation6 + $0x28] sm:$0xff]
    %v535 = vld [vmem:[#allocation6 + $0x30] sm:$0xff]
    %v536 = vld [vmem:[#allocation6 + $0x38] sm:$0xff]
    %v537 = vld [vmem:[#allocation9] sm:$0x1]
    %v539 = vlaneseq
    %v540 = vshrl.u32 %v539, 7
    %v541 = vsub.s32 0, %v540
    %v542 = vrot.slane %v537, %v541
    %vm544 = vcmask 523264
    %v546 = vsel %vm544, %v362, 0
    %548 = vmatprep.subr.mxu0 0.0
    %549 = vmatpush1.msra.mxu0 0.0
    %550 = vmatprep.subr.mxu0 0.0
    %551 = vmatpush1.msra.mxu0 0.0
    %552 = vmatprep.subr.mxu0 0.0
    %553 = vmatpush1.msra.mxu0 0.0
    %554 = vmatprep.subr.mxu0 0.0
    %555 = vmatpush1.msra.mxu0 0.0
    %556 = vmatprep.subr.mxu0 0.0
    %557 = vmatpush1.msra.mxu0 0.0
    %558 = vmatprep.subr.mxu0 0.0
    %559 = vmatpush1.msra.mxu0 0.0
    %560 = vmatprep.subr.mxu0 0.0
    %561 = vmatpush1.msra.mxu0 0.0
    %562 = vmatprep.subr.mxu0 0.0
    %563 = vmatpush1.msra.mxu0 0.0
    %564 = vmatprep.subr.mxu0 0.0
    %565 = vmatpush1.msra.mxu0 %v536
    %566 = vmatprep.subr.mxu0 0.0
    %567 = vmatpush1.msra.mxu0 %v535
    %568 = vmatprep.subr.mxu0 0.0
    %569 = vmatpush1.msra.mxu0 %v534
    %570 = vmatprep.subr.mxu0 0.0
    %571 = vmatpush1.msra.mxu0 %v533
    %572 = vmatprep.subr.mxu0 0.0
    %573 = vmatpush1.msra.mxu0 %v532
    %574 = vmatprep.subr.mxu0 0.0
    %575 = vmatpush1.msra.mxu0 %v531
    %576 = vmatprep.subr.mxu0 0.0
    %577 = vmatpush1.msra.mxu0 %v530
    %578 = vmatprep.subr.mxu0 0.0
    %579 = vmatpush1.msra.mxu0 %v529
    %580 = vmatprep.subr.mxu0 0.0
    %581 = vmatpush2.msra.mxu0 0.0
    %582 = vmatprep.subr.mxu0 0.0
    %583 = vmatpush2.msra.mxu0 0.0
    %584 = vmatprep.subr.mxu0 0.0
    %585 = vmatpush2.msra.mxu0 0.0
    %586 = vmatprep.subr.mxu0 0.0
    %587 = vmatpush2.msra.mxu0 0.0
    %588 = vmatprep.subr.mxu0 0.0
    %589 = vmatpush2.msra.mxu0 0.0
    %590 = vmatprep.subr.mxu0 0.0
    %591 = vmatpush2.msra.mxu0 0.0
    %592 = vmatprep.subr.mxu0 0.0
    %593 = vmatpush2.msra.mxu0 0.0
    %594 = vmatprep.subr.mxu0 0.0
    %595 = vmatpush2.msra.mxu0 0.0
    %596 = vmatprep.subr.mxu0 0.0
    %597 = vmatpush2.msra.mxu0 0.0
    %598 = vmatprep.subr.mxu0 0.0
    %599 = vmatpush2.msra.mxu0 0.0
    %600 = vmatprep.subr.mxu0 0.0
    %601 = vmatpush2.msra.mxu0 0.0
    %602 = vmatprep.subr.mxu0 0.0
    %603 = vmatpush2.msra.mxu0 0.0
    %604 = vmatprep.subr.mxu0 0.0
    %605 = vmatpush2.msra.mxu0 0.0
    %606 = vmatprep.subr.mxu0 0.0
    %607 = vmatpush2.msra.mxu0 0.0
    %608 = vmatprep.subr.mxu0 0.0
    %609 = vmatpush2.msra.mxu0 0.0
    %610 = vmatprep.subr.mxu0 0.0
    %611 = vmatpush2.msra.mxu0 0.0
    %612 = vmatprep.mubr.f32.mxu0 0.0
    %613 = vmatmul.mubr.f32.gmra.mxu0 %v546
    %v614 = vpop.f32.mrf.mxu0
    %v615 = vadd.f32 %v542, %v614
    %v616 = vpop.f32.mrf.mxu0
    %617 = vdwg.mxu0
    %618 = vst [vmem:[%s16] sm:$0x3] %v615
    %v619 = vld [vmem:[#allocation7] sm:$0xff]
    %v620 = vld [vmem:[#allocation7 + $0x8] sm:$0xff]
    %v621 = vld [vmem:[#allocation7 + $0x10] sm:$0xff]
    %v622 = vld [vmem:[#allocation7 + $0x18] sm:$0xff]
    %v623 = vld [vmem:[#allocation7 + $0x20] sm:$0xff]
    %v624 = vld [vmem:[#allocation7 + $0x28] sm:$0xff]
    %v625 = vld [vmem:[#allocation7 + $0x30] sm:$0xff]
    %v626 = vld [vmem:[#allocation7 + $0x38] sm:$0xff]
    %v627 = vld [vmem:[#allocation10] sm:$0x1]
    %v629 = vlaneseq
    %v630 = vshrl.u32 %v629, 7
    %v631 = vsub.s32 0, %v630
    %v632 = vrot.slane %v627, %v631
    %634 = vmatprep.subr.mxu0 0.0
    %635 = vmatpush1.msra.mxu0 0.0
    %636 = vmatprep.subr.mxu0 0.0
    %637 = vmatpush1.msra.mxu0 0.0
    %638 = vmatprep.subr.mxu0 0.0
    %639 = vmatpush1.msra.mxu0 0.0
    %640 = vmatprep.subr.mxu0 0.0
    %641 = vmatpush1.msra.mxu0 0.0
    %642 = vmatprep.subr.mxu0 0.0
    %643 = vmatpush1.msra.mxu0 0.0
    %644 = vmatprep.subr.mxu0 0.0
    %645 = vmatpush1.msra.mxu0 0.0
    %646 = vmatprep.subr.mxu0 0.0
    %647 = vmatpush1.msra.mxu0 0.0
    %648 = vmatprep.subr.mxu0 0.0
    %649 = vmatpush1.msra.mxu0 0.0
    %650 = vmatprep.subr.mxu0 0.0
    %651 = vmatpush1.msra.mxu0 %v626
    %652 = vmatprep.subr.mxu0 0.0
    %653 = vmatpush1.msra.mxu0 %v625
    %654 = vmatprep.subr.mxu0 0.0
    %655 = vmatpush1.msra.mxu0 %v624
    %656 = vmatprep.subr.mxu0 0.0
    %657 = vmatpush1.msra.mxu0 %v623
    %658 = vmatprep.subr.mxu0 0.0
    %659 = vmatpush1.msra.mxu0 %v622
    %660 = vmatprep.subr.mxu0 0.0
    %661 = vmatpush1.msra.mxu0 %v621
    %662 = vmatprep.subr.mxu0 0.0
    %663 = vmatpush1.msra.mxu0 %v620
    %664 = vmatprep.subr.mxu0 0.0
    %665 = vmatpush1.msra.mxu0 %v619
    %666 = vmatprep.subr.mxu0 0.0
    %667 = vmatpush2.msra.mxu0 0.0
    %668 = vmatprep.subr.mxu0 0.0
    %669 = vmatpush2.msra.mxu0 0.0
    %670 = vmatprep.subr.mxu0 0.0
    %671 = vmatpush2.msra.mxu0 0.0
    %672 = vmatprep.subr.mxu0 0.0
    %673 = vmatpush2.msra.mxu0 0.0
    %674 = vmatprep.subr.mxu0 0.0
    %675 = vmatpush2.msra.mxu0 0.0
    %676 = vmatprep.subr.mxu0 0.0
    %677 = vmatpush2.msra.mxu0 0.0
    %678 = vmatprep.subr.mxu0 0.0
    %679 = vmatpush2.msra.mxu0 0.0
    %680 = vmatprep.subr.mxu0 0.0
    %681 = vmatpush2.msra.mxu0 0.0
    %682 = vmatprep.subr.mxu0 0.0
    %683 = vmatpush2.msra.mxu0 0.0
    %684 = vmatprep.subr.mxu0 0.0
    %685 = vmatpush2.msra.mxu0 0.0
    %686 = vmatprep.subr.mxu0 0.0
    %687 = vmatpush2.msra.mxu0 0.0
    %688 = vmatprep.subr.mxu0 0.0
    %689 = vmatpush2.msra.mxu0 0.0
    %690 = vmatprep.subr.mxu0 0.0
    %691 = vmatpush2.msra.mxu0 0.0
    %692 = vmatprep.subr.mxu0 0.0
    %693 = vmatpush2.msra.mxu0 0.0
    %694 = vmatprep.subr.mxu0 0.0
    %695 = vmatpush2.msra.mxu0 0.0
    %696 = vmatprep.subr.mxu0 0.0
    %697 = vmatpush2.msra.mxu0 0.0
    %698 = vmatprep.mubr.f32.mxu0 0.0
    %699 = vmatmul.mubr.f32.gmra.mxu0 %v546
    %v700 = vpop.f32.mrf.mxu0
    %v701 = vadd.f32 %v632, %v700
    %v702 = vpop.f32.mrf.mxu0
    %703 = vdwg.mxu0
    %704 = vst [vmem:[%s17] sm:$0x3] %v701
    // Predicated region
    $region82: #{forward.6} parent=1 // pred_check
      _
    $region83: #{forward.6} parent=1 // pred_check_branch
      %706 = sbr.rel (0) target = $region85
    $region84: #{forward.6} parent=1 // pred_region
      _
    $region85: #{forward.6} parent=1 // pred_fallthru
      _
    // Predicated region
    $region86: #{forward.6} parent=1 // pred_check
      _
    $region87: #{forward.6} parent=1 // pred_check_branch
      %708 = sbr.rel (0) target = $region89
    $region88: #{forward.6} parent=1 // pred_region
      _
    $region89: #{forward.6} parent=1 // pred_fallthru
      _
    // Predicated region
    $region90: #{forward.6} parent=1 // pred_check
      _
    $region91: #{forward.6} parent=1 // pred_check_branch
      %710 = sbr.rel (0) target = $region93
    $region92: #{forward.6} parent=1 // pred_region
      _
    $region93: #{forward.6} parent=1 // pred_fallthru
      _
    // Predicated region
    $region94: #{forward.6} parent=1 // pred_check
      _
    $region95: #{forward.6} parent=1 // pred_check_branch
      %712 = sbr.rel (0) target = $region97
    $region96: #{forward.6} parent=1 // pred_region
      _
    $region97: #{forward.6} parent=1 // pred_fallthru
      _
    // Predicated region
    $region98: #{forward.6} parent=1 // pred_check
      _
    $region99: #{forward.6} parent=1 // pred_check_branch
      %714 = sbr.rel (0) target = $region101
    $region100: #{forward.6} parent=1 // pred_region
      _
    $region101: #{forward.6} parent=1 // pred_fallthru
      _
    // Predicated region
    $region102: #{forward.6} parent=1 // pred_check
      _
    $region103: #{forward.6} parent=1 // pred_check_branch
      %716 = sbr.rel (0) target = $region105
    $region104: #{forward.6} parent=1 // pred_region
      _
    $region105: #{forward.6} parent=1 // pred_fallthru
      _
    // Predicated region
    $region106: #{forward.6} parent=1 // pred_check
      _
    $region107: #{forward.6} parent=1 // pred_check_branch
      %718 = sbr.rel (0) target = $region109
    $region108: #{forward.6} parent=1 // pred_region
      _
    $region109: #{forward.6} parent=1 // pred_fallthru
      _
    // Predicated region
    $region110: #{forward.6} parent=1 // pred_check
      _
    $region111: #{forward.6} parent=1 // pred_check_branch
      %720 = sbr.rel (0) target = $region113
    $region112: #{forward.6} parent=1 // pred_region
      _
    $region113: #{forward.6} parent=1 // pred_fallthru
      _
    %721 = vsyncpa [#allocation3], 1
    %722 = vsyncpa [#allocation5], 1
    %723 = vsyncpa [#allocation8], 1
    %724 = vsyncpa [#allocation11], 1

// kernel: forward.7
$region0: #{forward.7}
  #allocation0 [shape = 'u32[]', space=smem, size = 0x4, offset = 0x4, fixed_abs, tag = 'smem constant byte address 0x4 - core index']
  #allocation1 [shape = 'u32[144,128]{1,0:T(1,128)}', space=vmem, size = 0x12000, scoped, tag = 'internal scratch']
  %s0 = inlined_call_operand.vmem [shape: bf16[64,16], index: 0, kind: input, shape index: {}]
  %s1 = inlined_call_operand.vmem [shape: bf16[16,512], index: 1, kind: input, shape index: {}]
  %s2 = inlined_call_operand.vmem [shape: bf16[16,512], index: 2, kind: input, shape index: {}]
  %s3 = inlined_call_operand.vmem [shape: bf16[64,512], index: 3, kind: input, shape index: {}]
  %s4 = inlined_call_operand.vmem [shape: bf16[64,512], index: 4, kind: input, shape index: {}]
  %s5 = inlined_call_operand.vmem [shape: bf16[64,512], index: 5, kind: output, shape index: {0}]
  %s6 = inlined_call_operand.vmem [shape: bf16[64,512], index: 6, kind: output, shape index: {1}]
  %7 = xla_tuple %s5, %s6
  %s8 = sld [smem:[#allocation0]]
  $region38: #{forward.7} parent=0
    _
  %s10 = ssub.s32 1, %s8
  %s11 = scalar_select 0, %s10, %s8
  // Predicated region
  $region2: #{forward.7} parent=0 // pred_check
    _
  $region3: #{forward.7} parent=0 // pred_check_branch
    %13 = sbr.rel (0) target = $region5
  $region4: #{forward.7} parent=0 // pred_region
    _
  $region5: #{forward.7} parent=0 // pred_fallthru
    _
  // Predicated region
  $region6: #{forward.7} parent=0 // pred_check
    _
  $region7: #{forward.7} parent=0 // pred_check_branch
    %15 = sbr.rel (0) target = $region9
  $region8: #{forward.7} parent=0 // pred_region
    _
  $region9: #{forward.7} parent=0 // pred_fallthru
    _
  // Predicated region
  $region10: #{forward.7} parent=0 // pred_check
    _
  $region11: #{forward.7} parent=0 // pred_check_branch
    %17 = sbr.rel (0) target = $region13
  $region12: #{forward.7} parent=0 // pred_region
    _
  $region13: #{forward.7} parent=0 // pred_fallthru
    _
  // Predicated region
  $region14: #{forward.7} parent=0 // pred_check
    _
  $region15: #{forward.7} parent=0 // pred_check_branch
    %19 = sbr.rel (0) target = $region17
  $region16: #{forward.7} parent=0 // pred_region
    _
  $region17: #{forward.7} parent=0 // pred_fallthru
    _
  // Predicated region
  $region18: #{forward.7} parent=0 // pred_check
    _
  $region19: #{forward.7} parent=0 // pred_check_branch
    %21 = sbr.rel (0) target = $region21
  $region20: #{forward.7} parent=0 // pred_region
    _
  $region21: #{forward.7} parent=0 // pred_fallthru
    _
  %v23 = vld [vmem:[%s0] sm:$0xf]
  %v24 = vld [vmem:[%s0 + $0x4] sm:$0xf]
  %v25 = vld [vmem:[%s0 + $0x8] sm:$0xf]
  %v26 = vld [vmem:[%s0 + $0xc] sm:$0xf]
  %v27 = vld [vmem:[%s0 + $0x10] sm:$0xf]
  %v28 = vld [vmem:[%s0 + $0x14] sm:$0xf]
  %v29 = vld [vmem:[%s0 + $0x18] sm:$0xf]
  %v30 = vld [vmem:[%s0 + $0x1c] sm:$0xf]
  %v31 = vld [vmem:[%s1] sm:$0xff]
  %v32 = vld [vmem:[%s1 + $0x8] sm:$0xff]
  %v33 = vld [vmem:[%s1 + $0x10] sm:$0xff]
  %v34 = vld [vmem:[%s1 + $0x18] sm:$0xff]
  %v35 = vld [vmem:[%s2] sm:$0xff]
  %v36 = vld [vmem:[%s2 + $0x8] sm:$0xff]
  %v37 = vld [vmem:[%s2 + $0x10] sm:$0xff]
  %v38 = vld [vmem:[%s2 + $0x18] sm:$0xff]
  %v39 = vld [vmem:[%s3] sm:$0xff]
  %v40 = vld [vmem:[%s3 + $0x8] sm:$0xff]
  %v41 = vld [vmem:[%s3 + $0x10] sm:$0xff]
  %v42 = vld [vmem:[%s3 + $0x18] sm:$0xff]
  %v43 = vld [vmem:[%s3 + $0x20] sm:$0xff]
  %v44 = vld [vmem:[%s3 + $0x28] sm:$0xff]
  %v45 = vld [vmem:[%s3 + $0x30] sm:$0xff]
  %v46 = vld [vmem:[%s3 + $0x38] sm:$0xff]
  %v47 = vld [vmem:[%s3 + $0x40] sm:$0xff]
  %v48 = vld [vmem:[%s3 + $0x48] sm:$0xff]
  %v49 = vld [vmem:[%s3 + $0x50] sm:$0xff]
  %v50 = vld [vmem:[%s3 + $0x58] sm:$0xff]
  %v51 = vld [vmem:[%s3 + $0x60] sm:$0xff]
  %v52 = vld [vmem:[%s3 + $0x68] sm:$0xff]
  %v53 = vld [vmem:[%s3 + $0x70] sm:$0xff]
  %v54 = vld [vmem:[%s3 + $0x78] sm:$0xff]
  %v55 = vunpack.c.l.bf16 %v39
  %v56 = vunpack.c.h.bf16 %v39
  %v57 = vunpack.c.l.bf16 %v40
  %v58 = vunpack.c.h.bf16 %v40
  %v59 = vunpack.c.l.bf16 %v41
  %v60 = vunpack.c.h.bf16 %v41
  %v61 = vunpack.c.l.bf16 %v42
  %v62 = vunpack.c.h.bf16 %v42
  %v63 = vunpack.c.l.bf16 %v43
  %v64 = vunpack.c.h.bf16 %v43
  %v65 = vunpack.c.l.bf16 %v44
  %v66 = vunpack.c.h.bf16 %v44
  %v67 = vunpack.c.l.bf16 %v45
  %v68 = vunpack.c.h.bf16 %v45
  %v69 = vunpack.c.l.bf16 %v46
  %v70 = vunpack.c.h.bf16 %v46
  %v71 = vunpack.c.l.bf16 %v47
  %v72 = vunpack.c.h.bf16 %v47
  %v73 = vunpack.c.l.bf16 %v48
  %v74 = vunpack.c.h.bf16 %v48
  %v75 = vunpack.c.l.bf16 %v49
  %v76 = vunpack.c.h.bf16 %v49
  %v77 = vunpack.c.l.bf16 %v50
  %v78 = vunpack.c.h.bf16 %v50
  %v79 = vunpack.c.l.bf16 %v51
  %v80 = vunpack.c.h.bf16 %v51
  %v81 = vunpack.c.l.bf16 %v52
  %v82 = vunpack.c.h.bf16 %v52
  %v83 = vunpack.c.l.bf16 %v53
  %v84 = vunpack.c.h.bf16 %v53
  %v85 = vunpack.c.l.bf16 %v54
  %v86 = vunpack.c.h.bf16 %v54
  %v95 = vunpack.c.l.b16 %v23
  %v96 = vunpack.c.l.b16 %v24
  %v97 = vunpack.c.l.b16 %v25
  %v98 = vunpack.c.l.b16 %v26
  %v99 = vunpack.c.l.b16 %v27
  %v100 = vunpack.c.l.b16 %v28
  %v101 = vunpack.c.l.b16 %v29
  %v102 = vunpack.c.l.b16 %v30
  %v103 = vpack.c.b16 %v96, %v95
  %v104 = vpack.c.b16 %v98, %v97
  %v105 = vpack.c.b16 %v100, %v99
  %v106 = vpack.c.b16 %v102, %v101
  %v111 = vunpack.c.l.b16 %v31
  %v112 = vunpack.c.h.b16 %v31
  %v113 = vunpack.c.l.b16 %v32
  %v114 = vunpack.c.h.b16 %v32
  %v115 = vunpack.c.l.b16 %v33
  %v116 = vunpack.c.h.b16 %v33
  %v117 = vunpack.c.l.b16 %v34
  %v118 = vunpack.c.h.b16 %v34
  %v119 = vpack.c.b16 %v115, %v111
  %v120 = vpack.c.b16 %v116, %v112
  %v121 = vpack.c.b16 %v117, %v113
  %v122 = vpack.c.b16 %v118, %v114
  %vm127 = vcmask 130048
  %v129 = vsel %vm127, %v103, 0
  %v132 = vsel %vm127, %v104, 0
  %v135 = vsel %vm127, %v105, 0
  %v138 = vsel %vm127, %v106, 0
  %140 = vmatprep.subr.bf16.mxu0 0
  %141 = vmatpush1.bf16.msra.mxu0 0
  %142 = vmatprep.subr.bf16.mxu0 0
  %143 = vmatpush1.bf16.msra.mxu0 0
  %144 = vmatprep.subr.bf16.mxu0 0
  %145 = vmatpush1.bf16.msra.mxu0 0
  %146 = vmatprep.subr.bf16.mxu0 0
  %147 = vmatpush1.bf16.msra.mxu0 0
  %148 = vmatprep.subr.bf16.mxu0 0
  %149 = vmatpush1.bf16.msra.mxu0 0
  %150 = vmatprep.subr.bf16.mxu0 0
  %151 = vmatpush1.bf16.msra.mxu0 0
  %152 = vmatprep.subr.bf16.mxu0 0
  %153 = vmatpush1.bf16.msra.mxu0 0
  %154 = vmatprep.subr.bf16.mxu0 %v120
  %155 = vmatpush1.bf16.msra.mxu0 %v119
  %156 = vmatprep.subr.bf16.mxu0 0
  %157 = vmatpush2.bf16.msra.mxu0 0
  %158 = vmatprep.subr.bf16.mxu0 0
  %159 = vmatpush2.bf16.msra.mxu0 0
  %160 = vmatprep.subr.bf16.mxu0 0
  %161 = vmatpush2.bf16.msra.mxu0 0
  %162 = vmatprep.subr.bf16.mxu0 0
  %163 = vmatpush2.bf16.msra.mxu0 0
  %164 = vmatprep.subr.bf16.mxu0 0
  %165 = vmatpush2.bf16.msra.mxu0 0
  %166 = vmatprep.subr.bf16.mxu0 0
  %167 = vmatpush2.bf16.msra.mxu0 0
  %168 = vmatprep.subr.bf16.mxu0 0
  %169 = vmatpush2.bf16.msra.mxu0 0
  %170 = vmatprep.subr.bf16.mxu0 0
  %171 = vmatpush2.bf16.msra.mxu0 0
  %172 = vmatprep.mubr.bf16.mxu0 0
  %173 = vmatmul.mubr.bf16.gmra.mxu0 %v129
  %v174 = vpop.f32.mrf.mxu0
  %v175 = vadd.f32 %v55, %v174
  %v176 = vpop.f32.mrf.mxu0
  %v177 = vadd.f32 %v56, %v176
  %v178 = vpop.f32.mrf.mxu0
  %v179 = vadd.f32 %v59, %v178
  %v180 = vpop.f32.mrf.mxu0
  %v181 = vadd.f32 %v60, %v180
  %182 = vmatprep.mubr.bf16.mxu0 0
  %183 = vmatmul.mubr.bf16.gmra.mxu0 %v132
  %v184 = vpop.f32.mrf.mxu0
  %v185 = vadd.f32 %v63, %v184
  %v186 = vpop.f32.mrf.mxu0
  %v187 = vadd.f32 %v64, %v186
  %v188 = vpop.f32.mrf.mxu0
  %v189 = vadd.f32 %v67, %v188
  %v190 = vpop.f32.mrf.mxu0
  %v191 = vadd.f32 %v68, %v190
  %192 = vmatprep.mubr.bf16.mxu0 0
  %193 = vmatmul.mubr.bf16.gmra.mxu0 %v135
  %v194 = vpop.f32.mrf.mxu0
  %v195 = vadd.f32 %v71, %v194
  %v196 = vpop.f32.mrf.mxu0
  %v197 = vadd.f32 %v72, %v196
  %v198 = vpop.f32.mrf.mxu0
  %v199 = vadd.f32 %v75, %v198
  %v200 = vpop.f32.mrf.mxu0
  %v201 = vadd.f32 %v76, %v200
  %202 = vmatprep.mubr.bf16.mxu0 0
  %203 = vmatmul.mubr.bf16.gmra.mxu0 %v138
  %v204 = vpop.f32.mrf.mxu0
  %v205 = vadd.f32 %v79, %v204
  %v206 = vpop.f32.mrf.mxu0
  %v207 = vadd.f32 %v80, %v206
  %v208 = vpop.f32.mrf.mxu0
  %v209 = vadd.f32 %v83, %v208
  %v210 = vpop.f32.mrf.mxu0
  %v211 = vadd.f32 %v84, %v210
  %212 = vdwg.mxu0
  %213 = vmatprep.subr.bf16.mxu0 0
  %214 = vmatpush1.bf16.msra.mxu0 0
  %215 = vmatprep.subr.bf16.mxu0 0
  %216 = vmatpush1.bf16.msra.mxu0 0
  %217 = vmatprep.subr.bf16.mxu0 0
  %218 = vmatpush1.bf16.msra.mxu0 0
  %219 = vmatprep.subr.bf16.mxu0 0
  %220 = vmatpush1.bf16.msra.mxu0 0
  %221 = vmatprep.subr.bf16.mxu0 0
  %222 = vmatpush1.bf16.msra.mxu0 0
  %223 = vmatprep.subr.bf16.mxu0 0
  %224 = vmatpush1.bf16.msra.mxu0 0
  %225 = vmatprep.subr.bf16.mxu0 0
  %226 = vmatpush1.bf16.msra.mxu0 0
  %227 = vmatprep.subr.bf16.mxu0 %v122
  %228 = vmatpush1.bf16.msra.mxu0 %v121
  %229 = vmatprep.subr.bf16.mxu0 0
  %230 = vmatpush2.bf16.msra.mxu0 0
  %231 = vmatprep.subr.bf16.mxu0 0
  %232 = vmatpush2.bf16.msra.mxu0 0
  %233 = vmatprep.subr.bf16.mxu0 0
  %234 = vmatpush2.bf16.msra.mxu0 0
  %235 = vmatprep.subr.bf16.mxu0 0
  %236 = vmatpush2.bf16.msra.mxu0 0
  %237 = vmatprep.subr.bf16.mxu0 0
  %238 = vmatpush2.bf16.msra.mxu0 0
  %239 = vmatprep.subr.bf16.mxu0 0
  %240 = vmatpush2.bf16.msra.mxu0 0
  %241 = vmatprep.subr.bf16.mxu0 0
  %242 = vmatpush2.bf16.msra.mxu0 0
  %243 = vmatprep.subr.bf16.mxu0 0
  %244 = vmatpush2.bf16.msra.mxu0 0
  %245 = vmatprep.mubr.bf16.mxu0 0
  %246 = vmatmul.mubr.bf16.gmra.mxu0 %v129
  %v247 = vpop.f32.mrf.mxu0
  %v248 = vadd.f32 %v57, %v247
  %v249 = vpop.f32.mrf.mxu0
  %v250 = vadd.f32 %v58, %v249
  %v251 = vpop.f32.mrf.mxu0
  %v252 = vadd.f32 %v61, %v251
  %v253 = vpop.f32.mrf.mxu0
  %v254 = vadd.f32 %v62, %v253
  %255 = vmatprep.mubr.bf16.mxu0 0
  %256 = vmatmul.mubr.bf16.gmra.mxu0 %v132
  %v257 = vpop.f32.mrf.mxu0
  %v258 = vadd.f32 %v65, %v257
  %v259 = vpop.f32.mrf.mxu0
  %v260 = vadd.f32 %v66, %v259
  %v261 = vpop.f32.mrf.mxu0
  %v262 = vadd.f32 %v69, %v261
  %v263 = vpop.f32.mrf.mxu0
  %v264 = vadd.f32 %v70, %v263
  %265 = vmatprep.mubr.bf16.mxu0 0
  %266 = vmatmul.mubr.bf16.gmra.mxu0 %v135
  %v267 = vpop.f32.mrf.mxu0
  %v268 = vadd.f32 %v73, %v267
  %v269 = vpop.f32.mrf.mxu0
  %v270 = vadd.f32 %v74, %v269
  %v271 = vpop.f32.mrf.mxu0
  %v272 = vadd.f32 %v77, %v271
  %v273 = vpop.f32.mrf.mxu0
  %v274 = vadd.f32 %v78, %v273
  %275 = vmatprep.mubr.bf16.mxu0 0
  %276 = vmatmul.mubr.bf16.gmra.mxu0 %v138
  %v277 = vpop.f32.mrf.mxu0
  %v278 = vadd.f32 %v81, %v277
  %v279 = vpop.f32.mrf.mxu0
  %v280 = vadd.f32 %v82, %v279
  %v281 = vpop.f32.mrf.mxu0
  %v282 = vadd.f32 %v85, %v281
  %v283 = vpop.f32.mrf.mxu0
  %v284 = vadd.f32 %v86, %v283
  %285 = vdwg.mxu0
  %v286 = vpack.c.bf16 %v179, %v175
  %v287 = vpack.c.bf16 %v181, %v177
  %v288 = vpack.c.bf16 %v252, %v248
  %v289 = vpack.c.bf16 %v254, %v250
  %v290 = vpack.c.bf16 %v189, %v185
  %v291 = vpack.c.bf16 %v191, %v187
  %v292 = vpack.c.bf16 %v262, %v258
  %v293 = vpack.c.bf16 %v264, %v260
  %v294 = vpack.c.bf16 %v199, %v195
  %v295 = vpack.c.bf16 %v201, %v197
  %v296 = vpack.c.bf16 %v272, %v268
  %v297 = vpack.c.bf16 %v274, %v270
  %v298 = vpack.c.bf16 %v209, %v205
  %v299 = vpack.c.bf16 %v211, %v207
  %v300 = vpack.c.bf16 %v282, %v278
  %v301 = vpack.c.bf16 %v284, %v280
  %v318 = vunpack.c.l.b16 %v286
  %v319 = vunpack.c.l.b16 %v287
  %v320 = vunpack.c.l.b16 %v288
  %v321 = vunpack.c.l.b16 %v289
  %v322 = vunpack.c.h.b16 %v286
  %v323 = vunpack.c.h.b16 %v287
  %v324 = vunpack.c.h.b16 %v288
  %v325 = vunpack.c.h.b16 %v289
  %v326 = vunpack.c.l.b16 %v290
  %v327 = vunpack.c.l.b16 %v291
  %v328 = vunpack.c.l.b16 %v292
  %v329 = vunpack.c.l.b16 %v293
  %v330 = vunpack.c.h.b16 %v290
  %v331 = vunpack.c.h.b16 %v291
  %v332 = vunpack.c.h.b16 %v292
  %v333 = vunpack.c.h.b16 %v293
  %v334 = vunpack.c.l.b16 %v294
  %v335 = vunpack.c.l.b16 %v295
  %v336 = vunpack.c.l.b16 %v296
  %v337 = vunpack.c.l.b16 %v297
  %v338 = vunpack.c.h.b16 %v294
  %v339 = vunpack.c.h.b16 %v295
  %v340 = vunpack.c.h.b16 %v296
  %v341 = vunpack.c.h.b16 %v297
  %v342 = vunpack.c.l.b16 %v298
  %v343 = vunpack.c.l.b16 %v299
  %v344 = vunpack.c.l.b16 %v300
  %v345 = vunpack.c.l.b16 %v301
  %v346 = vunpack.c.h.b16 %v298
  %v347 = vunpack.c.h.b16 %v299
  %v348 = vunpack.c.h.b16 %v300
  %v349 = vunpack.c.h.b16 %v301
  %v350 = vpack.c.b16 %v319, %v318
  %v351 = vpack.c.b16 %v321, %v320
  %v352 = vpack.c.b16 %v323, %v322
  %v353 = vpack.c.b16 %v325, %v324
  %v354 = vpack.c.b16 %v327, %v326
  %v355 = vpack.c.b16 %v329, %v328
  %v356 = vpack.c.b16 %v331, %v330
  %v357 = vpack.c.b16 %v333, %v332
  %v358 = vpack.c.b16 %v335, %v334
  %v359 = vpack.c.b16 %v337, %v336
  %v360 = vpack.c.b16 %v339, %v338
  %v361 = vpack.c.b16 %v341, %v340
  %v362 = vpack.c.b16 %v343, %v342
  %v363 = vpack.c.b16 %v345, %v344
  %v364 = vpack.c.b16 %v347, %v346
  %v365 = vpack.c.b16 %v349, %v348
  %382 = vst [vmem:[%s5] sm:$0xff] %v350
  %383 = vst [vmem:[%s5 + $0x8] sm:$0xff] %v351
  %384 = vst [vmem:[%s5 + $0x10] sm:$0xff] %v352
  %385 = vst [vmem:[%s5 + $0x18] sm:$0xff] %v353
  %386 = vst [vmem:[%s5 + $0x20] sm:$0xff] %v354
  %387 = vst [vmem:[%s5 + $0x28] sm:$0xff] %v355
  %388 = vst [vmem:[%s5 + $0x30] sm:$0xff] %v356
  %389 = vst [vmem:[%s5 + $0x38] sm:$0xff] %v357
  %390 = vst [vmem:[%s5 + $0x40] sm:$0xff] %v358
  %391 = vst [vmem:[%s5 + $0x48] sm:$0xff] %v359
  %392 = vst [vmem:[%s5 + $0x50] sm:$0xff] %v360
  %393 = vst [vmem:[%s5 + $0x58] sm:$0xff] %v361
  %394 = vst [vmem:[%s5 + $0x60] sm:$0xff] %v362
  %395 = vst [vmem:[%s5 + $0x68] sm:$0xff] %v363
  %396 = vst [vmem:[%s5 + $0x70] sm:$0xff] %v364
  %397 = vst [vmem:[%s5 + $0x78] sm:$0xff] %v365
  %v398 = vld [vmem:[%s4] sm:$0xff]
  %v399 = vld [vmem:[%s4 + $0x8] sm:$0xff]
  %v400 = vld [vmem:[%s4 + $0x10] sm:$0xff]
  %v401 = vld [vmem:[%s4 + $0x18] sm:$0xff]
  %v402 = vld [vmem:[%s4 + $0x20] sm:$0xff]
  %v403 = vld [vmem:[%s4 + $0x28] sm:$0xff]
  %v404 = vld [vmem:[%s4 + $0x30] sm:$0xff]
  %v405 = vld [vmem:[%s4 + $0x38] sm:$0xff]
  %v406 = vld [vmem:[%s4 + $0x40] sm:$0xff]
  %v407 = vld [vmem:[%s4 + $0x48] sm:$0xff]
  %v408 = vld [vmem:[%s4 + $0x50] sm:$0xff]
  %v409 = vld [vmem:[%s4 + $0x58] sm:$0xff]
  %v410 = vld [vmem:[%s4 + $0x60] sm:$0xff]
  %v411 = vld [vmem:[%s4 + $0x68] sm:$0xff]
  %v412 = vld [vmem:[%s4 + $0x70] sm:$0xff]
  %v413 = vld [vmem:[%s4 + $0x78] sm:$0xff]
  %v414 = vunpack.c.l.bf16 %v398
  %v415 = vunpack.c.h.bf16 %v398
  %v416 = vunpack.c.l.bf16 %v399
  %v417 = vunpack.c.h.bf16 %v399
  %v418 = vunpack.c.l.bf16 %v400
  %v419 = vunpack.c.h.bf16 %v400
  %v420 = vunpack.c.l.bf16 %v401
  %v421 = vunpack.c.h.bf16 %v401
  %v422 = vunpack.c.l.bf16 %v402
  %v423 = vunpack.c.h.bf16 %v402
  %v424 = vunpack.c.l.bf16 %v403
  %v425 = vunpack.c.h.bf16 %v403
  %v426 = vunpack.c.l.bf16 %v404
  %v427 = vunpack.c.h.bf16 %v404
  %v428 = vunpack.c.l.bf16 %v405
  %v429 = vunpack.c.h.bf16 %v405
  %v430 = vunpack.c.l.bf16 %v406
  %v431 = vunpack.c.h.bf16 %v406
  %v432 = vunpack.c.l.bf16 %v407
  %v433 = vunpack.c.h.bf16 %v407
  %v434 = vunpack.c.l.bf16 %v408
  %v435 = vunpack.c.h.bf16 %v408
  %v436 = vunpack.c.l.bf16 %v409
  %v437 = vunpack.c.h.bf16 %v409
  %v438 = vunpack.c.l.bf16 %v410
  %v439 = vunpack.c.h.bf16 %v410
  %v440 = vunpack.c.l.bf16 %v411
  %v441 = vunpack.c.h.bf16 %v411
  %v442 = vunpack.c.l.bf16 %v412
  %v443 = vunpack.c.h.bf16 %v412
  %v444 = vunpack.c.l.bf16 %v413
  %v445 = vunpack.c.h.bf16 %v413
  %v450 = vunpack.c.l.b16 %v35
  %v451 = vunpack.c.h.b16 %v35
  %v452 = vunpack.c.l.b16 %v36
  %v453 = vunpack.c.h.b16 %v36
  %v454 = vunpack.c.l.b16 %v37
  %v455 = vunpack.c.h.b16 %v37
  %v456 = vunpack.c.l.b16 %v38
  %v457 = vunpack.c.h.b16 %v38
  %v458 = vpack.c.b16 %v454, %v450
  %v459 = vpack.c.b16 %v455, %v451
  %v460 = vpack.c.b16 %v456, %v452
  %v461 = vpack.c.b16 %v457, %v453
  %466 = vmatprep.subr.bf16.mxu0 0
  %467 = vmatpush1.bf16.msra.mxu0 0
  %468 = vmatprep.subr.bf16.mxu0 0
  %469 = vmatpush1.bf16.msra.mxu0 0
  %470 = vmatprep.subr.bf16.mxu0 0
  %471 = vmatpush1.bf16.msra.mxu0 0
  %472 = vmatprep.subr.bf16.mxu0 0
  %473 = vmatpush1.bf16.msra.mxu0 0
  %474 = vmatprep.subr.bf16.mxu0 0
  %475 = vmatpush1.bf16.msra.mxu0 0
  %476 = vmatprep.subr.bf16.mxu0 0
  %477 = vmatpush1.bf16.msra.mxu0 0
  %478 = vmatprep.subr.bf16.mxu0 0
  %479 = vmatpush1.bf16.msra.mxu0 0
  %480 = vmatprep.subr.bf16.mxu0 %v459
  %481 = vmatpush1.bf16.msra.mxu0 %v458
  %482 = vmatprep.subr.bf16.mxu0 0
  %483 = vmatpush2.bf16.msra.mxu0 0
  %484 = vmatprep.subr.bf16.mxu0 0
  %485 = vmatpush2.bf16.msra.mxu0 0
  %486 = vmatprep.subr.bf16.mxu0 0
  %487 = vmatpush2.bf16.msra.mxu0 0
  %488 = vmatprep.subr.bf16.mxu0 0
  %489 = vmatpush2.bf16.msra.mxu0 0
  %490 = vmatprep.subr.bf16.mxu0 0
  %491 = vmatpush2.bf16.msra.mxu0 0
  %492 = vmatprep.subr.bf16.mxu0 0
  %493 = vmatpush2.bf16.msra.mxu0 0
  %494 = vmatprep.subr.bf16.mxu0 0
  %495 = vmatpush2.bf16.msra.mxu0 0
  %496 = vmatprep.subr.bf16.mxu0 0
  %497 = vmatpush2.bf16.msra.mxu0 0
  %498 = vmatprep.mubr.bf16.mxu0 0
  %499 = vmatmul.mubr.bf16.gmra.mxu0 %v129
  %v500 = vpop.f32.mrf.mxu0
  %v501 = vadd.f32 %v414, %v500
  %v502 = vpop.f32.mrf.mxu0
  %v503 = vadd.f32 %v415, %v502
  %v504 = vpop.f32.mrf.mxu0
  %v505 = vadd.f32 %v418, %v504
  %v506 = vpop.f32.mrf.mxu0
  %v507 = vadd.f32 %v419, %v506
  %508 = vmatprep.mubr.bf16.mxu0 0
  %509 = vmatmul.mubr.bf16.gmra.mxu0 %v132
  %v510 = vpop.f32.mrf.mxu0
  %v511 = vadd.f32 %v422, %v510
  %v512 = vpop.f32.mrf.mxu0
  %v513 = vadd.f32 %v423, %v512
  %v514 = vpop.f32.mrf.mxu0
  %v515 = vadd.f32 %v426, %v514
  %v516 = vpop.f32.mrf.mxu0
  %v517 = vadd.f32 %v427, %v516
  %518 = vmatprep.mubr.bf16.mxu0 0
  %519 = vmatmul.mubr.bf16.gmra.mxu0 %v135
  %v520 = vpop.f32.mrf.mxu0
  %v521 = vadd.f32 %v430, %v520
  %v522 = vpop.f32.mrf.mxu0
  %v523 = vadd.f32 %v431, %v522
  %v524 = vpop.f32.mrf.mxu0
  %v525 = vadd.f32 %v434, %v524
  %v526 = vpop.f32.mrf.mxu0
  %v527 = vadd.f32 %v435, %v526
  %528 = vmatprep.mubr.bf16.mxu0 0
  %529 = vmatmul.mubr.bf16.gmra.mxu0 %v138
  %v530 = vpop.f32.mrf.mxu0
  %v531 = vadd.f32 %v438, %v530
  %v532 = vpop.f32.mrf.mxu0
  %v533 = vadd.f32 %v439, %v532
  %v534 = vpop.f32.mrf.mxu0
  %v535 = vadd.f32 %v442, %v534
  %v536 = vpop.f32.mrf.mxu0
  %v537 = vadd.f32 %v443, %v536
  %538 = vdwg.mxu0
  %539 = vmatprep.subr.bf16.mxu0 0
  %540 = vmatpush1.bf16.msra.mxu0 0
  %541 = vmatprep.subr.bf16.mxu0 0
  %542 = vmatpush1.bf16.msra.mxu0 0
  %543 = vmatprep.subr.bf16.mxu0 0
  %544 = vmatpush1.bf16.msra.mxu0 0
  %545 = vmatprep.subr.bf16.mxu0 0
  %546 = vmatpush1.bf16.msra.mxu0 0
  %547 = vmatprep.subr.bf16.mxu0 0
  %548 = vmatpush1.bf16.msra.mxu0 0
  %549 = vmatprep.subr.bf16.mxu0 0
  %550 = vmatpush1.bf16.msra.mxu0 0
  %551 = vmatprep.subr.bf16.mxu0 0
  %552 = vmatpush1.bf16.msra.mxu0 0
  %553 = vmatprep.subr.bf16.mxu0 %v461
  %554 = vmatpush1.bf16.msra.mxu0 %v460
  %555 = vmatprep.subr.bf16.mxu0 0
  %556 = vmatpush2.bf16.msra.mxu0 0
  %557 = vmatprep.subr.bf16.mxu0 0
  %558 = vmatpush2.bf16.msra.mxu0 0
  %559 = vmatprep.subr.bf16.mxu0 0
  %560 = vmatpush2.bf16.msra.mxu0 0
  %561 = vmatprep.subr.bf16.mxu0 0
  %562 = vmatpush2.bf16.msra.mxu0 0
  %563 = vmatprep.subr.bf16.mxu0 0
  %564 = vmatpush2.bf16.msra.mxu0 0
  %565 = vmatprep.subr.bf16.mxu0 0
  %566 = vmatpush2.bf16.msra.mxu0 0
  %567 = vmatprep.subr.bf16.mxu0 0
  %568 = vmatpush2.bf16.msra.mxu0 0
  %569 = vmatprep.subr.bf16.mxu0 0
  %570 = vmatpush2.bf16.msra.mxu0 0
  %571 = vmatprep.mubr.bf16.mxu0 0
  %572 = vmatmul.mubr.bf16.gmra.mxu0 %v129
  %v573 = vpop.f32.mrf.mxu0
  %v574 = vadd.f32 %v416, %v573
  %v575 = vpop.f32.mrf.mxu0
  %v576 = vadd.f32 %v417, %v575
  %v577 = vpop.f32.mrf.mxu0
  %v578 = vadd.f32 %v420, %v577
  %v579 = vpop.f32.mrf.mxu0
  %v580 = vadd.f32 %v421, %v579
  %581 = vmatprep.mubr.bf16.mxu0 0
  %582 = vmatmul.mubr.bf16.gmra.mxu0 %v132
  %v583 = vpop.f32.mrf.mxu0
  %v584 = vadd.f32 %v424, %v583
  %v585 = vpop.f32.mrf.mxu0
  %v586 = vadd.f32 %v425, %v585
  %v587 = vpop.f32.mrf.mxu0
  %v588 = vadd.f32 %v428, %v587
  %v589 = vpop.f32.mrf.mxu0
  %v590 = vadd.f32 %v429, %v589
  %591 = vmatprep.mubr.bf16.mxu0 0
  %592 = vmatmul.mubr.bf16.gmra.mxu0 %v135
  %v593 = vpop.f32.mrf.mxu0
  %v594 = vadd.f32 %v432, %v593
  %v595 = vpop.f32.mrf.mxu0
  %v596 = vadd.f32 %v433, %v595
  %v597 = vpop.f32.mrf.mxu0
  %v598 = vadd.f32 %v436, %v597
  %v599 = vpop.f32.mrf.mxu0
  %v600 = vadd.f32 %v437, %v599
  %601 = vmatprep.mubr.bf16.mxu0 0
  %602 = vmatmul.mubr.bf16.gmra.mxu0 %v138
  %v603 = vpop.f32.mrf.mxu0
  %v604 = vadd.f32 %v440, %v603
  %v605 = vpop.f32.mrf.mxu0
  %v606 = vadd.f32 %v441, %v605
  %v607 = vpop.f32.mrf.mxu0
  %v608 = vadd.f32 %v444, %v607
  %v609 = vpop.f32.mrf.mxu0
  %v610 = vadd.f32 %v445, %v609
  %611 = vdwg.mxu0
  %v612 = vpack.c.bf16 %v505, %v501
  %v613 = vpack.c.bf16 %v507, %v503
  %v614 = vpack.c.bf16 %v578, %v574
  %v615 = vpack.c.bf16 %v580, %v576
  %v616 = vpack.c.bf16 %v515, %v511
  %v617 = vpack.c.bf16 %v517, %v513
  %v618 = vpack.c.bf16 %v588, %v584
  %v619 = vpack.c.bf16 %v590, %v586
  %v620 = vpack.c.bf16 %v525, %v521
  %v621 = vpack.c.bf16 %v527, %v523
  %v622 = vpack.c.bf16 %v598, %v594
  %v623 = vpack.c.bf16 %v600, %v596
  %v624 = vpack.c.bf16 %v535, %v531
  %v625 = vpack.c.bf16 %v537, %v533
  %v626 = vpack.c.bf16 %v608, %v604
  %v627 = vpack.c.bf16 %v610, %v606
  %v644 = vunpack.c.l.b16 %v612
  %v645 = vunpack.c.l.b16 %v613
  %v646 = vunpack.c.l.b16 %v614
  %v647 = vunpack.c.l.b16 %v615
  %v648 = vunpack.c.h.b16 %v612
  %v649 = vunpack.c.h.b16 %v613
  %v650 = vunpack.c.h.b16 %v614
  %v651 = vunpack.c.h.b16 %v615
  %v652 = vunpack.c.l.b16 %v616
  %v653 = vunpack.c.l.b16 %v617
  %v654 = vunpack.c.l.b16 %v618
  %v655 = vunpack.c.l.b16 %v619
  %v656 = vunpack.c.h.b16 %v616
  %v657 = vunpack.c.h.b16 %v617
  %v658 = vunpack.c.h.b16 %v618
  %v659 = vunpack.c.h.b16 %v619
  %v660 = vunpack.c.l.b16 %v620
  %v661 = vunpack.c.l.b16 %v621
  %v662 = vunpack.c.l.b16 %v622
  %v663 = vunpack.c.l.b16 %v623
  %v664 = vunpack.c.h.b16 %v620
  %v665 = vunpack.c.h.b16 %v621
  %v666 = vunpack.c.h.b16 %v622
  %v667 = vunpack.c.h.b16 %v623
  %v668 = vunpack.c.l.b16 %v624
  %v669 = vunpack.c.l.b16 %v625
  %v670 = vunpack.c.l.b16 %v626
  %v671 = vunpack.c.l.b16 %v627
  %v672 = vunpack.c.h.b16 %v624
  %v673 = vunpack.c.h.b16 %v625
  %v674 = vunpack.c.h.b16 %v626
  %v675 = vunpack.c.h.b16 %v627
  %v676 = vpack.c.b16 %v645, %v644
  %v677 = vpack.c.b16 %v647, %v646
  %v678 = vpack.c.b16 %v649, %v648
  %v679 = vpack.c.b16 %v651, %v650
  %v680 = vpack.c.b16 %v653, %v652
  %v681 = vpack.c.b16 %v655, %v654
  %v682 = vpack.c.b16 %v657, %v656
  %v683 = vpack.c.b16 %v659, %v658
  %v684 = vpack.c.b16 %v661, %v660
  %v685 = vpack.c.b16 %v663, %v662
  %v686 = vpack.c.b16 %v665, %v664
  %v687 = vpack.c.b16 %v667, %v666
  %v688 = vpack.c.b16 %v669, %v668
  %v689 = vpack.c.b16 %v671, %v670
  %v690 = vpack.c.b16 %v673, %v672
  %v691 = vpack.c.b16 %v675, %v674
  %708 = vst [vmem:[%s6] sm:$0xff] %v676
  %709 = vst [vmem:[%s6 + $0x8] sm:$0xff] %v677
  %710 = vst [vmem:[%s6 + $0x10] sm:$0xff] %v678
  %711 = vst [vmem:[%s6 + $0x18] sm:$0xff] %v679
  %712 = vst [vmem:[%s6 + $0x20] sm:$0xff] %v680
  %713 = vst [vmem:[%s6 + $0x28] sm:$0xff] %v681
  %714 = vst [vmem:[%s6 + $0x30] sm:$0xff] %v682
  %715 = vst [vmem:[%s6 + $0x38] sm:$0xff] %v683
  %716 = vst [vmem:[%s6 + $0x40] sm:$0xff] %v684
  %717 = vst [vmem:[%s6 + $0x48] sm:$0xff] %v685
  %718 = vst [vmem:[%s6 + $0x50] sm:$0xff] %v686
  %719 = vst [vmem:[%s6 + $0x58] sm:$0xff] %v687
  %720 = vst [vmem:[%s6 + $0x60] sm:$0xff] %v688
  %721 = vst [vmem:[%s6 + $0x68] sm:$0xff] %v689
  %722 = vst [vmem:[%s6 + $0x70] sm:$0xff] %v690
  %723 = vst [vmem:[%s6 + $0x78] sm:$0xff] %v691
  // Predicated region
  $region22: #{forward.7} parent=0 // pred_check
    _
  $region23: #{forward.7} parent=0 // pred_check_branch
    %725 = sbr.rel (0) target = $region25
  $region24: #{forward.7} parent=0 // pred_region
    _
  $region25: #{forward.7} parent=0 // pred_fallthru
    _
  // Predicated region
  $region26: #{forward.7} parent=0 // pred_check
    _
  $region27: #{forward.7} parent=0 // pred_check_branch
    %727 = sbr.rel (0) target = $region29
  $region28: #{forward.7} parent=0 // pred_region
    _
  $region29: #{forward.7} parent=0 // pred_fallthru
    _
  // Predicated region
  $region30: #{forward.7} parent=0 // pred_check
    _
  $region31: #{forward.7} parent=0 // pred_check_branch
    %729 = sbr.rel (0) target = $region33
  $region32: #{forward.7} parent=0 // pred_region
    _
  $region33: #{forward.7} parent=0 // pred_fallthru
    _
  // Predicated region
  $region34: #{forward.7} parent=0 // pred_check
    _
  $region35: #{forward.7} parent=0 // pred_check_branch
    %731 = sbr.rel (0) target = $region37
  $region36: #{forward.7} parent=0 // pred_region
    _
  $region37: #{forward.7} parent=0 // pred_fallthru
    _

// kernel: forward.11
$region0: #{forward.11}
  #allocation0 [shape = 'u32[]', space=smem, size = 0x4, offset = 0x4, fixed_abs, tag = 'smem constant byte address 0x4 - core index']
  #allocation1 [shape = 'u32[144,128]{1,0:T(1,128)}', space=vmem, size = 0x12000, scoped, tag = 'internal scratch']
  %s0 = inlined_call_operand.vmem [shape: bf16[64,128], index: 0, kind: input, shape index: {}]
  %s1 = inlined_call_operand.vmem [shape: bf16[64,128], index: 1, kind: input, shape index: {}]
  %s2 = inlined_call_operand.vmem [shape: bf16[128,128], index: 2, kind: input, shape index: {}]
  %s3 = inlined_call_operand.vmem [shape: bf16[128,128], index: 3, kind: input, shape index: {}]
  %s4 = inlined_call_operand.vmem [shape: f32[1,128], index: 4, kind: input, shape index: {}]
  %s5 = inlined_call_operand.vmem [shape: f32[64,128], index: 5, kind: output, shape index: {}]
  %s6 = sld [smem:[#allocation0]]
  $region30: #{forward.11} parent=0
    _
  %s8 = ssub.s32 1, %s6
  %s9 = scalar_select 0, %s8, %s6
  // Predicated region
  $region2: #{forward.11} parent=0 // pred_check
    _
  $region3: #{forward.11} parent=0 // pred_check_branch
    %11 = sbr.rel (0) target = $region5
  $region4: #{forward.11} parent=0 // pred_region
    _
  $region5: #{forward.11} parent=0 // pred_fallthru
    _
  // Predicated region
  $region6: #{forward.11} parent=0 // pred_check
    _
  $region7: #{forward.11} parent=0 // pred_check_branch
    %13 = sbr.rel (0) target = $region9
  $region8: #{forward.11} parent=0 // pred_region
    _
  $region9: #{forward.11} parent=0 // pred_fallthru
    _
  // Predicated region
  $region10: #{forward.11} parent=0 // pred_check
    _
  $region11: #{forward.11} parent=0 // pred_check_branch
    %15 = sbr.rel (0) target = $region13
  $region12: #{forward.11} parent=0 // pred_region
    _
  $region13: #{forward.11} parent=0 // pred_fallthru
    _
  // Predicated region
  $region14: #{forward.11} parent=0 // pred_check
    _
  $region15: #{forward.11} parent=0 // pred_check_branch
    %17 = sbr.rel (0) target = $region17
  $region16: #{forward.11} parent=0 // pred_region
    _
  $region17: #{forward.11} parent=0 // pred_fallthru
    _
  // Predicated region
  $region18: #{forward.11} parent=0 // pred_check
    _
  $region19: #{forward.11} parent=0 // pred_check_branch
    %19 = sbr.rel (0) target = $region21
  $region20: #{forward.11} parent=0 // pred_region
    _
  $region21: #{forward.11} parent=0 // pred_fallthru
    _
  %v21 = vld [vmem:[%s0] sm:$0xf]
  %v22 = vld [vmem:[%s0 + $0x4] sm:$0xf]
  %v23 = vld [vmem:[%s0 + $0x8] sm:$0xf]
  %v24 = vld [vmem:[%s0 + $0xc] sm:$0xf]
  %v25 = vld [vmem:[%s0 + $0x10] sm:$0xf]
  %v26 = vld [vmem:[%s0 + $0x14] sm:$0xf]
  %v27 = vld [vmem:[%s0 + $0x18] sm:$0xf]
  %v28 = vld [vmem:[%s0 + $0x1c] sm:$0xf]
  %v29 = vld [vmem:[%s2] sm:$0xf]
  %v30 = vld [vmem:[%s2 + $0x4] sm:$0xf]
  %v31 = vld [vmem:[%s2 + $0x8] sm:$0xf]
  %v32 = vld [vmem:[%s2 + $0xc] sm:$0xf]
  %v33 = vld [vmem:[%s2 + $0x10] sm:$0xf]
  %v34 = vld [vmem:[%s2 + $0x14] sm:$0xf]
  %v35 = vld [vmem:[%s2 + $0x18] sm:$0xf]
  %v36 = vld [vmem:[%s2 + $0x1c] sm:$0xf]
  %v37 = vld [vmem:[%s2 + $0x20] sm:$0xf]
  %v38 = vld [vmem:[%s2 + $0x24] sm:$0xf]
  %v39 = vld [vmem:[%s2 + $0x28] sm:$0xf]
  %v40 = vld [vmem:[%s2 + $0x2c] sm:$0xf]
  %v41 = vld [vmem:[%s2 + $0x30] sm:$0xf]
  %v42 = vld [vmem:[%s2 + $0x34] sm:$0xf]
  %v43 = vld [vmem:[%s2 + $0x38] sm:$0xf]
  %v44 = vld [vmem:[%s2 + $0x3c] sm:$0xf]
  %v45 = vld [vmem:[%s1] sm:$0xf]
  %v46 = vld [vmem:[%s1 + $0x4] sm:$0xf]
  %v47 = vld [vmem:[%s1 + $0x8] sm:$0xf]
  %v48 = vld [vmem:[%s1 + $0xc] sm:$0xf]
  %v49 = vld [vmem:[%s1 + $0x10] sm:$0xf]
  %v50 = vld [vmem:[%s1 + $0x14] sm:$0xf]
  %v51 = vld [vmem:[%s1 + $0x18] sm:$0xf]
  %v52 = vld [vmem:[%s1 + $0x1c] sm:$0xf]
  %v53 = vld [vmem:[%s3] sm:$0xf]
  %v54 = vld [vmem:[%s3 + $0x4] sm:$0xf]
  %v55 = vld [vmem:[%s3 + $0x8] sm:$0xf]
  %v56 = vld [vmem:[%s3 + $0xc] sm:$0xf]
  %v57 = vld [vmem:[%s3 + $0x10] sm:$0xf]
  %v58 = vld [vmem:[%s3 + $0x14] sm:$0xf]
  %v59 = vld [vmem:[%s3 + $0x18] sm:$0xf]
  %v60 = vld [vmem:[%s3 + $0x1c] sm:$0xf]
  %v61 = vld [vmem:[%s3 + $0x20] sm:$0xf]
  %v62 = vld [vmem:[%s3 + $0x24] sm:$0xf]
  %v63 = vld [vmem:[%s3 + $0x28] sm:$0xf]
  %v64 = vld [vmem:[%s3 + $0x2c] sm:$0xf]
  %v65 = vld [vmem:[%s3 + $0x30] sm:$0xf]
  %v66 = vld [vmem:[%s3 + $0x34] sm:$0xf]
  %v67 = vld [vmem:[%s3 + $0x38] sm:$0xf]
  %v68 = vld [vmem:[%s3 + $0x3c] sm:$0xf]
  %v77 = vunpack.c.l.b16 %v45
  %v78 = vunpack.c.l.b16 %v46
  %v79 = vunpack.c.l.b16 %v47
  %v80 = vunpack.c.l.b16 %v48
  %v81 = vunpack.c.l.b16 %v49
  %v82 = vunpack.c.l.b16 %v50
  %v83 = vunpack.c.l.b16 %v51
  %v84 = vunpack.c.l.b16 %v52
  %v85 = vpack.c.b16 %v78, %v77
  %v86 = vpack.c.b16 %v80, %v79
  %v87 = vpack.c.b16 %v82, %v81
  %v88 = vpack.c.b16 %v84, %v83
  %v109 = vunpack.c.l.b16 %v53
  %v110 = vunpack.c.l.b16 %v54
  %v111 = vunpack.c.l.b16 %v55
  %v112 = vunpack.c.l.b16 %v56
  %v113 = vunpack.c.l.b16 %v57
  %v114 = vunpack.c.l.b16 %v58
  %v115 = vunpack.c.l.b16 %v59
  %v116 = vunpack.c.l.b16 %v60
  %v117 = vunpack.c.l.b16 %v61
  %v118 = vunpack.c.l.b16 %v62
  %v119 = vunpack.c.l.b16 %v63
  %v120 = vunpack.c.l.b16 %v64
  %v121 = vunpack.c.l.b16 %v65
  %v122 = vunpack.c.l.b16 %v66
  %v123 = vunpack.c.l.b16 %v67
  %v124 = vunpack.c.l.b16 %v68
  %v125 = vpack.c.b16 %v110, %v109
  %v126 = vpack.c.b16 %v112, %v111
  %v127 = vpack.c.b16 %v114, %v113
  %v128 = vpack.c.b16 %v116, %v115
  %v129 = vpack.c.b16 %v118, %v117
  %v130 = vpack.c.b16 %v120, %v119
  %v131 = vpack.c.b16 %v122, %v121
  %v132 = vpack.c.b16 %v124, %v123
  %141 = vmatprep.subr.bf16.mxu0 0
  %142 = vmatpush1.bf16.msra.mxu0 %v132
  %143 = vmatprep.subr.bf16.mxu0 0
  %144 = vmatpush1.bf16.msra.mxu0 %v131
  %145 = vmatprep.subr.bf16.mxu0 0
  %146 = vmatpush1.bf16.msra.mxu0 %v130
  %147 = vmatprep.subr.bf16.mxu0 0
  %148 = vmatpush1.bf16.msra.mxu0 %v129
  %149 = vmatprep.subr.bf16.mxu0 0
  %150 = vmatpush1.bf16.msra.mxu0 %v128
  %151 = vmatprep.subr.bf16.mxu0 0
  %152 = vmatpush1.bf16.msra.mxu0 %v127
  %153 = vmatprep.subr.bf16.mxu0 0
  %154 = vmatpush1.bf16.msra.mxu0 %v126
  %155 = vmatprep.subr.bf16.mxu0 0
  %156 = vmatpush1.bf16.msra.mxu0 %v125
  %157 = vmatprep.subr.bf16.mxu0 0
  %158 = vmatpush2.bf16.msra.mxu0 0
  %159 = vmatprep.subr.bf16.mxu0 0
  %160 = vmatpush2.bf16.msra.mxu0 0
  %161 = vmatprep.subr.bf16.mxu0 0
  %162 = vmatpush2.bf16.msra.mxu0 0
  %163 = vmatprep.subr.bf16.mxu0 0
  %164 = vmatpush2.bf16.msra.mxu0 0
  %165 = vmatprep.subr.bf16.mxu0 0
  %166 = vmatpush2.bf16.msra.mxu0 0
  %167 = vmatprep.subr.bf16.mxu0 0
  %168 = vmatpush2.bf16.msra.mxu0 0
  %169 = vmatprep.subr.bf16.mxu0 0
  %170 = vmatpush2.bf16.msra.mxu0 0
  %171 = vmatprep.subr.bf16.mxu0 0
  %172 = vmatpush2.bf16.msra.mxu0 0
  %173 = vmatprep.mubr.bf16.mxu0 0
  %174 = vmatmul.mubr.bf16.gmra.mxu0 %v85
  %v175 = vpop.f32.mrf.mxu0
  %v176 = vadd.f32 0.0, %v175
  %v177 = vpop.f32.mrf.mxu0
  %v178 = vpop.f32.mrf.mxu0
  %v179 = vadd.f32 0.0, %v178
  %v180 = vpop.f32.mrf.mxu0
  %181 = vmatprep.mubr.bf16.mxu0 0
  %182 = vmatmul.mubr.bf16.gmra.mxu0 %v86
  %v183 = vpop.f32.mrf.mxu0
  %v184 = vadd.f32 0.0, %v183
  %v185 = vpop.f32.mrf.mxu0
  %v186 = vpop.f32.mrf.mxu0
  %v187 = vadd.f32 0.0, %v186
  %v188 = vpop.f32.mrf.mxu0
  %189 = vmatprep.mubr.bf16.mxu0 0
  %190 = vmatmul.mubr.bf16.gmra.mxu0 %v87
  %v191 = vpop.f32.mrf.mxu0
  %v192 = vadd.f32 0.0, %v191
  %v193 = vpop.f32.mrf.mxu0
  %v194 = vpop.f32.mrf.mxu0
  %v195 = vadd.f32 0.0, %v194
  %v196 = vpop.f32.mrf.mxu0
  %197 = vmatprep.mubr.bf16.mxu0 0
  %198 = vmatmul.mubr.bf16.gmra.mxu0 %v88
  %v199 = vpop.f32.mrf.mxu0
  %v200 = vadd.f32 0.0, %v199
  %v201 = vpop.f32.mrf.mxu0
  %v202 = vpop.f32.mrf.mxu0
  %v203 = vadd.f32 0.0, %v202
  %v204 = vpop.f32.mrf.mxu0
  %205 = vdwg.mxu0
  %v214 = vunpack.c.l.b16 %v21
  %v215 = vunpack.c.l.b16 %v22
  %v216 = vunpack.c.l.b16 %v23
  %v217 = vunpack.c.l.b16 %v24
  %v218 = vunpack.c.l.b16 %v25
  %v219 = vunpack.c.l.b16 %v26
  %v220 = vunpack.c.l.b16 %v27
  %v221 = vunpack.c.l.b16 %v28
  %v222 = vpack.c.b16 %v215, %v214
  %v223 = vpack.c.b16 %v217, %v216
  %v224 = vpack.c.b16 %v219, %v218
  %v225 = vpack.c.b16 %v221, %v220
  %v246 = vunpack.c.l.b16 %v29
  %v247 = vunpack.c.l.b16 %v30
  %v248 = vunpack.c.l.b16 %v31
  %v249 = vunpack.c.l.b16 %v32
  %v250 = vunpack.c.l.b16 %v33
  %v251 = vunpack.c.l.b16 %v34
  %v252 = vunpack.c.l.b16 %v35
  %v253 = vunpack.c.l.b16 %v36
  %v254 = vunpack.c.l.b16 %v37
  %v255 = vunpack.c.l.b16 %v38
  %v256 = vunpack.c.l.b16 %v39
  %v257 = vunpack.c.l.b16 %v40
  %v258 = vunpack.c.l.b16 %v41
  %v259 = vunpack.c.l.b16 %v42
  %v260 = vunpack.c.l.b16 %v43
  %v261 = vunpack.c.l.b16 %v44
  %v262 = vpack.c.b16 %v247, %v246
  %v263 = vpack.c.b16 %v249, %v248
  %v264 = vpack.c.b16 %v251, %v250
  %v265 = vpack.c.b16 %v253, %v252
  %v266 = vpack.c.b16 %v255, %v254
  %v267 = vpack.c.b16 %v257, %v256
  %v268 = vpack.c.b16 %v259, %v258
  %v269 = vpack.c.b16 %v261, %v260
  %278 = vmatprep.subr.bf16.mxu0 0
  %279 = vmatpush1.bf16.msra.mxu0 %v269
  %280 = vmatprep.subr.bf16.mxu0 0
  %281 = vmatpush1.bf16.msra.mxu0 %v268
  %282 = vmatprep.subr.bf16.mxu0 0
  %283 = vmatpush1.bf16.msra.mxu0 %v267
  %284 = vmatprep.subr.bf16.mxu0 0
  %285 = vmatpush1.bf16.msra.mxu0 %v266
  %286 = vmatprep.subr.bf16.mxu0 0
  %287 = vmatpush1.bf16.msra.mxu0 %v265
  %288 = vmatprep.subr.bf16.mxu0 0
  %289 = vmatpush1.bf16.msra.mxu0 %v264
  %290 = vmatprep.subr.bf16.mxu0 0
  %291 = vmatpush1.bf16.msra.mxu0 %v263
  %292 = vmatprep.subr.bf16.mxu0 0
  %293 = vmatpush1.bf16.msra.mxu0 %v262
  %294 = vmatprep.subr.bf16.mxu0 0
  %295 = vmatpush2.bf16.msra.mxu0 0
  %296 = vmatprep.subr.bf16.mxu0 0
  %297 = vmatpush2.bf16.msra.mxu0 0
  %298 = vmatprep.subr.bf16.mxu0 0
  %299 = vmatpush2.bf16.msra.mxu0 0
  %300 = vmatprep.subr.bf16.mxu0 0
  %301 = vmatpush2.bf16.msra.mxu0 0
  %302 = vmatprep.subr.bf16.mxu0 0
  %303 = vmatpush2.bf16.msra.mxu0 0
  %304 = vmatprep.subr.bf16.mxu0 0
  %305 = vmatpush2.bf16.msra.mxu0 0
  %306 = vmatprep.subr.bf16.mxu0 0
  %307 = vmatpush2.bf16.msra.mxu0 0
  %308 = vmatprep.subr.bf16.mxu0 0
  %309 = vmatpush2.bf16.msra.mxu0 0
  %310 = vmatprep.mubr.bf16.mxu0 0
  %311 = vmatmul.mubr.bf16.gmra.mxu0 %v222
  %v312 = vpop.f32.mrf.mxu0
  %v313 = vadd.f32 %v176, %v312
  %v314 = vpop.f32.mrf.mxu0
  %v315 = vpop.f32.mrf.mxu0
  %v316 = vadd.f32 %v179, %v315
  %v317 = vpop.f32.mrf.mxu0
  %318 = vmatprep.mubr.bf16.mxu0 0
  %319 = vmatmul.mubr.bf16.gmra.mxu0 %v223
  %v320 = vpop.f32.mrf.mxu0
  %v321 = vadd.f32 %v184, %v320
  %v322 = vpop.f32.mrf.mxu0
  %v323 = vpop.f32.mrf.mxu0
  %v324 = vadd.f32 %v187, %v323
  %v325 = vpop.f32.mrf.mxu0
  %326 = vmatprep.mubr.bf16.mxu0 0
  %327 = vmatmul.mubr.bf16.gmra.mxu0 %v224
  %v328 = vpop.f32.mrf.mxu0
  %v329 = vadd.f32 %v192, %v328
  %v330 = vpop.f32.mrf.mxu0
  %v331 = vpop.f32.mrf.mxu0
  %v332 = vadd.f32 %v195, %v331
  %v333 = vpop.f32.mrf.mxu0
  %334 = vmatprep.mubr.bf16.mxu0 0
  %335 = vmatmul.mubr.bf16.gmra.mxu0 %v225
  %v336 = vpop.f32.mrf.mxu0
  %v337 = vadd.f32 %v200, %v336
  %v338 = vpop.f32.mrf.mxu0
  %v339 = vpop.f32.mrf.mxu0
  %v340 = vadd.f32 %v203, %v339
  %v341 = vpop.f32.mrf.mxu0
  %342 = vdwg.mxu0
  %v343 = vld [vmem:[%s4] sm:$0x1]
  %v345 = vlaneseq
  %v346 = vshrl.u32 %v345, 7
  %v347 = vsub.s32 0, %v346
  %v348 = vrot.slane %v343, %v347
  %v350 = vadd.f32 %v313, %v348
  %v351 = vadd.f32 %v316, %v348
  %v352 = vadd.f32 %v321, %v348
  %v353 = vadd.f32 %v324, %v348
  %v354 = vadd.f32 %v329, %v348
  %v355 = vadd.f32 %v332, %v348
  %v356 = vadd.f32 %v337, %v348
  %v357 = vadd.f32 %v340, %v348
  %358 = vst [vmem:[%s5] sm:$0xff] %v350
  %359 = vst [vmem:[%s5 + $0x8] sm:$0xff] %v351
  %360 = vst [vmem:[%s5 + $0x10] sm:$0xff] %v352
  %361 = vst [vmem:[%s5 + $0x18] sm:$0xff] %v353
  %362 = vst [vmem:[%s5 + $0x20] sm:$0xff] %v354
  %363 = vst [vmem:[%s5 + $0x28] sm:$0xff] %v355
  %364 = vst [vmem:[%s5 + $0x30] sm:$0xff] %v356
  %365 = vst [vmem:[%s5 + $0x38] sm:$0xff] %v357
  // Predicated region
  $region22: #{forward.11} parent=0 // pred_check
    _
  $region23: #{forward.11} parent=0 // pred_check_branch
    %367 = sbr.rel (0) target = $region25
  $region24: #{forward.11} parent=0 // pred_region
    _
  $region25: #{forward.11} parent=0 // pred_fallthru
    _
  // Predicated region
  $region26: #{forward.11} parent=0 // pred_check
    _
  $region27: #{forward.11} parent=0 // pred_check_branch
    %369 = sbr.rel (0) target = $region29
  $region28: #{forward.11} parent=0 // pred_region
    _
  $region29: #{forward.11} parent=0 // pred_fallthru
    _

// kernel: forward.9
$region0: #{forward.9}
  #allocation0 [shape = 'u32[]', space=smem, size = 0x4, offset = 0x4, fixed_abs, tag = 'smem constant byte address 0x4 - core index']
  #allocation1 [shape = 'u32[144,128]{1,0:T(1,128)}', space=vmem, size = 0x12000, scoped, tag = 'internal scratch']
  %s0 = inlined_call_operand.vmem [shape: bf16[64,128], index: 0, kind: input, shape index: {}]
  %s1 = inlined_call_operand.vmem [shape: bf16[64,128], index: 1, kind: input, shape index: {}]
  %s2 = inlined_call_operand.vmem [shape: bf16[128,512], index: 2, kind: input, shape index: {}]
  %s3 = inlined_call_operand.vmem [shape: bf16[128,512], index: 3, kind: input, shape index: {}]
  %s4 = inlined_call_operand.vmem [shape: bf16[128,512], index: 4, kind: input, shape index: {}]
  %s5 = inlined_call_operand.vmem [shape: bf16[128,512], index: 5, kind: input, shape index: {}]
  %s6 = inlined_call_operand.vmem [shape: bf16[64,512], index: 6, kind: input, shape index: {}]
  %s7 = inlined_call_operand.vmem [shape: bf16[64,512], index: 7, kind: input, shape index: {}]
  %s8 = inlined_call_operand.vmem [shape: bf16[64,512], index: 8, kind: output, shape index: {0}]
  %s9 = inlined_call_operand.vmem [shape: bf16[64,512], index: 9, kind: output, shape index: {1}]
  %10 = xla_tuple %s8, %s9
  %s11 = sld [smem:[#allocation0]]
  $region50: #{forward.9} parent=0
    _
  %s13 = ssub.s32 1, %s11
  %s14 = scalar_select 0, %s13, %s11
  // Predicated region
  $region2: #{forward.9} parent=0 // pred_check
    _
  $region3: #{forward.9} parent=0 // pred_check_branch
    %16 = sbr.rel (0) target = $region5
  $region4: #{forward.9} parent=0 // pred_region
    _
  $region5: #{forward.9} parent=0 // pred_fallthru
    _
  // Predicated region
  $region6: #{forward.9} parent=0 // pred_check
    _
  $region7: #{forward.9} parent=0 // pred_check_branch
    %18 = sbr.rel (0) target = $region9
  $region8: #{forward.9} parent=0 // pred_region
    _
  $region9: #{forward.9} parent=0 // pred_fallthru
    _
  // Predicated region
  $region10: #{forward.9} parent=0 // pred_check
    _
  $region11: #{forward.9} parent=0 // pred_check_branch
    %20 = sbr.rel (0) target = $region13
  $region12: #{forward.9} parent=0 // pred_region
    _
  $region13: #{forward.9} parent=0 // pred_fallthru
    _
  // Predicated region
  $region14: #{forward.9} parent=0 // pred_check
    _
  $region15: #{forward.9} parent=0 // pred_check_branch
    %22 = sbr.rel (0) target = $region17
  $region16: #{forward.9} parent=0 // pred_region
    _
  $region17: #{forward.9} parent=0 // pred_fallthru
    _
  // Predicated region
  $region18: #{forward.9} parent=0 // pred_check
    _
  $region19: #{forward.9} parent=0 // pred_check_branch
    %24 = sbr.rel (0) target = $region21
  $region20: #{forward.9} parent=0 // pred_region
    _
  $region21: #{forward.9} parent=0 // pred_fallthru
    _
  // Predicated region
  $region22: #{forward.9} parent=0 // pred_check
    _
  $region23: #{forward.9} parent=0 // pred_check_branch
    %26 = sbr.rel (0) target = $region25
  $region24: #{forward.9} parent=0 // pred_region
    _
  $region25: #{forward.9} parent=0 // pred_fallthru
    _
  // Predicated region
  $region26: #{forward.9} parent=0 // pred_check
    _
  $region27: #{forward.9} parent=0 // pred_check_branch
    %28 = sbr.rel (0) target = $region29
  $region28: #{forward.9} parent=0 // pred_region
    _
  $region29: #{forward.9} parent=0 // pred_fallthru
    _
  // Predicated region
  $region30: #{forward.9} parent=0 // pred_check
    _
  $region31: #{forward.9} parent=0 // pred_check_branch
    %30 = sbr.rel (0) target = $region33
  $region32: #{forward.9} parent=0 // pred_region
    _
  $region33: #{forward.9} parent=0 // pred_fallthru
    _
  %v32 = vld [vmem:[%s0] sm:$0xf]
  %v33 = vld [vmem:[%s0 + $0x4] sm:$0xf]
  %v34 = vld [vmem:[%s0 + $0x8] sm:$0xf]
  %v35 = vld [vmem:[%s0 + $0xc] sm:$0xf]
  %v36 = vld [vmem:[%s0 + $0x10] sm:$0xf]
  %v37 = vld [vmem:[%s0 + $0x14] sm:$0xf]
  %v38 = vld [vmem:[%s0 + $0x18] sm:$0xf]
  %v39 = vld [vmem:[%s0 + $0x1c] sm:$0xf]
  %v40 = vld [vmem:[%s1] sm:$0xf]
  %v41 = vld [vmem:[%s1 + $0x4] sm:$0xf]
  %v42 = vld [vmem:[%s1 + $0x8] sm:$0xf]
  %v43 = vld [vmem:[%s1 + $0xc] sm:$0xf]
  %v44 = vld [vmem:[%s1 + $0x10] sm:$0xf]
  %v45 = vld [vmem:[%s1 + $0x14] sm:$0xf]
  %v46 = vld [vmem:[%s1 + $0x18] sm:$0xf]
  %v47 = vld [vmem:[%s1 + $0x1c] sm:$0xf]
  %v48 = vld [vmem:[%s2] sm:$0xff]
  %v49 = vld [vmem:[%s2 + $0x8] sm:$0xff]
  %v50 = vld [vmem:[%s2 + $0x10] sm:$0xff]
  %v51 = vld [vmem:[%s2 + $0x18] sm:$0xff]
  %v52 = vld [vmem:[%s2 + $0x20] sm:$0xff]
  %v53 = vld [vmem:[%s2 + $0x28] sm:$0xff]
  %v54 = vld [vmem:[%s2 + $0x30] sm:$0xff]
  %v55 = vld [vmem:[%s2 + $0x38] sm:$0xff]
  %v56 = vld [vmem:[%s2 + $0x40] sm:$0xff]
  %v57 = vld [vmem:[%s2 + $0x48] sm:$0xff]
  %v58 = vld [vmem:[%s2 + $0x50] sm:$0xff]
  %v59 = vld [vmem:[%s2 + $0x58] sm:$0xff]
  %v60 = vld [vmem:[%s2 + $0x60] sm:$0xff]
  %v61 = vld [vmem:[%s2 + $0x68] sm:$0xff]
  %v62 = vld [vmem:[%s2 + $0x70] sm:$0xff]
  %v63 = vld [vmem:[%s2 + $0x78] sm:$0xff]
  %v64 = vld [vmem:[%s2 + $0x80] sm:$0xff]
  %v65 = vld [vmem:[%s2 + $0x88] sm:$0xff]
  %v66 = vld [vmem:[%s2 + $0x90] sm:$0xff]
  %v67 = vld [vmem:[%s2 + $0x98] sm:$0xff]
  %v68 = vld [vmem:[%s2 + $0xa0] sm:$0xff]
  %v69 = vld [vmem:[%s2 + $0xa8] sm:$0xff]
  %v70 = vld [vmem:[%s2 + $0xb0] sm:$0xff]
  %v71 = vld [vmem:[%s2 + $0xb8] sm:$0xff]
  %v72 = vld [vmem:[%s2 + $0xc0] sm:$0xff]
  %v73 = vld [vmem:[%s2 + $0xc8] sm:$0xff]
  %v74 = vld [vmem:[%s2 + $0xd0] sm:$0xff]
  %v75 = vld [vmem:[%s2 + $0xd8] sm:$0xff]
  %v76 = vld [vmem:[%s2 + $0xe0] sm:$0xff]
  %v77 = vld [vmem:[%s2 + $0xe8] sm:$0xff]
  %v78 = vld [vmem:[%s2 + $0xf0] sm:$0xff]
  %v79 = vld [vmem:[%s2 + $0xf8] sm:$0xff]
  %v80 = vld [vmem:[%s3] sm:$0xff]
  %v81 = vld [vmem:[%s3 + $0x8] sm:$0xff]
  %v82 = vld [vmem:[%s3 + $0x10] sm:$0xff]
  %v83 = vld [vmem:[%s3 + $0x18] sm:$0xff]
  %v84 = vld [vmem:[%s3 + $0x20] sm:$0xff]
  %v85 = vld [vmem:[%s3 + $0x28] sm:$0xff]
  %v86 = vld [vmem:[%s3 + $0x30] sm:$0xff]
  %v87 = vld [vmem:[%s3 + $0x38] sm:$0xff]
  %v88 = vld [vmem:[%s3 + $0x40] sm:$0xff]
  %v89 = vld [vmem:[%s3 + $0x48] sm:$0xff]
  %v90 = vld [vmem:[%s3 + $0x50] sm:$0xff]
  %v91 = vld [vmem:[%s3 + $0x58] sm:$0xff]
  %v92 = vld [vmem:[%s3 + $0x60] sm:$0xff]
  %v93 = vld [vmem:[%s3 + $0x68] sm:$0xff]
  %v94 = vld [vmem:[%s3 + $0x70] sm:$0xff]
  %v95 = vld [vmem:[%s3 + $0x78] sm:$0xff]
  %v96 = vld [vmem:[%s3 + $0x80] sm:$0xff]
  %v97 = vld [vmem:[%s3 + $0x88] sm:$0xff]
  %v98 = vld [vmem:[%s3 + $0x90] sm:$0xff]
  %v99 = vld [vmem:[%s3 + $0x98] sm:$0xff]
  %v100 = vld [vmem:[%s3 + $0xa0] sm:$0xff]
  %v101 = vld [vmem:[%s3 + $0xa8] sm:$0xff]
  %v102 = vld [vmem:[%s3 + $0xb0] sm:$0xff]
  %v103 = vld [vmem:[%s3 + $0xb8] sm:$0xff]
  %v104 = vld [vmem:[%s3 + $0xc0] sm:$0xff]
  %v105 = vld [vmem:[%s3 + $0xc8] sm:$0xff]
  %v106 = vld [vmem:[%s3 + $0xd0] sm:$0xff]
  %v107 = vld [vmem:[%s3 + $0xd8] sm:$0xff]
  %v108 = vld [vmem:[%s3 + $0xe0] sm:$0xff]
  %v109 = vld [vmem:[%s3 + $0xe8] sm:$0xff]
  %v110 = vld [vmem:[%s3 + $0xf0] sm:$0xff]
  %v111 = vld [vmem:[%s3 + $0xf8] sm:$0xff]
  %v120 = vunpack.c.l.b16 %v40
  %v121 = vunpack.c.l.b16 %v41
  %v122 = vunpack.c.l.b16 %v42
  %v123 = vunpack.c.l.b16 %v43
  %v124 = vunpack.c.l.b16 %v44
  %v125 = vunpack.c.l.b16 %v45
  %v126 = vunpack.c.l.b16 %v46
  %v127 = vunpack.c.l.b16 %v47
  %v128 = vpack.c.b16 %v121, %v120
  %v129 = vpack.c.b16 %v123, %v122
  %v130 = vpack.c.b16 %v125, %v124
  %v131 = vpack.c.b16 %v127, %v126
  %v168 = vunpack.c.l.b16 %v80
  %v169 = vunpack.c.h.b16 %v80
  %v170 = vunpack.c.l.b16 %v81
  %v171 = vunpack.c.h.b16 %v81
  %v172 = vunpack.c.l.b16 %v82
  %v173 = vunpack.c.h.b16 %v82
  %v174 = vunpack.c.l.b16 %v83
  %v175 = vunpack.c.h.b16 %v83
  %v176 = vunpack.c.l.b16 %v84
  %v177 = vunpack.c.h.b16 %v84
  %v178 = vunpack.c.l.b16 %v85
  %v179 = vunpack.c.h.b16 %v85
  %v180 = vunpack.c.l.b16 %v86
  %v181 = vunpack.c.h.b16 %v86
  %v182 = vunpack.c.l.b16 %v87
  %v183 = vunpack.c.h.b16 %v87
  %v184 = vunpack.c.l.b16 %v88
  %v185 = vunpack.c.h.b16 %v88
  %v186 = vunpack.c.l.b16 %v89
  %v187 = vunpack.c.h.b16 %v89
  %v188 = vunpack.c.l.b16 %v90
  %v189 = vunpack.c.h.b16 %v90
  %v190 = vunpack.c.l.b16 %v91
  %v191 = vunpack.c.h.b16 %v91
  %v192 = vunpack.c.l.b16 %v92
  %v193 = vunpack.c.h.b16 %v92
  %v194 = vunpack.c.l.b16 %v93
  %v195 = vunpack.c.h.b16 %v93
  %v196 = vunpack.c.l.b16 %v94
  %v197 = vunpack.c.h.b16 %v94
  %v198 = vunpack.c.l.b16 %v95
  %v199 = vunpack.c.h.b16 %v95
  %v200 = vunpack.c.l.b16 %v96
  %v201 = vunpack.c.h.b16 %v96
  %v202 = vunpack.c.l.b16 %v97
  %v203 = vunpack.c.h.b16 %v97
  %v204 = vunpack.c.l.b16 %v98
  %v205 = vunpack.c.h.b16 %v98
  %v206 = vunpack.c.l.b16 %v99
  %v207 = vunpack.c.h.b16 %v99
  %v208 = vunpack.c.l.b16 %v100
  %v209 = vunpack.c.h.b16 %v100
  %v210 = vunpack.c.l.b16 %v101
  %v211 = vunpack.c.h.b16 %v101
  %v212 = vunpack.c.l.b16 %v102
  %v213 = vunpack.c.h.b16 %v102
  %v214 = vunpack.c.l.b16 %v103
  %v215 = vunpack.c.h.b16 %v103
  %v216 = vunpack.c.l.b16 %v104
  %v217 = vunpack.c.h.b16 %v104
  %v218 = vunpack.c.l.b16 %v105
  %v219 = vunpack.c.h.b16 %v105
  %v220 = vunpack.c.l.b16 %v106
  %v221 = vunpack.c.h.b16 %v106
  %v222 = vunpack.c.l.b16 %v107
  %v223 = vunpack.c.h.b16 %v107
  %v224 = vunpack.c.l.b16 %v108
  %v225 = vunpack.c.h.b16 %v108
  %v226 = vunpack.c.l.b16 %v109
  %v227 = vunpack.c.h.b16 %v109
  %v228 = vunpack.c.l.b16 %v110
  %v229 = vunpack.c.h.b16 %v110
  %v230 = vunpack.c.l.b16 %v111
  %v231 = vunpack.c.h.b16 %v111
  %v232 = vpack.c.b16 %v172, %v168
  %v233 = vpack.c.b16 %v173, %v169
  %v234 = vpack.c.b16 %v174, %v170
  %v235 = vpack.c.b16 %v175, %v171
  %v236 = vpack.c.b16 %v180, %v176
  %v237 = vpack.c.b16 %v181, %v177
  %v238 = vpack.c.b16 %v182, %v178
  %v239 = vpack.c.b16 %v183, %v179
  %v240 = vpack.c.b16 %v188, %v184
  %v241 = vpack.c.b16 %v189, %v185
  %v242 = vpack.c.b16 %v190, %v186
  %v243 = vpack.c.b16 %v191, %v187
  %v244 = vpack.c.b16 %v196, %v192
  %v245 = vpack.c.b16 %v197, %v193
  %v246 = vpack.c.b16 %v198, %v194
  %v247 = vpack.c.b16 %v199, %v195
  %v248 = vpack.c.b16 %v204, %v200
  %v249 = vpack.c.b16 %v205, %v201
  %v250 = vpack.c.b16 %v206, %v202
  %v251 = vpack.c.b16 %v207, %v203
  %v252 = vpack.c.b16 %v212, %v208
  %v253 = vpack.c.b16 %v213, %v209
  %v254 = vpack.c.b16 %v214, %v210
  %v255 = vpack.c.b16 %v215, %v211
  %v256 = vpack.c.b16 %v220, %v216
  %v257 = vpack.c.b16 %v221, %v217
  %v258 = vpack.c.b16 %v222, %v218
  %v259 = vpack.c.b16 %v223, %v219
  %v260 = vpack.c.b16 %v228, %v224
  %v261 = vpack.c.b16 %v229, %v225
  %v262 = vpack.c.b16 %v230, %v226
  %v263 = vpack.c.b16 %v231, %v227
  %296 = vmatprep.subr.bf16.mxu0 %v261
  %297 = vmatpush1.bf16.msra.mxu0 %v260
  %298 = vmatprep.subr.bf16.mxu0 %v257
  %299 = vmatpush1.bf16.msra.mxu0 %v256
  %300 = vmatprep.subr.bf16.mxu0 %v253
  %301 = vmatpush1.bf16.msra.mxu0 %v252
  %302 = vmatprep.subr.bf16.mxu0 %v249
  %303 = vmatpush1.bf16.msra.mxu0 %v248
  %304 = vmatprep.subr.bf16.mxu0 %v245
  %305 = vmatpush1.bf16.msra.mxu0 %v244
  %306 = vmatprep.subr.bf16.mxu0 %v241
  %307 = vmatpush1.bf16.msra.mxu0 %v240
  %308 = vmatprep.subr.bf16.mxu0 %v237
  %309 = vmatpush1.bf16.msra.mxu0 %v236
  %310 = vmatprep.subr.bf16.mxu0 %v233
  %311 = vmatpush1.bf16.msra.mxu0 %v232
  %312 = vmatprep.subr.bf16.mxu0 0
  %313 = vmatpush2.bf16.msra.mxu0 0
  %314 = vmatprep.subr.bf16.mxu0 0
  %315 = vmatpush2.bf16.msra.mxu0 0
  %316 = vmatprep.subr.bf16.mxu0 0
  %317 = vmatpush2.bf16.msra.mxu0 0
  %318 = vmatprep.subr.bf16.mxu0 0
  %319 = vmatpush2.bf16.msra.mxu0 0
  %320 = vmatprep.subr.bf16.mxu0 0
  %321 = vmatpush2.bf16.msra.mxu0 0
  %322 = vmatprep.subr.bf16.mxu0 0
  %323 = vmatpush2.bf16.msra.mxu0 0
  %324 = vmatprep.subr.bf16.mxu0 0
  %325 = vmatpush2.bf16.msra.mxu0 0
  %326 = vmatprep.subr.bf16.mxu0 0
  %327 = vmatpush2.bf16.msra.mxu0 0
  %328 = vmatprep.mubr.bf16.mxu0 0
  %329 = vmatmul.mubr.bf16.gmra.mxu0 %v128
  %v330 = vpop.f32.mrf.mxu0
  %v331 = vadd.f32 0.0, %v330
  %v332 = vpop.f32.mrf.mxu0
  %v333 = vadd.f32 0.0, %v332
  %v334 = vpop.f32.mrf.mxu0
  %v335 = vadd.f32 0.0, %v334
  %v336 = vpop.f32.mrf.mxu0
  %v337 = vadd.f32 0.0, %v336
  %338 = vmatprep.mubr.bf16.mxu0 0
  %339 = vmatmul.mubr.bf16.gmra.mxu0 %v129
  %v340 = vpop.f32.mrf.mxu0
  %v341 = vadd.f32 0.0, %v340
  %v342 = vpop.f32.mrf.mxu0
  %v343 = vadd.f32 0.0, %v342
  %v344 = vpop.f32.mrf.mxu0
  %v345 = vadd.f32 0.0, %v344
  %v346 = vpop.f32.mrf.mxu0
  %v347 = vadd.f32 0.0, %v346
  %348 = vmatprep.mubr.bf16.mxu0 0
  %349 = vmatmul.mubr.bf16.gmra.mxu0 %v130
  %v350 = vpop.f32.mrf.mxu0
  %v351 = vadd.f32 0.0, %v350
  %v352 = vpop.f32.mrf.mxu0
  %v353 = vadd.f32 0.0, %v352
  %v354 = vpop.f32.mrf.mxu0
  %v355 = vadd.f32 0.0, %v354
  %v356 = vpop.f32.mrf.mxu0
  %v357 = vadd.f32 0.0, %v356
  %358 = vmatprep.mubr.bf16.mxu0 0
  %359 = vmatmul.mubr.bf16.gmra.mxu0 %v131
  %v360 = vpop.f32.mrf.mxu0
  %v361 = vadd.f32 0.0, %v360
  %v362 = vpop.f32.mrf.mxu0
  %v363 = vadd.f32 0.0, %v362
  %v364 = vpop.f32.mrf.mxu0
  %v365 = vadd.f32 0.0, %v364
  %v366 = vpop.f32.mrf.mxu0
  %v367 = vadd.f32 0.0, %v366
  %368 = vdwg.mxu0
  %369 = vmatprep.subr.bf16.mxu0 %v263
  %370 = vmatpush1.bf16.msra.mxu0 %v262
  %371 = vmatprep.subr.bf16.mxu0 %v259
  %372 = vmatpush1.bf16.msra.mxu0 %v258
  %373 = vmatprep.subr.bf16.mxu0 %v255
  %374 = vmatpush1.bf16.msra.mxu0 %v254
  %375 = vmatprep.subr.bf16.mxu0 %v251
  %376 = vmatpush1.bf16.msra.mxu0 %v250
  %377 = vmatprep.subr.bf16.mxu0 %v247
  %378 = vmatpush1.bf16.msra.mxu0 %v246
  %379 = vmatprep.subr.bf16.mxu0 %v243
  %380 = vmatpush1.bf16.msra.mxu0 %v242
  %381 = vmatprep.subr.bf16.mxu0 %v239
  %382 = vmatpush1.bf16.msra.mxu0 %v238
  %383 = vmatprep.subr.bf16.mxu0 %v235
  %384 = vmatpush1.bf16.msra.mxu0 %v234
  %385 = vmatprep.subr.bf16.mxu0 0
  %386 = vmatpush2.bf16.msra.mxu0 0
  %387 = vmatprep.subr.bf16.mxu0 0
  %388 = vmatpush2.bf16.msra.mxu0 0
  %389 = vmatprep.subr.bf16.mxu0 0
  %390 = vmatpush2.bf16.msra.mxu0 0
  %391 = vmatprep.subr.bf16.mxu0 0
  %392 = vmatpush2.bf16.msra.mxu0 0
  %393 = vmatprep.subr.bf16.mxu0 0
  %394 = vmatpush2.bf16.msra.mxu0 0
  %395 = vmatprep.subr.bf16.mxu0 0
  %396 = vmatpush2.bf16.msra.mxu0 0
  %397 = vmatprep.subr.bf16.mxu0 0
  %398 = vmatpush2.bf16.msra.mxu0 0
  %399 = vmatprep.subr.bf16.mxu0 0
  %400 = vmatpush2.bf16.msra.mxu0 0
  %401 = vmatprep.mubr.bf16.mxu0 0
  %402 = vmatmul.mubr.bf16.gmra.mxu0 %v128
  %v403 = vpop.f32.mrf.mxu0
  %v404 = vadd.f32 0.0, %v403
  %v405 = vpop.f32.mrf.mxu0
  %v406 = vadd.f32 0.0, %v405
  %v407 = vpop.f32.mrf.mxu0
  %v408 = vadd.f32 0.0, %v407
  %v409 = vpop.f32.mrf.mxu0
  %v410 = vadd.f32 0.0, %v409
  %411 = vmatprep.mubr.bf16.mxu0 0
  %412 = vmatmul.mubr.bf16.gmra.mxu0 %v129
  %v413 = vpop.f32.mrf.mxu0
  %v414 = vadd.f32 0.0, %v413
  %v415 = vpop.f32.mrf.mxu0
  %v416 = vadd.f32 0.0, %v415
  %v417 = vpop.f32.mrf.mxu0
  %v418 = vadd.f32 0.0, %v417
  %v419 = vpop.f32.mrf.mxu0
  %v420 = vadd.f32 0.0, %v419
  %421 = vmatprep.mubr.bf16.mxu0 0
  %422 = vmatmul.mubr.bf16.gmra.mxu0 %v130
  %v423 = vpop.f32.mrf.mxu0
  %v424 = vadd.f32 0.0, %v423
  %v425 = vpop.f32.mrf.mxu0
  %v426 = vadd.f32 0.0, %v425
  %v427 = vpop.f32.mrf.mxu0
  %v428 = vadd.f32 0.0, %v427
  %v429 = vpop.f32.mrf.mxu0
  %v430 = vadd.f32 0.0, %v429
  %431 = vmatprep.mubr.bf16.mxu0 0
  %432 = vmatmul.mubr.bf16.gmra.mxu0 %v131
  %v433 = vpop.f32.mrf.mxu0
  %v434 = vadd.f32 0.0, %v433
  %v435 = vpop.f32.mrf.mxu0
  %v436 = vadd.f32 0.0, %v435
  %v437 = vpop.f32.mrf.mxu0
  %v438 = vadd.f32 0.0, %v437
  %v439 = vpop.f32.mrf.mxu0
  %v440 = vadd.f32 0.0, %v439
  %441 = vdwg.mxu0
  %v450 = vunpack.c.l.b16 %v32
  %v451 = vunpack.c.l.b16 %v33
  %v452 = vunpack.c.l.b16 %v34
  %v453 = vunpack.c.l.b16 %v35
  %v454 = vunpack.c.l.b16 %v36
  %v455 = vunpack.c.l.b16 %v37
  %v456 = vunpack.c.l.b16 %v38
  %v457 = vunpack.c.l.b16 %v39
  %v458 = vpack.c.b16 %v451, %v450
  %v459 = vpack.c.b16 %v453, %v452
  %v460 = vpack.c.b16 %v455, %v454
  %v461 = vpack.c.b16 %v457, %v456
  %v498 = vunpack.c.l.b16 %v48
  %v499 = vunpack.c.h.b16 %v48
  %v500 = vunpack.c.l.b16 %v49
  %v501 = vunpack.c.h.b16 %v49
  %v502 = vunpack.c.l.b16 %v50
  %v503 = vunpack.c.h.b16 %v50
  %v504 = vunpack.c.l.b16 %v51
  %v505 = vunpack.c.h.b16 %v51
  %v506 = vunpack.c.l.b16 %v52
  %v507 = vunpack.c.h.b16 %v52
  %v508 = vunpack.c.l.b16 %v53
  %v509 = vunpack.c.h.b16 %v53
  %v510 = vunpack.c.l.b16 %v54
  %v511 = vunpack.c.h.b16 %v54
  %v512 = vunpack.c.l.b16 %v55
  %v513 = vunpack.c.h.b16 %v55
  %v514 = vunpack.c.l.b16 %v56
  %v515 = vunpack.c.h.b16 %v56
  %v516 = vunpack.c.l.b16 %v57
  %v517 = vunpack.c.h.b16 %v57
  %v518 = vunpack.c.l.b16 %v58
  %v519 = vunpack.c.h.b16 %v58
  %v520 = vunpack.c.l.b16 %v59
  %v521 = vunpack.c.h.b16 %v59
  %v522 = vunpack.c.l.b16 %v60
  %v523 = vunpack.c.h.b16 %v60
  %v524 = vunpack.c.l.b16 %v61
  %v525 = vunpack.c.h.b16 %v61
  %v526 = vunpack.c.l.b16 %v62
  %v527 = vunpack.c.h.b16 %v62
  %v528 = vunpack.c.l.b16 %v63
  %v529 = vunpack.c.h.b16 %v63
  %v530 = vunpack.c.l.b16 %v64
  %v531 = vunpack.c.h.b16 %v64
  %v532 = vunpack.c.l.b16 %v65
  %v533 = vunpack.c.h.b16 %v65
  %v534 = vunpack.c.l.b16 %v66
  %v535 = vunpack.c.h.b16 %v66
  %v536 = vunpack.c.l.b16 %v67
  %v537 = vunpack.c.h.b16 %v67
  %v538 = vunpack.c.l.b16 %v68
  %v539 = vunpack.c.h.b16 %v68
  %v540 = vunpack.c.l.b16 %v69
  %v541 = vunpack.c.h.b16 %v69
  %v542 = vunpack.c.l.b16 %v70
  %v543 = vunpack.c.h.b16 %v70
  %v544 = vunpack.c.l.b16 %v71
  %v545 = vunpack.c.h.b16 %v71
  %v546 = vunpack.c.l.b16 %v72
  %v547 = vunpack.c.h.b16 %v72
  %v548 = vunpack.c.l.b16 %v73
  %v549 = vunpack.c.h.b16 %v73
  %v550 = vunpack.c.l.b16 %v74
  %v551 = vunpack.c.h.b16 %v74
  %v552 = vunpack.c.l.b16 %v75
  %v553 = vunpack.c.h.b16 %v75
  %v554 = vunpack.c.l.b16 %v76
  %v555 = vunpack.c.h.b16 %v76
  %v556 = vunpack.c.l.b16 %v77
  %v557 = vunpack.c.h.b16 %v77
  %v558 = vunpack.c.l.b16 %v78
  %v559 = vunpack.c.h.b16 %v78
  %v560 = vunpack.c.l.b16 %v79
  %v561 = vunpack.c.h.b16 %v79
  %v562 = vpack.c.b16 %v502, %v498
  %v563 = vpack.c.b16 %v503, %v499
  %v564 = vpack.c.b16 %v504, %v500
  %v565 = vpack.c.b16 %v505, %v501
  %v566 = vpack.c.b16 %v510, %v506
  %v567 = vpack.c.b16 %v511, %v507
  %v568 = vpack.c.b16 %v512, %v508
  %v569 = vpack.c.b16 %v513, %v509
  %v570 = vpack.c.b16 %v518, %v514
  %v571 = vpack.c.b16 %v519, %v515
  %v572 = vpack.c.b16 %v520, %v516
  %v573 = vpack.c.b16 %v521, %v517
  %v574 = vpack.c.b16 %v526, %v522
  %v575 = vpack.c.b16 %v527, %v523
  %v576 = vpack.c.b16 %v528, %v524
  %v577 = vpack.c.b16 %v529, %v525
  %v578 = vpack.c.b16 %v534, %v530
  %v579 = vpack.c.b16 %v535, %v531
  %v580 = vpack.c.b16 %v536, %v532
  %v581 = vpack.c.b16 %v537, %v533
  %v582 = vpack.c.b16 %v542, %v538
  %v583 = vpack.c.b16 %v543, %v539
  %v584 = vpack.c.b16 %v544, %v540
  %v585 = vpack.c.b16 %v545, %v541
  %v586 = vpack.c.b16 %v550, %v546
  %v587 = vpack.c.b16 %v551, %v547
  %v588 = vpack.c.b16 %v552, %v548
  %v589 = vpack.c.b16 %v553, %v549
  %v590 = vpack.c.b16 %v558, %v554
  %v591 = vpack.c.b16 %v559, %v555
  %v592 = vpack.c.b16 %v560, %v556
  %v593 = vpack.c.b16 %v561, %v557
  %626 = vmatprep.subr.bf16.mxu0 %v591
  %627 = vmatpush1.bf16.msra.mxu0 %v590
  %628 = vmatprep.subr.bf16.mxu0 %v587
  %629 = vmatpush1.bf16.msra.mxu0 %v586
  %630 = vmatprep.subr.bf16.mxu0 %v583
  %631 = vmatpush1.bf16.msra.mxu0 %v582
  %632 = vmatprep.subr.bf16.mxu0 %v579
  %633 = vmatpush1.bf16.msra.mxu0 %v578
  %634 = vmatprep.subr.bf16.mxu0 %v575
  %635 = vmatpush1.bf16.msra.mxu0 %v574
  %636 = vmatprep.subr.bf16.mxu0 %v571
  %637 = vmatpush1.bf16.msra.mxu0 %v570
  %638 = vmatprep.subr.bf16.mxu0 %v567
  %639 = vmatpush1.bf16.msra.mxu0 %v566
  %640 = vmatprep.subr.bf16.mxu0 %v563
  %641 = vmatpush1.bf16.msra.mxu0 %v562
  %642 = vmatprep.subr.bf16.mxu0 0
  %643 = vmatpush2.bf16.msra.mxu0 0
  %644 = vmatprep.subr.bf16.mxu0 0
  %645 = vmatpush2.bf16.msra.mxu0 0
  %646 = vmatprep.subr.bf16.mxu0 0
  %647 = vmatpush2.bf16.msra.mxu0 0
  %648 = vmatprep.subr.bf16.mxu0 0
  %649 = vmatpush2.bf16.msra.mxu0 0
  %650 = vmatprep.subr.bf16.mxu0 0
  %651 = vmatpush2.bf16.msra.mxu0 0
  %652 = vmatprep.subr.bf16.mxu0 0
  %653 = vmatpush2.bf16.msra.mxu0 0
  %654 = vmatprep.subr.bf16.mxu0 0
  %655 = vmatpush2.bf16.msra.mxu0 0
  %656 = vmatprep.subr.bf16.mxu0 0
  %657 = vmatpush2.bf16.msra.mxu0 0
  %658 = vmatprep.mubr.bf16.mxu0 0
  %659 = vmatmul.mubr.bf16.gmra.mxu0 %v458
  %v660 = vpop.f32.mrf.mxu0
  %v661 = vadd.f32 %v331, %v660
  %v662 = vpop.f32.mrf.mxu0
  %v663 = vadd.f32 %v333, %v662
  %v664 = vpop.f32.mrf.mxu0
  %v665 = vadd.f32 %v335, %v664
  %v666 = vpop.f32.mrf.mxu0
  %v667 = vadd.f32 %v337, %v666
  %668 = vmatprep.mubr.bf16.mxu0 0
  %669 = vmatmul.mubr.bf16.gmra.mxu0 %v459
  %v670 = vpop.f32.mrf.mxu0
  %v671 = vadd.f32 %v341, %v670
  %v672 = vpop.f32.mrf.mxu0
  %v673 = vadd.f32 %v343, %v672
  %v674 = vpop.f32.mrf.mxu0
  %v675 = vadd.f32 %v345, %v674
  %v676 = vpop.f32.mrf.mxu0
  %v677 = vadd.f32 %v347, %v676
  %678 = vmatprep.mubr.bf16.mxu0 0
  %679 = vmatmul.mubr.bf16.gmra.mxu0 %v460
  %v680 = vpop.f32.mrf.mxu0
  %v681 = vadd.f32 %v351, %v680
  %v682 = vpop.f32.mrf.mxu0
  %v683 = vadd.f32 %v353, %v682
  %v684 = vpop.f32.mrf.mxu0
  %v685 = vadd.f32 %v355, %v684
  %v686 = vpop.f32.mrf.mxu0
  %v687 = vadd.f32 %v357, %v686
  %688 = vmatprep.mubr.bf16.mxu0 0
  %689 = vmatmul.mubr.bf16.gmra.mxu0 %v461
  %v690 = vpop.f32.mrf.mxu0
  %v691 = vadd.f32 %v361, %v690
  %v692 = vpop.f32.mrf.mxu0
  %v693 = vadd.f32 %v363, %v692
  %v694 = vpop.f32.mrf.mxu0
  %v695 = vadd.f32 %v365, %v694
  %v696 = vpop.f32.mrf.mxu0
  %v697 = vadd.f32 %v367, %v696
  %698 = vdwg.mxu0
  %699 = vmatprep.subr.bf16.mxu0 %v593
  %700 = vmatpush1.bf16.msra.mxu0 %v592
  %701 = vmatprep.subr.bf16.mxu0 %v589
  %702 = vmatpush1.bf16.msra.mxu0 %v588
  %703 = vmatprep.subr.bf16.mxu0 %v585
  %704 = vmatpush1.bf16.msra.mxu0 %v584
  %705 = vmatprep.subr.bf16.mxu0 %v581
  %706 = vmatpush1.bf16.msra.mxu0 %v580
  %707 = vmatprep.subr.bf16.mxu0 %v577
  %708 = vmatpush1.bf16.msra.mxu0 %v576
  %709 = vmatprep.subr.bf16.mxu0 %v573
  %710 = vmatpush1.bf16.msra.mxu0 %v572
  %711 = vmatprep.subr.bf16.mxu0 %v569
  %712 = vmatpush1.bf16.msra.mxu0 %v568
  %713 = vmatprep.subr.bf16.mxu0 %v565
  %714 = vmatpush1.bf16.msra.mxu0 %v564
  %715 = vmatprep.subr.bf16.mxu0 0
  %716 = vmatpush2.bf16.msra.mxu0 0
  %717 = vmatprep.subr.bf16.mxu0 0
  %718 = vmatpush2.bf16.msra.mxu0 0
  %719 = vmatprep.subr.bf16.mxu0 0
  %720 = vmatpush2.bf16.msra.mxu0 0
  %721 = vmatprep.subr.bf16.mxu0 0
  %722 = vmatpush2.bf16.msra.mxu0 0
  %723 = vmatprep.subr.bf16.mxu0 0
  %724 = vmatpush2.bf16.msra.mxu0 0
  %725 = vmatprep.subr.bf16.mxu0 0
  %726 = vmatpush2.bf16.msra.mxu0 0
  %727 = vmatprep.subr.bf16.mxu0 0
  %728 = vmatpush2.bf16.msra.mxu0 0
  %729 = vmatprep.subr.bf16.mxu0 0
  %730 = vmatpush2.bf16.msra.mxu0 0
  %731 = vmatprep.mubr.bf16.mxu0 0
  %732 = vmatmul.mubr.bf16.gmra.mxu0 %v458
  %v733 = vpop.f32.mrf.mxu0
  %v734 = vadd.f32 %v404, %v733
  %v735 = vpop.f32.mrf.mxu0
  %v736 = vadd.f32 %v406, %v735
  %v737 = vpop.f32.mrf.mxu0
  %v738 = vadd.f32 %v408, %v737
  %v739 = vpop.f32.mrf.mxu0
  %v740 = vadd.f32 %v410, %v739
  %741 = vmatprep.mubr.bf16.mxu0 0
  %742 = vmatmul.mubr.bf16.gmra.mxu0 %v459
  %v743 = vpop.f32.mrf.mxu0
  %v744 = vadd.f32 %v414, %v743
  %v745 = vpop.f32.mrf.mxu0
  %v746 = vadd.f32 %v416, %v745
  %v747 = vpop.f32.mrf.mxu0
  %v748 = vadd.f32 %v418, %v747
  %v749 = vpop.f32.mrf.mxu0
  %v750 = vadd.f32 %v420, %v749
  %751 = vmatprep.mubr.bf16.mxu0 0
  %752 = vmatmul.mubr.bf16.gmra.mxu0 %v460
  %v753 = vpop.f32.mrf.mxu0
  %v754 = vadd.f32 %v424, %v753
  %v755 = vpop.f32.mrf.mxu0
  %v756 = vadd.f32 %v426, %v755
  %v757 = vpop.f32.mrf.mxu0
  %v758 = vadd.f32 %v428, %v757
  %v759 = vpop.f32.mrf.mxu0
  %v760 = vadd.f32 %v430, %v759
  %761 = vmatprep.mubr.bf16.mxu0 0
  %762 = vmatmul.mubr.bf16.gmra.mxu0 %v461
  %v763 = vpop.f32.mrf.mxu0
  %v764 = vadd.f32 %v434, %v763
  %v765 = vpop.f32.mrf.mxu0
  %v766 = vadd.f32 %v436, %v765
  %v767 = vpop.f32.mrf.mxu0
  %v768 = vadd.f32 %v438, %v767
  %v769 = vpop.f32.mrf.mxu0
  %v770 = vadd.f32 %v440, %v769
  %771 = vdwg.mxu0
  %v772 = vld [vmem:[%s4] sm:$0xff]
  %v773 = vld [vmem:[%s4 + $0x8] sm:$0xff]
  %v774 = vld [vmem:[%s4 + $0x10] sm:$0xff]
  %v775 = vld [vmem:[%s4 + $0x18] sm:$0xff]
  %v776 = vld [vmem:[%s4 + $0x20] sm:$0xff]
  %v777 = vld [vmem:[%s4 + $0x28] sm:$0xff]
  %v778 = vld [vmem:[%s4 + $0x30] sm:$0xff]
  %v779 = vld [vmem:[%s4 + $0x38] sm:$0xff]
  %v780 = vld [vmem:[%s4 + $0x40] sm:$0xff]
  %v781 = vld [vmem:[%s4 + $0x48] sm:$0xff]
  %v782 = vld [vmem:[%s4 + $0x50] sm:$0xff]
  %v783 = vld [vmem:[%s4 + $0x58] sm:$0xff]
  %v784 = vld [vmem:[%s4 + $0x60] sm:$0xff]
  %v785 = vld [vmem:[%s4 + $0x68] sm:$0xff]
  %v786 = vld [vmem:[%s4 + $0x70] sm:$0xff]
  %v787 = vld [vmem:[%s4 + $0x78] sm:$0xff]
  %v788 = vld [vmem:[%s4 + $0x80] sm:$0xff]
  %v789 = vld [vmem:[%s4 + $0x88] sm:$0xff]
  %v790 = vld [vmem:[%s4 + $0x90] sm:$0xff]
  %v791 = vld [vmem:[%s4 + $0x98] sm:$0xff]
  %v792 = vld [vmem:[%s4 + $0xa0] sm:$0xff]
  %v793 = vld [vmem:[%s4 + $0xa8] sm:$0xff]
  %v794 = vld [vmem:[%s4 + $0xb0] sm:$0xff]
  %v795 = vld [vmem:[%s4 + $0xb8] sm:$0xff]
  %v796 = vld [vmem:[%s4 + $0xc0] sm:$0xff]
  %v797 = vld [vmem:[%s4 + $0xc8] sm:$0xff]
  %v798 = vld [vmem:[%s4 + $0xd0] sm:$0xff]
  %v799 = vld [vmem:[%s4 + $0xd8] sm:$0xff]
  %v800 = vld [vmem:[%s4 + $0xe0] sm:$0xff]
  %v801 = vld [vmem:[%s4 + $0xe8] sm:$0xff]
  %v802 = vld [vmem:[%s4 + $0xf0] sm:$0xff]
  %v803 = vld [vmem:[%s4 + $0xf8] sm:$0xff]
  %v804 = vld [vmem:[%s5] sm:$0xff]
  %v805 = vld [vmem:[%s5 + $0x8] sm:$0xff]
  %v806 = vld [vmem:[%s5 + $0x10] sm:$0xff]
  %v807 = vld [vmem:[%s5 + $0x18] sm:$0xff]
  %v808 = vld [vmem:[%s5 + $0x20] sm:$0xff]
  %v809 = vld [vmem:[%s5 + $0x28] sm:$0xff]
  %v810 = vld [vmem:[%s5 + $0x30] sm:$0xff]
  %v811 = vld [vmem:[%s5 + $0x38] sm:$0xff]
  %v812 = vld [vmem:[%s5 + $0x40] sm:$0xff]
  %v813 = vld [vmem:[%s5 + $0x48] sm:$0xff]
  %v814 = vld [vmem:[%s5 + $0x50] sm:$0xff]
  %v815 = vld [vmem:[%s5 + $0x58] sm:$0xff]
  %v816 = vld [vmem:[%s5 + $0x60] sm:$0xff]
  %v817 = vld [vmem:[%s5 + $0x68] sm:$0xff]
  %v818 = vld [vmem:[%s5 + $0x70] sm:$0xff]
  %v819 = vld [vmem:[%s5 + $0x78] sm:$0xff]
  %v820 = vld [vmem:[%s5 + $0x80] sm:$0xff]
  %v821 = vld [vmem:[%s5 + $0x88] sm:$0xff]
  %v822 = vld [vmem:[%s5 + $0x90] sm:$0xff]
  %v823 = vld [vmem:[%s5 + $0x98] sm:$0xff]
  %v824 = vld [vmem:[%s5 + $0xa0] sm:$0xff]
  %v825 = vld [vmem:[%s5 + $0xa8] sm:$0xff]
  %v826 = vld [vmem:[%s5 + $0xb0] sm:$0xff]
  %v827 = vld [vmem:[%s5 + $0xb8] sm:$0xff]
  %v828 = vld [vmem:[%s5 + $0xc0] sm:$0xff]
  %v829 = vld [vmem:[%s5 + $0xc8] sm:$0xff]
  %v830 = vld [vmem:[%s5 + $0xd0] sm:$0xff]
  %v831 = vld [vmem:[%s5 + $0xd8] sm:$0xff]
  %v832 = vld [vmem:[%s5 + $0xe0] sm:$0xff]
  %v833 = vld [vmem:[%s5 + $0xe8] sm:$0xff]
  %v834 = vld [vmem:[%s5 + $0xf0] sm:$0xff]
  %v835 = vld [vmem:[%s5 + $0xf8] sm:$0xff]
  %v868 = vunpack.c.l.b16 %v804
  %v869 = vunpack.c.h.b16 %v804
  %v870 = vunpack.c.l.b16 %v805
  %v871 = vunpack.c.h.b16 %v805
  %v872 = vunpack.c.l.b16 %v806
  %v873 = vunpack.c.h.b16 %v806
  %v874 = vunpack.c.l.b16 %v807
  %v875 = vunpack.c.h.b16 %v807
  %v876 = vunpack.c.l.b16 %v808
  %v877 = vunpack.c.h.b16 %v808
  %v878 = vunpack.c.l.b16 %v809
  %v879 = vunpack.c.h.b16 %v809
  %v880 = vunpack.c.l.b16 %v810
  %v881 = vunpack.c.h.b16 %v810
  %v882 = vunpack.c.l.b16 %v811
  %v883 = vunpack.c.h.b16 %v811
  %v884 = vunpack.c.l.b16 %v812
  %v885 = vunpack.c.h.b16 %v812
  %v886 = vunpack.c.l.b16 %v813
  %v887 = vunpack.c.h.b16 %v813
  %v888 = vunpack.c.l.b16 %v814
  %v889 = vunpack.c.h.b16 %v814
  %v890 = vunpack.c.l.b16 %v815
  %v891 = vunpack.c.h.b16 %v815
  %v892 = vunpack.c.l.b16 %v816
  %v893 = vunpack.c.h.b16 %v816
  %v894 = vunpack.c.l.b16 %v817
  %v895 = vunpack.c.h.b16 %v817
  %v896 = vunpack.c.l.b16 %v818
  %v897 = vunpack.c.h.b16 %v818
  %v898 = vunpack.c.l.b16 %v819
  %v899 = vunpack.c.h.b16 %v819
  %v900 = vunpack.c.l.b16 %v820
  %v901 = vunpack.c.h.b16 %v820
  %v902 = vunpack.c.l.b16 %v821
  %v903 = vunpack.c.h.b16 %v821
  %v904 = vunpack.c.l.b16 %v822
  %v905 = vunpack.c.h.b16 %v822
  %v906 = vunpack.c.l.b16 %v823
  %v907 = vunpack.c.h.b16 %v823
  %v908 = vunpack.c.l.b16 %v824
  %v909 = vunpack.c.h.b16 %v824
  %v910 = vunpack.c.l.b16 %v825
  %v911 = vunpack.c.h.b16 %v825
  %v912 = vunpack.c.l.b16 %v826
  %v913 = vunpack.c.h.b16 %v826
  %v914 = vunpack.c.l.b16 %v827
  %v915 = vunpack.c.h.b16 %v827
  %v916 = vunpack.c.l.b16 %v828
  %v917 = vunpack.c.h.b16 %v828
  %v918 = vunpack.c.l.b16 %v829
  %v919 = vunpack.c.h.b16 %v829
  %v920 = vunpack.c.l.b16 %v830
  %v921 = vunpack.c.h.b16 %v830
  %v922 = vunpack.c.l.b16 %v831
  %v923 = vunpack.c.h.b16 %v831
  %v924 = vunpack.c.l.b16 %v832
  %v925 = vunpack.c.h.b16 %v832
  %v926 = vunpack.c.l.b16 %v833
  %v927 = vunpack.c.h.b16 %v833
  %v928 = vunpack.c.l.b16 %v834
  %v929 = vunpack.c.h.b16 %v834
  %v930 = vunpack.c.l.b16 %v835
  %v931 = vunpack.c.h.b16 %v835
  %v932 = vpack.c.b16 %v872, %v868
  %v933 = vpack.c.b16 %v873, %v869
  %v934 = vpack.c.b16 %v874, %v870
  %v935 = vpack.c.b16 %v875, %v871
  %v936 = vpack.c.b16 %v880, %v876
  %v937 = vpack.c.b16 %v881, %v877
  %v938 = vpack.c.b16 %v882, %v878
  %v939 = vpack.c.b16 %v883, %v879
  %v940 = vpack.c.b16 %v888, %v884
  %v941 = vpack.c.b16 %v889, %v885
  %v942 = vpack.c.b16 %v890, %v886
  %v943 = vpack.c.b16 %v891, %v887
  %v944 = vpack.c.b16 %v896, %v892
  %v945 = vpack.c.b16 %v897, %v893
  %v946 = vpack.c.b16 %v898, %v894
  %v947 = vpack.c.b16 %v899, %v895
  %v948 = vpack.c.b16 %v904, %v900
  %v949 = vpack.c.b16 %v905, %v901
  %v950 = vpack.c.b16 %v906, %v902
  %v951 = vpack.c.b16 %v907, %v903
  %v952 = vpack.c.b16 %v912, %v908
  %v953 = vpack.c.b16 %v913, %v909
  %v954 = vpack.c.b16 %v914, %v910
  %v955 = vpack.c.b16 %v915, %v911
  %v956 = vpack.c.b16 %v920, %v916
  %v957 = vpack.c.b16 %v921, %v917
  %v958 = vpack.c.b16 %v922, %v918
  %v959 = vpack.c.b16 %v923, %v919
  %v960 = vpack.c.b16 %v928, %v924
  %v961 = vpack.c.b16 %v929, %v925
  %v962 = vpack.c.b16 %v930, %v926
  %v963 = vpack.c.b16 %v931, %v927
  %996 = vmatprep.subr.bf16.mxu0 %v961
  %997 = vmatpush1.bf16.msra.mxu0 %v960
  %998 = vmatprep.subr.bf16.mxu0 %v957
  %999 = vmatpush1.bf16.msra.mxu0 %v956
  %1000 = vmatprep.subr.bf16.mxu0 %v953
  %1001 = vmatpush1.bf16.msra.mxu0 %v952
  %1002 = vmatprep.subr.bf16.mxu0 %v949
  %1003 = vmatpush1.bf16.msra.mxu0 %v948
  %1004 = vmatprep.subr.bf16.mxu0 %v945
  %1005 = vmatpush1.bf16.msra.mxu0 %v944
  %1006 = vmatprep.subr.bf16.mxu0 %v941
  %1007 = vmatpush1.bf16.msra.mxu0 %v940
  %1008 = vmatprep.subr.bf16.mxu0 %v937
  %1009 = vmatpush1.bf16.msra.mxu0 %v936
  %1010 = vmatprep.subr.bf16.mxu0 %v933
  %1011 = vmatpush1.bf16.msra.mxu0 %v932
  %1012 = vmatprep.subr.bf16.mxu0 0
  %1013 = vmatpush2.bf16.msra.mxu0 0
  %1014 = vmatprep.subr.bf16.mxu0 0
  %1015 = vmatpush2.bf16.msra.mxu0 0
  %1016 = vmatprep.subr.bf16.mxu0 0
  %1017 = vmatpush2.bf16.msra.mxu0 0
  %1018 = vmatprep.subr.bf16.mxu0 0
  %1019 = vmatpush2.bf16.msra.mxu0 0
  %1020 = vmatprep.subr.bf16.mxu0 0
  %1021 = vmatpush2.bf16.msra.mxu0 0
  %1022 = vmatprep.subr.bf16.mxu0 0
  %1023 = vmatpush2.bf16.msra.mxu0 0
  %1024 = vmatprep.subr.bf16.mxu0 0
  %1025 = vmatpush2.bf16.msra.mxu0 0
  %1026 = vmatprep.subr.bf16.mxu0 0
  %1027 = vmatpush2.bf16.msra.mxu0 0
  %1028 = vmatprep.mubr.bf16.mxu0 0
  %1029 = vmatmul.mubr.bf16.gmra.mxu0 %v128
  %v1030 = vpop.f32.mrf.mxu0
  %v1031 = vadd.f32 0.0, %v1030
  %v1032 = vpop.f32.mrf.mxu0
  %v1033 = vadd.f32 0.0, %v1032
  %v1034 = vpop.f32.mrf.mxu0
  %v1035 = vadd.f32 0.0, %v1034
  %v1036 = vpop.f32.mrf.mxu0
  %v1037 = vadd.f32 0.0, %v1036
  %1038 = vmatprep.mubr.bf16.mxu0 0
  %1039 = vmatmul.mubr.bf16.gmra.mxu0 %v129
  %v1040 = vpop.f32.mrf.mxu0
  %v1041 = vadd.f32 0.0, %v1040
  %v1042 = vpop.f32.mrf.mxu0
  %v1043 = vadd.f32 0.0, %v1042
  %v1044 = vpop.f32.mrf.mxu0
  %v1045 = vadd.f32 0.0, %v1044
  %v1046 = vpop.f32.mrf.mxu0
  %v1047 = vadd.f32 0.0, %v1046
  %1048 = vmatprep.mubr.bf16.mxu0 0
  %1049 = vmatmul.mubr.bf16.gmra.mxu0 %v130
  %v1050 = vpop.f32.mrf.mxu0
  %v1051 = vadd.f32 0.0, %v1050
  %v1052 = vpop.f32.mrf.mxu0
  %v1053 = vadd.f32 0.0, %v1052
  %v1054 = vpop.f32.mrf.mxu0
  %v1055 = vadd.f32 0.0, %v1054
  %v1056 = vpop.f32.mrf.mxu0
  %v1057 = vadd.f32 0.0, %v1056
  %1058 = vmatprep.mubr.bf16.mxu0 0
  %1059 = vmatmul.mubr.bf16.gmra.mxu0 %v131
  %v1060 = vpop.f32.mrf.mxu0
  %v1061 = vadd.f32 0.0, %v1060
  %v1062 = vpop.f32.mrf.mxu0
  %v1063 = vadd.f32 0.0, %v1062
  %v1064 = vpop.f32.mrf.mxu0
  %v1065 = vadd.f32 0.0, %v1064
  %v1066 = vpop.f32.mrf.mxu0
  %v1067 = vadd.f32 0.0, %v1066
  %1068 = vdwg.mxu0
  %1069 = vmatprep.subr.bf16.mxu0 %v963
  %1070 = vmatpush1.bf16.msra.mxu0 %v962
  %1071 = vmatprep.subr.bf16.mxu0 %v959
  %1072 = vmatpush1.bf16.msra.mxu0 %v958
  %1073 = vmatprep.subr.bf16.mxu0 %v955
  %1074 = vmatpush1.bf16.msra.mxu0 %v954
  %1075 = vmatprep.subr.bf16.mxu0 %v951
  %1076 = vmatpush1.bf16.msra.mxu0 %v950
  %1077 = vmatprep.subr.bf16.mxu0 %v947
  %1078 = vmatpush1.bf16.msra.mxu0 %v946
  %1079 = vmatprep.subr.bf16.mxu0 %v943
  %1080 = vmatpush1.bf16.msra.mxu0 %v942
  %1081 = vmatprep.subr.bf16.mxu0 %v939
  %1082 = vmatpush1.bf16.msra.mxu0 %v938
  %1083 = vmatprep.subr.bf16.mxu0 %v935
  %1084 = vmatpush1.bf16.msra.mxu0 %v934
  %1085 = vmatprep.subr.bf16.mxu0 0
  %1086 = vmatpush2.bf16.msra.mxu0 0
  %1087 = vmatprep.subr.bf16.mxu0 0
  %1088 = vmatpush2.bf16.msra.mxu0 0
  %1089 = vmatprep.subr.bf16.mxu0 0
  %1090 = vmatpush2.bf16.msra.mxu0 0
  %1091 = vmatprep.subr.bf16.mxu0 0
  %1092 = vmatpush2.bf16.msra.mxu0 0
  %1093 = vmatprep.subr.bf16.mxu0 0
  %1094 = vmatpush2.bf16.msra.mxu0 0
  %1095 = vmatprep.subr.bf16.mxu0 0
  %1096 = vmatpush2.bf16.msra.mxu0 0
  %1097 = vmatprep.subr.bf16.mxu0 0
  %1098 = vmatpush2.bf16.msra.mxu0 0
  %1099 = vmatprep.subr.bf16.mxu0 0
  %1100 = vmatpush2.bf16.msra.mxu0 0
  %1101 = vmatprep.mubr.bf16.mxu0 0
  %1102 = vmatmul.mubr.bf16.gmra.mxu0 %v128
  %v1103 = vpop.f32.mrf.mxu0
  %v1104 = vadd.f32 0.0, %v1103
  %v1105 = vpop.f32.mrf.mxu0
  %v1106 = vadd.f32 0.0, %v1105
  %v1107 = vpop.f32.mrf.mxu0
  %v1108 = vadd.f32 0.0, %v1107
  %v1109 = vpop.f32.mrf.mxu0
  %v1110 = vadd.f32 0.0, %v1109
  %1111 = vmatprep.mubr.bf16.mxu0 0
  %1112 = vmatmul.mubr.bf16.gmra.mxu0 %v129
  %v1113 = vpop.f32.mrf.mxu0
  %v1114 = vadd.f32 0.0, %v1113
  %v1115 = vpop.f32.mrf.mxu0
  %v1116 = vadd.f32 0.0, %v1115
  %v1117 = vpop.f32.mrf.mxu0
  %v1118 = vadd.f32 0.0, %v1117
  %v1119 = vpop.f32.mrf.mxu0
  %v1120 = vadd.f32 0.0, %v1119
  %1121 = vmatprep.mubr.bf16.mxu0 0
  %1122 = vmatmul.mubr.bf16.gmra.mxu0 %v130
  %v1123 = vpop.f32.mrf.mxu0
  %v1124 = vadd.f32 0.0, %v1123
  %v1125 = vpop.f32.mrf.mxu0
  %v1126 = vadd.f32 0.0, %v1125
  %v1127 = vpop.f32.mrf.mxu0
  %v1128 = vadd.f32 0.0, %v1127
  %v1129 = vpop.f32.mrf.mxu0
  %v1130 = vadd.f32 0.0, %v1129
  %1131 = vmatprep.mubr.bf16.mxu0 0
  %1132 = vmatmul.mubr.bf16.gmra.mxu0 %v131
  %v1133 = vpop.f32.mrf.mxu0
  %v1134 = vadd.f32 0.0, %v1133
  %v1135 = vpop.f32.mrf.mxu0
  %v1136 = vadd.f32 0.0, %v1135
  %v1137 = vpop.f32.mrf.mxu0
  %v1138 = vadd.f32 0.0, %v1137
  %v1139 = vpop.f32.mrf.mxu0
  %v1140 = vadd.f32 0.0, %v1139
  %1141 = vdwg.mxu0
  %v1174 = vunpack.c.l.b16 %v772
  %v1175 = vunpack.c.h.b16 %v772
  %v1176 = vunpack.c.l.b16 %v773
  %v1177 = vunpack.c.h.b16 %v773
  %v1178 = vunpack.c.l.b16 %v774
  %v1179 = vunpack.c.h.b16 %v774
  %v1180 = vunpack.c.l.b16 %v775
  %v1181 = vunpack.c.h.b16 %v775
  %v1182 = vunpack.c.l.b16 %v776
  %v1183 = vunpack.c.h.b16 %v776
  %v1184 = vunpack.c.l.b16 %v777
  %v1185 = vunpack.c.h.b16 %v777
  %v1186 = vunpack.c.l.b16 %v778
  %v1187 = vunpack.c.h.b16 %v778
  %v1188 = vunpack.c.l.b16 %v779
  %v1189 = vunpack.c.h.b16 %v779
  %v1190 = vunpack.c.l.b16 %v780
  %v1191 = vunpack.c.h.b16 %v780
  %v1192 = vunpack.c.l.b16 %v781
  %v1193 = vunpack.c.h.b16 %v781
  %v1194 = vunpack.c.l.b16 %v782
  %v1195 = vunpack.c.h.b16 %v782
  %v1196 = vunpack.c.l.b16 %v783
  %v1197 = vunpack.c.h.b16 %v783
  %v1198 = vunpack.c.l.b16 %v784
  %v1199 = vunpack.c.h.b16 %v784
  %v1200 = vunpack.c.l.b16 %v785
  %v1201 = vunpack.c.h.b16 %v785
  %v1202 = vunpack.c.l.b16 %v786
  %v1203 = vunpack.c.h.b16 %v786
  %v1204 = vunpack.c.l.b16 %v787
  %v1205 = vunpack.c.h.b16 %v787
  %v1206 = vunpack.c.l.b16 %v788
  %v1207 = vunpack.c.h.b16 %v788
  %v1208 = vunpack.c.l.b16 %v789
  %v1209 = vunpack.c.h.b16 %v789
  %v1210 = vunpack.c.l.b16 %v790
  %v1211 = vunpack.c.h.b16 %v790
  %v1212 = vunpack.c.l.b16 %v791
  %v1213 = vunpack.c.h.b16 %v791
  %v1214 = vunpack.c.l.b16 %v792
  %v1215 = vunpack.c.h.b16 %v792
  %v1216 = vunpack.c.l.b16 %v793
  %v1217 = vunpack.c.h.b16 %v793
  %v1218 = vunpack.c.l.b16 %v794
  %v1219 = vunpack.c.h.b16 %v794
  %v1220 = vunpack.c.l.b16 %v795
  %v1221 = vunpack.c.h.b16 %v795
  %v1222 = vunpack.c.l.b16 %v796
  %v1223 = vunpack.c.h.b16 %v796
  %v1224 = vunpack.c.l.b16 %v797
  %v1225 = vunpack.c.h.b16 %v797
  %v1226 = vunpack.c.l.b16 %v798
  %v1227 = vunpack.c.h.b16 %v798
  %v1228 = vunpack.c.l.b16 %v799
  %v1229 = vunpack.c.h.b16 %v799
  %v1230 = vunpack.c.l.b16 %v800
  %v1231 = vunpack.c.h.b16 %v800
  %v1232 = vunpack.c.l.b16 %v801
  %v1233 = vunpack.c.h.b16 %v801
  %v1234 = vunpack.c.l.b16 %v802
  %v1235 = vunpack.c.h.b16 %v802
  %v1236 = vunpack.c.l.b16 %v803
  %v1237 = vunpack.c.h.b16 %v803
  %v1238 = vpack.c.b16 %v1178, %v1174
  %v1239 = vpack.c.b16 %v1179, %v1175
  %v1240 = vpack.c.b16 %v1180, %v1176
  %v1241 = vpack.c.b16 %v1181, %v1177
  %v1242 = vpack.c.b16 %v1186, %v1182
  %v1243 = vpack.c.b16 %v1187, %v1183
  %v1244 = vpack.c.b16 %v1188, %v1184
  %v1245 = vpack.c.b16 %v1189, %v1185
  %v1246 = vpack.c.b16 %v1194, %v1190
  %v1247 = vpack.c.b16 %v1195, %v1191
  %v1248 = vpack.c.b16 %v1196, %v1192
  %v1249 = vpack.c.b16 %v1197, %v1193
  %v1250 = vpack.c.b16 %v1202, %v1198
  %v1251 = vpack.c.b16 %v1203, %v1199
  %v1252 = vpack.c.b16 %v1204, %v1200
  %v1253 = vpack.c.b16 %v1205, %v1201
  %v1254 = vpack.c.b16 %v1210, %v1206
  %v1255 = vpack.c.b16 %v1211, %v1207
  %v1256 = vpack.c.b16 %v1212, %v1208
  %v1257 = vpack.c.b16 %v1213, %v1209
  %v1258 = vpack.c.b16 %v1218, %v1214
  %v1259 = vpack.c.b16 %v1219, %v1215
  %v1260 = vpack.c.b16 %v1220, %v1216
  %v1261 = vpack.c.b16 %v1221, %v1217
  %v1262 = vpack.c.b16 %v1226, %v1222
  %v1263 = vpack.c.b16 %v1227, %v1223
  %v1264 = vpack.c.b16 %v1228, %v1224
  %v1265 = vpack.c.b16 %v1229, %v1225
  %v1266 = vpack.c.b16 %v1234, %v1230
  %v1267 = vpack.c.b16 %v1235, %v1231
  %v1268 = vpack.c.b16 %v1236, %v1232
  %v1269 = vpack.c.b16 %v1237, %v1233
  %1302 = vmatprep.subr.bf16.mxu0 %v1267
  %1303 = vmatpush1.bf16.msra.mxu0 %v1266
  %1304 = vmatprep.subr.bf16.mxu0 %v1263
  %1305 = vmatpush1.bf16.msra.mxu0 %v1262
  %1306 = vmatprep.subr.bf16.mxu0 %v1259
  %1307 = vmatpush1.bf16.msra.mxu0 %v1258
  %1308 = vmatprep.subr.bf16.mxu0 %v1255
  %1309 = vmatpush1.bf16.msra.mxu0 %v1254
  %1310 = vmatprep.subr.bf16.mxu0 %v1251
  %1311 = vmatpush1.bf16.msra.mxu0 %v1250
  %1312 = vmatprep.subr.bf16.mxu0 %v1247
  %1313 = vmatpush1.bf16.msra.mxu0 %v1246
  %1314 = vmatprep.subr.bf16.mxu0 %v1243
  %1315 = vmatpush1.bf16.msra.mxu0 %v1242
  %1316 = vmatprep.subr.bf16.mxu0 %v1239
  %1317 = vmatpush1.bf16.msra.mxu0 %v1238
  %1318 = vmatprep.subr.bf16.mxu0 0
  %1319 = vmatpush2.bf16.msra.mxu0 0
  %1320 = vmatprep.subr.bf16.mxu0 0
  %1321 = vmatpush2.bf16.msra.mxu0 0
  %1322 = vmatprep.subr.bf16.mxu0 0
  %1323 = vmatpush2.bf16.msra.mxu0 0
  %1324 = vmatprep.subr.bf16.mxu0 0
  %1325 = vmatpush2.bf16.msra.mxu0 0
  %1326 = vmatprep.subr.bf16.mxu0 0
  %1327 = vmatpush2.bf16.msra.mxu0 0
  %1328 = vmatprep.subr.bf16.mxu0 0
  %1329 = vmatpush2.bf16.msra.mxu0 0
  %1330 = vmatprep.subr.bf16.mxu0 0
  %1331 = vmatpush2.bf16.msra.mxu0 0
  %1332 = vmatprep.subr.bf16.mxu0 0
  %1333 = vmatpush2.bf16.msra.mxu0 0
  %1334 = vmatprep.mubr.bf16.mxu0 0
  %1335 = vmatmul.mubr.bf16.gmra.mxu0 %v458
  %v1336 = vpop.f32.mrf.mxu0
  %v1337 = vadd.f32 %v1031, %v1336
  %v1338 = vpop.f32.mrf.mxu0
  %v1339 = vadd.f32 %v1033, %v1338
  %v1340 = vpop.f32.mrf.mxu0
  %v1341 = vadd.f32 %v1035, %v1340
  %v1342 = vpop.f32.mrf.mxu0
  %v1343 = vadd.f32 %v1037, %v1342
  %1344 = vmatprep.mubr.bf16.mxu0 0
  %1345 = vmatmul.mubr.bf16.gmra.mxu0 %v459
  %v1346 = vpop.f32.mrf.mxu0
  %v1347 = vadd.f32 %v1041, %v1346
  %v1348 = vpop.f32.mrf.mxu0
  %v1349 = vadd.f32 %v1043, %v1348
  %v1350 = vpop.f32.mrf.mxu0
  %v1351 = vadd.f32 %v1045, %v1350
  %v1352 = vpop.f32.mrf.mxu0
  %v1353 = vadd.f32 %v1047, %v1352
  %1354 = vmatprep.mubr.bf16.mxu0 0
  %1355 = vmatmul.mubr.bf16.gmra.mxu0 %v460
  %v1356 = vpop.f32.mrf.mxu0
  %v1357 = vadd.f32 %v1051, %v1356
  %v1358 = vpop.f32.mrf.mxu0
  %v1359 = vadd.f32 %v1053, %v1358
  %v1360 = vpop.f32.mrf.mxu0
  %v1361 = vadd.f32 %v1055, %v1360
  %v1362 = vpop.f32.mrf.mxu0
  %v1363 = vadd.f32 %v1057, %v1362
  %1364 = vmatprep.mubr.bf16.mxu0 0
  %1365 = vmatmul.mubr.bf16.gmra.mxu0 %v461
  %v1366 = vpop.f32.mrf.mxu0
  %v1367 = vadd.f32 %v1061, %v1366
  %v1368 = vpop.f32.mrf.mxu0
  %v1369 = vadd.f32 %v1063, %v1368
  %v1370 = vpop.f32.mrf.mxu0
  %v1371 = vadd.f32 %v1065, %v1370
  %v1372 = vpop.f32.mrf.mxu0
  %v1373 = vadd.f32 %v1067, %v1372
  %1374 = vdwg.mxu0
  %1375 = vmatprep.subr.bf16.mxu0 %v1269
  %1376 = vmatpush1.bf16.msra.mxu0 %v1268
  %1377 = vmatprep.subr.bf16.mxu0 %v1265
  %1378 = vmatpush1.bf16.msra.mxu0 %v1264
  %1379 = vmatprep.subr.bf16.mxu0 %v1261
  %1380 = vmatpush1.bf16.msra.mxu0 %v1260
  %1381 = vmatprep.subr.bf16.mxu0 %v1257
  %1382 = vmatpush1.bf16.msra.mxu0 %v1256
  %1383 = vmatprep.subr.bf16.mxu0 %v1253
  %1384 = vmatpush1.bf16.msra.mxu0 %v1252
  %1385 = vmatprep.subr.bf16.mxu0 %v1249
  %1386 = vmatpush1.bf16.msra.mxu0 %v1248
  %1387 = vmatprep.subr.bf16.mxu0 %v1245
  %1388 = vmatpush1.bf16.msra.mxu0 %v1244
  %1389 = vmatprep.subr.bf16.mxu0 %v1241
  %1390 = vmatpush1.bf16.msra.mxu0 %v1240
  %1391 = vmatprep.subr.bf16.mxu0 0
  %1392 = vmatpush2.bf16.msra.mxu0 0
  %1393 = vmatprep.subr.bf16.mxu0 0
  %1394 = vmatpush2.bf16.msra.mxu0 0
  %1395 = vmatprep.subr.bf16.mxu0 0
  %1396 = vmatpush2.bf16.msra.mxu0 0
  %1397 = vmatprep.subr.bf16.mxu0 0
  %1398 = vmatpush2.bf16.msra.mxu0 0
  %1399 = vmatprep.subr.bf16.mxu0 0
  %1400 = vmatpush2.bf16.msra.mxu0 0
  %1401 = vmatprep.subr.bf16.mxu0 0
  %1402 = vmatpush2.bf16.msra.mxu0 0
  %1403 = vmatprep.subr.bf16.mxu0 0
  %1404 = vmatpush2.bf16.msra.mxu0 0
  %1405 = vmatprep.subr.bf16.mxu0 0
  %1406 = vmatpush2.bf16.msra.mxu0 0
  %1407 = vmatprep.mubr.bf16.mxu0 0
  %1408 = vmatmul.mubr.bf16.gmra.mxu0 %v458
  %v1409 = vpop.f32.mrf.mxu0
  %v1410 = vadd.f32 %v1104, %v1409
  %v1411 = vpop.f32.mrf.mxu0
  %v1412 = vadd.f32 %v1106, %v1411
  %v1413 = vpop.f32.mrf.mxu0
  %v1414 = vadd.f32 %v1108, %v1413
  %v1415 = vpop.f32.mrf.mxu0
  %v1416 = vadd.f32 %v1110, %v1415
  %1417 = vmatprep.mubr.bf16.mxu0 0
  %1418 = vmatmul.mubr.bf16.gmra.mxu0 %v459
  %v1419 = vpop.f32.mrf.mxu0
  %v1420 = vadd.f32 %v1114, %v1419
  %v1421 = vpop.f32.mrf.mxu0
  %v1422 = vadd.f32 %v1116, %v1421
  %v1423 = vpop.f32.mrf.mxu0
  %v1424 = vadd.f32 %v1118, %v1423
  %v1425 = vpop.f32.mrf.mxu0
  %v1426 = vadd.f32 %v1120, %v1425
  %1427 = vmatprep.mubr.bf16.mxu0 0
  %1428 = vmatmul.mubr.bf16.gmra.mxu0 %v460
  %v1429 = vpop.f32.mrf.mxu0
  %v1430 = vadd.f32 %v1124, %v1429
  %v1431 = vpop.f32.mrf.mxu0
  %v1432 = vadd.f32 %v1126, %v1431
  %v1433 = vpop.f32.mrf.mxu0
  %v1434 = vadd.f32 %v1128, %v1433
  %v1435 = vpop.f32.mrf.mxu0
  %v1436 = vadd.f32 %v1130, %v1435
  %1437 = vmatprep.mubr.bf16.mxu0 0
  %1438 = vmatmul.mubr.bf16.gmra.mxu0 %v461
  %v1439 = vpop.f32.mrf.mxu0
  %v1440 = vadd.f32 %v1134, %v1439
  %v1441 = vpop.f32.mrf.mxu0
  %v1442 = vadd.f32 %v1136, %v1441
  %v1443 = vpop.f32.mrf.mxu0
  %v1444 = vadd.f32 %v1138, %v1443
  %v1445 = vpop.f32.mrf.mxu0
  %v1446 = vadd.f32 %v1140, %v1445
  %1447 = vdwg.mxu0
  %v1448 = vld [vmem:[%s6] sm:$0xff]
  %v1449 = vld [vmem:[%s6 + $0x8] sm:$0xff]
  %v1450 = vld [vmem:[%s6 + $0x10] sm:$0xff]
  %v1451 = vld [vmem:[%s6 + $0x18] sm:$0xff]
  %v1452 = vld [vmem:[%s6 + $0x20] sm:$0xff]
  %v1453 = vld [vmem:[%s6 + $0x28] sm:$0xff]
  %v1454 = vld [vmem:[%s6 + $0x30] sm:$0xff]
  %v1455 = vld [vmem:[%s6 + $0x38] sm:$0xff]
  %v1456 = vld [vmem:[%s6 + $0x40] sm:$0xff]
  %v1457 = vld [vmem:[%s6 + $0x48] sm:$0xff]
  %v1458 = vld [vmem:[%s6 + $0x50] sm:$0xff]
  %v1459 = vld [vmem:[%s6 + $0x58] sm:$0xff]
  %v1460 = vld [vmem:[%s6 + $0x60] sm:$0xff]
  %v1461 = vld [vmem:[%s6 + $0x68] sm:$0xff]
  %v1462 = vld [vmem:[%s6 + $0x70] sm:$0xff]
  %v1463 = vld [vmem:[%s6 + $0x78] sm:$0xff]
  %v1464 = vunpack.c.l.bf16 %v1448
  %v1465 = vunpack.c.h.bf16 %v1448
  %v1466 = vunpack.c.l.bf16 %v1449
  %v1467 = vunpack.c.h.bf16 %v1449
  %v1468 = vunpack.c.l.bf16 %v1450
  %v1469 = vunpack.c.h.bf16 %v1450
  %v1470 = vunpack.c.l.bf16 %v1451
  %v1471 = vunpack.c.h.bf16 %v1451
  %v1472 = vunpack.c.l.bf16 %v1452
  %v1473 = vunpack.c.h.bf16 %v1452
  %v1474 = vunpack.c.l.bf16 %v1453
  %v1475 = vunpack.c.h.bf16 %v1453
  %v1476 = vunpack.c.l.bf16 %v1454
  %v1477 = vunpack.c.h.bf16 %v1454
  %v1478 = vunpack.c.l.bf16 %v1455
  %v1479 = vunpack.c.h.bf16 %v1455
  %v1480 = vunpack.c.l.bf16 %v1456
  %v1481 = vunpack.c.h.bf16 %v1456
  %v1482 = vunpack.c.l.bf16 %v1457
  %v1483 = vunpack.c.h.bf16 %v1457
  %v1484 = vunpack.c.l.bf16 %v1458
  %v1485 = vunpack.c.h.bf16 %v1458
  %v1486 = vunpack.c.l.bf16 %v1459
  %v1487 = vunpack.c.h.bf16 %v1459
  %v1488 = vunpack.c.l.bf16 %v1460
  %v1489 = vunpack.c.h.bf16 %v1460
  %v1490 = vunpack.c.l.bf16 %v1461
  %v1491 = vunpack.c.h.bf16 %v1461
  %v1492 = vunpack.c.l.bf16 %v1462
  %v1493 = vunpack.c.h.bf16 %v1462
  %v1494 = vunpack.c.l.bf16 %v1463
  %v1495 = vunpack.c.h.bf16 %v1463
  %v1496 = vadd.f32 %v661, %v1464
  %v1497 = vadd.f32 %v663, %v1465
  %v1498 = vadd.f32 %v734, %v1466
  %v1499 = vadd.f32 %v736, %v1467
  %v1500 = vadd.f32 %v665, %v1468
  %v1501 = vadd.f32 %v667, %v1469
  %v1502 = vadd.f32 %v738, %v1470
  %v1503 = vadd.f32 %v740, %v1471
  %v1504 = vadd.f32 %v671, %v1472
  %v1505 = vadd.f32 %v673, %v1473
  %v1506 = vadd.f32 %v744, %v1474
  %v1507 = vadd.f32 %v746, %v1475
  %v1508 = vadd.f32 %v675, %v1476
  %v1509 = vadd.f32 %v677, %v1477
  %v1510 = vadd.f32 %v748, %v1478
  %v1511 = vadd.f32 %v750, %v1479
  %v1512 = vadd.f32 %v681, %v1480
  %v1513 = vadd.f32 %v683, %v1481
  %v1514 = vadd.f32 %v754, %v1482
  %v1515 = vadd.f32 %v756, %v1483
  %v1516 = vadd.f32 %v685, %v1484
  %v1517 = vadd.f32 %v687, %v1485
  %v1518 = vadd.f32 %v758, %v1486
  %v1519 = vadd.f32 %v760, %v1487
  %v1520 = vadd.f32 %v691, %v1488
  %v1521 = vadd.f32 %v693, %v1489
  %v1522 = vadd.f32 %v764, %v1490
  %v1523 = vadd.f32 %v766, %v1491
  %v1524 = vadd.f32 %v695, %v1492
  %v1525 = vadd.f32 %v697, %v1493
  %v1526 = vadd.f32 %v768, %v1494
  %v1527 = vadd.f32 %v770, %v1495
  %v1528 = vpack.c.bf16 %v1500, %v1496
  %v1529 = vpack.c.bf16 %v1501, %v1497
  %v1530 = vpack.c.bf16 %v1502, %v1498
  %v1531 = vpack.c.bf16 %v1503, %v1499
  %v1532 = vpack.c.bf16 %v1508, %v1504
  %v1533 = vpack.c.bf16 %v1509, %v1505
  %v1534 = vpack.c.bf16 %v1510, %v1506
  %v1535 = vpack.c.bf16 %v1511, %v1507
  %v1536 = vpack.c.bf16 %v1516, %v1512
  %v1537 = vpack.c.bf16 %v1517, %v1513
  %v1538 = vpack.c.bf16 %v1518, %v1514
  %v1539 = vpack.c.bf16 %v1519, %v1515
  %v1540 = vpack.c.bf16 %v1524, %v1520
  %v1541 = vpack.c.bf16 %v1525, %v1521
  %v1542 = vpack.c.bf16 %v1526, %v1522
  %v1543 = vpack.c.bf16 %v1527, %v1523
  %v1560 = vunpack.c.l.b16 %v1528
  %v1561 = vunpack.c.l.b16 %v1529
  %v1562 = vunpack.c.l.b16 %v1530
  %v1563 = vunpack.c.l.b16 %v1531
  %v1564 = vunpack.c.h.b16 %v1528
  %v1565 = vunpack.c.h.b16 %v1529
  %v1566 = vunpack.c.h.b16 %v1530
  %v1567 = vunpack.c.h.b16 %v1531
  %v1568 = vunpack.c.l.b16 %v1532
  %v1569 = vunpack.c.l.b16 %v1533
  %v1570 = vunpack.c.l.b16 %v1534
  %v1571 = vunpack.c.l.b16 %v1535
  %v1572 = vunpack.c.h.b16 %v1532
  %v1573 = vunpack.c.h.b16 %v1533
  %v1574 = vunpack.c.h.b16 %v1534
  %v1575 = vunpack.c.h.b16 %v1535
  %v1576 = vunpack.c.l.b16 %v1536
  %v1577 = vunpack.c.l.b16 %v1537
  %v1578 = vunpack.c.l.b16 %v1538
  %v1579 = vunpack.c.l.b16 %v1539
  %v1580 = vunpack.c.h.b16 %v1536
  %v1581 = vunpack.c.h.b16 %v1537
  %v1582 = vunpack.c.h.b16 %v1538
  %v1583 = vunpack.c.h.b16 %v1539
  %v1584 = vunpack.c.l.b16 %v1540
  %v1585 = vunpack.c.l.b16 %v1541
  %v1586 = vunpack.c.l.b16 %v1542
  %v1587 = vunpack.c.l.b16 %v1543
  %v1588 = vunpack.c.h.b16 %v1540
  %v1589 = vunpack.c.h.b16 %v1541
  %v1590 = vunpack.c.h.b16 %v1542
  %v1591 = vunpack.c.h.b16 %v1543
  %v1592 = vpack.c.b16 %v1561, %v1560
  %v1593 = vpack.c.b16 %v1563, %v1562
  %v1594 = vpack.c.b16 %v1565, %v1564
  %v1595 = vpack.c.b16 %v1567, %v1566
  %v1596 = vpack.c.b16 %v1569, %v1568
  %v1597 = vpack.c.b16 %v1571, %v1570
  %v1598 = vpack.c.b16 %v1573, %v1572
  %v1599 = vpack.c.b16 %v1575, %v1574
  %v1600 = vpack.c.b16 %v1577, %v1576
  %v1601 = vpack.c.b16 %v1579, %v1578
  %v1602 = vpack.c.b16 %v1581, %v1580
  %v1603 = vpack.c.b16 %v1583, %v1582
  %v1604 = vpack.c.b16 %v1585, %v1584
  %v1605 = vpack.c.b16 %v1587, %v1586
  %v1606 = vpack.c.b16 %v1589, %v1588
  %v1607 = vpack.c.b16 %v1591, %v1590
  %1624 = vst [vmem:[%s8] sm:$0xff] %v1592
  %1625 = vst [vmem:[%s8 + $0x8] sm:$0xff] %v1593
  %1626 = vst [vmem:[%s8 + $0x10] sm:$0xff] %v1594
  %1627 = vst [vmem:[%s8 + $0x18] sm:$0xff] %v1595
  %1628 = vst [vmem:[%s8 + $0x20] sm:$0xff] %v1596
  %1629 = vst [vmem:[%s8 + $0x28] sm:$0xff] %v1597
  %1630 = vst [vmem:[%s8 + $0x30] sm:$0xff] %v1598
  %1631 = vst [vmem:[%s8 + $0x38] sm:$0xff] %v1599
  %1632 = vst [vmem:[%s8 + $0x40] sm:$0xff] %v1600
  %1633 = vst [vmem:[%s8 + $0x48] sm:$0xff] %v1601
  %1634 = vst [vmem:[%s8 + $0x50] sm:$0xff] %v1602
  %1635 = vst [vmem:[%s8 + $0x58] sm:$0xff] %v1603
  %1636 = vst [vmem:[%s8 + $0x60] sm:$0xff] %v1604
  %1637 = vst [vmem:[%s8 + $0x68] sm:$0xff] %v1605
  %1638 = vst [vmem:[%s8 + $0x70] sm:$0xff] %v1606
  %1639 = vst [vmem:[%s8 + $0x78] sm:$0xff] %v1607
  %v1640 = vld [vmem:[%s7] sm:$0xff]
  %v1641 = vld [vmem:[%s7 + $0x8] sm:$0xff]
  %v1642 = vld [vmem:[%s7 + $0x10] sm:$0xff]
  %v1643 = vld [vmem:[%s7 + $0x18] sm:$0xff]
  %v1644 = vld [vmem:[%s7 + $0x20] sm:$0xff]
  %v1645 = vld [vmem:[%s7 + $0x28] sm:$0xff]
  %v1646 = vld [vmem:[%s7 + $0x30] sm:$0xff]
  %v1647 = vld [vmem:[%s7 + $0x38] sm:$0xff]
  %v1648 = vld [vmem:[%s7 + $0x40] sm:$0xff]
  %v1649 = vld [vmem:[%s7 + $0x48] sm:$0xff]
  %v1650 = vld [vmem:[%s7 + $0x50] sm:$0xff]
  %v1651 = vld [vmem:[%s7 + $0x58] sm:$0xff]
  %v1652 = vld [vmem:[%s7 + $0x60] sm:$0xff]
  %v1653 = vld [vmem:[%s7 + $0x68] sm:$0xff]
  %v1654 = vld [vmem:[%s7 + $0x70] sm:$0xff]
  %v1655 = vld [vmem:[%s7 + $0x78] sm:$0xff]
  %v1656 = vunpack.c.l.bf16 %v1640
  %v1657 = vunpack.c.h.bf16 %v1640
  %v1658 = vunpack.c.l.bf16 %v1641
  %v1659 = vunpack.c.h.bf16 %v1641
  %v1660 = vunpack.c.l.bf16 %v1642
  %v1661 = vunpack.c.h.bf16 %v1642
  %v1662 = vunpack.c.l.bf16 %v1643
  %v1663 = vunpack.c.h.bf16 %v1643
  %v1664 = vunpack.c.l.bf16 %v1644
  %v1665 = vunpack.c.h.bf16 %v1644
  %v1666 = vunpack.c.l.bf16 %v1645
  %v1667 = vunpack.c.h.bf16 %v1645
  %v1668 = vunpack.c.l.bf16 %v1646
  %v1669 = vunpack.c.h.bf16 %v1646
  %v1670 = vunpack.c.l.bf16 %v1647
  %v1671 = vunpack.c.h.bf16 %v1647
  %v1672 = vunpack.c.l.bf16 %v1648
  %v1673 = vunpack.c.h.bf16 %v1648
  %v1674 = vunpack.c.l.bf16 %v1649
  %v1675 = vunpack.c.h.bf16 %v1649
  %v1676 = vunpack.c.l.bf16 %v1650
  %v1677 = vunpack.c.h.bf16 %v1650
  %v1678 = vunpack.c.l.bf16 %v1651
  %v1679 = vunpack.c.h.bf16 %v1651
  %v1680 = vunpack.c.l.bf16 %v1652
  %v1681 = vunpack.c.h.bf16 %v1652
  %v1682 = vunpack.c.l.bf16 %v1653
  %v1683 = vunpack.c.h.bf16 %v1653
  %v1684 = vunpack.c.l.bf16 %v1654
  %v1685 = vunpack.c.h.bf16 %v1654
  %v1686 = vunpack.c.l.bf16 %v1655
  %v1687 = vunpack.c.h.bf16 %v1655
  %v1688 = vadd.f32 %v1337, %v1656
  %v1689 = vadd.f32 %v1339, %v1657
  %v1690 = vadd.f32 %v1410, %v1658
  %v1691 = vadd.f32 %v1412, %v1659
  %v1692 = vadd.f32 %v1341, %v1660
  %v1693 = vadd.f32 %v1343, %v1661
  %v1694 = vadd.f32 %v1414, %v1662
  %v1695 = vadd.f32 %v1416, %v1663
  %v1696 = vadd.f32 %v1347, %v1664
  %v1697 = vadd.f32 %v1349, %v1665
  %v1698 = vadd.f32 %v1420, %v1666
  %v1699 = vadd.f32 %v1422, %v1667
  %v1700 = vadd.f32 %v1351, %v1668
  %v1701 = vadd.f32 %v1353, %v1669
  %v1702 = vadd.f32 %v1424, %v1670
  %v1703 = vadd.f32 %v1426, %v1671
  %v1704 = vadd.f32 %v1357, %v1672
  %v1705 = vadd.f32 %v1359, %v1673
  %v1706 = vadd.f32 %v1430, %v1674
  %v1707 = vadd.f32 %v1432, %v1675
  %v1708 = vadd.f32 %v1361, %v1676
  %v1709 = vadd.f32 %v1363, %v1677
  %v1710 = vadd.f32 %v1434, %v1678
  %v1711 = vadd.f32 %v1436, %v1679
  %v1712 = vadd.f32 %v1367, %v1680
  %v1713 = vadd.f32 %v1369, %v1681
  %v1714 = vadd.f32 %v1440, %v1682
  %v1715 = vadd.f32 %v1442, %v1683
  %v1716 = vadd.f32 %v1371, %v1684
  %v1717 = vadd.f32 %v1373, %v1685
  %v1718 = vadd.f32 %v1444, %v1686
  %v1719 = vadd.f32 %v1446, %v1687
  %v1720 = vpack.c.bf16 %v1692, %v1688
  %v1721 = vpack.c.bf16 %v1693, %v1689
  %v1722 = vpack.c.bf16 %v1694, %v1690
  %v1723 = vpack.c.bf16 %v1695, %v1691
  %v1724 = vpack.c.bf16 %v1700, %v1696
  %v1725 = vpack.c.bf16 %v1701, %v1697
  %v1726 = vpack.c.bf16 %v1702, %v1698
  %v1727 = vpack.c.bf16 %v1703, %v1699
  %v1728 = vpack.c.bf16 %v1708, %v1704
  %v1729 = vpack.c.bf16 %v1709, %v1705
  %v1730 = vpack.c.bf16 %v1710, %v1706
  %v1731 = vpack.c.bf16 %v1711, %v1707
  %v1732 = vpack.c.bf16 %v1716, %v1712
  %v1733 = vpack.c.bf16 %v1717, %v1713
  %v1734 = vpack.c.bf16 %v1718, %v1714
  %v1735 = vpack.c.bf16 %v1719, %v1715
  %v1752 = vunpack.c.l.b16 %v1720
  %v1753 = vunpack.c.l.b16 %v1721
  %v1754 = vunpack.c.l.b16 %v1722
  %v1755 = vunpack.c.l.b16 %v1723
  %v1756 = vunpack.c.h.b16 %v1720
  %v1757 = vunpack.c.h.b16 %v1721
  %v1758 = vunpack.c.h.b16 %v1722
  %v1759 = vunpack.c.h.b16 %v1723
  %v1760 = vunpack.c.l.b16 %v1724
  %v1761 = vunpack.c.l.b16 %v1725
  %v1762 = vunpack.c.l.b16 %v1726
  %v1763 = vunpack.c.l.b16 %v1727
  %v1764 = vunpack.c.h.b16 %v1724
  %v1765 = vunpack.c.h.b16 %v1725
  %v1766 = vunpack.c.h.b16 %v1726
  %v1767 = vunpack.c.h.b16 %v1727
  %v1768 = vunpack.c.l.b16 %v1728
  %v1769 = vunpack.c.l.b16 %v1729
  %v1770 = vunpack.c.l.b16 %v1730
  %v1771 = vunpack.c.l.b16 %v1731
  %v1772 = vunpack.c.h.b16 %v1728
  %v1773 = vunpack.c.h.b16 %v1729
  %v1774 = vunpack.c.h.b16 %v1730
  %v1775 = vunpack.c.h.b16 %v1731
  %v1776 = vunpack.c.l.b16 %v1732
  %v1777 = vunpack.c.l.b16 %v1733
  %v1778 = vunpack.c.l.b16 %v1734
  %v1779 = vunpack.c.l.b16 %v1735
  %v1780 = vunpack.c.h.b16 %v1732
  %v1781 = vunpack.c.h.b16 %v1733
  %v1782 = vunpack.c.h.b16 %v1734
  %v1783 = vunpack.c.h.b16 %v1735
  %v1784 = vpack.c.b16 %v1753, %v1752
  %v1785 = vpack.c.b16 %v1755, %v1754
  %v1786 = vpack.c.b16 %v1757, %v1756
  %v1787 = vpack.c.b16 %v1759, %v1758
  %v1788 = vpack.c.b16 %v1761, %v1760
  %v1789 = vpack.c.b16 %v1763, %v1762
  %v1790 = vpack.c.b16 %v1765, %v1764
  %v1791 = vpack.c.b16 %v1767, %v1766
  %v1792 = vpack.c.b16 %v1769, %v1768
  %v1793 = vpack.c.b16 %v1771, %v1770
  %v1794 = vpack.c.b16 %v1773, %v1772
  %v1795 = vpack.c.b16 %v1775, %v1774
  %v1796 = vpack.c.b16 %v1777, %v1776
  %v1797 = vpack.c.b16 %v1779, %v1778
  %v1798 = vpack.c.b16 %v1781, %v1780
  %v1799 = vpack.c.b16 %v1783, %v1782
  %1816 = vst [vmem:[%s9] sm:$0xff] %v1784
  %1817 = vst [vmem:[%s9 + $0x8] sm:$0xff] %v1785
  %1818 = vst [vmem:[%s9 + $0x10] sm:$0xff] %v1786
  %1819 = vst [vmem:[%s9 + $0x18] sm:$0xff] %v1787
  %1820 = vst [vmem:[%s9 + $0x20] sm:$0xff] %v1788
  %1821 = vst [vmem:[%s9 + $0x28] sm:$0xff] %v1789
  %1822 = vst [vmem:[%s9 + $0x30] sm:$0xff] %v1790
  %1823 = vst [vmem:[%s9 + $0x38] sm:$0xff] %v1791
  %1824 = vst [vmem:[%s9 + $0x40] sm:$0xff] %v1792
  %1825 = vst [vmem:[%s9 + $0x48] sm:$0xff] %v1793
  %1826 = vst [vmem:[%s9 + $0x50] sm:$0xff] %v1794
  %1827 = vst [vmem:[%s9 + $0x58] sm:$0xff] %v1795
  %1828 = vst [vmem:[%s9 + $0x60] sm:$0xff] %v1796
  %1829 = vst [vmem:[%s9 + $0x68] sm:$0xff] %v1797
  %1830 = vst [vmem:[%s9 + $0x70] sm:$0xff] %v1798
  %1831 = vst [vmem:[%s9 + $0x78] sm:$0xff] %v1799
  // Predicated region
  $region34: #{forward.9} parent=0 // pred_check
    _
  $region35: #{forward.9} parent=0 // pred_check_branch
    %1833 = sbr.rel (0) target = $region37
  $region36: #{forward.9} parent=0 // pred_region
    _
  $region37: #{forward.9} parent=0 // pred_fallthru
    _
  // Predicated region
  $region38: #{forward.9} parent=0 // pred_check
    _
  $region39: #{forward.9} parent=0 // pred_check_branch
    %1835 = sbr.rel (0) target = $region41
  $region40: #{forward.9} parent=0 // pred_region
    _
  $region41: #{forward.9} parent=0 // pred_fallthru
    _
  // Predicated region
  $region42: #{forward.9} parent=0 // pred_check
    _
  $region43: #{forward.9} parent=0 // pred_check_branch
    %1837 = sbr.rel (0) target = $region45
  $region44: #{forward.9} parent=0 // pred_region
    _
  $region45: #{forward.9} parent=0 // pred_fallthru
    _
  // Predicated region
  $region46: #{forward.9} parent=0 // pred_check
    _
  $region47: #{forward.9} parent=0 // pred_check_branch
    %1839 = sbr.rel (0) target = $region49
  $region48: #{forward.9} parent=0 // pred_region
    _
  $region49: #{forward.9} parent=0 // pred_fallthru
    _

// kernel: forward.8
$region0: #{forward.8}
  #allocation0 [shape = 'u32[]', space=smem, size = 0x4, offset = 0x4, fixed_abs, tag = 'smem constant byte address 0x4 - core index']
  #allocation1 [shape = 'u32[144,128]{1,0:T(1,128)}', space=vmem, size = 0x12000, scoped, tag = 'internal scratch']
  #allocation2 [shape = 'f32[8,128]{1,0:T(8,128)}', space=vmem, size = 0x1000, scoped, tag = 'scratch operand']
  #allocation3 [shape = 'f32[8,128]{1,0:T(8,128)}', space=vmem, size = 0x1000, scoped, tag = 'scratch operand']
  #allocation4 [shape = 'f32[8,128]{1,0:T(8,128)}', space=vmem, size = 0x1000, scoped, tag = 'scratch operand']
  #allocation5 [shape = 'f32[8,128]{1,0:T(8,128)}', space=vmem, size = 0x1000, scoped, tag = 'scratch operand']
  %s0 = inlined_call_operand.vmem [shape: bf16[8,8,512], index: 0, kind: input, shape index: {}]
  %s1 = inlined_call_operand.vmem [shape: bf16[8,8,512], index: 1, kind: input, shape index: {}]
  %s2 = inlined_call_operand.vmem [shape: bf16[128,512], index: 2, kind: input, shape index: {}]
  %s3 = inlined_call_operand.vmem [shape: bf16[128,512], index: 3, kind: input, shape index: {}]
  %s4 = inlined_call_operand.vmem [shape: bf16[8,8,128], index: 4, kind: output, shape index: {0}]
  %s5 = inlined_call_operand.vmem [shape: bf16[8,8,128], index: 5, kind: output, shape index: {1}]
  %6 = xla_tuple %s4, %s5
  %s7 = sld [smem:[#allocation0]]
  $region38: #{forward.8} parent=0
    _
  %s9 = ssub.s32 1, %s7
  %s10 = scalar_select 0, %s9, %s7
  // Predicated region
  $region2: #{forward.8} parent=0 // pred_check
    _
  $region3: #{forward.8} parent=0 // pred_check_branch
    %12 = sbr.rel (0) target = $region5
  $region4: #{forward.8} parent=0 // pred_region
    _
  $region5: #{forward.8} parent=0 // pred_fallthru
    _
  // Predicated region
  $region6: #{forward.8} parent=0 // pred_check
    _
  $region7: #{forward.8} parent=0 // pred_check_branch
    %14 = sbr.rel (0) target = $region9
  $region8: #{forward.8} parent=0 // pred_region
    %s15 = ssub.s32 0, 0
    %s16 = smul.u32 8, %s15
    %p17 = scmp.lt.s32.totalorder %s16, 7
    %s18 = scalar_select %p17, %s16, 7
    %s19 = smul.addr %s18, 4
    %s20 = smul.addr %s19, 4
    %s21 = scalar_lea.vmem %s1, %s20
    %s22 = ssub.s32 0, 0
    %s23 = smul.u32 8, %s22
  $region9: #{forward.8} parent=0 // pred_fallthru
    _
  // Predicated region
  $region10: #{forward.8} parent=0 // pred_check
    _
  $region11: #{forward.8} parent=0 // pred_check_branch
    %25 = sbr.rel (0) target = $region13
  $region12: #{forward.8} parent=0 // pred_region
    _
  $region13: #{forward.8} parent=0 // pred_fallthru
    _
  // Predicated region
  $region14: #{forward.8} parent=0 // pred_check
    _
  $region15: #{forward.8} parent=0 // pred_check_branch
    %27 = sbr.rel (0) target = $region17
  $region16: #{forward.8} parent=0 // pred_region
    _
  $region17: #{forward.8} parent=0 // pred_fallthru
    _
  %s28 = ssub.s32 0, 0
  %s29 = smul.u32 8, %s28
  %p30 = scmp.lt.s32.totalorder %s29, 7
  %s31 = scalar_select %p30, %s29, 7
  %s32 = smul.addr %s31, 4
  %s33 = smul.addr %s32, 4
  %s34 = scalar_lea.vmem %s1, %s33
  %s35 = ssub.s32 0, 0
  %s36 = smul.u32 8, %s35
  %p37 = scmp.lt.s32.totalorder %s36, 7
  %s38 = scalar_select %p37, %s36, 7
  %s39 = smul.addr %s38, 4
  %s40 = scalar_lea.vmem %s5, %s39
  %s41 = ssub.s32 0, 0
  %s42 = smul.u32 8, %s41
  %p43 = scmp.lt.s32.totalorder %s42, 7
  %s44 = scalar_select %p43, %s42, 7
  %s45 = smul.addr %s44, 4
  %s46 = smul.addr %s45, 4
  %s47 = scalar_lea.vmem %s1, %s46
  %s48 = ssub.s32 0, 0
  %s49 = smul.u32 8, %s48
  %s50 = ssub.s32 0, 0
  %s51 = smul.u32 8, %s50
  %p52 = scmp.lt.s32.totalorder %s51, 7
  %s53 = scalar_select %p52, %s51, 7
  %s54 = smul.addr %s53, 4
  %s55 = scalar_lea.vmem %s5, %s54
  %s56 = ssub.s32 0, 0
  %s57 = smul.u32 8, %s56
  %p59 = scmp.eq.s32.totalorder 0, 0
  // Predicated region
  $region18: #{forward.8} parent=0 // pred_check
    %p60 = pneg %p59
  $region19: #{forward.8} parent=0 // pred_check_branch
    %62 = sbr.rel (%p60) target = $region21
  $region20: #{forward.8} parent=0 // pred_region
    %63 = vst [vmem:[#allocation2] sm:$0xff] 0.0
    %64 = vst [vmem:[#allocation3] sm:$0xff] 0.0
    %65 = vst [vmem:[#allocation4] sm:$0xff] 0.0
    %66 = vst [vmem:[#allocation5] sm:$0xff] 0.0
  $region21: #{forward.8} parent=0 // pred_fallthru
    _
  %v67 = vld [vmem:[%s2] sm:$0xff]
  %v68 = vld [vmem:[%s2 + $0x8] sm:$0xff]
  %v69 = vld [vmem:[%s2 + $0x10] sm:$0xff]
  %v70 = vld [vmem:[%s2 + $0x18] sm:$0xff]
  %v71 = vld [vmem:[%s2 + $0x20] sm:$0xff]
  %v72 = vld [vmem:[%s2 + $0x28] sm:$0xff]
  %v73 = vld [vmem:[%s2 + $0x30] sm:$0xff]
  %v74 = vld [vmem:[%s2 + $0x38] sm:$0xff]
  %v75 = vld [vmem:[%s2 + $0x40] sm:$0xff]
  %v76 = vld [vmem:[%s2 + $0x48] sm:$0xff]
  %v77 = vld [vmem:[%s2 + $0x50] sm:$0xff]
  %v78 = vld [vmem:[%s2 + $0x58] sm:$0xff]
  %v79 = vld [vmem:[%s2 + $0x60] sm:$0xff]
  %v80 = vld [vmem:[%s2 + $0x68] sm:$0xff]
  %v81 = vld [vmem:[%s2 + $0x70] sm:$0xff]
  %v82 = vld [vmem:[%s2 + $0x78] sm:$0xff]
  %v83 = vld [vmem:[%s2 + $0x80] sm:$0xff]
  %v84 = vld [vmem:[%s2 + $0x88] sm:$0xff]
  %v85 = vld [vmem:[%s2 + $0x90] sm:$0xff]
  %v86 = vld [vmem:[%s2 + $0x98] sm:$0xff]
  %v87 = vld [vmem:[%s2 + $0xa0] sm:$0xff]
  %v88 = vld [vmem:[%s2 + $0xa8] sm:$0xff]
  %v89 = vld [vmem:[%s2 + $0xb0] sm:$0xff]
  %v90 = vld [vmem:[%s2 + $0xb8] sm:$0xff]
  %v91 = vld [vmem:[%s2 + $0xc0] sm:$0xff]
  %v92 = vld [vmem:[%s2 + $0xc8] sm:$0xff]
  %v93 = vld [vmem:[%s2 + $0xd0] sm:$0xff]
  %v94 = vld [vmem:[%s2 + $0xd8] sm:$0xff]
  %v95 = vld [vmem:[%s2 + $0xe0] sm:$0xff]
  %v96 = vld [vmem:[%s2 + $0xe8] sm:$0xff]
  %v97 = vld [vmem:[%s2 + $0xf0] sm:$0xff]
  %v98 = vld [vmem:[%s2 + $0xf8] sm:$0xff]
  %v99 = vld [vmem:[%s3] sm:$0xff]
  %v100 = vld [vmem:[%s3 + $0x8] sm:$0xff]
  %v101 = vld [vmem:[%s3 + $0x10] sm:$0xff]
  %v102 = vld [vmem:[%s3 + $0x18] sm:$0xff]
  %v103 = vld [vmem:[%s3 + $0x20] sm:$0xff]
  %v104 = vld [vmem:[%s3 + $0x28] sm:$0xff]
  %v105 = vld [vmem:[%s3 + $0x30] sm:$0xff]
  %v106 = vld [vmem:[%s3 + $0x38] sm:$0xff]
  %v107 = vld [vmem:[%s3 + $0x40] sm:$0xff]
  %v108 = vld [vmem:[%s3 + $0x48] sm:$0xff]
  %v109 = vld [vmem:[%s3 + $0x50] sm:$0xff]
  %v110 = vld [vmem:[%s3 + $0x58] sm:$0xff]
  %v111 = vld [vmem:[%s3 + $0x60] sm:$0xff]
  %v112 = vld [vmem:[%s3 + $0x68] sm:$0xff]
  %v113 = vld [vmem:[%s3 + $0x70] sm:$0xff]
  %v114 = vld [vmem:[%s3 + $0x78] sm:$0xff]
  %v115 = vld [vmem:[%s3 + $0x80] sm:$0xff]
  %v116 = vld [vmem:[%s3 + $0x88] sm:$0xff]
  %v117 = vld [vmem:[%s3 + $0x90] sm:$0xff]
  %v118 = vld [vmem:[%s3 + $0x98] sm:$0xff]
  %v119 = vld [vmem:[%s3 + $0xa0] sm:$0xff]
  %v120 = vld [vmem:[%s3 + $0xa8] sm:$0xff]
  %v121 = vld [vmem:[%s3 + $0xb0] sm:$0xff]
  %v122 = vld [vmem:[%s3 + $0xb8] sm:$0xff]
  %v123 = vld [vmem:[%s3 + $0xc0] sm:$0xff]
  %v124 = vld [vmem:[%s3 + $0xc8] sm:$0xff]
  %v125 = vld [vmem:[%s3 + $0xd0] sm:$0xff]
  %v126 = vld [vmem:[%s3 + $0xd8] sm:$0xff]
  %v127 = vld [vmem:[%s3 + $0xe0] sm:$0xff]
  %v128 = vld [vmem:[%s3 + $0xe8] sm:$0xff]
  %v129 = vld [vmem:[%s3 + $0xf0] sm:$0xff]
  %v130 = vld [vmem:[%s3 + $0xf8] sm:$0xff]
  %v131 = vld [vmem:[#allocation2] sm:$0xff]
  %v132 = vld [vmem:[#allocation3] sm:$0xff]
  %v133 = vld [vmem:[#allocation4] sm:$0xff]
  %v134 = vld [vmem:[#allocation5] sm:$0xff]
  %v135 = vld [vmem:[%s0] sm:$0xff]
  %v136 = vld [vmem:[%s0 + $0x8] sm:$0xff]
  %v137 = vunpack.c.l.bf16 %v135
  %v138 = vunpack.c.h.bf16 %v135
  %v139 = vunpack.c.l.bf16 %v136
  %v140 = vunpack.c.h.bf16 %v136
  %v141 = vpack.c.bf16 %v131, %v131
  %v174 = vunpack.c.l.b16 %v67
  %v175 = vunpack.c.h.b16 %v67
  %v176 = vunpack.c.l.b16 %v68
  %v177 = vunpack.c.h.b16 %v68
  %v178 = vunpack.c.l.b16 %v69
  %v179 = vunpack.c.h.b16 %v69
  %v180 = vunpack.c.l.b16 %v70
  %v181 = vunpack.c.h.b16 %v70
  %v182 = vunpack.c.l.b16 %v71
  %v183 = vunpack.c.h.b16 %v71
  %v184 = vunpack.c.l.b16 %v72
  %v185 = vunpack.c.h.b16 %v72
  %v186 = vunpack.c.l.b16 %v73
  %v187 = vunpack.c.h.b16 %v73
  %v188 = vunpack.c.l.b16 %v74
  %v189 = vunpack.c.h.b16 %v74
  %v190 = vunpack.c.l.b16 %v75
  %v191 = vunpack.c.h.b16 %v75
  %v192 = vunpack.c.l.b16 %v76
  %v193 = vunpack.c.h.b16 %v76
  %v194 = vunpack.c.l.b16 %v77
  %v195 = vunpack.c.h.b16 %v77
  %v196 = vunpack.c.l.b16 %v78
  %v197 = vunpack.c.h.b16 %v78
  %v198 = vunpack.c.l.b16 %v79
  %v199 = vunpack.c.h.b16 %v79
  %v200 = vunpack.c.l.b16 %v80
  %v201 = vunpack.c.h.b16 %v80
  %v202 = vunpack.c.l.b16 %v81
  %v203 = vunpack.c.h.b16 %v81
  %v204 = vunpack.c.l.b16 %v82
  %v205 = vunpack.c.h.b16 %v82
  %v206 = vunpack.c.l.b16 %v83
  %v207 = vunpack.c.h.b16 %v83
  %v208 = vunpack.c.l.b16 %v84
  %v209 = vunpack.c.h.b16 %v84
  %v210 = vunpack.c.l.b16 %v85
  %v211 = vunpack.c.h.b16 %v85
  %v212 = vunpack.c.l.b16 %v86
  %v213 = vunpack.c.h.b16 %v86
  %v214 = vunpack.c.l.b16 %v87
  %v215 = vunpack.c.h.b16 %v87
  %v216 = vunpack.c.l.b16 %v88
  %v217 = vunpack.c.h.b16 %v88
  %v218 = vunpack.c.l.b16 %v89
  %v219 = vunpack.c.h.b16 %v89
  %v220 = vunpack.c.l.b16 %v90
  %v221 = vunpack.c.h.b16 %v90
  %v222 = vunpack.c.l.b16 %v91
  %v223 = vunpack.c.h.b16 %v91
  %v224 = vunpack.c.l.b16 %v92
  %v225 = vunpack.c.h.b16 %v92
  %v226 = vunpack.c.l.b16 %v93
  %v227 = vunpack.c.h.b16 %v93
  %v228 = vunpack.c.l.b16 %v94
  %v229 = vunpack.c.h.b16 %v94
  %v230 = vunpack.c.l.b16 %v95
  %v231 = vunpack.c.h.b16 %v95
  %v232 = vunpack.c.l.b16 %v96
  %v233 = vunpack.c.h.b16 %v96
  %v234 = vunpack.c.l.b16 %v97
  %v235 = vunpack.c.h.b16 %v97
  %v236 = vunpack.c.l.b16 %v98
  %v237 = vunpack.c.h.b16 %v98
  %v238 = vpack.c.b16 %v178, %v174
  %v239 = vpack.c.b16 %v179, %v175
  %v240 = vpack.c.b16 %v180, %v176
  %v241 = vpack.c.b16 %v181, %v177
  %v242 = vpack.c.b16 %v186, %v182
  %v243 = vpack.c.b16 %v187, %v183
  %v244 = vpack.c.b16 %v188, %v184
  %v245 = vpack.c.b16 %v189, %v185
  %v246 = vpack.c.b16 %v194, %v190
  %v247 = vpack.c.b16 %v195, %v191
  %v248 = vpack.c.b16 %v196, %v192
  %v249 = vpack.c.b16 %v197, %v193
  %v250 = vpack.c.b16 %v202, %v198
  %v251 = vpack.c.b16 %v203, %v199
  %v252 = vpack.c.b16 %v204, %v200
  %v253 = vpack.c.b16 %v205, %v201
  %v254 = vpack.c.b16 %v210, %v206
  %v255 = vpack.c.b16 %v211, %v207
  %v256 = vpack.c.b16 %v212, %v208
  %v257 = vpack.c.b16 %v213, %v209
  %v258 = vpack.c.b16 %v218, %v214
  %v259 = vpack.c.b16 %v219, %v215
  %v260 = vpack.c.b16 %v220, %v216
  %v261 = vpack.c.b16 %v221, %v217
  %v262 = vpack.c.b16 %v226, %v222
  %v263 = vpack.c.b16 %v227, %v223
  %v264 = vpack.c.b16 %v228, %v224
  %v265 = vpack.c.b16 %v229, %v225
  %v266 = vpack.c.b16 %v234, %v230
  %v267 = vpack.c.b16 %v235, %v231
  %v268 = vpack.c.b16 %v236, %v232
  %v269 = vpack.c.b16 %v237, %v233
  %302 = vmatprep.subr.bf16.mxu0 %v267
  %303 = vmatpush1.bf16.msra.mxu0 %v266
  %304 = vmatprep.subr.bf16.mxu0 %v263
  %305 = vmatpush1.bf16.msra.mxu0 %v262
  %306 = vmatprep.subr.bf16.mxu0 %v259
  %307 = vmatpush1.bf16.msra.mxu0 %v258
  %308 = vmatprep.subr.bf16.mxu0 %v255
  %309 = vmatpush1.bf16.msra.mxu0 %v254
  %310 = vmatprep.subr.bf16.mxu0 %v251
  %311 = vmatpush1.bf16.msra.mxu0 %v250
  %312 = vmatprep.subr.bf16.mxu0 %v247
  %313 = vmatpush1.bf16.msra.mxu0 %v246
  %314 = vmatprep.subr.bf16.mxu0 %v243
  %315 = vmatpush1.bf16.msra.mxu0 %v242
  %316 = vmatprep.subr.bf16.mxu0 %v239
  %317 = vmatpush1.bf16.msra.mxu0 %v238
  %318 = vmatprep.subr.bf16.mxu0 0
  %319 = vmatpush2.bf16.msra.mxu0 0
  %320 = vmatprep.subr.bf16.mxu0 0
  %321 = vmatpush2.bf16.msra.mxu0 0
  %322 = vmatprep.subr.bf16.mxu0 0
  %323 = vmatpush2.bf16.msra.mxu0 0
  %324 = vmatprep.subr.bf16.mxu0 0
  %325 = vmatpush2.bf16.msra.mxu0 0
  %326 = vmatprep.subr.bf16.mxu0 0
  %327 = vmatpush2.bf16.msra.mxu0 0
  %328 = vmatprep.subr.bf16.mxu0 0
  %329 = vmatpush2.bf16.msra.mxu0 0
  %330 = vmatprep.subr.bf16.mxu0 0
  %331 = vmatpush2.bf16.msra.mxu0 0
  %332 = vmatprep.subr.bf16.mxu0 0
  %333 = vmatpush2.bf16.msra.mxu0 0
  %334 = vmatprep.mubr.bf16.mxu0 0
  %335 = vmatmul.mubr.bf16.gmra.mxu0 %v141
  %v336 = vpop.f32.mrf.mxu0
  %v337 = vadd.f32 0.0, %v336
  %v338 = vpop.f32.mrf.mxu0
  %v339 = vadd.f32 0.0, %v338
  %v340 = vpop.f32.mrf.mxu0
  %v341 = vpop.f32.mrf.mxu0
  %342 = vdwg.mxu0
  %343 = vmatprep.subr.bf16.mxu0 %v269
  %344 = vmatpush1.bf16.msra.mxu0 %v268
  %345 = vmatprep.subr.bf16.mxu0 %v265
  %346 = vmatpush1.bf16.msra.mxu0 %v264
  %347 = vmatprep.subr.bf16.mxu0 %v261
  %348 = vmatpush1.bf16.msra.mxu0 %v260
  %349 = vmatprep.subr.bf16.mxu0 %v257
  %350 = vmatpush1.bf16.msra.mxu0 %v256
  %351 = vmatprep.subr.bf16.mxu0 %v253
  %352 = vmatpush1.bf16.msra.mxu0 %v252
  %353 = vmatprep.subr.bf16.mxu0 %v249
  %354 = vmatpush1.bf16.msra.mxu0 %v248
  %355 = vmatprep.subr.bf16.mxu0 %v245
  %356 = vmatpush1.bf16.msra.mxu0 %v244
  %357 = vmatprep.subr.bf16.mxu0 %v241
  %358 = vmatpush1.bf16.msra.mxu0 %v240
  %359 = vmatprep.subr.bf16.mxu0 0
  %360 = vmatpush2.bf16.msra.mxu0 0
  %361 = vmatprep.subr.bf16.mxu0 0
  %362 = vmatpush2.bf16.msra.mxu0 0
  %363 = vmatprep.subr.bf16.mxu0 0
  %364 = vmatpush2.bf16.msra.mxu0 0
  %365 = vmatprep.subr.bf16.mxu0 0
  %366 = vmatpush2.bf16.msra.mxu0 0
  %367 = vmatprep.subr.bf16.mxu0 0
  %368 = vmatpush2.bf16.msra.mxu0 0
  %369 = vmatprep.subr.bf16.mxu0 0
  %370 = vmatpush2.bf16.msra.mxu0 0
  %371 = vmatprep.subr.bf16.mxu0 0
  %372 = vmatpush2.bf16.msra.mxu0 0
  %373 = vmatprep.subr.bf16.mxu0 0
  %374 = vmatpush2.bf16.msra.mxu0 0
  %375 = vmatprep.mubr.bf16.mxu0 0
  %376 = vmatmul.mubr.bf16.gmra.mxu0 %v141
  %v377 = vpop.f32.mrf.mxu0
  %v378 = vadd.f32 0.0, %v377
  %v379 = vpop.f32.mrf.mxu0
  %v380 = vadd.f32 0.0, %v379
  %v381 = vpop.f32.mrf.mxu0
  %v382 = vpop.f32.mrf.mxu0
  %383 = vdwg.mxu0
  %v384 = vadd.f32 %v137, %v337
  %v385 = vadd.f32 %v138, %v339
  %v386 = vadd.f32 %v139, %v378
  %v387 = vadd.f32 %v140, %v380
  %v388 = vxor.u32 %v384, 2147483648
  %v389 = vmul.f32 %v388, 1.442695
  %v390 = vpow.pop %v389
  %v391 = vadd.f32 %v390, 1.0
  %v392 = vrcp.pop %v391
  %v393 = vmul.f32 1.0, %v392
  %v394 = vxor.u32 %v385, 2147483648
  %v395 = vmul.f32 %v394, 1.442695
  %v396 = vpow.pop %v395
  %v397 = vadd.f32 %v396, 1.0
  %v398 = vrcp.pop %v397
  %v399 = vmul.f32 1.0, %v398
  %v400 = vtanh.pop %v386
  %v401 = vxor.u32 %v387, 2147483648
  %v402 = vmul.f32 %v401, 1.442695
  %v403 = vpow.pop %v402
  %v404 = vadd.f32 %v403, 1.0
  %v405 = vrcp.pop %v404
  %v406 = vmul.f32 1.0, %v405
  %v407 = vmul.f32 %v399, %v132
  %v408 = vmul.f32 %v393, %v400
  %v409 = vadd.f32 %v407, %v408
  %v410 = vtanh.pop %v409
  %v411 = vmul.f32 %v406, %v410
  %s412 = scalar_lea.vmem %s47, 112
  %v413 = vld [vmem:[%s412] sm:$0xff]
  %v414 = vld [vmem:[%s412 + $0x8] sm:$0xff]
  %v415 = vunpack.c.l.bf16 %v413
  %v416 = vunpack.c.h.bf16 %v413
  %v417 = vunpack.c.l.bf16 %v414
  %v418 = vunpack.c.h.bf16 %v414
  %v419 = vpack.c.bf16 %v133, %v133
  %v452 = vunpack.c.l.b16 %v99
  %v453 = vunpack.c.h.b16 %v99
  %v454 = vunpack.c.l.b16 %v100
  %v455 = vunpack.c.h.b16 %v100
  %v456 = vunpack.c.l.b16 %v101
  %v457 = vunpack.c.h.b16 %v101
  %v458 = vunpack.c.l.b16 %v102
  %v459 = vunpack.c.h.b16 %v102
  %v460 = vunpack.c.l.b16 %v103
  %v461 = vunpack.c.h.b16 %v103
  %v462 = vunpack.c.l.b16 %v104
  %v463 = vunpack.c.h.b16 %v104
  %v464 = vunpack.c.l.b16 %v105
  %v465 = vunpack.c.h.b16 %v105
  %v466 = vunpack.c.l.b16 %v106
  %v467 = vunpack.c.h.b16 %v106
  %v468 = vunpack.c.l.b16 %v107
  %v469 = vunpack.c.h.b16 %v107
  %v470 = vunpack.c.l.b16 %v108
  %v471 = vunpack.c.h.b16 %v108
  %v472 = vunpack.c.l.b16 %v109
  %v473 = vunpack.c.h.b16 %v109
  %v474 = vunpack.c.l.b16 %v110
  %v475 = vunpack.c.h.b16 %v110
  %v476 = vunpack.c.l.b16 %v111
  %v477 = vunpack.c.h.b16 %v111
  %v478 = vunpack.c.l.b16 %v112
  %v479 = vunpack.c.h.b16 %v112
  %v480 = vunpack.c.l.b16 %v113
  %v481 = vunpack.c.h.b16 %v113
  %v482 = vunpack.c.l.b16 %v114
  %v483 = vunpack.c.h.b16 %v114
  %v484 = vunpack.c.l.b16 %v115
  %v485 = vunpack.c.h.b16 %v115
  %v486 = vunpack.c.l.b16 %v116
  %v487 = vunpack.c.h.b16 %v116
  %v488 = vunpack.c.l.b16 %v117
  %v489 = vunpack.c.h.b16 %v117
  %v490 = vunpack.c.l.b16 %v118
  %v491 = vunpack.c.h.b16 %v118
  %v492 = vunpack.c.l.b16 %v119
  %v493 = vunpack.c.h.b16 %v119
  %v494 = vunpack.c.l.b16 %v120
  %v495 = vunpack.c.h.b16 %v120
  %v496 = vunpack.c.l.b16 %v121
  %v497 = vunpack.c.h.b16 %v121
  %v498 = vunpack.c.l.b16 %v122
  %v499 = vunpack.c.h.b16 %v122
  %v500 = vunpack.c.l.b16 %v123
  %v501 = vunpack.c.h.b16 %v123
  %v502 = vunpack.c.l.b16 %v124
  %v503 = vunpack.c.h.b16 %v124
  %v504 = vunpack.c.l.b16 %v125
  %v505 = vunpack.c.h.b16 %v125
  %v506 = vunpack.c.l.b16 %v126
  %v507 = vunpack.c.h.b16 %v126
  %v508 = vunpack.c.l.b16 %v127
  %v509 = vunpack.c.h.b16 %v127
  %v510 = vunpack.c.l.b16 %v128
  %v511 = vunpack.c.h.b16 %v128
  %v512 = vunpack.c.l.b16 %v129
  %v513 = vunpack.c.h.b16 %v129
  %v514 = vunpack.c.l.b16 %v130
  %v515 = vunpack.c.h.b16 %v130
  %v516 = vpack.c.b16 %v456, %v452
  %v517 = vpack.c.b16 %v457, %v453
  %v518 = vpack.c.b16 %v458, %v454
  %v519 = vpack.c.b16 %v459, %v455
  %v520 = vpack.c.b16 %v464, %v460
  %v521 = vpack.c.b16 %v465, %v461
  %v522 = vpack.c.b16 %v466, %v462
  %v523 = vpack.c.b16 %v467, %v463
  %v524 = vpack.c.b16 %v472, %v468
  %v525 = vpack.c.b16 %v473, %v469
  %v526 = vpack.c.b16 %v474, %v470
  %v527 = vpack.c.b16 %v475, %v471
  %v528 = vpack.c.b16 %v480, %v476
  %v529 = vpack.c.b16 %v481, %v477
  %v530 = vpack.c.b16 %v482, %v478
  %v531 = vpack.c.b16 %v483, %v479
  %v532 = vpack.c.b16 %v488, %v484
  %v533 = vpack.c.b16 %v489, %v485
  %v534 = vpack.c.b16 %v490, %v486
  %v535 = vpack.c.b16 %v491, %v487
  %v536 = vpack.c.b16 %v496, %v492
  %v537 = vpack.c.b16 %v497, %v493
  %v538 = vpack.c.b16 %v498, %v494
  %v539 = vpack.c.b16 %v499, %v495
  %v540 = vpack.c.b16 %v504, %v500
  %v541 = vpack.c.b16 %v505, %v501
  %v542 = vpack.c.b16 %v506, %v502
  %v543 = vpack.c.b16 %v507, %v503
  %v544 = vpack.c.b16 %v512, %v508
  %v545 = vpack.c.b16 %v513, %v509
  %v546 = vpack.c.b16 %v514, %v510
  %v547 = vpack.c.b16 %v515, %v511
  %580 = vmatprep.subr.bf16.mxu0 %v545
  %581 = vmatpush1.bf16.msra.mxu0 %v544
  %582 = vmatprep.subr.bf16.mxu0 %v541
  %583 = vmatpush1.bf16.msra.mxu0 %v540
  %584 = vmatprep.subr.bf16.mxu0 %v537
  %585 = vmatpush1.bf16.msra.mxu0 %v536
  %586 = vmatprep.subr.bf16.mxu0 %v533
  %587 = vmatpush1.bf16.msra.mxu0 %v532
  %588 = vmatprep.subr.bf16.mxu0 %v529
  %589 = vmatpush1.bf16.msra.mxu0 %v528
  %590 = vmatprep.subr.bf16.mxu0 %v525
  %591 = vmatpush1.bf16.msra.mxu0 %v524
  %592 = vmatprep.subr.bf16.mxu0 %v521
  %593 = vmatpush1.bf16.msra.mxu0 %v520
  %594 = vmatprep.subr.bf16.mxu0 %v517
  %595 = vmatpush1.bf16.msra.mxu0 %v516
  %596 = vmatprep.subr.bf16.mxu0 0
  %597 = vmatpush2.bf16.msra.mxu0 0
  %598 = vmatprep.subr.bf16.mxu0 0
  %599 = vmatpush2.bf16.msra.mxu0 0
  %600 = vmatprep.subr.bf16.mxu0 0
  %601 = vmatpush2.bf16.msra.mxu0 0
  %602 = vmatprep.subr.bf16.mxu0 0
  %603 = vmatpush2.bf16.msra.mxu0 0
  %604 = vmatprep.subr.bf16.mxu0 0
  %605 = vmatpush2.bf16.msra.mxu0 0
  %606 = vmatprep.subr.bf16.mxu0 0
  %607 = vmatpush2.bf16.msra.mxu0 0
  %608 = vmatprep.subr.bf16.mxu0 0
  %609 = vmatpush2.bf16.msra.mxu0 0
  %610 = vmatprep.subr.bf16.mxu0 0
  %611 = vmatpush2.bf16.msra.mxu0 0
  %612 = vmatprep.mubr.bf16.mxu0 0
  %613 = vmatmul.mubr.bf16.gmra.mxu0 %v419
  %v614 = vpop.f32.mrf.mxu0
  %v615 = vadd.f32 0.0, %v614
  %v616 = vpop.f32.mrf.mxu0
  %v617 = vadd.f32 0.0, %v616
  %v618 = vpop.f32.mrf.mxu0
  %v619 = vpop.f32.mrf.mxu0
  %620 = vdwg.mxu0
  %621 = vmatprep.subr.bf16.mxu0 %v547
  %622 = vmatpush1.bf16.msra.mxu0 %v546
  %623 = vmatprep.subr.bf16.mxu0 %v543
  %624 = vmatpush1.bf16.msra.mxu0 %v542
  %625 = vmatprep.subr.bf16.mxu0 %v539
  %626 = vmatpush1.bf16.msra.mxu0 %v538
  %627 = vmatprep.subr.bf16.mxu0 %v535
  %628 = vmatpush1.bf16.msra.mxu0 %v534
  %629 = vmatprep.subr.bf16.mxu0 %v531
  %630 = vmatpush1.bf16.msra.mxu0 %v530
  %631 = vmatprep.subr.bf16.mxu0 %v527
  %632 = vmatpush1.bf16.msra.mxu0 %v526
  %633 = vmatprep.subr.bf16.mxu0 %v523
  %634 = vmatpush1.bf16.msra.mxu0 %v522
  %635 = vmatprep.subr.bf16.mxu0 %v519
  %636 = vmatpush1.bf16.msra.mxu0 %v518
  %637 = vmatprep.subr.bf16.mxu0 0
  %638 = vmatpush2.bf16.msra.mxu0 0
  %639 = vmatprep.subr.bf16.mxu0 0
  %640 = vmatpush2.bf16.msra.mxu0 0
  %641 = vmatprep.subr.bf16.mxu0 0
  %642 = vmatpush2.bf16.msra.mxu0 0
  %643 = vmatprep.subr.bf16.mxu0 0
  %644 = vmatpush2.bf16.msra.mxu0 0
  %645 = vmatprep.subr.bf16.mxu0 0
  %646 = vmatpush2.bf16.msra.mxu0 0
  %647 = vmatprep.subr.bf16.mxu0 0
  %648 = vmatpush2.bf16.msra.mxu0 0
  %649 = vmatprep.subr.bf16.mxu0 0
  %650 = vmatpush2.bf16.msra.mxu0 0
  %651 = vmatprep.subr.bf16.mxu0 0
  %652 = vmatpush2.bf16.msra.mxu0 0
  %653 = vmatprep.mubr.bf16.mxu0 0
  %654 = vmatmul.mubr.bf16.gmra.mxu0 %v419
  %v655 = vpop.f32.mrf.mxu0
  %v656 = vadd.f32 0.0, %v655
  %v657 = vpop.f32.mrf.mxu0
  %v658 = vadd.f32 0.0, %v657
  %v659 = vpop.f32.mrf.mxu0
  %v660 = vpop.f32.mrf.mxu0
  %661 = vdwg.mxu0
  %v662 = vadd.f32 %v415, %v615
  %v663 = vadd.f32 %v416, %v617
  %v664 = vadd.f32 %v417, %v656
  %v665 = vadd.f32 %v418, %v658
  %v666 = vxor.u32 %v662, 2147483648
  %v667 = vmul.f32 %v666, 1.442695
  %v668 = vpow.pop %v667
  %v669 = vadd.f32 %v668, 1.0
  %v670 = vrcp.pop %v669
  %v671 = vmul.f32 1.0, %v670
  %v672 = vxor.u32 %v663, 2147483648
  %v673 = vmul.f32 %v672, 1.442695
  %v674 = vpow.pop %v673
  %v675 = vadd.f32 %v674, 1.0
  %v676 = vrcp.pop %v675
  %v677 = vmul.f32 1.0, %v676
  %v678 = vtanh.pop %v664
  %v679 = vxor.u32 %v665, 2147483648
  %v680 = vmul.f32 %v679, 1.442695
  %v681 = vpow.pop %v680
  %v682 = vadd.f32 %v681, 1.0
  %v683 = vrcp.pop %v682
  %v684 = vmul.f32 1.0, %v683
  %v685 = vmul.f32 %v677, %v134
  %v686 = vmul.f32 %v671, %v678
  %v687 = vadd.f32 %v685, %v686
  %v688 = vtanh.pop %v687
  %v689 = vmul.f32 %v684, %v688
  %v690 = vpack.c.bf16 %v411, %v411
  %691 = vst [vmem:[%s4] sm:$0xf] %v690
  %v692 = vpack.c.bf16 %v689, %v689
  %s693 = scalar_lea.vmem %s55, 28
  %694 = vst [vmem:[%s693] sm:$0xf] %v692
  %s695 = scalar_lea.vmem %s0, 16
  %v696 = vld [vmem:[%s695] sm:$0xff]
  %v697 = vld [vmem:[%s695 + $0x8] sm:$0xff]
  %v698 = vunpack.c.l.bf16 %v696
  %v699 = vunpack.c.h.bf16 %v696
  %v700 = vunpack.c.l.bf16 %v697
  %v701 = vunpack.c.h.bf16 %v697
  %702 = vmatprep.subr.bf16.mxu0 %v267
  %703 = vmatpush1.bf16.msra.mxu0 %v266
  %704 = vmatprep.subr.bf16.mxu0 %v263
  %705 = vmatpush1.bf16.msra.mxu0 %v262
  %706 = vmatprep.subr.bf16.mxu0 %v259
  %707 = vmatpush1.bf16.msra.mxu0 %v258
  %708 = vmatprep.subr.bf16.mxu0 %v255
  %709 = vmatpush1.bf16.msra.mxu0 %v254
  %710 = vmatprep.subr.bf16.mxu0 %v251
  %711 = vmatpush1.bf16.msra.mxu0 %v250
  %712 = vmatprep.subr.bf16.mxu0 %v247
  %713 = vmatpush1.bf16.msra.mxu0 %v246
  %714 = vmatprep.subr.bf16.mxu0 %v243
  %715 = vmatpush1.bf16.msra.mxu0 %v242
  %716 = vmatprep.subr.bf16.mxu0 %v239
  %717 = vmatpush1.bf16.msra.mxu0 %v238
  %718 = vmatprep.subr.bf16.mxu0 0
  %719 = vmatpush2.bf16.msra.mxu0 0
  %720 = vmatprep.subr.bf16.mxu0 0
  %721 = vmatpush2.bf16.msra.mxu0 0
  %722 = vmatprep.subr.bf16.mxu0 0
  %723 = vmatpush2.bf16.msra.mxu0 0
  %724 = vmatprep.subr.bf16.mxu0 0
  %725 = vmatpush2.bf16.msra.mxu0 0
  %726 = vmatprep.subr.bf16.mxu0 0
  %727 = vmatpush2.bf16.msra.mxu0 0
  %728 = vmatprep.subr.bf16.mxu0 0
  %729 = vmatpush2.bf16.msra.mxu0 0
  %730 = vmatprep.subr.bf16.mxu0 0
  %731 = vmatpush2.bf16.msra.mxu0 0
  %732 = vmatprep.subr.bf16.mxu0 0
  %733 = vmatpush2.bf16.msra.mxu0 0
  %734 = vmatprep.mubr.bf16.mxu0 0
  %735 = vmatmul.mubr.bf16.gmra.mxu0 %v690
  %v736 = vpop.f32.mrf.mxu0
  %v737 = vadd.f32 0.0, %v736
  %v738 = vpop.f32.mrf.mxu0
  %v739 = vadd.f32 0.0, %v738
  %v740 = vpop.f32.mrf.mxu0
  %v741 = vpop.f32.mrf.mxu0
  %742 = vdwg.mxu0
  %743 = vmatprep.subr.bf16.mxu0 %v269
  %744 = vmatpush1.bf16.msra.mxu0 %v268
  %745 = vmatprep.subr.bf16.mxu0 %v265
  %746 = vmatpush1.bf16.msra.mxu0 %v264
  %747 = vmatprep.subr.bf16.mxu0 %v261
  %748 = vmatpush1.bf16.msra.mxu0 %v260
  %749 = vmatprep.subr.bf16.mxu0 %v257
  %750 = vmatpush1.bf16.msra.mxu0 %v256
  %751 = vmatprep.subr.bf16.mxu0 %v253
  %752 = vmatpush1.bf16.msra.mxu0 %v252
  %753 = vmatprep.subr.bf16.mxu0 %v249
  %754 = vmatpush1.bf16.msra.mxu0 %v248
  %755 = vmatprep.subr.bf16.mxu0 %v245
  %756 = vmatpush1.bf16.msra.mxu0 %v244
  %757 = vmatprep.subr.bf16.mxu0 %v241
  %758 = vmatpush1.bf16.msra.mxu0 %v240
  %759 = vmatprep.subr.bf16.mxu0 0
  %760 = vmatpush2.bf16.msra.mxu0 0
  %761 = vmatprep.subr.bf16.mxu0 0
  %762 = vmatpush2.bf16.msra.mxu0 0
  %763 = vmatprep.subr.bf16.mxu0 0
  %764 = vmatpush2.bf16.msra.mxu0 0
  %765 = vmatprep.subr.bf16.mxu0 0
  %766 = vmatpush2.bf16.msra.mxu0 0
  %767 = vmatprep.subr.bf16.mxu0 0
  %768 = vmatpush2.bf16.msra.mxu0 0
  %769 = vmatprep.subr.bf16.mxu0 0
  %770 = vmatpush2.bf16.msra.mxu0 0
  %771 = vmatprep.subr.bf16.mxu0 0
  %772 = vmatpush2.bf16.msra.mxu0 0
  %773 = vmatprep.subr.bf16.mxu0 0
  %774 = vmatpush2.bf16.msra.mxu0 0
  %775 = vmatprep.mubr.bf16.mxu0 0
  %776 = vmatmul.mubr.bf16.gmra.mxu0 %v690
  %v777 = vpop.f32.mrf.mxu0
  %v778 = vadd.f32 0.0, %v777
  %v779 = vpop.f32.mrf.mxu0
  %v780 = vadd.f32 0.0, %v779
  %v781 = vpop.f32.mrf.mxu0
  %v782 = vpop.f32.mrf.mxu0
  %783 = vdwg.mxu0
  %v784 = vadd.f32 %v698, %v737
  %v785 = vadd.f32 %v699, %v739
  %v786 = vadd.f32 %v700, %v778
  %v787 = vadd.f32 %v701, %v780
  %v788 = vxor.u32 %v784, 2147483648
  %v789 = vmul.f32 %v788, 1.442695
  %v790 = vpow.pop %v789
  %v791 = vadd.f32 %v790, 1.0
  %v792 = vrcp.pop %v791
  %v793 = vmul.f32 1.0, %v792
  %v794 = vxor.u32 %v785, 2147483648
  %v795 = vmul.f32 %v794, 1.442695
  %v796 = vpow.pop %v795
  %v797 = vadd.f32 %v796, 1.0
  %v798 = vrcp.pop %v797
  %v799 = vmul.f32 1.0, %v798
  %v800 = vtanh.pop %v786
  %v801 = vxor.u32 %v787, 2147483648
  %v802 = vmul.f32 %v801, 1.442695
  %v803 = vpow.pop %v802
  %v804 = vadd.f32 %v803, 1.0
  %v805 = vrcp.pop %v804
  %v806 = vmul.f32 1.0, %v805
  %v807 = vmul.f32 %v799, %v409
  %v808 = vmul.f32 %v793, %v800
  %v809 = vadd.f32 %v807, %v808
  %v810 = vtanh.pop %v809
  %v811 = vmul.f32 %v806, %v810
  %s812 = scalar_lea.vmem %s47, 96
  %v813 = vld [vmem:[%s812] sm:$0xff]
  %v814 = vld [vmem:[%s812 + $0x8] sm:$0xff]
  %v815 = vunpack.c.l.bf16 %v813
  %v816 = vunpack.c.h.bf16 %v813
  %v817 = vunpack.c.l.bf16 %v814
  %v818 = vunpack.c.h.bf16 %v814
  %819 = vmatprep.subr.bf16.mxu0 %v545
  %820 = vmatpush1.bf16.msra.mxu0 %v544
  %821 = vmatprep.subr.bf16.mxu0 %v541
  %822 = vmatpush1.bf16.msra.mxu0 %v540
  %823 = vmatprep.subr.bf16.mxu0 %v537
  %824 = vmatpush1.bf16.msra.mxu0 %v536
  %825 = vmatprep.subr.bf16.mxu0 %v533
  %826 = vmatpush1.bf16.msra.mxu0 %v532
  %827 = vmatprep.subr.bf16.mxu0 %v529
  %828 = vmatpush1.bf16.msra.mxu0 %v528
  %829 = vmatprep.subr.bf16.mxu0 %v525
  %830 = vmatpush1.bf16.msra.mxu0 %v524
  %831 = vmatprep.subr.bf16.mxu0 %v521
  %832 = vmatpush1.bf16.msra.mxu0 %v520
  %833 = vmatprep.subr.bf16.mxu0 %v517
  %834 = vmatpush1.bf16.msra.mxu0 %v516
  %835 = vmatprep.subr.bf16.mxu0 0
  %836 = vmatpush2.bf16.msra.mxu0 0
  %837 = vmatprep.subr.bf16.mxu0 0
  %838 = vmatpush2.bf16.msra.mxu0 0
  %839 = vmatprep.subr.bf16.mxu0 0
  %840 = vmatpush2.bf16.msra.mxu0 0
  %841 = vmatprep.subr.bf16.mxu0 0
  %842 = vmatpush2.bf16.msra.mxu0 0
  %843 = vmatprep.subr.bf16.mxu0 0
  %844 = vmatpush2.bf16.msra.mxu0 0
  %845 = vmatprep.subr.bf16.mxu0 0
  %846 = vmatpush2.bf16.msra.mxu0 0
  %847 = vmatprep.subr.bf16.mxu0 0
  %848 = vmatpush2.bf16.msra.mxu0 0
  %849 = vmatprep.subr.bf16.mxu0 0
  %850 = vmatpush2.bf16.msra.mxu0 0
  %851 = vmatprep.mubr.bf16.mxu0 0
  %852 = vmatmul.mubr.bf16.gmra.mxu0 %v692
  %v853 = vpop.f32.mrf.mxu0
  %v854 = vadd.f32 0.0, %v853
  %v855 = vpop.f32.mrf.mxu0
  %v856 = vadd.f32 0.0, %v855
  %v857 = vpop.f32.mrf.mxu0
  %v858 = vpop.f32.mrf.mxu0
  %859 = vdwg.mxu0
  %860 = vmatprep.subr.bf16.mxu0 %v547
  %861 = vmatpush1.bf16.msra.mxu0 %v546
  %862 = vmatprep.subr.bf16.mxu0 %v543
  %863 = vmatpush1.bf16.msra.mxu0 %v542
  %864 = vmatprep.subr.bf16.mxu0 %v539
  %865 = vmatpush1.bf16.msra.mxu0 %v538
  %866 = vmatprep.subr.bf16.mxu0 %v535
  %867 = vmatpush1.bf16.msra.mxu0 %v534
  %868 = vmatprep.subr.bf16.mxu0 %v531
  %869 = vmatpush1.bf16.msra.mxu0 %v530
  %870 = vmatprep.subr.bf16.mxu0 %v527
  %871 = vmatpush1.bf16.msra.mxu0 %v526
  %872 = vmatprep.subr.bf16.mxu0 %v523
  %873 = vmatpush1.bf16.msra.mxu0 %v522
  %874 = vmatprep.subr.bf16.mxu0 %v519
  %875 = vmatpush1.bf16.msra.mxu0 %v518
  %876 = vmatprep.subr.bf16.mxu0 0
  %877 = vmatpush2.bf16.msra.mxu0 0
  %878 = vmatprep.subr.bf16.mxu0 0
  %879 = vmatpush2.bf16.msra.mxu0 0
  %880 = vmatprep.subr.bf16.mxu0 0
  %881 = vmatpush2.bf16.msra.mxu0 0
  %882 = vmatprep.subr.bf16.mxu0 0
  %883 = vmatpush2.bf16.msra.mxu0 0
  %884 = vmatprep.subr.bf16.mxu0 0
  %885 = vmatpush2.bf16.msra.mxu0 0
  %886 = vmatprep.subr.bf16.mxu0 0
  %887 = vmatpush2.bf16.msra.mxu0 0
  %888 = vmatprep.subr.bf16.mxu0 0
  %889 = vmatpush2.bf16.msra.mxu0 0
  %890 = vmatprep.subr.bf16.mxu0 0
  %891 = vmatpush2.bf16.msra.mxu0 0
  %892 = vmatprep.mubr.bf16.mxu0 0
  %893 = vmatmul.mubr.bf16.gmra.mxu0 %v692
  %v894 = vpop.f32.mrf.mxu0
  %v895 = vadd.f32 0.0, %v894
  %v896 = vpop.f32.mrf.mxu0
  %v897 = vadd.f32 0.0, %v896
  %v898 = vpop.f32.mrf.mxu0
  %v899 = vpop.f32.mrf.mxu0
  %900 = vdwg.mxu0
  %v901 = vadd.f32 %v815, %v854
  %v902 = vadd.f32 %v816, %v856
  %v903 = vadd.f32 %v817, %v895
  %v904 = vadd.f32 %v818, %v897
  %v905 = vxor.u32 %v901, 2147483648
  %v906 = vmul.f32 %v905, 1.442695
  %v907 = vpow.pop %v906
  %v908 = vadd.f32 %v907, 1.0
  %v909 = vrcp.pop %v908
  %v910 = vmul.f32 1.0, %v909
  %v911 = vxor.u32 %v902, 2147483648
  %v912 = vmul.f32 %v911, 1.442695
  %v913 = vpow.pop %v912
  %v914 = vadd.f32 %v913, 1.0
  %v915 = vrcp.pop %v914
  %v916 = vmul.f32 1.0, %v915
  %v917 = vtanh.pop %v903
  %v918 = vxor.u32 %v904, 2147483648
  %v919 = vmul.f32 %v918, 1.442695
  %v920 = vpow.pop %v919
  %v921 = vadd.f32 %v920, 1.0
  %v922 = vrcp.pop %v921
  %v923 = vmul.f32 1.0, %v922
  %v924 = vmul.f32 %v916, %v687
  %v925 = vmul.f32 %v910, %v917
  %v926 = vadd.f32 %v924, %v925
  %v927 = vtanh.pop %v926
  %v928 = vmul.f32 %v923, %v927
  %v929 = vpack.c.bf16 %v811, %v811
  %s930 = scalar_lea.vmem %s4, 4
  %931 = vst [vmem:[%s930] sm:$0xf] %v929
  %v932 = vpack.c.bf16 %v928, %v928
  %s933 = scalar_lea.vmem %s55, 24
  %934 = vst [vmem:[%s933] sm:$0xf] %v932
  %s935 = scalar_lea.vmem %s0, 32
  %v936 = vld [vmem:[%s935] sm:$0xff]
  %v937 = vld [vmem:[%s935 + $0x8] sm:$0xff]
  %v938 = vunpack.c.l.bf16 %v936
  %v939 = vunpack.c.h.bf16 %v936
  %v940 = vunpack.c.l.bf16 %v937
  %v941 = vunpack.c.h.bf16 %v937
  %942 = vmatprep.subr.bf16.mxu0 %v267
  %943 = vmatpush1.bf16.msra.mxu0 %v266
  %944 = vmatprep.subr.bf16.mxu0 %v263
  %945 = vmatpush1.bf16.msra.mxu0 %v262
  %946 = vmatprep.subr.bf16.mxu0 %v259
  %947 = vmatpush1.bf16.msra.mxu0 %v258
  %948 = vmatprep.subr.bf16.mxu0 %v255
  %949 = vmatpush1.bf16.msra.mxu0 %v254
  %950 = vmatprep.subr.bf16.mxu0 %v251
  %951 = vmatpush1.bf16.msra.mxu0 %v250
  %952 = vmatprep.subr.bf16.mxu0 %v247
  %953 = vmatpush1.bf16.msra.mxu0 %v246
  %954 = vmatprep.subr.bf16.mxu0 %v243
  %955 = vmatpush1.bf16.msra.mxu0 %v242
  %956 = vmatprep.subr.bf16.mxu0 %v239
  %957 = vmatpush1.bf16.msra.mxu0 %v238
  %958 = vmatprep.subr.bf16.mxu0 0
  %959 = vmatpush2.bf16.msra.mxu0 0
  %960 = vmatprep.subr.bf16.mxu0 0
  %961 = vmatpush2.bf16.msra.mxu0 0
  %962 = vmatprep.subr.bf16.mxu0 0
  %963 = vmatpush2.bf16.msra.mxu0 0
  %964 = vmatprep.subr.bf16.mxu0 0
  %965 = vmatpush2.bf16.msra.mxu0 0
  %966 = vmatprep.subr.bf16.mxu0 0
  %967 = vmatpush2.bf16.msra.mxu0 0
  %968 = vmatprep.subr.bf16.mxu0 0
  %969 = vmatpush2.bf16.msra.mxu0 0
  %970 = vmatprep.subr.bf16.mxu0 0
  %971 = vmatpush2.bf16.msra.mxu0 0
  %972 = vmatprep.subr.bf16.mxu0 0
  %973 = vmatpush2.bf16.msra.mxu0 0
  %974 = vmatprep.mubr.bf16.mxu0 0
  %975 = vmatmul.mubr.bf16.gmra.mxu0 %v929
  %v976 = vpop.f32.mrf.mxu0
  %v977 = vadd.f32 0.0, %v976
  %v978 = vpop.f32.mrf.mxu0
  %v979 = vadd.f32 0.0, %v978
  %v980 = vpop.f32.mrf.mxu0
  %v981 = vpop.f32.mrf.mxu0
  %982 = vdwg.mxu0
  %983 = vmatprep.subr.bf16.mxu0 %v269
  %984 = vmatpush1.bf16.msra.mxu0 %v268
  %985 = vmatprep.subr.bf16.mxu0 %v265
  %986 = vmatpush1.bf16.msra.mxu0 %v264
  %987 = vmatprep.subr.bf16.mxu0 %v261
  %988 = vmatpush1.bf16.msra.mxu0 %v260
  %989 = vmatprep.subr.bf16.mxu0 %v257
  %990 = vmatpush1.bf16.msra.mxu0 %v256
  %991 = vmatprep.subr.bf16.mxu0 %v253
  %992 = vmatpush1.bf16.msra.mxu0 %v252
  %993 = vmatprep.subr.bf16.mxu0 %v249
  %994 = vmatpush1.bf16.msra.mxu0 %v248
  %995 = vmatprep.subr.bf16.mxu0 %v245
  %996 = vmatpush1.bf16.msra.mxu0 %v244
  %997 = vmatprep.subr.bf16.mxu0 %v241
  %998 = vmatpush1.bf16.msra.mxu0 %v240
  %999 = vmatprep.subr.bf16.mxu0 0
  %1000 = vmatpush2.bf16.msra.mxu0 0
  %1001 = vmatprep.subr.bf16.mxu0 0
  %1002 = vmatpush2.bf16.msra.mxu0 0
  %1003 = vmatprep.subr.bf16.mxu0 0
  %1004 = vmatpush2.bf16.msra.mxu0 0
  %1005 = vmatprep.subr.bf16.mxu0 0
  %1006 = vmatpush2.bf16.msra.mxu0 0
  %1007 = vmatprep.subr.bf16.mxu0 0
  %1008 = vmatpush2.bf16.msra.mxu0 0
  %1009 = vmatprep.subr.bf16.mxu0 0
  %1010 = vmatpush2.bf16.msra.mxu0 0
  %1011 = vmatprep.subr.bf16.mxu0 0
  %1012 = vmatpush2.bf16.msra.mxu0 0
  %1013 = vmatprep.subr.bf16.mxu0 0
  %1014 = vmatpush2.bf16.msra.mxu0 0
  %1015 = vmatprep.mubr.bf16.mxu0 0
  %1016 = vmatmul.mubr.bf16.gmra.mxu0 %v929
  %v1017 = vpop.f32.mrf.mxu0
  %v1018 = vadd.f32 0.0, %v1017
  %v1019 = vpop.f32.mrf.mxu0
  %v1020 = vadd.f32 0.0, %v1019
  %v1021 = vpop.f32.mrf.mxu0
  %v1022 = vpop.f32.mrf.mxu0
  %1023 = vdwg.mxu0
  %v1024 = vadd.f32 %v938, %v977
  %v1025 = vadd.f32 %v939, %v979
  %v1026 = vadd.f32 %v940, %v1018
  %v1027 = vadd.f32 %v941, %v1020
  %v1028 = vxor.u32 %v1024, 2147483648
  %v1029 = vmul.f32 %v1028, 1.442695
  %v1030 = vpow.pop %v1029
  %v1031 = vadd.f32 %v1030, 1.0
  %v1032 = vrcp.pop %v1031
  %v1033 = vmul.f32 1.0, %v1032
  %v1034 = vxor.u32 %v1025, 2147483648
  %v1035 = vmul.f32 %v1034, 1.442695
  %v1036 = vpow.pop %v1035
  %v1037 = vadd.f32 %v1036, 1.0
  %v1038 = vrcp.pop %v1037
  %v1039 = vmul.f32 1.0, %v1038
  %v1040 = vtanh.pop %v1026
  %v1041 = vxor.u32 %v1027, 2147483648
  %v1042 = vmul.f32 %v1041, 1.442695
  %v1043 = vpow.pop %v1042
  %v1044 = vadd.f32 %v1043, 1.0
  %v1045 = vrcp.pop %v1044
  %v1046 = vmul.f32 1.0, %v1045
  %v1047 = vmul.f32 %v1039, %v809
  %v1048 = vmul.f32 %v1033, %v1040
  %v1049 = vadd.f32 %v1047, %v1048
  %v1050 = vtanh.pop %v1049
  %v1051 = vmul.f32 %v1046, %v1050
  %s1052 = scalar_lea.vmem %s47, 80
  %v1053 = vld [vmem:[%s1052] sm:$0xff]
  %v1054 = vld [vmem:[%s1052 + $0x8] sm:$0xff]
  %v1055 = vunpack.c.l.bf16 %v1053
  %v1056 = vunpack.c.h.bf16 %v1053
  %v1057 = vunpack.c.l.bf16 %v1054
  %v1058 = vunpack.c.h.bf16 %v1054
  %1059 = vmatprep.subr.bf16.mxu0 %v545
  %1060 = vmatpush1.bf16.msra.mxu0 %v544
  %1061 = vmatprep.subr.bf16.mxu0 %v541
  %1062 = vmatpush1.bf16.msra.mxu0 %v540
  %1063 = vmatprep.subr.bf16.mxu0 %v537
  %1064 = vmatpush1.bf16.msra.mxu0 %v536
  %1065 = vmatprep.subr.bf16.mxu0 %v533
  %1066 = vmatpush1.bf16.msra.mxu0 %v532
  %1067 = vmatprep.subr.bf16.mxu0 %v529
  %1068 = vmatpush1.bf16.msra.mxu0 %v528
  %1069 = vmatprep.subr.bf16.mxu0 %v525
  %1070 = vmatpush1.bf16.msra.mxu0 %v524
  %1071 = vmatprep.subr.bf16.mxu0 %v521
  %1072 = vmatpush1.bf16.msra.mxu0 %v520
  %1073 = vmatprep.subr.bf16.mxu0 %v517
  %1074 = vmatpush1.bf16.msra.mxu0 %v516
  %1075 = vmatprep.subr.bf16.mxu0 0
  %1076 = vmatpush2.bf16.msra.mxu0 0
  %1077 = vmatprep.subr.bf16.mxu0 0
  %1078 = vmatpush2.bf16.msra.mxu0 0
  %1079 = vmatprep.subr.bf16.mxu0 0
  %1080 = vmatpush2.bf16.msra.mxu0 0
  %1081 = vmatprep.subr.bf16.mxu0 0
  %1082 = vmatpush2.bf16.msra.mxu0 0
  %1083 = vmatprep.subr.bf16.mxu0 0
  %1084 = vmatpush2.bf16.msra.mxu0 0
  %1085 = vmatprep.subr.bf16.mxu0 0
  %1086 = vmatpush2.bf16.msra.mxu0 0
  %1087 = vmatprep.subr.bf16.mxu0 0
  %1088 = vmatpush2.bf16.msra.mxu0 0
  %1089 = vmatprep.subr.bf16.mxu0 0
  %1090 = vmatpush2.bf16.msra.mxu0 0
  %1091 = vmatprep.mubr.bf16.mxu0 0
  %1092 = vmatmul.mubr.bf16.gmra.mxu0 %v932
  %v1093 = vpop.f32.mrf.mxu0
  %v1094 = vadd.f32 0.0, %v1093
  %v1095 = vpop.f32.mrf.mxu0
  %v1096 = vadd.f32 0.0, %v1095
  %v1097 = vpop.f32.mrf.mxu0
  %v1098 = vpop.f32.mrf.mxu0
  %1099 = vdwg.mxu0
  %1100 = vmatprep.subr.bf16.mxu0 %v547
  %1101 = vmatpush1.bf16.msra.mxu0 %v546
  %1102 = vmatprep.subr.bf16.mxu0 %v543
  %1103 = vmatpush1.bf16.msra.mxu0 %v542
  %1104 = vmatprep.subr.bf16.mxu0 %v539
  %1105 = vmatpush1.bf16.msra.mxu0 %v538
  %1106 = vmatprep.subr.bf16.mxu0 %v535
  %1107 = vmatpush1.bf16.msra.mxu0 %v534
  %1108 = vmatprep.subr.bf16.mxu0 %v531
  %1109 = vmatpush1.bf16.msra.mxu0 %v530
  %1110 = vmatprep.subr.bf16.mxu0 %v527
  %1111 = vmatpush1.bf16.msra.mxu0 %v526
  %1112 = vmatprep.subr.bf16.mxu0 %v523
  %1113 = vmatpush1.bf16.msra.mxu0 %v522
  %1114 = vmatprep.subr.bf16.mxu0 %v519
  %1115 = vmatpush1.bf16.msra.mxu0 %v518
  %1116 = vmatprep.subr.bf16.mxu0 0
  %1117 = vmatpush2.bf16.msra.mxu0 0
  %1118 = vmatprep.subr.bf16.mxu0 0
  %1119 = vmatpush2.bf16.msra.mxu0 0
  %1120 = vmatprep.subr.bf16.mxu0 0
  %1121 = vmatpush2.bf16.msra.mxu0 0
  %1122 = vmatprep.subr.bf16.mxu0 0
  %1123 = vmatpush2.bf16.msra.mxu0 0
  %1124 = vmatprep.subr.bf16.mxu0 0
  %1125 = vmatpush2.bf16.msra.mxu0 0
  %1126 = vmatprep.subr.bf16.mxu0 0
  %1127 = vmatpush2.bf16.msra.mxu0 0
  %1128 = vmatprep.subr.bf16.mxu0 0
  %1129 = vmatpush2.bf16.msra.mxu0 0
  %1130 = vmatprep.subr.bf16.mxu0 0
  %1131 = vmatpush2.bf16.msra.mxu0 0
  %1132 = vmatprep.mubr.bf16.mxu0 0
  %1133 = vmatmul.mubr.bf16.gmra.mxu0 %v932
  %v1134 = vpop.f32.mrf.mxu0
  %v1135 = vadd.f32 0.0, %v1134
  %v1136 = vpop.f32.mrf.mxu0
  %v1137 = vadd.f32 0.0, %v1136
  %v1138 = vpop.f32.mrf.mxu0
  %v1139 = vpop.f32.mrf.mxu0
  %1140 = vdwg.mxu0
  %v1141 = vadd.f32 %v1055, %v1094
  %v1142 = vadd.f32 %v1056, %v1096
  %v1143 = vadd.f32 %v1057, %v1135
  %v1144 = vadd.f32 %v1058, %v1137
  %v1145 = vxor.u32 %v1141, 2147483648
  %v1146 = vmul.f32 %v1145, 1.442695
  %v1147 = vpow.pop %v1146
  %v1148 = vadd.f32 %v1147, 1.0
  %v1149 = vrcp.pop %v1148
  %v1150 = vmul.f32 1.0, %v1149
  %v1151 = vxor.u32 %v1142, 2147483648
  %v1152 = vmul.f32 %v1151, 1.442695
  %v1153 = vpow.pop %v1152
  %v1154 = vadd.f32 %v1153, 1.0
  %v1155 = vrcp.pop %v1154
  %v1156 = vmul.f32 1.0, %v1155
  %v1157 = vtanh.pop %v1143
  %v1158 = vxor.u32 %v1144, 2147483648
  %v1159 = vmul.f32 %v1158, 1.442695
  %v1160 = vpow.pop %v1159
  %v1161 = vadd.f32 %v1160, 1.0
  %v1162 = vrcp.pop %v1161
  %v1163 = vmul.f32 1.0, %v1162
  %v1164 = vmul.f32 %v1156, %v926
  %v1165 = vmul.f32 %v1150, %v1157
  %v1166 = vadd.f32 %v1164, %v1165
  %v1167 = vtanh.pop %v1166
  %v1168 = vmul.f32 %v1163, %v1167
  %v1169 = vpack.c.bf16 %v1051, %v1051
  %s1170 = scalar_lea.vmem %s4, 8
  %1171 = vst [vmem:[%s1170] sm:$0xf] %v1169
  %v1172 = vpack.c.bf16 %v1168, %v1168
  %s1173 = scalar_lea.vmem %s55, 20
  %1174 = vst [vmem:[%s1173] sm:$0xf] %v1172
  %s1175 = scalar_lea.vmem %s0, 48
  %v1176 = vld [vmem:[%s1175] sm:$0xff]
  %v1177 = vld [vmem:[%s1175 + $0x8] sm:$0xff]
  %v1178 = vunpack.c.l.bf16 %v1176
  %v1179 = vunpack.c.h.bf16 %v1176
  %v1180 = vunpack.c.l.bf16 %v1177
  %v1181 = vunpack.c.h.bf16 %v1177
  %1182 = vmatprep.subr.bf16.mxu0 %v267
  %1183 = vmatpush1.bf16.msra.mxu0 %v266
  %1184 = vmatprep.subr.bf16.mxu0 %v263
  %1185 = vmatpush1.bf16.msra.mxu0 %v262
  %1186 = vmatprep.subr.bf16.mxu0 %v259
  %1187 = vmatpush1.bf16.msra.mxu0 %v258
  %1188 = vmatprep.subr.bf16.mxu0 %v255
  %1189 = vmatpush1.bf16.msra.mxu0 %v254
  %1190 = vmatprep.subr.bf16.mxu0 %v251
  %1191 = vmatpush1.bf16.msra.mxu0 %v250
  %1192 = vmatprep.subr.bf16.mxu0 %v247
  %1193 = vmatpush1.bf16.msra.mxu0 %v246
  %1194 = vmatprep.subr.bf16.mxu0 %v243
  %1195 = vmatpush1.bf16.msra.mxu0 %v242
  %1196 = vmatprep.subr.bf16.mxu0 %v239
  %1197 = vmatpush1.bf16.msra.mxu0 %v238
  %1198 = vmatprep.subr.bf16.mxu0 0
  %1199 = vmatpush2.bf16.msra.mxu0 0
  %1200 = vmatprep.subr.bf16.mxu0 0
  %1201 = vmatpush2.bf16.msra.mxu0 0
  %1202 = vmatprep.subr.bf16.mxu0 0
  %1203 = vmatpush2.bf16.msra.mxu0 0
  %1204 = vmatprep.subr.bf16.mxu0 0
  %1205 = vmatpush2.bf16.msra.mxu0 0
  %1206 = vmatprep.subr.bf16.mxu0 0
  %1207 = vmatpush2.bf16.msra.mxu0 0
  %1208 = vmatprep.subr.bf16.mxu0 0
  %1209 = vmatpush2.bf16.msra.mxu0 0
  %1210 = vmatprep.subr.bf16.mxu0 0
  %1211 = vmatpush2.bf16.msra.mxu0 0
  %1212 = vmatprep.subr.bf16.mxu0 0
  %1213 = vmatpush2.bf16.msra.mxu0 0
  %1214 = vmatprep.mubr.bf16.mxu0 0
  %1215 = vmatmul.mubr.bf16.gmra.mxu0 %v1169
  %v1216 = vpop.f32.mrf.mxu0
  %v1217 = vadd.f32 0.0, %v1216
  %v1218 = vpop.f32.mrf.mxu0
  %v1219 = vadd.f32 0.0, %v1218
  %v1220 = vpop.f32.mrf.mxu0
  %v1221 = vpop.f32.mrf.mxu0
  %1222 = vdwg.mxu0
  %1223 = vmatprep.subr.bf16.mxu0 %v269
  %1224 = vmatpush1.bf16.msra.mxu0 %v268
  %1225 = vmatprep.subr.bf16.mxu0 %v265
  %1226 = vmatpush1.bf16.msra.mxu0 %v264
  %1227 = vmatprep.subr.bf16.mxu0 %v261
  %1228 = vmatpush1.bf16.msra.mxu0 %v260
  %1229 = vmatprep.subr.bf16.mxu0 %v257
  %1230 = vmatpush1.bf16.msra.mxu0 %v256
  %1231 = vmatprep.subr.bf16.mxu0 %v253
  %1232 = vmatpush1.bf16.msra.mxu0 %v252
  %1233 = vmatprep.subr.bf16.mxu0 %v249
  %1234 = vmatpush1.bf16.msra.mxu0 %v248
  %1235 = vmatprep.subr.bf16.mxu0 %v245
  %1236 = vmatpush1.bf16.msra.mxu0 %v244
  %1237 = vmatprep.subr.bf16.mxu0 %v241
  %1238 = vmatpush1.bf16.msra.mxu0 %v240
  %1239 = vmatprep.subr.bf16.mxu0 0
  %1240 = vmatpush2.bf16.msra.mxu0 0
  %1241 = vmatprep.subr.bf16.mxu0 0
  %1242 = vmatpush2.bf16.msra.mxu0 0
  %1243 = vmatprep.subr.bf16.mxu0 0
  %1244 = vmatpush2.bf16.msra.mxu0 0
  %1245 = vmatprep.subr.bf16.mxu0 0
  %1246 = vmatpush2.bf16.msra.mxu0 0
  %1247 = vmatprep.subr.bf16.mxu0 0
  %1248 = vmatpush2.bf16.msra.mxu0 0
  %1249 = vmatprep.subr.bf16.mxu0 0
  %1250 = vmatpush2.bf16.msra.mxu0 0
  %1251 = vmatprep.subr.bf16.mxu0 0
  %1252 = vmatpush2.bf16.msra.mxu0 0
  %1253 = vmatprep.subr.bf16.mxu0 0
  %1254 = vmatpush2.bf16.msra.mxu0 0
  %1255 = vmatprep.mubr.bf16.mxu0 0
  %1256 = vmatmul.mubr.bf16.gmra.mxu0 %v1169
  %v1257 = vpop.f32.mrf.mxu0
  %v1258 = vadd.f32 0.0, %v1257
  %v1259 = vpop.f32.mrf.mxu0
  %v1260 = vadd.f32 0.0, %v1259
  %v1261 = vpop.f32.mrf.mxu0
  %v1262 = vpop.f32.mrf.mxu0
  %1263 = vdwg.mxu0
  %v1264 = vadd.f32 %v1178, %v1217
  %v1265 = vadd.f32 %v1179, %v1219
  %v1266 = vadd.f32 %v1180, %v1258
  %v1267 = vadd.f32 %v1181, %v1260
  %v1268 = vxor.u32 %v1264, 2147483648
  %v1269 = vmul.f32 %v1268, 1.442695
  %v1270 = vpow.pop %v1269
  %v1271 = vadd.f32 %v1270, 1.0
  %v1272 = vrcp.pop %v1271
  %v1273 = vmul.f32 1.0, %v1272
  %v1274 = vxor.u32 %v1265, 2147483648
  %v1275 = vmul.f32 %v1274, 1.442695
  %v1276 = vpow.pop %v1275
  %v1277 = vadd.f32 %v1276, 1.0
  %v1278 = vrcp.pop %v1277
  %v1279 = vmul.f32 1.0, %v1278
  %v1280 = vtanh.pop %v1266
  %v1281 = vxor.u32 %v1267, 2147483648
  %v1282 = vmul.f32 %v1281, 1.442695
  %v1283 = vpow.pop %v1282
  %v1284 = vadd.f32 %v1283, 1.0
  %v1285 = vrcp.pop %v1284
  %v1286 = vmul.f32 1.0, %v1285
  %v1287 = vmul.f32 %v1279, %v1049
  %v1288 = vmul.f32 %v1273, %v1280
  %v1289 = vadd.f32 %v1287, %v1288
  %v1290 = vtanh.pop %v1289
  %v1291 = vmul.f32 %v1286, %v1290
  %s1292 = scalar_lea.vmem %s47, 64
  %v1293 = vld [vmem:[%s1292] sm:$0xff]
  %v1294 = vld [vmem:[%s1292 + $0x8] sm:$0xff]
  %v1295 = vunpack.c.l.bf16 %v1293
  %v1296 = vunpack.c.h.bf16 %v1293
  %v1297 = vunpack.c.l.bf16 %v1294
  %v1298 = vunpack.c.h.bf16 %v1294
  %1299 = vmatprep.subr.bf16.mxu0 %v545
  %1300 = vmatpush1.bf16.msra.mxu0 %v544
  %1301 = vmatprep.subr.bf16.mxu0 %v541
  %1302 = vmatpush1.bf16.msra.mxu0 %v540
  %1303 = vmatprep.subr.bf16.mxu0 %v537
  %1304 = vmatpush1.bf16.msra.mxu0 %v536
  %1305 = vmatprep.subr.bf16.mxu0 %v533
  %1306 = vmatpush1.bf16.msra.mxu0 %v532
  %1307 = vmatprep.subr.bf16.mxu0 %v529
  %1308 = vmatpush1.bf16.msra.mxu0 %v528
  %1309 = vmatprep.subr.bf16.mxu0 %v525
  %1310 = vmatpush1.bf16.msra.mxu0 %v524
  %1311 = vmatprep.subr.bf16.mxu0 %v521
  %1312 = vmatpush1.bf16.msra.mxu0 %v520
  %1313 = vmatprep.subr.bf16.mxu0 %v517
  %1314 = vmatpush1.bf16.msra.mxu0 %v516
  %1315 = vmatprep.subr.bf16.mxu0 0
  %1316 = vmatpush2.bf16.msra.mxu0 0
  %1317 = vmatprep.subr.bf16.mxu0 0
  %1318 = vmatpush2.bf16.msra.mxu0 0
  %1319 = vmatprep.subr.bf16.mxu0 0
  %1320 = vmatpush2.bf16.msra.mxu0 0
  %1321 = vmatprep.subr.bf16.mxu0 0
  %1322 = vmatpush2.bf16.msra.mxu0 0
  %1323 = vmatprep.subr.bf16.mxu0 0
  %1324 = vmatpush2.bf16.msra.mxu0 0
  %1325 = vmatprep.subr.bf16.mxu0 0
  %1326 = vmatpush2.bf16.msra.mxu0 0
  %1327 = vmatprep.subr.bf16.mxu0 0
  %1328 = vmatpush2.bf16.msra.mxu0 0
  %1329 = vmatprep.subr.bf16.mxu0 0
  %1330 = vmatpush2.bf16.msra.mxu0 0
  %1331 = vmatprep.mubr.bf16.mxu0 0
  %1332 = vmatmul.mubr.bf16.gmra.mxu0 %v1172
  %v1333 = vpop.f32.mrf.mxu0
  %v1334 = vadd.f32 0.0, %v1333
  %v1335 = vpop.f32.mrf.mxu0
  %v1336 = vadd.f32 0.0, %v1335
  %v1337 = vpop.f32.mrf.mxu0
  %v1338 = vpop.f32.mrf.mxu0
  %1339 = vdwg.mxu0
  %1340 = vmatprep.subr.bf16.mxu0 %v547
  %1341 = vmatpush1.bf16.msra.mxu0 %v546
  %1342 = vmatprep.subr.bf16.mxu0 %v543
  %1343 = vmatpush1.bf16.msra.mxu0 %v542
  %1344 = vmatprep.subr.bf16.mxu0 %v539
  %1345 = vmatpush1.bf16.msra.mxu0 %v538
  %1346 = vmatprep.subr.bf16.mxu0 %v535
  %1347 = vmatpush1.bf16.msra.mxu0 %v534
  %1348 = vmatprep.subr.bf16.mxu0 %v531
  %1349 = vmatpush1.bf16.msra.mxu0 %v530
  %1350 = vmatprep.subr.bf16.mxu0 %v527
  %1351 = vmatpush1.bf16.msra.mxu0 %v526
  %1352 = vmatprep.subr.bf16.mxu0 %v523
  %1353 = vmatpush1.bf16.msra.mxu0 %v522
  %1354 = vmatprep.subr.bf16.mxu0 %v519
  %1355 = vmatpush1.bf16.msra.mxu0 %v518
  %1356 = vmatprep.subr.bf16.mxu0 0
  %1357 = vmatpush2.bf16.msra.mxu0 0
  %1358 = vmatprep.subr.bf16.mxu0 0
  %1359 = vmatpush2.bf16.msra.mxu0 0
  %1360 = vmatprep.subr.bf16.mxu0 0
  %1361 = vmatpush2.bf16.msra.mxu0 0
  %1362 = vmatprep.subr.bf16.mxu0 0
  %1363 = vmatpush2.bf16.msra.mxu0 0
  %1364 = vmatprep.subr.bf16.mxu0 0
  %1365 = vmatpush2.bf16.msra.mxu0 0
  %1366 = vmatprep.subr.bf16.mxu0 0
  %1367 = vmatpush2.bf16.msra.mxu0 0
  %1368 = vmatprep.subr.bf16.mxu0 0
  %1369 = vmatpush2.bf16.msra.mxu0 0
  %1370 = vmatprep.subr.bf16.mxu0 0
  %1371 = vmatpush2.bf16.msra.mxu0 0
  %1372 = vmatprep.mubr.bf16.mxu0 0
  %1373 = vmatmul.mubr.bf16.gmra.mxu0 %v1172
  %v1374 = vpop.f32.mrf.mxu0
  %v1375 = vadd.f32 0.0, %v1374
  %v1376 = vpop.f32.mrf.mxu0
  %v1377 = vadd.f32 0.0, %v1376
  %v1378 = vpop.f32.mrf.mxu0
  %v1379 = vpop.f32.mrf.mxu0
  %1380 = vdwg.mxu0
  %v1381 = vadd.f32 %v1295, %v1334
  %v1382 = vadd.f32 %v1296, %v1336
  %v1383 = vadd.f32 %v1297, %v1375
  %v1384 = vadd.f32 %v1298, %v1377
  %v1385 = vxor.u32 %v1381, 2147483648
  %v1386 = vmul.f32 %v1385, 1.442695
  %v1387 = vpow.pop %v1386
  %v1388 = vadd.f32 %v1387, 1.0
  %v1389 = vrcp.pop %v1388
  %v1390 = vmul.f32 1.0, %v1389
  %v1391 = vxor.u32 %v1382, 2147483648
  %v1392 = vmul.f32 %v1391, 1.442695
  %v1393 = vpow.pop %v1392
  %v1394 = vadd.f32 %v1393, 1.0
  %v1395 = vrcp.pop %v1394
  %v1396 = vmul.f32 1.0, %v1395
  %v1397 = vtanh.pop %v1383
  %v1398 = vxor.u32 %v1384, 2147483648
  %v1399 = vmul.f32 %v1398, 1.442695
  %v1400 = vpow.pop %v1399
  %v1401 = vadd.f32 %v1400, 1.0
  %v1402 = vrcp.pop %v1401
  %v1403 = vmul.f32 1.0, %v1402
  %v1404 = vmul.f32 %v1396, %v1166
  %v1405 = vmul.f32 %v1390, %v1397
  %v1406 = vadd.f32 %v1404, %v1405
  %v1407 = vtanh.pop %v1406
  %v1408 = vmul.f32 %v1403, %v1407
  %v1409 = vpack.c.bf16 %v1291, %v1291
  %s1410 = scalar_lea.vmem %s4, 12
  %1411 = vst [vmem:[%s1410] sm:$0xf] %v1409
  %v1412 = vpack.c.bf16 %v1408, %v1408
  %s1413 = scalar_lea.vmem %s55, 16
  %1414 = vst [vmem:[%s1413] sm:$0xf] %v1412
  %s1415 = scalar_lea.vmem %s0, 64
  %v1416 = vld [vmem:[%s1415] sm:$0xff]
  %v1417 = vld [vmem:[%s1415 + $0x8] sm:$0xff]
  %v1418 = vunpack.c.l.bf16 %v1416
  %v1419 = vunpack.c.h.bf16 %v1416
  %v1420 = vunpack.c.l.bf16 %v1417
  %v1421 = vunpack.c.h.bf16 %v1417
  %1422 = vmatprep.subr.bf16.mxu0 %v267
  %1423 = vmatpush1.bf16.msra.mxu0 %v266
  %1424 = vmatprep.subr.bf16.mxu0 %v263
  %1425 = vmatpush1.bf16.msra.mxu0 %v262
  %1426 = vmatprep.subr.bf16.mxu0 %v259
  %1427 = vmatpush1.bf16.msra.mxu0 %v258
  %1428 = vmatprep.subr.bf16.mxu0 %v255
  %1429 = vmatpush1.bf16.msra.mxu0 %v254
  %1430 = vmatprep.subr.bf16.mxu0 %v251
  %1431 = vmatpush1.bf16.msra.mxu0 %v250
  %1432 = vmatprep.subr.bf16.mxu0 %v247
  %1433 = vmatpush1.bf16.msra.mxu0 %v246
  %1434 = vmatprep.subr.bf16.mxu0 %v243
  %1435 = vmatpush1.bf16.msra.mxu0 %v242
  %1436 = vmatprep.subr.bf16.mxu0 %v239
  %1437 = vmatpush1.bf16.msra.mxu0 %v238
  %1438 = vmatprep.subr.bf16.mxu0 0
  %1439 = vmatpush2.bf16.msra.mxu0 0
  %1440 = vmatprep.subr.bf16.mxu0 0
  %1441 = vmatpush2.bf16.msra.mxu0 0
  %1442 = vmatprep.subr.bf16.mxu0 0
  %1443 = vmatpush2.bf16.msra.mxu0 0
  %1444 = vmatprep.subr.bf16.mxu0 0
  %1445 = vmatpush2.bf16.msra.mxu0 0
  %1446 = vmatprep.subr.bf16.mxu0 0
  %1447 = vmatpush2.bf16.msra.mxu0 0
  %1448 = vmatprep.subr.bf16.mxu0 0
  %1449 = vmatpush2.bf16.msra.mxu0 0
  %1450 = vmatprep.subr.bf16.mxu0 0
  %1451 = vmatpush2.bf16.msra.mxu0 0
  %1452 = vmatprep.subr.bf16.mxu0 0
  %1453 = vmatpush2.bf16.msra.mxu0 0
  %1454 = vmatprep.mubr.bf16.mxu0 0
  %1455 = vmatmul.mubr.bf16.gmra.mxu0 %v1409
  %v1456 = vpop.f32.mrf.mxu0
  %v1457 = vadd.f32 0.0, %v1456
  %v1458 = vpop.f32.mrf.mxu0
  %v1459 = vadd.f32 0.0, %v1458
  %v1460 = vpop.f32.mrf.mxu0
  %v1461 = vpop.f32.mrf.mxu0
  %1462 = vdwg.mxu0
  %1463 = vmatprep.subr.bf16.mxu0 %v269
  %1464 = vmatpush1.bf16.msra.mxu0 %v268
  %1465 = vmatprep.subr.bf16.mxu0 %v265
  %1466 = vmatpush1.bf16.msra.mxu0 %v264
  %1467 = vmatprep.subr.bf16.mxu0 %v261
  %1468 = vmatpush1.bf16.msra.mxu0 %v260
  %1469 = vmatprep.subr.bf16.mxu0 %v257
  %1470 = vmatpush1.bf16.msra.mxu0 %v256
  %1471 = vmatprep.subr.bf16.mxu0 %v253
  %1472 = vmatpush1.bf16.msra.mxu0 %v252
  %1473 = vmatprep.subr.bf16.mxu0 %v249
  %1474 = vmatpush1.bf16.msra.mxu0 %v248
  %1475 = vmatprep.subr.bf16.mxu0 %v245
  %1476 = vmatpush1.bf16.msra.mxu0 %v244
  %1477 = vmatprep.subr.bf16.mxu0 %v241
  %1478 = vmatpush1.bf16.msra.mxu0 %v240
  %1479 = vmatprep.subr.bf16.mxu0 0
  %1480 = vmatpush2.bf16.msra.mxu0 0
  %1481 = vmatprep.subr.bf16.mxu0 0
  %1482 = vmatpush2.bf16.msra.mxu0 0
  %1483 = vmatprep.subr.bf16.mxu0 0
  %1484 = vmatpush2.bf16.msra.mxu0 0
  %1485 = vmatprep.subr.bf16.mxu0 0
  %1486 = vmatpush2.bf16.msra.mxu0 0
  %1487 = vmatprep.subr.bf16.mxu0 0
  %1488 = vmatpush2.bf16.msra.mxu0 0
  %1489 = vmatprep.subr.bf16.mxu0 0
  %1490 = vmatpush2.bf16.msra.mxu0 0
  %1491 = vmatprep.subr.bf16.mxu0 0
  %1492 = vmatpush2.bf16.msra.mxu0 0
  %1493 = vmatprep.subr.bf16.mxu0 0
  %1494 = vmatpush2.bf16.msra.mxu0 0
  %1495 = vmatprep.mubr.bf16.mxu0 0
  %1496 = vmatmul.mubr.bf16.gmra.mxu0 %v1409
  %v1497 = vpop.f32.mrf.mxu0
  %v1498 = vadd.f32 0.0, %v1497
  %v1499 = vpop.f32.mrf.mxu0
  %v1500 = vadd.f32 0.0, %v1499
  %v1501 = vpop.f32.mrf.mxu0
  %v1502 = vpop.f32.mrf.mxu0
  %1503 = vdwg.mxu0
  %v1504 = vadd.f32 %v1418, %v1457
  %v1505 = vadd.f32 %v1419, %v1459
  %v1506 = vadd.f32 %v1420, %v1498
  %v1507 = vadd.f32 %v1421, %v1500
  %v1508 = vxor.u32 %v1504, 2147483648
  %v1509 = vmul.f32 %v1508, 1.442695
  %v1510 = vpow.pop %v1509
  %v1511 = vadd.f32 %v1510, 1.0
  %v1512 = vrcp.pop %v1511
  %v1513 = vmul.f32 1.0, %v1512
  %v1514 = vxor.u32 %v1505, 2147483648
  %v1515 = vmul.f32 %v1514, 1.442695
  %v1516 = vpow.pop %v1515
  %v1517 = vadd.f32 %v1516, 1.0
  %v1518 = vrcp.pop %v1517
  %v1519 = vmul.f32 1.0, %v1518
  %v1520 = vtanh.pop %v1506
  %v1521 = vxor.u32 %v1507, 2147483648
  %v1522 = vmul.f32 %v1521, 1.442695
  %v1523 = vpow.pop %v1522
  %v1524 = vadd.f32 %v1523, 1.0
  %v1525 = vrcp.pop %v1524
  %v1526 = vmul.f32 1.0, %v1525
  %v1527 = vmul.f32 %v1519, %v1289
  %v1528 = vmul.f32 %v1513, %v1520
  %v1529 = vadd.f32 %v1527, %v1528
  %v1530 = vtanh.pop %v1529
  %v1531 = vmul.f32 %v1526, %v1530
  %s1532 = scalar_lea.vmem %s47, 48
  %v1533 = vld [vmem:[%s1532] sm:$0xff]
  %v1534 = vld [vmem:[%s1532 + $0x8] sm:$0xff]
  %v1535 = vunpack.c.l.bf16 %v1533
  %v1536 = vunpack.c.h.bf16 %v1533
  %v1537 = vunpack.c.l.bf16 %v1534
  %v1538 = vunpack.c.h.bf16 %v1534
  %1539 = vmatprep.subr.bf16.mxu0 %v545
  %1540 = vmatpush1.bf16.msra.mxu0 %v544
  %1541 = vmatprep.subr.bf16.mxu0 %v541
  %1542 = vmatpush1.bf16.msra.mxu0 %v540
  %1543 = vmatprep.subr.bf16.mxu0 %v537
  %1544 = vmatpush1.bf16.msra.mxu0 %v536
  %1545 = vmatprep.subr.bf16.mxu0 %v533
  %1546 = vmatpush1.bf16.msra.mxu0 %v532
  %1547 = vmatprep.subr.bf16.mxu0 %v529
  %1548 = vmatpush1.bf16.msra.mxu0 %v528
  %1549 = vmatprep.subr.bf16.mxu0 %v525
  %1550 = vmatpush1.bf16.msra.mxu0 %v524
  %1551 = vmatprep.subr.bf16.mxu0 %v521
  %1552 = vmatpush1.bf16.msra.mxu0 %v520
  %1553 = vmatprep.subr.bf16.mxu0 %v517
  %1554 = vmatpush1.bf16.msra.mxu0 %v516
  %1555 = vmatprep.subr.bf16.mxu0 0
  %1556 = vmatpush2.bf16.msra.mxu0 0
  %1557 = vmatprep.subr.bf16.mxu0 0
  %1558 = vmatpush2.bf16.msra.mxu0 0
  %1559 = vmatprep.subr.bf16.mxu0 0
  %1560 = vmatpush2.bf16.msra.mxu0 0
  %1561 = vmatprep.subr.bf16.mxu0 0
  %1562 = vmatpush2.bf16.msra.mxu0 0
  %1563 = vmatprep.subr.bf16.mxu0 0
  %1564 = vmatpush2.bf16.msra.mxu0 0
  %1565 = vmatprep.subr.bf16.mxu0 0
  %1566 = vmatpush2.bf16.msra.mxu0 0
  %1567 = vmatprep.subr.bf16.mxu0 0
  %1568 = vmatpush2.bf16.msra.mxu0 0
  %1569 = vmatprep.subr.bf16.mxu0 0
  %1570 = vmatpush2.bf16.msra.mxu0 0
  %1571 = vmatprep.mubr.bf16.mxu0 0
  %1572 = vmatmul.mubr.bf16.gmra.mxu0 %v1412
  %v1573 = vpop.f32.mrf.mxu0
  %v1574 = vadd.f32 0.0, %v1573
  %v1575 = vpop.f32.mrf.mxu0
  %v1576 = vadd.f32 0.0, %v1575
  %v1577 = vpop.f32.mrf.mxu0
  %v1578 = vpop.f32.mrf.mxu0
  %1579 = vdwg.mxu0
  %1580 = vmatprep.subr.bf16.mxu0 %v547
  %1581 = vmatpush1.bf16.msra.mxu0 %v546
  %1582 = vmatprep.subr.bf16.mxu0 %v543
  %1583 = vmatpush1.bf16.msra.mxu0 %v542
  %1584 = vmatprep.subr.bf16.mxu0 %v539
  %1585 = vmatpush1.bf16.msra.mxu0 %v538
  %1586 = vmatprep.subr.bf16.mxu0 %v535
  %1587 = vmatpush1.bf16.msra.mxu0 %v534
  %1588 = vmatprep.subr.bf16.mxu0 %v531
  %1589 = vmatpush1.bf16.msra.mxu0 %v530
  %1590 = vmatprep.subr.bf16.mxu0 %v527
  %1591 = vmatpush1.bf16.msra.mxu0 %v526
  %1592 = vmatprep.subr.bf16.mxu0 %v523
  %1593 = vmatpush1.bf16.msra.mxu0 %v522
  %1594 = vmatprep.subr.bf16.mxu0 %v519
  %1595 = vmatpush1.bf16.msra.mxu0 %v518
  %1596 = vmatprep.subr.bf16.mxu0 0
  %1597 = vmatpush2.bf16.msra.mxu0 0
  %1598 = vmatprep.subr.bf16.mxu0 0
  %1599 = vmatpush2.bf16.msra.mxu0 0
  %1600 = vmatprep.subr.bf16.mxu0 0
  %1601 = vmatpush2.bf16.msra.mxu0 0
  %1602 = vmatprep.subr.bf16.mxu0 0
  %1603 = vmatpush2.bf16.msra.mxu0 0
  %1604 = vmatprep.subr.bf16.mxu0 0
  %1605 = vmatpush2.bf16.msra.mxu0 0
  %1606 = vmatprep.subr.bf16.mxu0 0
  %1607 = vmatpush2.bf16.msra.mxu0 0
  %1608 = vmatprep.subr.bf16.mxu0 0
  %1609 = vmatpush2.bf16.msra.mxu0 0
  %1610 = vmatprep.subr.bf16.mxu0 0
  %1611 = vmatpush2.bf16.msra.mxu0 0
  %1612 = vmatprep.mubr.bf16.mxu0 0
  %1613 = vmatmul.mubr.bf16.gmra.mxu0 %v1412
  %v1614 = vpop.f32.mrf.mxu0
  %v1615 = vadd.f32 0.0, %v1614
  %v1616 = vpop.f32.mrf.mxu0
  %v1617 = vadd.f32 0.0, %v1616
  %v1618 = vpop.f32.mrf.mxu0
  %v1619 = vpop.f32.mrf.mxu0
  %1620 = vdwg.mxu0
  %v1621 = vadd.f32 %v1535, %v1574
  %v1622 = vadd.f32 %v1536, %v1576
  %v1623 = vadd.f32 %v1537, %v1615
  %v1624 = vadd.f32 %v1538, %v1617
  %v1625 = vxor.u32 %v1621, 2147483648
  %v1626 = vmul.f32 %v1625, 1.442695
  %v1627 = vpow.pop %v1626
  %v1628 = vadd.f32 %v1627, 1.0
  %v1629 = vrcp.pop %v1628
  %v1630 = vmul.f32 1.0, %v1629
  %v1631 = vxor.u32 %v1622, 2147483648
  %v1632 = vmul.f32 %v1631, 1.442695
  %v1633 = vpow.pop %v1632
  %v1634 = vadd.f32 %v1633, 1.0
  %v1635 = vrcp.pop %v1634
  %v1636 = vmul.f32 1.0, %v1635
  %v1637 = vtanh.pop %v1623
  %v1638 = vxor.u32 %v1624, 2147483648
  %v1639 = vmul.f32 %v1638, 1.442695
  %v1640 = vpow.pop %v1639
  %v1641 = vadd.f32 %v1640, 1.0
  %v1642 = vrcp.pop %v1641
  %v1643 = vmul.f32 1.0, %v1642
  %v1644 = vmul.f32 %v1636, %v1406
  %v1645 = vmul.f32 %v1630, %v1637
  %v1646 = vadd.f32 %v1644, %v1645
  %v1647 = vtanh.pop %v1646
  %v1648 = vmul.f32 %v1643, %v1647
  %v1649 = vpack.c.bf16 %v1531, %v1531
  %s1650 = scalar_lea.vmem %s4, 16
  %1651 = vst [vmem:[%s1650] sm:$0xf] %v1649
  %v1652 = vpack.c.bf16 %v1648, %v1648
  %s1653 = scalar_lea.vmem %s55, 12
  %1654 = vst [vmem:[%s1653] sm:$0xf] %v1652
  %s1655 = scalar_lea.vmem %s0, 80
  %v1656 = vld [vmem:[%s1655] sm:$0xff]
  %v1657 = vld [vmem:[%s1655 + $0x8] sm:$0xff]
  %v1658 = vunpack.c.l.bf16 %v1656
  %v1659 = vunpack.c.h.bf16 %v1656
  %v1660 = vunpack.c.l.bf16 %v1657
  %v1661 = vunpack.c.h.bf16 %v1657
  %1662 = vmatprep.subr.bf16.mxu0 %v267
  %1663 = vmatpush1.bf16.msra.mxu0 %v266
  %1664 = vmatprep.subr.bf16.mxu0 %v263
  %1665 = vmatpush1.bf16.msra.mxu0 %v262
  %1666 = vmatprep.subr.bf16.mxu0 %v259
  %1667 = vmatpush1.bf16.msra.mxu0 %v258
  %1668 = vmatprep.subr.bf16.mxu0 %v255
  %1669 = vmatpush1.bf16.msra.mxu0 %v254
  %1670 = vmatprep.subr.bf16.mxu0 %v251
  %1671 = vmatpush1.bf16.msra.mxu0 %v250
  %1672 = vmatprep.subr.bf16.mxu0 %v247
  %1673 = vmatpush1.bf16.msra.mxu0 %v246
  %1674 = vmatprep.subr.bf16.mxu0 %v243
  %1675 = vmatpush1.bf16.msra.mxu0 %v242
  %1676 = vmatprep.subr.bf16.mxu0 %v239
  %1677 = vmatpush1.bf16.msra.mxu0 %v238
  %1678 = vmatprep.subr.bf16.mxu0 0
  %1679 = vmatpush2.bf16.msra.mxu0 0
  %1680 = vmatprep.subr.bf16.mxu0 0
  %1681 = vmatpush2.bf16.msra.mxu0 0
  %1682 = vmatprep.subr.bf16.mxu0 0
  %1683 = vmatpush2.bf16.msra.mxu0 0
  %1684 = vmatprep.subr.bf16.mxu0 0
  %1685 = vmatpush2.bf16.msra.mxu0 0
  %1686 = vmatprep.subr.bf16.mxu0 0
  %1687 = vmatpush2.bf16.msra.mxu0 0
  %1688 = vmatprep.subr.bf16.mxu0 0
  %1689 = vmatpush2.bf16.msra.mxu0 0
  %1690 = vmatprep.subr.bf16.mxu0 0
  %1691 = vmatpush2.bf16.msra.mxu0 0
  %1692 = vmatprep.subr.bf16.mxu0 0
  %1693 = vmatpush2.bf16.msra.mxu0 0
  %1694 = vmatprep.mubr.bf16.mxu0 0
  %1695 = vmatmul.mubr.bf16.gmra.mxu0 %v1649
  %v1696 = vpop.f32.mrf.mxu0
  %v1697 = vadd.f32 0.0, %v1696
  %v1698 = vpop.f32.mrf.mxu0
  %v1699 = vadd.f32 0.0, %v1698
  %v1700 = vpop.f32.mrf.mxu0
  %v1701 = vpop.f32.mrf.mxu0
  %1702 = vdwg.mxu0
  %1703 = vmatprep.subr.bf16.mxu0 %v269
  %1704 = vmatpush1.bf16.msra.mxu0 %v268
  %1705 = vmatprep.subr.bf16.mxu0 %v265
  %1706 = vmatpush1.bf16.msra.mxu0 %v264
  %1707 = vmatprep.subr.bf16.mxu0 %v261
  %1708 = vmatpush1.bf16.msra.mxu0 %v260
  %1709 = vmatprep.subr.bf16.mxu0 %v257
  %1710 = vmatpush1.bf16.msra.mxu0 %v256
  %1711 = vmatprep.subr.bf16.mxu0 %v253
  %1712 = vmatpush1.bf16.msra.mxu0 %v252
  %1713 = vmatprep.subr.bf16.mxu0 %v249
  %1714 = vmatpush1.bf16.msra.mxu0 %v248
  %1715 = vmatprep.subr.bf16.mxu0 %v245
  %1716 = vmatpush1.bf16.msra.mxu0 %v244
  %1717 = vmatprep.subr.bf16.mxu0 %v241
  %1718 = vmatpush1.bf16.msra.mxu0 %v240
  %1719 = vmatprep.subr.bf16.mxu0 0
  %1720 = vmatpush2.bf16.msra.mxu0 0
  %1721 = vmatprep.subr.bf16.mxu0 0
  %1722 = vmatpush2.bf16.msra.mxu0 0
  %1723 = vmatprep.subr.bf16.mxu0 0
  %1724 = vmatpush2.bf16.msra.mxu0 0
  %1725 = vmatprep.subr.bf16.mxu0 0
  %1726 = vmatpush2.bf16.msra.mxu0 0
  %1727 = vmatprep.subr.bf16.mxu0 0
  %1728 = vmatpush2.bf16.msra.mxu0 0
  %1729 = vmatprep.subr.bf16.mxu0 0
  %1730 = vmatpush2.bf16.msra.mxu0 0
  %1731 = vmatprep.subr.bf16.mxu0 0
  %1732 = vmatpush2.bf16.msra.mxu0 0
  %1733 = vmatprep.subr.bf16.mxu0 0
  %1734 = vmatpush2.bf16.msra.mxu0 0
  %1735 = vmatprep.mubr.bf16.mxu0 0
  %1736 = vmatmul.mubr.bf16.gmra.mxu0 %v1649
  %v1737 = vpop.f32.mrf.mxu0
  %v1738 = vadd.f32 0.0, %v1737
  %v1739 = vpop.f32.mrf.mxu0
  %v1740 = vadd.f32 0.0, %v1739
  %v1741 = vpop.f32.mrf.mxu0
  %v1742 = vpop.f32.mrf.mxu0
  %1743 = vdwg.mxu0
  %v1744 = vadd.f32 %v1658, %v1697
  %v1745 = vadd.f32 %v1659, %v1699
  %v1746 = vadd.f32 %v1660, %v1738
  %v1747 = vadd.f32 %v1661, %v1740
  %v1748 = vxor.u32 %v1744, 2147483648
  %v1749 = vmul.f32 %v1748, 1.442695
  %v1750 = vpow.pop %v1749
  %v1751 = vadd.f32 %v1750, 1.0
  %v1752 = vrcp.pop %v1751
  %v1753 = vmul.f32 1.0, %v1752
  %v1754 = vxor.u32 %v1745, 2147483648
  %v1755 = vmul.f32 %v1754, 1.442695
  %v1756 = vpow.pop %v1755
  %v1757 = vadd.f32 %v1756, 1.0
  %v1758 = vrcp.pop %v1757
  %v1759 = vmul.f32 1.0, %v1758
  %v1760 = vtanh.pop %v1746
  %v1761 = vxor.u32 %v1747, 2147483648
  %v1762 = vmul.f32 %v1761, 1.442695
  %v1763 = vpow.pop %v1762
  %v1764 = vadd.f32 %v1763, 1.0
  %v1765 = vrcp.pop %v1764
  %v1766 = vmul.f32 1.0, %v1765
  %v1767 = vmul.f32 %v1759, %v1529
  %v1768 = vmul.f32 %v1753, %v1760
  %v1769 = vadd.f32 %v1767, %v1768
  %v1770 = vtanh.pop %v1769
  %v1771 = vmul.f32 %v1766, %v1770
  %s1772 = scalar_lea.vmem %s47, 32
  %v1773 = vld [vmem:[%s1772] sm:$0xff]
  %v1774 = vld [vmem:[%s1772 + $0x8] sm:$0xff]
  %v1775 = vunpack.c.l.bf16 %v1773
  %v1776 = vunpack.c.h.bf16 %v1773
  %v1777 = vunpack.c.l.bf16 %v1774
  %v1778 = vunpack.c.h.bf16 %v1774
  %1779 = vmatprep.subr.bf16.mxu0 %v545
  %1780 = vmatpush1.bf16.msra.mxu0 %v544
  %1781 = vmatprep.subr.bf16.mxu0 %v541
  %1782 = vmatpush1.bf16.msra.mxu0 %v540
  %1783 = vmatprep.subr.bf16.mxu0 %v537
  %1784 = vmatpush1.bf16.msra.mxu0 %v536
  %1785 = vmatprep.subr.bf16.mxu0 %v533
  %1786 = vmatpush1.bf16.msra.mxu0 %v532
  %1787 = vmatprep.subr.bf16.mxu0 %v529
  %1788 = vmatpush1.bf16.msra.mxu0 %v528
  %1789 = vmatprep.subr.bf16.mxu0 %v525
  %1790 = vmatpush1.bf16.msra.mxu0 %v524
  %1791 = vmatprep.subr.bf16.mxu0 %v521
  %1792 = vmatpush1.bf16.msra.mxu0 %v520
  %1793 = vmatprep.subr.bf16.mxu0 %v517
  %1794 = vmatpush1.bf16.msra.mxu0 %v516
  %1795 = vmatprep.subr.bf16.mxu0 0
  %1796 = vmatpush2.bf16.msra.mxu0 0
  %1797 = vmatprep.subr.bf16.mxu0 0
  %1798 = vmatpush2.bf16.msra.mxu0 0
  %1799 = vmatprep.subr.bf16.mxu0 0
  %1800 = vmatpush2.bf16.msra.mxu0 0
  %1801 = vmatprep.subr.bf16.mxu0 0
  %1802 = vmatpush2.bf16.msra.mxu0 0
  %1803 = vmatprep.subr.bf16.mxu0 0
  %1804 = vmatpush2.bf16.msra.mxu0 0
  %1805 = vmatprep.subr.bf16.mxu0 0
  %1806 = vmatpush2.bf16.msra.mxu0 0
  %1807 = vmatprep.subr.bf16.mxu0 0
  %1808 = vmatpush2.bf16.msra.mxu0 0
  %1809 = vmatprep.subr.bf16.mxu0 0
  %1810 = vmatpush2.bf16.msra.mxu0 0
  %1811 = vmatprep.mubr.bf16.mxu0 0
  %1812 = vmatmul.mubr.bf16.gmra.mxu0 %v1652
  %v1813 = vpop.f32.mrf.mxu0
  %v1814 = vadd.f32 0.0, %v1813
  %v1815 = vpop.f32.mrf.mxu0
  %v1816 = vadd.f32 0.0, %v1815
  %v1817 = vpop.f32.mrf.mxu0
  %v1818 = vpop.f32.mrf.mxu0
  %1819 = vdwg.mxu0
  %1820 = vmatprep.subr.bf16.mxu0 %v547
  %1821 = vmatpush1.bf16.msra.mxu0 %v546
  %1822 = vmatprep.subr.bf16.mxu0 %v543
  %1823 = vmatpush1.bf16.msra.mxu0 %v542
  %1824 = vmatprep.subr.bf16.mxu0 %v539
  %1825 = vmatpush1.bf16.msra.mxu0 %v538
  %1826 = vmatprep.subr.bf16.mxu0 %v535
  %1827 = vmatpush1.bf16.msra.mxu0 %v534
  %1828 = vmatprep.subr.bf16.mxu0 %v531
  %1829 = vmatpush1.bf16.msra.mxu0 %v530
  %1830 = vmatprep.subr.bf16.mxu0 %v527
  %1831 = vmatpush1.bf16.msra.mxu0 %v526
  %1832 = vmatprep.subr.bf16.mxu0 %v523
  %1833 = vmatpush1.bf16.msra.mxu0 %v522
  %1834 = vmatprep.subr.bf16.mxu0 %v519
  %1835 = vmatpush1.bf16.msra.mxu0 %v518
  %1836 = vmatprep.subr.bf16.mxu0 0
  %1837 = vmatpush2.bf16.msra.mxu0 0
  %1838 = vmatprep.subr.bf16.mxu0 0
  %1839 = vmatpush2.bf16.msra.mxu0 0
  %1840 = vmatprep.subr.bf16.mxu0 0
  %1841 = vmatpush2.bf16.msra.mxu0 0
  %1842 = vmatprep.subr.bf16.mxu0 0
  %1843 = vmatpush2.bf16.msra.mxu0 0
  %1844 = vmatprep.subr.bf16.mxu0 0
  %1845 = vmatpush2.bf16.msra.mxu0 0
  %1846 = vmatprep.subr.bf16.mxu0 0
  %1847 = vmatpush2.bf16.msra.mxu0 0
  %1848 = vmatprep.subr.bf16.mxu0 0
  %1849 = vmatpush2.bf16.msra.mxu0 0
  %1850 = vmatprep.subr.bf16.mxu0 0
  %1851 = vmatpush2.bf16.msra.mxu0 0
  %1852 = vmatprep.mubr.bf16.mxu0 0
  %1853 = vmatmul.mubr.bf16.gmra.mxu0 %v1652
  %v1854 = vpop.f32.mrf.mxu0
  %v1855 = vadd.f32 0.0, %v1854
  %v1856 = vpop.f32.mrf.mxu0
  %v1857 = vadd.f32 0.0, %v1856
  %v1858 = vpop.f32.mrf.mxu0
  %v1859 = vpop.f32.mrf.mxu0
  %1860 = vdwg.mxu0
  %v1861 = vadd.f32 %v1775, %v1814
  %v1862 = vadd.f32 %v1776, %v1816
  %v1863 = vadd.f32 %v1777, %v1855
  %v1864 = vadd.f32 %v1778, %v1857
  %v1865 = vxor.u32 %v1861, 2147483648
  %v1866 = vmul.f32 %v1865, 1.442695
  %v1867 = vpow.pop %v1866
  %v1868 = vadd.f32 %v1867, 1.0
  %v1869 = vrcp.pop %v1868
  %v1870 = vmul.f32 1.0, %v1869
  %v1871 = vxor.u32 %v1862, 2147483648
  %v1872 = vmul.f32 %v1871, 1.442695
  %v1873 = vpow.pop %v1872
  %v1874 = vadd.f32 %v1873, 1.0
  %v1875 = vrcp.pop %v1874
  %v1876 = vmul.f32 1.0, %v1875
  %v1877 = vtanh.pop %v1863
  %v1878 = vxor.u32 %v1864, 2147483648
  %v1879 = vmul.f32 %v1878, 1.442695
  %v1880 = vpow.pop %v1879
  %v1881 = vadd.f32 %v1880, 1.0
  %v1882 = vrcp.pop %v1881
  %v1883 = vmul.f32 1.0, %v1882
  %v1884 = vmul.f32 %v1876, %v1646
  %v1885 = vmul.f32 %v1870, %v1877
  %v1886 = vadd.f32 %v1884, %v1885
  %v1887 = vtanh.pop %v1886
  %v1888 = vmul.f32 %v1883, %v1887
  %v1889 = vpack.c.bf16 %v1771, %v1771
  %s1890 = scalar_lea.vmem %s4, 20
  %1891 = vst [vmem:[%s1890] sm:$0xf] %v1889
  %v1892 = vpack.c.bf16 %v1888, %v1888
  %s1893 = scalar_lea.vmem %s55, 8
  %1894 = vst [vmem:[%s1893] sm:$0xf] %v1892
  %s1895 = scalar_lea.vmem %s0, 96
  %v1896 = vld [vmem:[%s1895] sm:$0xff]
  %v1897 = vld [vmem:[%s1895 + $0x8] sm:$0xff]
  %v1898 = vunpack.c.l.bf16 %v1896
  %v1899 = vunpack.c.h.bf16 %v1896
  %v1900 = vunpack.c.l.bf16 %v1897
  %v1901 = vunpack.c.h.bf16 %v1897
  %1902 = vmatprep.subr.bf16.mxu0 %v267
  %1903 = vmatpush1.bf16.msra.mxu0 %v266
  %1904 = vmatprep.subr.bf16.mxu0 %v263
  %1905 = vmatpush1.bf16.msra.mxu0 %v262
  %1906 = vmatprep.subr.bf16.mxu0 %v259
  %1907 = vmatpush1.bf16.msra.mxu0 %v258
  %1908 = vmatprep.subr.bf16.mxu0 %v255
  %1909 = vmatpush1.bf16.msra.mxu0 %v254
  %1910 = vmatprep.subr.bf16.mxu0 %v251
  %1911 = vmatpush1.bf16.msra.mxu0 %v250
  %1912 = vmatprep.subr.bf16.mxu0 %v247
  %1913 = vmatpush1.bf16.msra.mxu0 %v246
  %1914 = vmatprep.subr.bf16.mxu0 %v243
  %1915 = vmatpush1.bf16.msra.mxu0 %v242
  %1916 = vmatprep.subr.bf16.mxu0 %v239
  %1917 = vmatpush1.bf16.msra.mxu0 %v238
  %1918 = vmatprep.subr.bf16.mxu0 0
  %1919 = vmatpush2.bf16.msra.mxu0 0
  %1920 = vmatprep.subr.bf16.mxu0 0
  %1921 = vmatpush2.bf16.msra.mxu0 0
  %1922 = vmatprep.subr.bf16.mxu0 0
  %1923 = vmatpush2.bf16.msra.mxu0 0
  %1924 = vmatprep.subr.bf16.mxu0 0
  %1925 = vmatpush2.bf16.msra.mxu0 0
  %1926 = vmatprep.subr.bf16.mxu0 0
  %1927 = vmatpush2.bf16.msra.mxu0 0
  %1928 = vmatprep.subr.bf16.mxu0 0
  %1929 = vmatpush2.bf16.msra.mxu0 0
  %1930 = vmatprep.subr.bf16.mxu0 0
  %1931 = vmatpush2.bf16.msra.mxu0 0
  %1932 = vmatprep.subr.bf16.mxu0 0
  %1933 = vmatpush2.bf16.msra.mxu0 0
  %1934 = vmatprep.mubr.bf16.mxu0 0
  %1935 = vmatmul.mubr.bf16.gmra.mxu0 %v1889
  %v1936 = vpop.f32.mrf.mxu0
  %v1937 = vadd.f32 0.0, %v1936
  %v1938 = vpop.f32.mrf.mxu0
  %v1939 = vadd.f32 0.0, %v1938
  %v1940 = vpop.f32.mrf.mxu0
  %v1941 = vpop.f32.mrf.mxu0
  %1942 = vdwg.mxu0
  %1943 = vmatprep.subr.bf16.mxu0 %v269
  %1944 = vmatpush1.bf16.msra.mxu0 %v268
  %1945 = vmatprep.subr.bf16.mxu0 %v265
  %1946 = vmatpush1.bf16.msra.mxu0 %v264
  %1947 = vmatprep.subr.bf16.mxu0 %v261
  %1948 = vmatpush1.bf16.msra.mxu0 %v260
  %1949 = vmatprep.subr.bf16.mxu0 %v257
  %1950 = vmatpush1.bf16.msra.mxu0 %v256
  %1951 = vmatprep.subr.bf16.mxu0 %v253
  %1952 = vmatpush1.bf16.msra.mxu0 %v252
  %1953 = vmatprep.subr.bf16.mxu0 %v249
  %1954 = vmatpush1.bf16.msra.mxu0 %v248
  %1955 = vmatprep.subr.bf16.mxu0 %v245
  %1956 = vmatpush1.bf16.msra.mxu0 %v244
  %1957 = vmatprep.subr.bf16.mxu0 %v241
  %1958 = vmatpush1.bf16.msra.mxu0 %v240
  %1959 = vmatprep.subr.bf16.mxu0 0
  %1960 = vmatpush2.bf16.msra.mxu0 0
  %1961 = vmatprep.subr.bf16.mxu0 0
  %1962 = vmatpush2.bf16.msra.mxu0 0
  %1963 = vmatprep.subr.bf16.mxu0 0
  %1964 = vmatpush2.bf16.msra.mxu0 0
  %1965 = vmatprep.subr.bf16.mxu0 0
  %1966 = vmatpush2.bf16.msra.mxu0 0
  %1967 = vmatprep.subr.bf16.mxu0 0
  %1968 = vmatpush2.bf16.msra.mxu0 0
  %1969 = vmatprep.subr.bf16.mxu0 0
  %1970 = vmatpush2.bf16.msra.mxu0 0
  %1971 = vmatprep.subr.bf16.mxu0 0
  %1972 = vmatpush2.bf16.msra.mxu0 0
  %1973 = vmatprep.subr.bf16.mxu0 0
  %1974 = vmatpush2.bf16.msra.mxu0 0
  %1975 = vmatprep.mubr.bf16.mxu0 0
  %1976 = vmatmul.mubr.bf16.gmra.mxu0 %v1889
  %v1977 = vpop.f32.mrf.mxu0
  %v1978 = vadd.f32 0.0, %v1977
  %v1979 = vpop.f32.mrf.mxu0
  %v1980 = vadd.f32 0.0, %v1979
  %v1981 = vpop.f32.mrf.mxu0
  %v1982 = vpop.f32.mrf.mxu0
  %1983 = vdwg.mxu0
  %v1984 = vadd.f32 %v1898, %v1937
  %v1985 = vadd.f32 %v1899, %v1939
  %v1986 = vadd.f32 %v1900, %v1978
  %v1987 = vadd.f32 %v1901, %v1980
  %v1988 = vxor.u32 %v1984, 2147483648
  %v1989 = vmul.f32 %v1988, 1.442695
  %v1990 = vpow.pop %v1989
  %v1991 = vadd.f32 %v1990, 1.0
  %v1992 = vrcp.pop %v1991
  %v1993 = vmul.f32 1.0, %v1992
  %v1994 = vxor.u32 %v1985, 2147483648
  %v1995 = vmul.f32 %v1994, 1.442695
  %v1996 = vpow.pop %v1995
  %v1997 = vadd.f32 %v1996, 1.0
  %v1998 = vrcp.pop %v1997
  %v1999 = vmul.f32 1.0, %v1998
  %v2000 = vtanh.pop %v1986
  %v2001 = vxor.u32 %v1987, 2147483648
  %v2002 = vmul.f32 %v2001, 1.442695
  %v2003 = vpow.pop %v2002
  %v2004 = vadd.f32 %v2003, 1.0
  %v2005 = vrcp.pop %v2004
  %v2006 = vmul.f32 1.0, %v2005
  %v2007 = vmul.f32 %v1999, %v1769
  %v2008 = vmul.f32 %v1993, %v2000
  %v2009 = vadd.f32 %v2007, %v2008
  %v2010 = vtanh.pop %v2009
  %v2011 = vmul.f32 %v2006, %v2010
  %s2012 = scalar_lea.vmem %s47, 16
  %v2013 = vld [vmem:[%s2012] sm:$0xff]
  %v2014 = vld [vmem:[%s2012 + $0x8] sm:$0xff]
  %v2015 = vunpack.c.l.bf16 %v2013
  %v2016 = vunpack.c.h.bf16 %v2013
  %v2017 = vunpack.c.l.bf16 %v2014
  %v2018 = vunpack.c.h.bf16 %v2014
  %2019 = vmatprep.subr.bf16.mxu0 %v545
  %2020 = vmatpush1.bf16.msra.mxu0 %v544
  %2021 = vmatprep.subr.bf16.mxu0 %v541
  %2022 = vmatpush1.bf16.msra.mxu0 %v540
  %2023 = vmatprep.subr.bf16.mxu0 %v537
  %2024 = vmatpush1.bf16.msra.mxu0 %v536
  %2025 = vmatprep.subr.bf16.mxu0 %v533
  %2026 = vmatpush1.bf16.msra.mxu0 %v532
  %2027 = vmatprep.subr.bf16.mxu0 %v529
  %2028 = vmatpush1.bf16.msra.mxu0 %v528
  %2029 = vmatprep.subr.bf16.mxu0 %v525
  %2030 = vmatpush1.bf16.msra.mxu0 %v524
  %2031 = vmatprep.subr.bf16.mxu0 %v521
  %2032 = vmatpush1.bf16.msra.mxu0 %v520
  %2033 = vmatprep.subr.bf16.mxu0 %v517
  %2034 = vmatpush1.bf16.msra.mxu0 %v516
  %2035 = vmatprep.subr.bf16.mxu0 0
  %2036 = vmatpush2.bf16.msra.mxu0 0
  %2037 = vmatprep.subr.bf16.mxu0 0
  %2038 = vmatpush2.bf16.msra.mxu0 0
  %2039 = vmatprep.subr.bf16.mxu0 0
  %2040 = vmatpush2.bf16.msra.mxu0 0
  %2041 = vmatprep.subr.bf16.mxu0 0
  %2042 = vmatpush2.bf16.msra.mxu0 0
  %2043 = vmatprep.subr.bf16.mxu0 0
  %2044 = vmatpush2.bf16.msra.mxu0 0
  %2045 = vmatprep.subr.bf16.mxu0 0
  %2046 = vmatpush2.bf16.msra.mxu0 0
  %2047 = vmatprep.subr.bf16.mxu0 0
  %2048 = vmatpush2.bf16.msra.mxu0 0
  %2049 = vmatprep.subr.bf16.mxu0 0
  %2050 = vmatpush2.bf16.msra.mxu0 0
  %2051 = vmatprep.mubr.bf16.mxu0 0
  %2052 = vmatmul.mubr.bf16.gmra.mxu0 %v1892
  %v2053 = vpop.f32.mrf.mxu0
  %v2054 = vadd.f32 0.0, %v2053
  %v2055 = vpop.f32.mrf.mxu0
  %v2056 = vadd.f32 0.0, %v2055
  %v2057 = vpop.f32.mrf.mxu0
  %v2058 = vpop.f32.mrf.mxu0
  %2059 = vdwg.mxu0
  %2060 = vmatprep.subr.bf16.mxu0 %v547
  %2061 = vmatpush1.bf16.msra.mxu0 %v546
  %2062 = vmatprep.subr.bf16.mxu0 %v543
  %2063 = vmatpush1.bf16.msra.mxu0 %v542
  %2064 = vmatprep.subr.bf16.mxu0 %v539
  %2065 = vmatpush1.bf16.msra.mxu0 %v538
  %2066 = vmatprep.subr.bf16.mxu0 %v535
  %2067 = vmatpush1.bf16.msra.mxu0 %v534
  %2068 = vmatprep.subr.bf16.mxu0 %v531
  %2069 = vmatpush1.bf16.msra.mxu0 %v530
  %2070 = vmatprep.subr.bf16.mxu0 %v527
  %2071 = vmatpush1.bf16.msra.mxu0 %v526
  %2072 = vmatprep.subr.bf16.mxu0 %v523
  %2073 = vmatpush1.bf16.msra.mxu0 %v522
  %2074 = vmatprep.subr.bf16.mxu0 %v519
  %2075 = vmatpush1.bf16.msra.mxu0 %v518
  %2076 = vmatprep.subr.bf16.mxu0 0
  %2077 = vmatpush2.bf16.msra.mxu0 0
  %2078 = vmatprep.subr.bf16.mxu0 0
  %2079 = vmatpush2.bf16.msra.mxu0 0
  %2080 = vmatprep.subr.bf16.mxu0 0
  %2081 = vmatpush2.bf16.msra.mxu0 0
  %2082 = vmatprep.subr.bf16.mxu0 0
  %2083 = vmatpush2.bf16.msra.mxu0 0
  %2084 = vmatprep.subr.bf16.mxu0 0
  %2085 = vmatpush2.bf16.msra.mxu0 0
  %2086 = vmatprep.subr.bf16.mxu0 0
  %2087 = vmatpush2.bf16.msra.mxu0 0
  %2088 = vmatprep.subr.bf16.mxu0 0
  %2089 = vmatpush2.bf16.msra.mxu0 0
  %2090 = vmatprep.subr.bf16.mxu0 0
  %2091 = vmatpush2.bf16.msra.mxu0 0
  %2092 = vmatprep.mubr.bf16.mxu0 0
  %2093 = vmatmul.mubr.bf16.gmra.mxu0 %v1892
  %v2094 = vpop.f32.mrf.mxu0
  %v2095 = vadd.f32 0.0, %v2094
  %v2096 = vpop.f32.mrf.mxu0
  %v2097 = vadd.f32 0.0, %v2096
  %v2098 = vpop.f32.mrf.mxu0
  %v2099 = vpop.f32.mrf.mxu0
  %2100 = vdwg.mxu0
  %v2101 = vadd.f32 %v2015, %v2054
  %v2102 = vadd.f32 %v2016, %v2056
  %v2103 = vadd.f32 %v2017, %v2095
  %v2104 = vadd.f32 %v2018, %v2097
  %v2105 = vxor.u32 %v2101, 2147483648
  %v2106 = vmul.f32 %v2105, 1.442695
  %v2107 = vpow.pop %v2106
  %v2108 = vadd.f32 %v2107, 1.0
  %v2109 = vrcp.pop %v2108
  %v2110 = vmul.f32 1.0, %v2109
  %v2111 = vxor.u32 %v2102, 2147483648
  %v2112 = vmul.f32 %v2111, 1.442695
  %v2113 = vpow.pop %v2112
  %v2114 = vadd.f32 %v2113, 1.0
  %v2115 = vrcp.pop %v2114
  %v2116 = vmul.f32 1.0, %v2115
  %v2117 = vtanh.pop %v2103
  %v2118 = vxor.u32 %v2104, 2147483648
  %v2119 = vmul.f32 %v2118, 1.442695
  %v2120 = vpow.pop %v2119
  %v2121 = vadd.f32 %v2120, 1.0
  %v2122 = vrcp.pop %v2121
  %v2123 = vmul.f32 1.0, %v2122
  %v2124 = vmul.f32 %v2116, %v1886
  %v2125 = vmul.f32 %v2110, %v2117
  %v2126 = vadd.f32 %v2124, %v2125
  %v2127 = vtanh.pop %v2126
  %v2128 = vmul.f32 %v2123, %v2127
  %v2129 = vpack.c.bf16 %v2011, %v2011
  %s2130 = scalar_lea.vmem %s4, 24
  %2131 = vst [vmem:[%s2130] sm:$0xf] %v2129
  %v2132 = vpack.c.bf16 %v2128, %v2128
  %s2133 = scalar_lea.vmem %s55, 4
  %2134 = vst [vmem:[%s2133] sm:$0xf] %v2132
  %s2135 = scalar_lea.vmem %s0, 112
  %v2136 = vld [vmem:[%s2135] sm:$0xff]
  %v2137 = vld [vmem:[%s2135 + $0x8] sm:$0xff]
  %v2138 = vunpack.c.l.bf16 %v2136
  %v2139 = vunpack.c.h.bf16 %v2136
  %v2140 = vunpack.c.l.bf16 %v2137
  %v2141 = vunpack.c.h.bf16 %v2137
  %2142 = vmatprep.subr.bf16.mxu0 %v267
  %2143 = vmatpush1.bf16.msra.mxu0 %v266
  %2144 = vmatprep.subr.bf16.mxu0 %v263
  %2145 = vmatpush1.bf16.msra.mxu0 %v262
  %2146 = vmatprep.subr.bf16.mxu0 %v259
  %2147 = vmatpush1.bf16.msra.mxu0 %v258
  %2148 = vmatprep.subr.bf16.mxu0 %v255
  %2149 = vmatpush1.bf16.msra.mxu0 %v254
  %2150 = vmatprep.subr.bf16.mxu0 %v251
  %2151 = vmatpush1.bf16.msra.mxu0 %v250
  %2152 = vmatprep.subr.bf16.mxu0 %v247
  %2153 = vmatpush1.bf16.msra.mxu0 %v246
  %2154 = vmatprep.subr.bf16.mxu0 %v243
  %2155 = vmatpush1.bf16.msra.mxu0 %v242
  %2156 = vmatprep.subr.bf16.mxu0 %v239
  %2157 = vmatpush1.bf16.msra.mxu0 %v238
  %2158 = vmatprep.subr.bf16.mxu0 0
  %2159 = vmatpush2.bf16.msra.mxu0 0
  %2160 = vmatprep.subr.bf16.mxu0 0
  %2161 = vmatpush2.bf16.msra.mxu0 0
  %2162 = vmatprep.subr.bf16.mxu0 0
  %2163 = vmatpush2.bf16.msra.mxu0 0
  %2164 = vmatprep.subr.bf16.mxu0 0
  %2165 = vmatpush2.bf16.msra.mxu0 0
  %2166 = vmatprep.subr.bf16.mxu0 0
  %2167 = vmatpush2.bf16.msra.mxu0 0
  %2168 = vmatprep.subr.bf16.mxu0 0
  %2169 = vmatpush2.bf16.msra.mxu0 0
  %2170 = vmatprep.subr.bf16.mxu0 0
  %2171 = vmatpush2.bf16.msra.mxu0 0
  %2172 = vmatprep.subr.bf16.mxu0 0
  %2173 = vmatpush2.bf16.msra.mxu0 0
  %2174 = vmatprep.mubr.bf16.mxu0 0
  %2175 = vmatmul.mubr.bf16.gmra.mxu0 %v2129
  %v2176 = vpop.f32.mrf.mxu0
  %v2177 = vadd.f32 0.0, %v2176
  %v2178 = vpop.f32.mrf.mxu0
  %v2179 = vadd.f32 0.0, %v2178
  %v2180 = vpop.f32.mrf.mxu0
  %v2181 = vpop.f32.mrf.mxu0
  %2182 = vdwg.mxu0
  %2183 = vmatprep.subr.bf16.mxu0 %v269
  %2184 = vmatpush1.bf16.msra.mxu0 %v268
  %2185 = vmatprep.subr.bf16.mxu0 %v265
  %2186 = vmatpush1.bf16.msra.mxu0 %v264
  %2187 = vmatprep.subr.bf16.mxu0 %v261
  %2188 = vmatpush1.bf16.msra.mxu0 %v260
  %2189 = vmatprep.subr.bf16.mxu0 %v257
  %2190 = vmatpush1.bf16.msra.mxu0 %v256
  %2191 = vmatprep.subr.bf16.mxu0 %v253
  %2192 = vmatpush1.bf16.msra.mxu0 %v252
  %2193 = vmatprep.subr.bf16.mxu0 %v249
  %2194 = vmatpush1.bf16.msra.mxu0 %v248
  %2195 = vmatprep.subr.bf16.mxu0 %v245
  %2196 = vmatpush1.bf16.msra.mxu0 %v244
  %2197 = vmatprep.subr.bf16.mxu0 %v241
  %2198 = vmatpush1.bf16.msra.mxu0 %v240
  %2199 = vmatprep.subr.bf16.mxu0 0
  %2200 = vmatpush2.bf16.msra.mxu0 0
  %2201 = vmatprep.subr.bf16.mxu0 0
  %2202 = vmatpush2.bf16.msra.mxu0 0
  %2203 = vmatprep.subr.bf16.mxu0 0
  %2204 = vmatpush2.bf16.msra.mxu0 0
  %2205 = vmatprep.subr.bf16.mxu0 0
  %2206 = vmatpush2.bf16.msra.mxu0 0
  %2207 = vmatprep.subr.bf16.mxu0 0
  %2208 = vmatpush2.bf16.msra.mxu0 0
  %2209 = vmatprep.subr.bf16.mxu0 0
  %2210 = vmatpush2.bf16.msra.mxu0 0
  %2211 = vmatprep.subr.bf16.mxu0 0
  %2212 = vmatpush2.bf16.msra.mxu0 0
  %2213 = vmatprep.subr.bf16.mxu0 0
  %2214 = vmatpush2.bf16.msra.mxu0 0
  %2215 = vmatprep.mubr.bf16.mxu0 0
  %2216 = vmatmul.mubr.bf16.gmra.mxu0 %v2129
  %v2217 = vpop.f32.mrf.mxu0
  %v2218 = vadd.f32 0.0, %v2217
  %v2219 = vpop.f32.mrf.mxu0
  %v2220 = vadd.f32 0.0, %v2219
  %v2221 = vpop.f32.mrf.mxu0
  %v2222 = vpop.f32.mrf.mxu0
  %2223 = vdwg.mxu0
  %v2224 = vadd.f32 %v2138, %v2177
  %v2225 = vadd.f32 %v2139, %v2179
  %v2226 = vadd.f32 %v2140, %v2218
  %v2227 = vadd.f32 %v2141, %v2220
  %v2228 = vxor.u32 %v2224, 2147483648
  %v2229 = vmul.f32 %v2228, 1.442695
  %v2230 = vpow.pop %v2229
  %v2231 = vadd.f32 %v2230, 1.0
  %v2232 = vrcp.pop %v2231
  %v2233 = vmul.f32 1.0, %v2232
  %v2234 = vxor.u32 %v2225, 2147483648
  %v2235 = vmul.f32 %v2234, 1.442695
  %v2236 = vpow.pop %v2235
  %v2237 = vadd.f32 %v2236, 1.0
  %v2238 = vrcp.pop %v2237
  %v2239 = vmul.f32 1.0, %v2238
  %v2240 = vtanh.pop %v2226
  %v2241 = vxor.u32 %v2227, 2147483648
  %v2242 = vmul.f32 %v2241, 1.442695
  %v2243 = vpow.pop %v2242
  %v2244 = vadd.f32 %v2243, 1.0
  %v2245 = vrcp.pop %v2244
  %v2246 = vmul.f32 1.0, %v2245
  %v2247 = vmul.f32 %v2239, %v2009
  %v2248 = vmul.f32 %v2233, %v2240
  %v2249 = vadd.f32 %v2247, %v2248
  %v2250 = vtanh.pop %v2249
  %v2251 = vmul.f32 %v2246, %v2250
  %v2252 = vld [vmem:[%s47] sm:$0xff]
  %v2253 = vld [vmem:[%s47 + $0x8] sm:$0xff]
  %v2254 = vunpack.c.l.bf16 %v2252
  %v2255 = vunpack.c.h.bf16 %v2252
  %v2256 = vunpack.c.l.bf16 %v2253
  %v2257 = vunpack.c.h.bf16 %v2253
  %2258 = vmatprep.subr.bf16.mxu0 %v545
  %2259 = vmatpush1.bf16.msra.mxu0 %v544
  %2260 = vmatprep.subr.bf16.mxu0 %v541
  %2261 = vmatpush1.bf16.msra.mxu0 %v540
  %2262 = vmatprep.subr.bf16.mxu0 %v537
  %2263 = vmatpush1.bf16.msra.mxu0 %v536
  %2264 = vmatprep.subr.bf16.mxu0 %v533
  %2265 = vmatpush1.bf16.msra.mxu0 %v532
  %2266 = vmatprep.subr.bf16.mxu0 %v529
  %2267 = vmatpush1.bf16.msra.mxu0 %v528
  %2268 = vmatprep.subr.bf16.mxu0 %v525
  %2269 = vmatpush1.bf16.msra.mxu0 %v524
  %2270 = vmatprep.subr.bf16.mxu0 %v521
  %2271 = vmatpush1.bf16.msra.mxu0 %v520
  %2272 = vmatprep.subr.bf16.mxu0 %v517
  %2273 = vmatpush1.bf16.msra.mxu0 %v516
  %2274 = vmatprep.subr.bf16.mxu0 0
  %2275 = vmatpush2.bf16.msra.mxu0 0
  %2276 = vmatprep.subr.bf16.mxu0 0
  %2277 = vmatpush2.bf16.msra.mxu0 0
  %2278 = vmatprep.subr.bf16.mxu0 0
  %2279 = vmatpush2.bf16.msra.mxu0 0
  %2280 = vmatprep.subr.bf16.mxu0 0
  %2281 = vmatpush2.bf16.msra.mxu0 0
  %2282 = vmatprep.subr.bf16.mxu0 0
  %2283 = vmatpush2.bf16.msra.mxu0 0
  %2284 = vmatprep.subr.bf16.mxu0 0
  %2285 = vmatpush2.bf16.msra.mxu0 0
  %2286 = vmatprep.subr.bf16.mxu0 0
  %2287 = vmatpush2.bf16.msra.mxu0 0
  %2288 = vmatprep.subr.bf16.mxu0 0
  %2289 = vmatpush2.bf16.msra.mxu0 0
  %2290 = vmatprep.mubr.bf16.mxu0 0
  %2291 = vmatmul.mubr.bf16.gmra.mxu0 %v2132
  %v2292 = vpop.f32.mrf.mxu0
  %v2293 = vadd.f32 0.0, %v2292
  %v2294 = vpop.f32.mrf.mxu0
  %v2295 = vadd.f32 0.0, %v2294
  %v2296 = vpop.f32.mrf.mxu0
  %v2297 = vpop.f32.mrf.mxu0
  %2298 = vdwg.mxu0
  %2299 = vmatprep.subr.bf16.mxu0 %v547
  %2300 = vmatpush1.bf16.msra.mxu0 %v546
  %2301 = vmatprep.subr.bf16.mxu0 %v543
  %2302 = vmatpush1.bf16.msra.mxu0 %v542
  %2303 = vmatprep.subr.bf16.mxu0 %v539
  %2304 = vmatpush1.bf16.msra.mxu0 %v538
  %2305 = vmatprep.subr.bf16.mxu0 %v535
  %2306 = vmatpush1.bf16.msra.mxu0 %v534
  %2307 = vmatprep.subr.bf16.mxu0 %v531
  %2308 = vmatpush1.bf16.msra.mxu0 %v530
  %2309 = vmatprep.subr.bf16.mxu0 %v527
  %2310 = vmatpush1.bf16.msra.mxu0 %v526
  %2311 = vmatprep.subr.bf16.mxu0 %v523
  %2312 = vmatpush1.bf16.msra.mxu0 %v522
  %2313 = vmatprep.subr.bf16.mxu0 %v519
  %2314 = vmatpush1.bf16.msra.mxu0 %v518
  %2315 = vmatprep.subr.bf16.mxu0 0
  %2316 = vmatpush2.bf16.msra.mxu0 0
  %2317 = vmatprep.subr.bf16.mxu0 0
  %2318 = vmatpush2.bf16.msra.mxu0 0
  %2319 = vmatprep.subr.bf16.mxu0 0
  %2320 = vmatpush2.bf16.msra.mxu0 0
  %2321 = vmatprep.subr.bf16.mxu0 0
  %2322 = vmatpush2.bf16.msra.mxu0 0
  %2323 = vmatprep.subr.bf16.mxu0 0
  %2324 = vmatpush2.bf16.msra.mxu0 0
  %2325 = vmatprep.subr.bf16.mxu0 0
  %2326 = vmatpush2.bf16.msra.mxu0 0
  %2327 = vmatprep.subr.bf16.mxu0 0
  %2328 = vmatpush2.bf16.msra.mxu0 0
  %2329 = vmatprep.subr.bf16.mxu0 0
  %2330 = vmatpush2.bf16.msra.mxu0 0
  %2331 = vmatprep.mubr.bf16.mxu0 0
  %2332 = vmatmul.mubr.bf16.gmra.mxu0 %v2132
  %v2333 = vpop.f32.mrf.mxu0
  %v2334 = vadd.f32 0.0, %v2333
  %v2335 = vpop.f32.mrf.mxu0
  %v2336 = vadd.f32 0.0, %v2335
  %v2337 = vpop.f32.mrf.mxu0
  %v2338 = vpop.f32.mrf.mxu0
  %2339 = vdwg.mxu0
  %v2340 = vadd.f32 %v2254, %v2293
  %v2341 = vadd.f32 %v2255, %v2295
  %v2342 = vadd.f32 %v2256, %v2334
  %v2343 = vadd.f32 %v2257, %v2336
  %v2344 = vxor.u32 %v2340, 2147483648
  %v2345 = vmul.f32 %v2344, 1.442695
  %v2346 = vpow.pop %v2345
  %v2347 = vadd.f32 %v2346, 1.0
  %v2348 = vrcp.pop %v2347
  %v2349 = vmul.f32 1.0, %v2348
  %v2350 = vxor.u32 %v2341, 2147483648
  %v2351 = vmul.f32 %v2350, 1.442695
  %v2352 = vpow.pop %v2351
  %v2353 = vadd.f32 %v2352, 1.0
  %v2354 = vrcp.pop %v2353
  %v2355 = vmul.f32 1.0, %v2354
  %v2356 = vtanh.pop %v2342
  %v2357 = vxor.u32 %v2343, 2147483648
  %v2358 = vmul.f32 %v2357, 1.442695
  %v2359 = vpow.pop %v2358
  %v2360 = vadd.f32 %v2359, 1.0
  %v2361 = vrcp.pop %v2360
  %v2362 = vmul.f32 1.0, %v2361
  %v2363 = vmul.f32 %v2355, %v2126
  %v2364 = vmul.f32 %v2349, %v2356
  %v2365 = vadd.f32 %v2363, %v2364
  %v2366 = vtanh.pop %v2365
  %v2367 = vmul.f32 %v2362, %v2366
  %v2368 = vpack.c.bf16 %v2251, %v2251
  %s2369 = scalar_lea.vmem %s4, 28
  %2370 = vst [vmem:[%s2369] sm:$0xf] %v2368
  %v2371 = vpack.c.bf16 %v2367, %v2367
  %2372 = vst [vmem:[%s55] sm:$0xf] %v2371
  %2373 = vst [vmem:[#allocation2] sm:$0xff] %v2251
  %2374 = vst [vmem:[#allocation3] sm:$0xff] %v2249
  %2375 = vst [vmem:[#allocation4] sm:$0xff] %v2367
  %2376 = vst [vmem:[#allocation5] sm:$0xff] %v2365
  %s2377 = ssub.s32 0, 0
  %s2378 = smul.u32 8, %s2377
  %p2379 = scmp.lt.s32.totalorder %s2378, 7
  %s2380 = scalar_select %p2379, %s2378, 7
  %s2381 = smul.addr %s2380, 4
  %s2382 = scalar_lea.vmem %s5, %s2381
  // Predicated region
  $region22: #{forward.8} parent=0 // pred_check
    _
  $region23: #{forward.8} parent=0 // pred_check_branch
    %2384 = sbr.rel (0) target = $region25
  $region24: #{forward.8} parent=0 // pred_region
    _
  $region25: #{forward.8} parent=0 // pred_fallthru
    _
  // Predicated region
  $region26: #{forward.8} parent=0 // pred_check
    _
  $region27: #{forward.8} parent=0 // pred_check_branch
    %2386 = sbr.rel (0) target = $region29
  $region28: #{forward.8} parent=0 // pred_region
    %s2387 = ssub.s32 0, 0
    %s2388 = smul.u32 8, %s2387
  $region29: #{forward.8} parent=0 // pred_fallthru
    _
  // Predicated region
  $region30: #{forward.8} parent=0 // pred_check
    _
  $region31: #{forward.8} parent=0 // pred_check_branch
    %2390 = sbr.rel (0) target = $region33
  $region32: #{forward.8} parent=0 // pred_region
    _
  $region33: #{forward.8} parent=0 // pred_fallthru
    _
  // Predicated region
  $region34: #{forward.8} parent=0 // pred_check
    _
  $region35: #{forward.8} parent=0 // pred_check_branch
    %2392 = sbr.rel (0) target = $region37
  $region36: #{forward.8} parent=0 // pred_region
    %s2393 = ssub.s32 0, 0
    %s2394 = smul.u32 8, %s2393
    %p2395 = scmp.lt.s32.totalorder %s2394, 7
    %s2396 = scalar_select %p2395, %s2394, 7
    %s2397 = smul.addr %s2396, 4
    %s2398 = scalar_lea.vmem %s5, %s2397
  $region37: #{forward.8} parent=0 // pred_fallthru
    _

</llo_original>
